<compile_context>
chip_gen: v7x
topology: tpu7x:2x2x1
jax: 0.10.0
libtpu: 0.0.40
codegen_flags: <defaults>
</compile_context>

<pallas_src>
import jax
import jax.numpy as jnp
import numpy as np
from jax.experimental import pallas as pl
from jax.experimental.pallas import tpu as pltpu

NEG_SLOPE = 0.01   # nn.LeakyReLU default
BN_EPS = 1e-5      # nn.BatchNorm3d default
_OFF = 8           # sublane-aligned interior row offset inside padded slabs


def _fused_encoder_kernel(x_ref, w1_ref, b1_ref, w2_ref, b2_ref, out_ref,
                          xp1_ref, xp2_ref, a1_ref, a2_ref):
    """Fused [conv3x3x3 + eval-BN + LeakyReLU] x 2 for one batch element.

    x_ref  : (D, H, W*CinPad)            bf16 input slab (C folded into lanes)
    w1_ref : (9*W*CinPad, W*C1)          bf16 K-concatenated banded weights
    b1_ref : (1, W*C1)                   f32 folded bias (tiled over W)
    w2_ref : (9*W*C1, W*C2)              bf16
    b2_ref : (1, W*C2)                   f32
    out_ref: (D*H, W*C2)                 f32 lane-dense output slab
    xp1_ref: VMEM (D+2, H+16, W*CinPad)  bf16 padded slab, interior at row 8
    xp2_ref: VMEM (D+2, H+16, W*C1)      bf16 padded slab for layer 2
    a1_ref : VMEM (D, H, 9*W*CinPad)     bf16 im2col (K-concatenated taps)
    a2_ref : VMEM (D, H, 9*W*C1)         bf16 im2col for layer 2
    """
    D, H, WCin = x_ref.shape
    WC1 = w1_ref.shape[-1]

    def conv_bn_lrelu(src, xp_ref, a_ref, w_ref, b_ref, wc_in):
        # --- halo zeroing: only the faces the 9 window reads touch ---------
        # (done every step so each megacore's private scratch is always valid)
        zero_plane = jnp.zeros((1,) + tuple(xp_ref.shape[1:]), xp_ref.dtype)
        xp_ref[pl.ds(0, 1), :, :] = zero_plane              # D-face, aligned
        xp_ref[pl.ds(D + 1, 1), :, :] = zero_plane          # D-face, aligned
        zero_row = jnp.zeros((D, 1, wc_in), xp_ref.dtype)
        xp_ref[pl.ds(1, D), pl.ds(_OFF - 1, 1), :] = zero_row   # H halo row
        xp_ref[pl.ds(1, D), pl.ds(_OFF + H, 1), :] = zero_row   # H halo row

        # --- interior write: sublane offset 8 -> unmasked aligned stores ---
        xp_ref[pl.ds(1, D), pl.ds(_OFF, H), :] = src

        # --- im2col: K-concatenate the 9 (kd,kh) shifted windows -----------
        # (writes are lane- and sublane-aligned; only the reads are shifted)
        for kd in range(3):
            for kh in range(3):
                t = kd * 3 + kh
                a_ref[:, :, pl.ds(t * wc_in, wc_in)] = \
                    xp_ref[pl.ds(kd, D), pl.ds(_OFF - 1 + kh, H), :]

        # --- single MXU matmul: bf16 operands, f32 accumulation ------------
        a = a_ref[...].reshape(D * H, 9 * wc_in)
        y = jnp.dot(a, w_ref[...], preferred_element_type=jnp.float32)
        y = y + b_ref[...]                                   # folded bias (f32)
        return jnp.where(y >= 0, y, NEG_SLOPE * y)           # LeakyReLU (f32)

    # ---------------- layer 1 ----------------------------------------------
    y1 = conv_bn_lrelu(x_ref[...], xp1_ref, a1_ref, w1_ref, b1_ref, WCin)

    # ---------------- layer 2: intermediate stays in VMEM (bf16) -----------
    y1_b = y1.reshape(D, H, WC1).astype(xp2_ref.dtype)
    y2 = conv_bn_lrelu(y1_b, xp2_ref, a2_ref, w2_ref, b2_ref, WC1)

    # Dropout3d: identity in eval mode.
    out_ref[...] = y2.astype(out_ref.dtype)


def _w_selector(W):
    """sel[kw, wi, wo] = 1 iff wi == wo + kw - 1 and 0 <= wi < W (pad=1)."""
    sel = np.zeros((3, W, W), np.float32)
    for kw in range(3):
        for wo in range(W):
            wi = wo + kw - 1
            if 0 <= wi < W:
                sel[kw, wi, wo] = 1.0
    return jnp.asarray(sel)


def _fold_layer(raw, W, cin_pad):
    """Fold conv bias + eval BN into K-concatenated banded weights + bias.

    Returns:
      band: (9*W*cin_pad, W*Cout) bf16.  K index = tap*(W*cin_pad)+wi*cin_pad+ci
            matches the kernel's im2col column ordering; the kw taps and the
            W zero-padding are encoded in the band structure; BN scale folded.
      bias: (1, W*Cout) f32 folded bias tiled so lane = w*Cout + co.
    """
    wt = raw["weight"]                                        # (Cout,Cin,3,3,3)
    cout, cin = wt.shape[0], wt.shape[1]
    if cin_pad > cin:                                         # zero rows for
        wt = jnp.pad(wt, ((0, 0), (0, cin_pad - cin),         # padded channels
                          (0, 0), (0, 0), (0, 0)))
    wt = jnp.transpose(wt, (2, 3, 4, 1, 0))                   # (3,3,3,CinP,Cout)
    inv_std = raw["gamma"] / jnp.sqrt(raw["var"] + BN_EPS)    # (Cout,)
    wt = wt * inv_std                                         # fold BN scale
    sel = _w_selector(W)                                      # (3, W, W)
    # band[kd,kh,wi,ci,wo,co] = wt[kd, kh, wi-wo+1, ci, co] (0 if tap invalid)
    band = jnp.einsum("kio,abkcd->abicod", sel, wt)           # (3,3,W,CinP,W,Cout)
    band = band.reshape(9 * W * cin_pad, W * cout).astype(jnp.bfloat16)
    bias = raw["beta"] + inv_std * (raw["bias"] - raw["mean"])
    bias_tiled = jnp.tile(bias, W).reshape(1, W * cout)       # f32
    return band, bias_tiled


def encoder_forward(x_ncdhw, raw_params):
    """ConvBNLeakyReLUEncoder3D.forward (eval mode), NCDHW in/out."""
    N, Cin, D, H, W = x_ncdhw.shape
    C1 = raw_params[0]["weight"].shape[0]
    C2 = raw_params[1]["weight"].shape[0]

    # Pad Cin so the layer-1 lane dim W*CinPad fills full 128-lane vregs.
    cin_pad = Cin if W * Cin >= 128 else max(Cin, -(-128 // W))

    x = jnp.transpose(x_ncdhw, (0, 2, 3, 4, 1))               # NDHWC
    if cin_pad > Cin:
        x = jnp.pad(x, ((0, 0), (0, 0), (0, 0), (0, 0), (0, cin_pad - Cin)))
    x = x.reshape(N, D, H, W * cin_pad).astype(jnp.bfloat16)  # bf16 DMA

    w1, b1 = _fold_layer(raw_params[0], W, cin_pad)
    w2, b2 = _fold_layer(raw_params[1], W, C1)

    # Executed (banded, channel-padded) MXU flops — not the logical conv flops.
    flops = 2 * N * D * H * ((9 * W * cin_pad) * (W * C1)
                             + (9 * W * C1) * (W * C2))
    bytes_accessed = (2 * x.size + 2 * (w1.size + w2.size)
                      + 4 * (b1.size + b2.size) + 4 * N * D * H * W * C2)

    out2d = pl.pallas_call(
        _fused_encoder_kernel,
        out_shape=jax.ShapeDtypeStruct((N, D * H, W * C2), jnp.float32),
        grid=(N,),
        in_specs=[
            pl.BlockSpec((None, D, H, W * cin_pad), lambda n: (n, 0, 0, 0)),
            pl.BlockSpec((9 * W * cin_pad, W * C1), lambda n: (0, 0)),
            pl.BlockSpec((1, W * C1), lambda n: (0, 0)),
            pl.BlockSpec((9 * W * C1, W * C2), lambda n: (0, 0)),
            pl.BlockSpec((1, W * C2), lambda n: (0, 0)),
        ],
        out_specs=pl.BlockSpec((None, D * H, W * C2), lambda n: (n, 0, 0)),
        scratch_shapes=[
            pltpu.VMEM((D + 2, H + 16, W * cin_pad), jnp.bfloat16),  # xp1
            pltpu.VMEM((D + 2, H + 16, W * C1), jnp.bfloat16),       # xp2
            pltpu.VMEM((D, H, 9 * W * cin_pad), jnp.bfloat16),       # im2col 1
            pltpu.VMEM((D, H, 9 * W * C1), jnp.bfloat16),            # im2col 2
        ],
        compiler_params=pltpu.CompilerParams(
            dimension_semantics=("parallel",),
            vmem_limit_bytes=32 * 1024 * 1024),
        cost_estimate=pl.CostEstimate(
            flops=int(flops), transcendentals=0,
            bytes_accessed=int(bytes_accessed)),
    )(x, w1, b1, w2, b2)

    out = out2d.reshape(N, D, H, W, C2)
    return jnp.transpose(out, (0, 4, 1, 2, 3))                # -> NCDHW


def _init_params(key, in_channels, out_channels):
    """Deterministic synthetic parameters (conv + BN) for both layers."""
    params = []
    cin = in_channels
    for i in range(2):
        k = jax.random.fold_in(key, i)
        kw, kb, kg, kbeta, km, kv = jax.random.split(k, 6)
        params.append({
            "weight": 0.1 * jax.random.normal(
                kw, (out_channels, cin, 3, 3, 3), jnp.float32),
            "bias": 0.05 * jax.random.normal(kb, (out_channels,), jnp.float32),
            "gamma": 1.0 + 0.1 * jax.random.normal(kg, (out_channels,), jnp.float32),
            "beta": 0.1 * jax.random.normal(kbeta, (out_channels,), jnp.float32),
            "mean": 0.1 * jax.random.normal(km, (out_channels,), jnp.float32),
            "var": 0.5 + jnp.abs(jax.random.normal(kv, (out_channels,), jnp.float32)),
        })
        cin = out_channels
    return params


def _reference(x_ncdhw, raw_params):
    """Pure-JAX f32 reference (lax conv) for correctness checking."""
    x = x_ncdhw
    for p in raw_params:
        x = jax.lax.conv_general_dilated(
            x, p["weight"], window_strides=(1, 1, 1),
            padding=((1, 1), (1, 1), (1, 1)),
            dimension_numbers=("NCDHW", "OIDHW", "NCDHW"))
        x = x + p["bias"][None, :, None, None, None]
        inv = (p["gamma"] / jnp.sqrt(p["var"] + BN_EPS))[None, :, None, None, None]
        x = (x - p["mean"][None, :, None, None, None]) * inv \
            + p["beta"][None, :, None, None, None]
        x = jnp.where(x >= 0, x, NEG_SLOPE * x)
    return x


if __name__ == "__main__":
    key = jax.random.PRNGKey(0)
    kx, kp = jax.random.split(key)

    # spatial=16, out_channels=8 -> output lane dim W*Cout = 128 (lane dense);
    # in_channels=4 is zero-padded to 8 so the layer-1 lane dim is also 128.
    batch, in_channels, out_channels, spatial = 2, 4, 8, 16
    x = jax.random.normal(
        kx, (batch, in_channels, spatial, spatial, spatial), jnp.float32)

    params = _init_params(kp, in_channels, out_channels)

    out = jax.block_until_ready(encoder_forward(x, params))
    ref = jax.block_until_ready(_reference(x, params))

    assert out.shape == (batch, out_channels, spatial, spatial, spatial)
    # bf16 MXU operands (f32 accumulation) => looser tolerance than pure f32.
    np.testing.assert_allclose(np.asarray(out), np.asarray(ref),
                               rtol=5e-2, atol=5e-2)
    print("KERNEL_OK")
</pallas_src>

<mosaic_0001>
module attributes {stable_mosaic.version = 11 : i64} {
  func.func @_fused_encoder_kernel(%arg0: i32, %arg1: memref<1x16x16x128xbf16, #tpu.memory_space<vmem>>, %arg2: memref<1152x128xbf16, #tpu.memory_space<vmem>>, %arg3: memref<1x128xf32, #tpu.memory_space<vmem>>, %arg4: memref<1152x128xbf16, #tpu.memory_space<vmem>>, %arg5: memref<1x128xf32, #tpu.memory_space<vmem>>, %arg6: memref<1x256x128xf32, #tpu.memory_space<vmem>>, %arg7: memref<18x32x128xbf16, #tpu.memory_space<vmem>>, %arg8: memref<18x32x128xbf16, #tpu.memory_space<vmem>>, %arg9: memref<16x16x1152xbf16, #tpu.memory_space<vmem>>, %arg10: memref<16x16x1152xbf16, #tpu.memory_space<vmem>>) attributes {dimension_semantics = [#tpu.dimension_semantics<parallel>], iteration_bounds = array<i64: 2>, scalar_prefetch = 0 : i64, scratch_operands = 4 : i64, tpu.core_type = #tpu.core_type<tc>, window_params = [{transform_indices = @transform_0, window_bounds = array<i64: 1, 16, 16, 128>}, {pipeline_mode = #tpu.pipeline_mode<synchronous>, transform_indices = @transform_1, window_bounds = array<i64: 1152, 128>}, {pipeline_mode = #tpu.pipeline_mode<synchronous>, transform_indices = @transform_2, window_bounds = array<i64: 1, 128>}, {pipeline_mode = #tpu.pipeline_mode<synchronous>, transform_indices = @transform_3, window_bounds = array<i64: 1152, 128>}, {pipeline_mode = #tpu.pipeline_mode<synchronous>, transform_indices = @transform_4, window_bounds = array<i64: 1, 128>}, {transform_indices = @transform_5, window_bounds = array<i64: 1, 256, 128>}]} {
    %c0 = arith.constant 0 : index
    %c0_0 = arith.constant 0 : index
    %c0_1 = arith.constant 0 : index
    %c0_2 = arith.constant 0 : index
    %0 = vector.load %arg1[%c0, %c0_0, %c0_1, %c0_2] : memref<1x16x16x128xbf16, #tpu.memory_space<vmem>>, vector<1x16x16x128xbf16>
    %1 = vector.shape_cast %0 : vector<1x16x16x128xbf16> to vector<16x16x128xbf16>
    %cst = arith.constant 0.000000e+00 : bf16
    %2 = vector.broadcast %cst : bf16 to vector<1x32x128xbf16>
    %c0_3 = arith.constant 0 : index
    %c0_4 = arith.constant 0 : index
    %c0_5 = arith.constant 0 : index
    %3 = vector.load %arg7[%c0_3, %c0_4, %c0_5] : memref<18x32x128xbf16, #tpu.memory_space<vmem>>, vector<1x32x128xbf16>
    tpu.vector_store %arg7[%c0_3, %c0_4, %c0_5], %2 {strides = array<i32>} : memref<18x32x128xbf16, #tpu.memory_space<vmem>>, vector<1x32x128xbf16>,
    %c17 = arith.constant 17 : index
    %c0_6 = arith.constant 0 : index
    %c0_7 = arith.constant 0 : index
    %4 = vector.load %arg7[%c17, %c0_6, %c0_7] : memref<18x32x128xbf16, #tpu.memory_space<vmem>>, vector<1x32x128xbf16>
    tpu.vector_store %arg7[%c17, %c0_6, %c0_7], %2 {strides = array<i32>} : memref<18x32x128xbf16, #tpu.memory_space<vmem>>, vector<1x32x128xbf16>,
    %cst_8 = arith.constant 0.000000e+00 : bf16
    %5 = vector.broadcast %cst_8 : bf16 to vector<16x1x128xbf16>
    %c1 = arith.constant 1 : index
    %c7 = arith.constant 7 : index
    %c0_9 = arith.constant 0 : index
    %6 = vector.load %arg7[%c1, %c7, %c0_9] : memref<18x32x128xbf16, #tpu.memory_space<vmem>>, vector<16x1x128xbf16>
    tpu.vector_store %arg7[%c1, %c7, %c0_9], %5 {strides = array<i32>} : memref<18x32x128xbf16, #tpu.memory_space<vmem>>, vector<16x1x128xbf16>,
    %c1_10 = arith.constant 1 : index
    %c24 = arith.constant 24 : index
    %c0_11 = arith.constant 0 : index
    %7 = vector.load %arg7[%c1_10, %c24, %c0_11] : memref<18x32x128xbf16, #tpu.memory_space<vmem>>, vector<16x1x128xbf16>
    tpu.vector_store %arg7[%c1_10, %c24, %c0_11], %5 {strides = array<i32>} : memref<18x32x128xbf16, #tpu.memory_space<vmem>>, vector<16x1x128xbf16>,
    %c1_12 = arith.constant 1 : index
    %c8 = arith.constant 8 : index
    %c0_13 = arith.constant 0 : index
    %8 = vector.load %arg7[%c1_12, %c8, %c0_13] : memref<18x32x128xbf16, #tpu.memory_space<vmem>>, vector<16x16x128xbf16>
    tpu.vector_store %arg7[%c1_12, %c8, %c0_13], %1 {strides = array<i32>} : memref<18x32x128xbf16, #tpu.memory_space<vmem>>, vector<16x16x128xbf16>,
    %c0_14 = arith.constant 0 : index
    %c7_15 = arith.constant 7 : index
    %c0_16 = arith.constant 0 : index
    %9 = vector.load %arg7[%c0_14, %c7_15, %c0_16] : memref<18x32x128xbf16, #tpu.memory_space<vmem>>, vector<16x16x128xbf16>
    %c0_17 = arith.constant 0 : index
    %c0_18 = arith.constant 0 : index
    %c0_19 = arith.constant 0 : index
    %10 = vector.load %arg9[%c0_17, %c0_18, %c0_19] : memref<16x16x1152xbf16, #tpu.memory_space<vmem>>, vector<16x16x128xbf16>
    tpu.vector_store %arg9[%c0_17, %c0_18, %c0_19], %9 {strides = array<i32>} : memref<16x16x1152xbf16, #tpu.memory_space<vmem>>, vector<16x16x128xbf16>,
    %c0_20 = arith.constant 0 : index
    %c8_21 = arith.constant 8 : index
    %c0_22 = arith.constant 0 : index
    %11 = vector.load %arg7[%c0_20, %c8_21, %c0_22] : memref<18x32x128xbf16, #tpu.memory_space<vmem>>, vector<16x16x128xbf16>
    %c0_23 = arith.constant 0 : index
    %c0_24 = arith.constant 0 : index
    %c128 = arith.constant 128 : index
    %12 = vector.load %arg9[%c0_23, %c0_24, %c128] : memref<16x16x1152xbf16, #tpu.memory_space<vmem>>, vector<16x16x128xbf16>
    tpu.vector_store %arg9[%c0_23, %c0_24, %c128], %11 {strides = array<i32>} : memref<16x16x1152xbf16, #tpu.memory_space<vmem>>, vector<16x16x128xbf16>,
    %c0_25 = arith.constant 0 : index
    %c9 = arith.constant 9 : index
    %c0_26 = arith.constant 0 : index
    %13 = vector.load %arg7[%c0_25, %c9, %c0_26] : memref<18x32x128xbf16, #tpu.memory_space<vmem>>, vector<16x16x128xbf16>
    %c0_27 = arith.constant 0 : index
    %c0_28 = arith.constant 0 : index
    %c256 = arith.constant 256 : index
    %14 = vector.load %arg9[%c0_27, %c0_28, %c256] : memref<16x16x1152xbf16, #tpu.memory_space<vmem>>, vector<16x16x128xbf16>
    tpu.vector_store %arg9[%c0_27, %c0_28, %c256], %13 {strides = array<i32>} : memref<16x16x1152xbf16, #tpu.memory_space<vmem>>, vector<16x16x128xbf16>,
    %c1_29 = arith.constant 1 : index
    %c7_30 = arith.constant 7 : index
    %c0_31 = arith.constant 0 : index
    %15 = vector.load %arg7[%c1_29, %c7_30, %c0_31] : memref<18x32x128xbf16, #tpu.memory_space<vmem>>, vector<16x16x128xbf16>
    %c0_32 = arith.constant 0 : index
    %c0_33 = arith.constant 0 : index
    %c384 = arith.constant 384 : index
    %16 = vector.load %arg9[%c0_32, %c0_33, %c384] : memref<16x16x1152xbf16, #tpu.memory_space<vmem>>, vector<16x16x128xbf16>
    tpu.vector_store %arg9[%c0_32, %c0_33, %c384], %15 {strides = array<i32>} : memref<16x16x1152xbf16, #tpu.memory_space<vmem>>, vector<16x16x128xbf16>,
    %c1_34 = arith.constant 1 : index
    %c8_35 = arith.constant 8 : index
    %c0_36 = arith.constant 0 : index
    %17 = vector.load %arg7[%c1_34, %c8_35, %c0_36] : memref<18x32x128xbf16, #tpu.memory_space<vmem>>, vector<16x16x128xbf16>
    %c0_37 = arith.constant 0 : index
    %c0_38 = arith.constant 0 : index
    %c512 = arith.constant 512 : index
    %18 = vector.load %arg9[%c0_37, %c0_38, %c512] : memref<16x16x1152xbf16, #tpu.memory_space<vmem>>, vector<16x16x128xbf16>
    tpu.vector_store %arg9[%c0_37, %c0_38, %c512], %17 {strides = array<i32>} : memref<16x16x1152xbf16, #tpu.memory_space<vmem>>, vector<16x16x128xbf16>,
    %c1_39 = arith.constant 1 : index
    %c9_40 = arith.constant 9 : index
    %c0_41 = arith.constant 0 : index
    %19 = vector.load %arg7[%c1_39, %c9_40, %c0_41] : memref<18x32x128xbf16, #tpu.memory_space<vmem>>, vector<16x16x128xbf16>
    %c0_42 = arith.constant 0 : index
    %c0_43 = arith.constant 0 : index
    %c640 = arith.constant 640 : index
    %20 = vector.load %arg9[%c0_42, %c0_43, %c640] : memref<16x16x1152xbf16, #tpu.memory_space<vmem>>, vector<16x16x128xbf16>
    tpu.vector_store %arg9[%c0_42, %c0_43, %c640], %19 {strides = array<i32>} : memref<16x16x1152xbf16, #tpu.memory_space<vmem>>, vector<16x16x128xbf16>,
    %c2 = arith.constant 2 : index
    %c7_44 = arith.constant 7 : index
    %c0_45 = arith.constant 0 : index
    %21 = vector.load %arg7[%c2, %c7_44, %c0_45] : memref<18x32x128xbf16, #tpu.memory_space<vmem>>, vector<16x16x128xbf16>
    %c0_46 = arith.constant 0 : index
    %c0_47 = arith.constant 0 : index
    %c768 = arith.constant 768 : index
    %22 = vector.load %arg9[%c0_46, %c0_47, %c768] : memref<16x16x1152xbf16, #tpu.memory_space<vmem>>, vector<16x16x128xbf16>
    tpu.vector_store %arg9[%c0_46, %c0_47, %c768], %21 {strides = array<i32>} : memref<16x16x1152xbf16, #tpu.memory_space<vmem>>, vector<16x16x128xbf16>,
    %c2_48 = arith.constant 2 : index
    %c8_49 = arith.constant 8 : index
    %c0_50 = arith.constant 0 : index
    %23 = vector.load %arg7[%c2_48, %c8_49, %c0_50] : memref<18x32x128xbf16, #tpu.memory_space<vmem>>, vector<16x16x128xbf16>
    %c0_51 = arith.constant 0 : index
    %c0_52 = arith.constant 0 : index
    %c896 = arith.constant 896 : index
    %24 = vector.load %arg9[%c0_51, %c0_52, %c896] : memref<16x16x1152xbf16, #tpu.memory_space<vmem>>, vector<16x16x128xbf16>
    tpu.vector_store %arg9[%c0_51, %c0_52, %c896], %23 {strides = array<i32>} : memref<16x16x1152xbf16, #tpu.memory_space<vmem>>, vector<16x16x128xbf16>,
    %c2_53 = arith.constant 2 : index
    %c9_54 = arith.constant 9 : index
    %c0_55 = arith.constant 0 : index
    %25 = vector.load %arg7[%c2_53, %c9_54, %c0_55] : memref<18x32x128xbf16, #tpu.memory_space<vmem>>, vector<16x16x128xbf16>
    %c0_56 = arith.constant 0 : index
    %c0_57 = arith.constant 0 : index
    %c1024 = arith.constant 1024 : index
    %26 = vector.load %arg9[%c0_56, %c0_57, %c1024] : memref<16x16x1152xbf16, #tpu.memory_space<vmem>>, vector<16x16x128xbf16>
    tpu.vector_store %arg9[%c0_56, %c0_57, %c1024], %25 {strides = array<i32>} : memref<16x16x1152xbf16, #tpu.memory_space<vmem>>, vector<16x16x128xbf16>,
    %c0_58 = arith.constant 0 : index
    %c0_59 = arith.constant 0 : index
    %c0_60 = arith.constant 0 : index
    %27 = vector.load %arg9[%c0_58, %c0_59, %c0_60] : memref<16x16x1152xbf16, #tpu.memory_space<vmem>>, vector<16x16x1152xbf16>
    %28 = vector.shape_cast %27 : vector<16x16x1152xbf16> to vector<256x1152xbf16>
    %c0_61 = arith.constant 0 : index
    %c0_62 = arith.constant 0 : index
    %29 = vector.load %arg2[%c0_61, %c0_62] : memref<1152x128xbf16, #tpu.memory_space<vmem>>, vector<1152x128xbf16>
    %cst_63 = arith.constant dense<0.000000e+00> : vector<256x128xf32>
    %30 = tpu.matmul %28, %29, %cst_63 {dimension_numbers = #tpu.dot_dimension_numbers<[1], [0], [0], [1], [0, 0, 1, 1], [], []>} : vector<256x1152xbf16>, vector<1152x128xbf16>, vector<256x128xf32> -> vector<256x128xf32>
    %c0_64 = arith.constant 0 : index
    %c0_65 = arith.constant 0 : index
    %31 = vector.load %arg3[%c0_64, %c0_65] : memref<1x128xf32, #tpu.memory_space<vmem>>, vector<1x128xf32>
    %32 = vector.broadcast %31 : vector<1x128xf32> to vector<256x128xf32>
    %33 = arith.addf %30, %32 : vector<256x128xf32>
    %cst_66 = arith.constant 0.000000e+00 : f32
    %34 = vector.broadcast %cst_66 : f32 to vector<256x128xf32>
    %35 = arith.cmpf oge, %33, %34 : vector<256x128xf32>
    %cst_67 = arith.constant 0.00999999977 : f32
    %36 = vector.broadcast %cst_67 : f32 to vector<256x128xf32>
    %37 = arith.mulf %36, %33 : vector<256x128xf32>
    %38 = arith.select %35, %33, %37 : vector<256x128xi1>, vector<256x128xf32>
    %39 = vector.shape_cast %38 : vector<256x128xf32> to vector<16x16x128xf32>
    %40 = arith.truncf %39 : vector<16x16x128xf32> to vector<16x16x128xbf16>
    %cst_68 = arith.constant 0.000000e+00 : bf16
    %41 = vector.broadcast %cst_68 : bf16 to vector<1x32x128xbf16>
    %c0_69 = arith.constant 0 : index
    %c0_70 = arith.constant 0 : index
    %c0_71 = arith.constant 0 : index
    %42 = vector.load %arg8[%c0_69, %c0_70, %c0_71] : memref<18x32x128xbf16, #tpu.memory_space<vmem>>, vector<1x32x128xbf16>
    tpu.vector_store %arg8[%c0_69, %c0_70, %c0_71], %41 {strides = array<i32>} : memref<18x32x128xbf16, #tpu.memory_space<vmem>>, vector<1x32x128xbf16>,
    %c17_72 = arith.constant 17 : index
    %c0_73 = arith.constant 0 : index
    %c0_74 = arith.constant 0 : index
    %43 = vector.load %arg8[%c17_72, %c0_73, %c0_74] : memref<18x32x128xbf16, #tpu.memory_space<vmem>>, vector<1x32x128xbf16>
    tpu.vector_store %arg8[%c17_72, %c0_73, %c0_74], %41 {strides = array<i32>} : memref<18x32x128xbf16, #tpu.memory_space<vmem>>, vector<1x32x128xbf16>,
    %cst_75 = arith.constant 0.000000e+00 : bf16
    %44 = vector.broadcast %cst_75 : bf16 to vector<16x1x128xbf16>
    %c1_76 = arith.constant 1 : index
    %c7_77 = arith.constant 7 : index
    %c0_78 = arith.constant 0 : index
    %45 = vector.load %arg8[%c1_76, %c7_77, %c0_78] : memref<18x32x128xbf16, #tpu.memory_space<vmem>>, vector<16x1x128xbf16>
    tpu.vector_store %arg8[%c1_76, %c7_77, %c0_78], %44 {strides = array<i32>} : memref<18x32x128xbf16, #tpu.memory_space<vmem>>, vector<16x1x128xbf16>,
    %c1_79 = arith.constant 1 : index
    %c24_80 = arith.constant 24 : index
    %c0_81 = arith.constant 0 : index
    %46 = vector.load %arg8[%c1_79, %c24_80, %c0_81] : memref<18x32x128xbf16, #tpu.memory_space<vmem>>, vector<16x1x128xbf16>
    tpu.vector_store %arg8[%c1_79, %c24_80, %c0_81], %44 {strides = array<i32>} : memref<18x32x128xbf16, #tpu.memory_space<vmem>>, vector<16x1x128xbf16>,
    %c1_82 = arith.constant 1 : index
    %c8_83 = arith.constant 8 : index
    %c0_84 = arith.constant 0 : index
    %47 = vector.load %arg8[%c1_82, %c8_83, %c0_84] : memref<18x32x128xbf16, #tpu.memory_space<vmem>>, vector<16x16x128xbf16>
    tpu.vector_store %arg8[%c1_82, %c8_83, %c0_84], %40 {strides = array<i32>} : memref<18x32x128xbf16, #tpu.memory_space<vmem>>, vector<16x16x128xbf16>,
    %c0_85 = arith.constant 0 : index
    %c7_86 = arith.constant 7 : index
    %c0_87 = arith.constant 0 : index
    %48 = vector.load %arg8[%c0_85, %c7_86, %c0_87] : memref<18x32x128xbf16, #tpu.memory_space<vmem>>, vector<16x16x128xbf16>
    %c0_88 = arith.constant 0 : index
    %c0_89 = arith.constant 0 : index
    %c0_90 = arith.constant 0 : index
    %49 = vector.load %arg10[%c0_88, %c0_89, %c0_90] : memref<16x16x1152xbf16, #tpu.memory_space<vmem>>, vector<16x16x128xbf16>
    tpu.vector_store %arg10[%c0_88, %c0_89, %c0_90], %48 {strides = array<i32>} : memref<16x16x1152xbf16, #tpu.memory_space<vmem>>, vector<16x16x128xbf16>,
    %c0_91 = arith.constant 0 : index
    %c8_92 = arith.constant 8 : index
    %c0_93 = arith.constant 0 : index
    %50 = vector.load %arg8[%c0_91, %c8_92, %c0_93] : memref<18x32x128xbf16, #tpu.memory_space<vmem>>, vector<16x16x128xbf16>
    %c0_94 = arith.constant 0 : index
    %c0_95 = arith.constant 0 : index
    %c128_96 = arith.constant 128 : index
    %51 = vector.load %arg10[%c0_94, %c0_95, %c128_96] : memref<16x16x1152xbf16, #tpu.memory_space<vmem>>, vector<16x16x128xbf16>
    tpu.vector_store %arg10[%c0_94, %c0_95, %c128_96], %50 {strides = array<i32>} : memref<16x16x1152xbf16, #tpu.memory_space<vmem>>, vector<16x16x128xbf16>,
    %c0_97 = arith.constant 0 : index
    %c9_98 = arith.constant 9 : index
    %c0_99 = arith.constant 0 : index
    %52 = vector.load %arg8[%c0_97, %c9_98, %c0_99] : memref<18x32x128xbf16, #tpu.memory_space<vmem>>, vector<16x16x128xbf16>
    %c0_100 = arith.constant 0 : index
    %c0_101 = arith.constant 0 : index
    %c256_102 = arith.constant 256 : index
    %53 = vector.load %arg10[%c0_100, %c0_101, %c256_102] : memref<16x16x1152xbf16, #tpu.memory_space<vmem>>, vector<16x16x128xbf16>
    tpu.vector_store %arg10[%c0_100, %c0_101, %c256_102], %52 {strides = array<i32>} : memref<16x16x1152xbf16, #tpu.memory_space<vmem>>, vector<16x16x128xbf16>,
    %c1_103 = arith.constant 1 : index
    %c7_104 = arith.constant 7 : index
    %c0_105 = arith.constant 0 : index
    %54 = vector.load %arg8[%c1_103, %c7_104, %c0_105] : memref<18x32x128xbf16, #tpu.memory_space<vmem>>, vector<16x16x128xbf16>
    %c0_106 = arith.constant 0 : index
    %c0_107 = arith.constant 0 : index
    %c384_108 = arith.constant 384 : index
    %55 = vector.load %arg10[%c0_106, %c0_107, %c384_108] : memref<16x16x1152xbf16, #tpu.memory_space<vmem>>, vector<16x16x128xbf16>
    tpu.vector_store %arg10[%c0_106, %c0_107, %c384_108], %54 {strides = array<i32>} : memref<16x16x1152xbf16, #tpu.memory_space<vmem>>, vector<16x16x128xbf16>,
    %c1_109 = arith.constant 1 : index
    %c8_110 = arith.constant 8 : index
    %c0_111 = arith.constant 0 : index
    %56 = vector.load %arg8[%c1_109, %c8_110, %c0_111] : memref<18x32x128xbf16, #tpu.memory_space<vmem>>, vector<16x16x128xbf16>
    %c0_112 = arith.constant 0 : index
    %c0_113 = arith.constant 0 : index
    %c512_114 = arith.constant 512 : index
    %57 = vector.load %arg10[%c0_112, %c0_113, %c512_114] : memref<16x16x1152xbf16, #tpu.memory_space<vmem>>, vector<16x16x128xbf16>
    tpu.vector_store %arg10[%c0_112, %c0_113, %c512_114], %56 {strides = array<i32>} : memref<16x16x1152xbf16, #tpu.memory_space<vmem>>, vector<16x16x128xbf16>,
    %c1_115 = arith.constant 1 : index
    %c9_116 = arith.constant 9 : index
    %c0_117 = arith.constant 0 : index
    %58 = vector.load %arg8[%c1_115, %c9_116, %c0_117] : memref<18x32x128xbf16, #tpu.memory_space<vmem>>, vector<16x16x128xbf16>
    %c0_118 = arith.constant 0 : index
    %c0_119 = arith.constant 0 : index
    %c640_120 = arith.constant 640 : index
    %59 = vector.load %arg10[%c0_118, %c0_119, %c640_120] : memref<16x16x1152xbf16, #tpu.memory_space<vmem>>, vector<16x16x128xbf16>
    tpu.vector_store %arg10[%c0_118, %c0_119, %c640_120], %58 {strides = array<i32>} : memref<16x16x1152xbf16, #tpu.memory_space<vmem>>, vector<16x16x128xbf16>,
    %c2_121 = arith.constant 2 : index
    %c7_122 = arith.constant 7 : index
    %c0_123 = arith.constant 0 : index
    %60 = vector.load %arg8[%c2_121, %c7_122, %c0_123] : memref<18x32x128xbf16, #tpu.memory_space<vmem>>, vector<16x16x128xbf16>
    %c0_124 = arith.constant 0 : index
    %c0_125 = arith.constant 0 : index
    %c768_126 = arith.constant 768 : index
    %61 = vector.load %arg10[%c0_124, %c0_125, %c768_126] : memref<16x16x1152xbf16, #tpu.memory_space<vmem>>, vector<16x16x128xbf16>
    tpu.vector_store %arg10[%c0_124, %c0_125, %c768_126], %60 {strides = array<i32>} : memref<16x16x1152xbf16, #tpu.memory_space<vmem>>, vector<16x16x128xbf16>,
    %c2_127 = arith.constant 2 : index
    %c8_128 = arith.constant 8 : index
    %c0_129 = arith.constant 0 : index
    %62 = vector.load %arg8[%c2_127, %c8_128, %c0_129] : memref<18x32x128xbf16, #tpu.memory_space<vmem>>, vector<16x16x128xbf16>
    %c0_130 = arith.constant 0 : index
    %c0_131 = arith.constant 0 : index
    %c896_132 = arith.constant 896 : index
    %63 = vector.load %arg10[%c0_130, %c0_131, %c896_132] : memref<16x16x1152xbf16, #tpu.memory_space<vmem>>, vector<16x16x128xbf16>
    tpu.vector_store %arg10[%c0_130, %c0_131, %c896_132], %62 {strides = array<i32>} : memref<16x16x1152xbf16, #tpu.memory_space<vmem>>, vector<16x16x128xbf16>,
    %c2_133 = arith.constant 2 : index
    %c9_134 = arith.constant 9 : index
    %c0_135 = arith.constant 0 : index
    %64 = vector.load %arg8[%c2_133, %c9_134, %c0_135] : memref<18x32x128xbf16, #tpu.memory_space<vmem>>, vector<16x16x128xbf16>
    %c0_136 = arith.constant 0 : index
    %c0_137 = arith.constant 0 : index
    %c1024_138 = arith.constant 1024 : index
    %65 = vector.load %arg10[%c0_136, %c0_137, %c1024_138] : memref<16x16x1152xbf16, #tpu.memory_space<vmem>>, vector<16x16x128xbf16>
    tpu.vector_store %arg10[%c0_136, %c0_137, %c1024_138], %64 {strides = array<i32>} : memref<16x16x1152xbf16, #tpu.memory_space<vmem>>, vector<16x16x128xbf16>,
    %c0_139 = arith.constant 0 : index
    %c0_140 = arith.constant 0 : index
    %c0_141 = arith.constant 0 : index
    %66 = vector.load %arg10[%c0_139, %c0_140, %c0_141] : memref<16x16x1152xbf16, #tpu.memory_space<vmem>>, vector<16x16x1152xbf16>
    %67 = vector.shape_cast %66 : vector<16x16x1152xbf16> to vector<256x1152xbf16>
    %c0_142 = arith.constant 0 : index
    %c0_143 = arith.constant 0 : index
    %68 = vector.load %arg4[%c0_142, %c0_143] : memref<1152x128xbf16, #tpu.memory_space<vmem>>, vector<1152x128xbf16>
    %cst_144 = arith.constant dense<0.000000e+00> : vector<256x128xf32>
    %69 = tpu.matmul %67, %68, %cst_144 {dimension_numbers = #tpu.dot_dimension_numbers<[1], [0], [0], [1], [0, 0, 1, 1], [], []>} : vector<256x1152xbf16>, vector<1152x128xbf16>, vector<256x128xf32> -> vector<256x128xf32>
    %c0_145 = arith.constant 0 : index
    %c0_146 = arith.constant 0 : index
    %70 = vector.load %arg5[%c0_145, %c0_146] : memref<1x128xf32, #tpu.memory_space<vmem>>, vector<1x128xf32>
    %71 = vector.broadcast %70 : vector<1x128xf32> to vector<256x128xf32>
    %72 = arith.addf %69, %71 : vector<256x128xf32>
    %cst_147 = arith.constant 0.000000e+00 : f32
    %73 = vector.broadcast %cst_147 : f32 to vector<256x128xf32>
    %74 = arith.cmpf oge, %72, %73 : vector<256x128xf32>
    %cst_148 = arith.constant 0.00999999977 : f32
    %75 = vector.broadcast %cst_148 : f32 to vector<256x128xf32>
    %76 = arith.mulf %75, %72 : vector<256x128xf32>
    %77 = arith.select %74, %72, %76 : vector<256x128xi1>, vector<256x128xf32>
    %c0_149 = arith.constant 0 : index
    %c0_150 = arith.constant 0 : index
    %c0_151 = arith.constant 0 : index
    %78 = vector.load %arg6[%c0_149, %c0_150, %c0_151] : memref<1x256x128xf32, #tpu.memory_space<vmem>>, vector<1x256x128xf32>
    %79 = vector.shape_cast %78 : vector<1x256x128xf32> to vector<256x128xf32>
    %80 = vector.shape_cast %77 : vector<256x128xf32> to vector<1x256x128xf32>
    tpu.vector_store %arg6[%c0_149, %c0_150, %c0_151], %80 {strides = array<i32>} : memref<1x256x128xf32, #tpu.memory_space<vmem>>, vector<1x256x128xf32>,
    return
  }
  func.func @transform_0(%arg0: i32) -> (i32, i32, i32, i32) {
    %c0_i32 = arith.constant 0 : i32
    %c0_i32_0 = arith.constant 0 : i32
    %c0_i32_1 = arith.constant 0 : i32
    %c0_i32_2 = arith.constant 0 : i32
    return %arg0, %c0_i32, %c0_i32_0, %c0_i32_1 : i32, i32, i32, i32
  }
  func.func @transform_1(%arg0: i32) -> (i32, i32) {
    %c0_i32 = arith.constant 0 : i32
    %c0_i32_0 = arith.constant 0 : i32
    %c0_i32_1 = arith.constant 0 : i32
    return %c0_i32, %c0_i32_0 : i32, i32
  }
  func.func @transform_2(%arg0: i32) -> (i32, i32) {
    %c0_i32 = arith.constant 0 : i32
    %c0_i32_0 = arith.constant 0 : i32
    %c0_i32_1 = arith.constant 0 : i32
    return %c0_i32, %c0_i32_0 : i32, i32
  }
  func.func @transform_3(%arg0: i32) -> (i32, i32) {
    %c0_i32 = arith.constant 0 : i32
    %c0_i32_0 = arith.constant 0 : i32
    %c0_i32_1 = arith.constant 0 : i32
    return %c0_i32, %c0_i32_0 : i32, i32
  }
  func.func @transform_4(%arg0: i32) -> (i32, i32) {
    %c0_i32 = arith.constant 0 : i32
    %c0_i32_0 = arith.constant 0 : i32
    %c0_i32_1 = arith.constant 0 : i32
    return %c0_i32, %c0_i32_0 : i32, i32
  }
  func.func @transform_5(%arg0: i32) -> (i32, i32, i32) {
    %c0_i32 = arith.constant 0 : i32
    %c0_i32_0 = arith.constant 0 : i32
    %c0_i32_1 = arith.constant 0 : i32
    return %arg0, %c0_i32, %c0_i32_0 : i32, i32, i32
  }
}

</mosaic_0001>

<llo_original>
// kernel: tpu_custom_call.1
$region0: #{tpu_custom_call.1}
  #allocation0 [shape = 'u32[]', space=smem, size = 0x4, offset = 0x4, fixed_abs, tag = 'smem constant byte address 0x4 - core index']
  #allocation1 [shape = 'u32[144,128]{1,0:T(1,128)}', space=vmem, size = 0x12000, scoped, tag = 'internal scratch']
  #allocation2 [shape = 'bf16[18,32,128]{2,1,0:T(16,128)(2,1)}', space=vmem, size = 0x24000, scoped, tag = 'scratch operand']
  #allocation3 [shape = 'bf16[18,32,128]{2,1,0:T(16,128)(2,1)}', space=vmem, size = 0x24000, scoped, tag = 'scratch operand']
  #allocation4 [shape = 'bf16[16,16,1152]{2,1,0:T(16,128)(2,1)}', space=vmem, size = 0x90000, scoped, tag = 'scratch operand']
  #allocation5 [shape = 'bf16[16,16,1152]{2,1,0:T(16,128)(2,1)}', space=vmem, size = 0x90000, scoped, tag = 'scratch operand']
  %s0 = inlined_call_operand.hbm [shape: bf16[2,16,16,128], index: 0, kind: input, shape index: {}]
  %s1 = inlined_call_operand.hbm [shape: bf16[1152,128], index: 1, kind: input, shape index: {}]
  %s2 = inlined_call_operand.vmem [shape: f32[1,128], index: 2, kind: input, shape index: {}]
  %s3 = inlined_call_operand.hbm [shape: bf16[1152,128], index: 3, kind: input, shape index: {}]
  %s4 = inlined_call_operand.vmem [shape: f32[1,128], index: 4, kind: input, shape index: {}]
  %s5 = inlined_call_operand.hbm [shape: f32[2,256,128], index: 5, kind: output, shape index: {}]
  %s6 = sld [smem:[#allocation0]]
  $region65: #{tpu_custom_call.1} parent=0
    _
  %s8 = ssub.s32 1, %s6
  %s9 = scalar_select 0, %s8, %s6
  $region1: #{tpu_custom_call.1} parent=0
    #allocation6 [shape = 'u8[131072]{0}', space=vmem, size = 0x20000, scoped, tag = 'input window, operand 0']
    #allocation7 [shape = 's32[2]{0}', space=sflag, size = 0x8, scoped, tag = 'scoped memory for tpu_custom_call.1']
    #allocation8 [shape = 's32[2]{0}', space=sflag, size = 0x8, scoped, tag = 'scoped memory for tpu_custom_call.1']
    #allocation9 [shape = 'u8[294912]{0}', space=vmem, size = 0x48000, scoped, tag = 'input window, operand 1, single buffered']
    #allocation10 [shape = 's32[1]{0}', space=sflag, size = 0x4, scoped, tag = 'scoped memory for tpu_custom_call.1']
    #allocation11 [shape = 'u8[294912]{0}', space=vmem, size = 0x48000, scoped, tag = 'input window, operand 3, single buffered']
    #allocation12 [shape = 'u8[262144]{0}', space=vmem, size = 0x40000, scoped, tag = 'output window, operand 0']
    %10 = vsyncpa [#allocation7], 0
    %s11 = scalar_lea.sflag [#allocation7], 1
    %12 = vsyncpa %s11, 0
    %13 = vsyncpa [#allocation10], 0
    %14 = vsyncpa [#allocation8], 0
    %s15 = scalar_lea.sflag [#allocation8], 1
    %16 = vsyncpa %s15, 0
    loop: start=0, step=1, limit=4
    $region2: #{tpu_custom_call.1} parent=1 // loop_pre_header
      _
    $region3: #{tpu_custom_call.1} parent=1 // loop_header
      %s18 = sphi 0, %s22
      %p19 = scmp.ge.s32.totalorder %s18, 4
      %s28 = sphi 0, %s30
      %s31 = sphi 0, %s28
      %s32 = sphi 0, %s31
      %s48 = sphi 0, %s32
      %s52 = sphi 0, %s52
      %s54 = sphi 0, %s52
      %s55 = sphi 0, %s54
      %s69 = sphi 0, %s55
      %s73 = sphi 0, %s73
      %s75 = sphi 0, %s73
      %s76 = sphi 0, %s75
      %s90 = sphi 0, %s76
      %s94 = sphi 0, %s94
      %s96 = sphi 0, %s94
      %s97 = sphi 0, %s96
      %s111 = sphi 0, %s97
      %s115 = sphi 0, %s115
      %s117 = sphi 0, %s115
      %s118 = sphi 0, %s117
      %s132 = sphi 0, %s118
      %s138 = sphi 0, %s140
      %s141 = sphi 0, %s138
      %s142 = sphi 0, %s141
      %s158 = sphi 0, %s142
    $region4: #{tpu_custom_call.1} parent=1 // loop_header_branch
      %21 = sbr.rel (%p19) target = $region8
    $region5: #{tpu_custom_call.1} parent=1 // loop_body
      %s23 = ssub.s32 %s18, 1
      %s24 = ssub.s32 %s18, 2
      %s25 = sadd.s32 %s18, 1
      %s26 = ssub.s32 %s18, %s25
      %p27 = scmp.eq.s32.totalorder %s26, 0
      %s29 = sadd.s32 %s28, 1
      %s30 = scalar_select %p27, %s28, %s29
      %p33 = pneg %p27
      %p34 = scmp.eq.s32.totalorder %s18, 1
      %p35 = por %p33, %p34
      %p36 = scmp.ne.s32.totalorder %s28, %s31
      %p37 = scmp.eq.s32.totalorder %s18, 0
      %p38 = por %p36, %p37
      %p39 = scmp.ne.s32.totalorder %s28, %s31
      %p40 = scmp.eq.s32.totalorder %s23, 1
      %p41 = por %p39, %p40
      %p42 = scmp.ne.s32.totalorder %s31, %s32
      %p43 = scmp.eq.s32.totalorder %s23, 0
      %p44 = por %p42, %p43
      %p45 = scmp.ne.s32.totalorder %s31, %s32
      %p46 = scmp.eq.s32.totalorder %s24, 1
      %p47 = por %p45, %p46
      %p49 = scmp.ne.s32.totalorder %s32, %s48
      %p50 = scmp.eq.s32.totalorder %s24, 0
      %p51 = por %p49, %p50
      %s53 = sadd.s32 %s52, 1
      %p56 = scmp.eq.s32.totalorder %s18, 1
      %p57 = scmp.ne.s32.totalorder %s52, %s54
      %p58 = scmp.eq.s32.totalorder %s18, 0
      %p59 = por %p57, %p58
      %p60 = scmp.ne.s32.totalorder %s52, %s54
      %p61 = scmp.eq.s32.totalorder %s23, 1
      %p62 = por %p60, %p61
      %p63 = scmp.ne.s32.totalorder %s54, %s55
      %p64 = scmp.eq.s32.totalorder %s23, 0
      %p65 = por %p63, %p64
      %p66 = scmp.ne.s32.totalorder %s54, %s55
      %p67 = scmp.eq.s32.totalorder %s24, 1
      %p68 = por %p66, %p67
      %p70 = scmp.ne.s32.totalorder %s55, %s69
      %p71 = scmp.eq.s32.totalorder %s24, 0
      %p72 = por %p70, %p71
      %s74 = sadd.s32 %s73, 1
      %p77 = scmp.eq.s32.totalorder %s18, 1
      %p78 = scmp.ne.s32.totalorder %s73, %s75
      %p79 = scmp.eq.s32.totalorder %s18, 0
      %p80 = por %p78, %p79
      %p81 = scmp.ne.s32.totalorder %s73, %s75
      %p82 = scmp.eq.s32.totalorder %s23, 1
      %p83 = por %p81, %p82
      %p84 = scmp.ne.s32.totalorder %s75, %s76
      %p85 = scmp.eq.s32.totalorder %s23, 0
      %p86 = por %p84, %p85
      %p87 = scmp.ne.s32.totalorder %s75, %s76
      %p88 = scmp.eq.s32.totalorder %s24, 1
      %p89 = por %p87, %p88
      %p91 = scmp.ne.s32.totalorder %s76, %s90
      %p92 = scmp.eq.s32.totalorder %s24, 0
      %p93 = por %p91, %p92
      %s95 = sadd.s32 %s94, 1
      %p98 = scmp.eq.s32.totalorder %s18, 1
      %p99 = scmp.ne.s32.totalorder %s94, %s96
      %p100 = scmp.eq.s32.totalorder %s18, 0
      %p101 = por %p99, %p100
      %p102 = scmp.ne.s32.totalorder %s94, %s96
      %p103 = scmp.eq.s32.totalorder %s23, 1
      %p104 = por %p102, %p103
      %p105 = scmp.ne.s32.totalorder %s96, %s97
      %p106 = scmp.eq.s32.totalorder %s23, 0
      %p107 = por %p105, %p106
      %p108 = scmp.ne.s32.totalorder %s96, %s97
      %p109 = scmp.eq.s32.totalorder %s24, 1
      %p110 = por %p108, %p109
      %p112 = scmp.ne.s32.totalorder %s97, %s111
      %p113 = scmp.eq.s32.totalorder %s24, 0
      %p114 = por %p112, %p113
      %s116 = sadd.s32 %s115, 1
      %p119 = scmp.eq.s32.totalorder %s18, 1
      %p120 = scmp.ne.s32.totalorder %s115, %s117
      %p121 = scmp.eq.s32.totalorder %s18, 0
      %p122 = por %p120, %p121
      %p123 = scmp.ne.s32.totalorder %s115, %s117
      %p124 = scmp.eq.s32.totalorder %s23, 1
      %p125 = por %p123, %p124
      %p126 = scmp.ne.s32.totalorder %s117, %s118
      %p127 = scmp.eq.s32.totalorder %s23, 0
      %p128 = por %p126, %p127
      %p129 = scmp.ne.s32.totalorder %s117, %s118
      %p130 = scmp.eq.s32.totalorder %s24, 1
      %p131 = por %p129, %p130
      %p133 = scmp.ne.s32.totalorder %s118, %s132
      %p134 = scmp.eq.s32.totalorder %s24, 0
      %p135 = por %p133, %p134
      %s136 = ssub.s32 %s18, %s25
      %p137 = scmp.eq.s32.totalorder %s136, 0
      %s139 = sadd.s32 %s138, 1
      %s140 = scalar_select %p137, %s138, %s139
      %p143 = pneg %p137
      %p144 = scmp.eq.s32.totalorder %s18, 1
      %p145 = por %p143, %p144
      %p146 = scmp.ne.s32.totalorder %s138, %s141
      %p147 = scmp.eq.s32.totalorder %s18, 0
      %p148 = por %p146, %p147
      %p149 = scmp.ne.s32.totalorder %s138, %s141
      %p150 = scmp.eq.s32.totalorder %s23, 1
      %p151 = por %p149, %p150
      %p152 = scmp.ne.s32.totalorder %s141, %s142
      %p153 = scmp.eq.s32.totalorder %s23, 0
      %p154 = por %p152, %p153
      %p155 = scmp.ne.s32.totalorder %s141, %s142
      %p156 = scmp.eq.s32.totalorder %s24, 1
      %p157 = por %p155, %p156
      %p159 = scmp.ne.s32.totalorder %s142, %s158
      %p160 = scmp.eq.s32.totalorder %s24, 0
      %p161 = por %p159, %p160
      %p162 = scmp.le.s32.totalorder 1, %s18
      %p163 = scmp.lt.s32.totalorder %s18, 3
      %p164 = pnand %p162, %p163
      %p165 = pneg %p164
      // Predicated region
      $region9: #{tpu_custom_call.1} parent=5 // pred_check
        _
      $region10: #{tpu_custom_call.1} parent=5 // pred_check_branch
        %167 = sbr.rel (%p164) target = $region12
      $region11: #{tpu_custom_call.1} parent=5 // pred_region
        %s168 = ssub.s32 %s18, 1
        // Predicated region
        $region13: #{tpu_custom_call.1} parent=11 // pred_check
          %p169 = pneg %p65
        $region14: #{tpu_custom_call.1} parent=11 // pred_check_branch
          %171 = sbr.rel (%p169) target = $region16
        $region15: #{tpu_custom_call.1} parent=11 // pred_region
          %s173 = ssub.s32 9216, 9216
          %174 = vsyncadd [#allocation10], %s173
          %s175 = sshll.u32 [#allocation9], 4
          %s176 = int_to_ptr.vmem [resolvable:$true] %s175
          %181 = dma.hbm_to_vmem [thread:$0]  %s1, 9216, %s176, [#allocation10], 64, 64, 4
        $region16: #{tpu_custom_call.1} parent=11 // pred_fallthru
          _
        // Predicated region
        $region17: #{tpu_custom_call.1} parent=11 // pred_check
          %p182 = pneg %p86
        $region18: #{tpu_custom_call.1} parent=11 // pred_check_branch
          %184 = sbr.rel (%p182) target = $region20
        $region19: #{tpu_custom_call.1} parent=11 // pred_region
          _
        $region20: #{tpu_custom_call.1} parent=11 // pred_fallthru
          _
        // Predicated region
        $region21: #{tpu_custom_call.1} parent=11 // pred_check
          %p185 = pneg %p107
        $region22: #{tpu_custom_call.1} parent=11 // pred_check_branch
          %187 = sbr.rel (%p185) target = $region24
        $region23: #{tpu_custom_call.1} parent=11 // pred_region
          %s189 = ssub.s32 9216, 9216
          %190 = vsyncadd [#allocation10], %s189
          %s191 = sshll.u32 [#allocation11], 4
          %s192 = int_to_ptr.vmem [resolvable:$true] %s191
          %197 = dma.hbm_to_vmem [thread:$0]  %s3, 9216, %s192, [#allocation10], 64, 64, 4
        $region24: #{tpu_custom_call.1} parent=11 // pred_fallthru
          _
        // Predicated region
        $region25: #{tpu_custom_call.1} parent=11 // pred_check
          %p198 = pneg %p128
        $region26: #{tpu_custom_call.1} parent=11 // pred_check_branch
          %200 = sbr.rel (%p198) target = $region28
        $region27: #{tpu_custom_call.1} parent=11 // pred_region
          _
        $region28: #{tpu_custom_call.1} parent=11 // pred_fallthru
          _
      $region12: #{tpu_custom_call.1} parent=5 // pred_fallthru
        _
      %p201 = scmp.lt.s32.totalorder %s18, 2
      // Predicated region
      $region29: #{tpu_custom_call.1} parent=5 // pred_check
        %p202 = pneg %p201
      $region30: #{tpu_custom_call.1} parent=5 // pred_check_branch
        %204 = sbr.rel (%p202) target = $region32
      $region31: #{tpu_custom_call.1} parent=5 // pred_region
        // Predicated region
        $region33: #{tpu_custom_call.1} parent=31 // pred_check
          %p205 = pneg %p38
        $region34: #{tpu_custom_call.1} parent=31 // pred_check_branch
          %207 = sbr.rel (%p205) target = $region36
        $region35: #{tpu_custom_call.1} parent=31 // pred_region
          %s208 = sand.u32 %s28, 1
          %s209 = scalar_lea.sflag [#allocation7], %s208
          %s210 = sand.u32 %s28, 1
          %s211 = smul.addr %s210, 128
          %s212 = scalar_lea.vmem [#allocation6], %s211
          %s214 = ssub.s32 2048, 2048
          %215 = vsyncadd %s209, %s214
          %s216 = smul.addr %s18, 32
          %s217 = smul.addr %s216, 64
          %s218 = scalar_lea.hbm %s0, %s217
          %s219 = sshll.u32 %s212, 4
          %s220 = int_to_ptr.vmem [resolvable:$true] %s219
          %225 = dma.hbm_to_vmem [thread:$0]  %s218, 2048, %s220, %s209, 64, 64, 4
        $region36: #{tpu_custom_call.1} parent=31 // pred_fallthru
          _
      $region32: #{tpu_custom_call.1} parent=5 // pred_fallthru
        _
      %p226 = scmp.le.s32.totalorder 1, %s18
      %p227 = scmp.lt.s32.totalorder %s18, 3
      %p228 = pnand %p226, %p227
      %p229 = pneg %p228
      // Predicated region
      $region37: #{tpu_custom_call.1} parent=5 // pred_check
        _
      $region38: #{tpu_custom_call.1} parent=5 // pred_check_branch
        %231 = sbr.rel (%p228) target = $region40
      $region39: #{tpu_custom_call.1} parent=5 // pred_region
        %s232 = ssub.s32 %s18, 1
        %s233 = sand.u32 %s31, 1
        %s234 = scalar_lea.sflag [#allocation7], %s233
        %s235 = sand.u32 %s31, 1
        %s236 = smul.addr %s235, 128
        %s237 = scalar_lea.vmem [#allocation6], %s236
        // Predicated region
        $region41: #{tpu_custom_call.1} parent=39 // pred_check
          %p238 = pneg %p44
        $region42: #{tpu_custom_call.1} parent=39 // pred_check_branch
          %240 = sbr.rel (%p238) target = $region44
        $region43: #{tpu_custom_call.1} parent=39 // pred_region
          %241 = dma.done %s234, 2048
        $region44: #{tpu_custom_call.1} parent=39 // pred_fallthru
          _
        // Predicated region
        $region45: #{tpu_custom_call.1} parent=39 // pred_check
          %p242 = pneg %p65
        $region46: #{tpu_custom_call.1} parent=39 // pred_check_branch
          %244 = sbr.rel (%p242) target = $region48
        $region47: #{tpu_custom_call.1} parent=39 // pred_region
          %245 = dma.done [#allocation10], 9216
        $region48: #{tpu_custom_call.1} parent=39 // pred_fallthru
          _
        // Predicated region
        $region49: #{tpu_custom_call.1} parent=39 // pred_check
          %p246 = pneg %p107
        $region50: #{tpu_custom_call.1} parent=39 // pred_check_branch
          %248 = sbr.rel (%p246) target = $region52
        $region51: #{tpu_custom_call.1} parent=39 // pred_region
          %249 = dma.done [#allocation10], 9216
        $region52: #{tpu_custom_call.1} parent=39 // pred_fallthru
          _
        %s250 = sand.u32 %s31, 1
        %s251 = scalar_lea.sflag [#allocation7], %s250
        %s252 = sand.u32 %s31, 1
        %s253 = smul.addr %s252, 128
        %s254 = scalar_lea.vmem [#allocation6], %s253
        %p255 = pneg %p44
        %p256 = pneg %p41
        %p257 = pneg %p65
        %p258 = pneg %p62
        %p259 = pneg %p86
        %p260 = pneg %p83
        %p261 = pneg %p107
        %p262 = pneg %p104
        %p263 = pneg %p128
        %p264 = pneg %p125
        %p265 = pneg %p154
        %p266 = pneg %p151
        %s267 = sand.u32 %s141, 1
        %s268 = scalar_lea.sflag [#allocation8], %s267
        %s269 = sand.u32 %s141, 1
        %s270 = smul.addr %s269, 256
        %s271 = scalar_lea.vmem [#allocation12], %s270
        %v273 = vld [vmem:[%s237] sm:$0xf]
        %v274 = vld [vmem:[%s237 + $0x4] sm:$0xf]
        %v275 = vld [vmem:[%s237 + $0x8] sm:$0xf]
        %v276 = vld [vmem:[%s237 + $0xc] sm:$0xf]
        %v277 = vld [vmem:[%s237 + $0x10] sm:$0xf]
        %v278 = vld [vmem:[%s237 + $0x14] sm:$0xf]
        %v279 = vld [vmem:[%s237 + $0x18] sm:$0xf]
        %v280 = vld [vmem:[%s237 + $0x1c] sm:$0xf]
        %v281 = vld [vmem:[%s237 + $0x20] sm:$0xf]
        %v282 = vld [vmem:[%s237 + $0x24] sm:$0xf]
        %v283 = vld [vmem:[%s237 + $0x28] sm:$0xf]
        %v284 = vld [vmem:[%s237 + $0x2c] sm:$0xf]
        %v285 = vld [vmem:[%s237 + $0x30] sm:$0xf]
        %v286 = vld [vmem:[%s237 + $0x34] sm:$0xf]
        %v287 = vld [vmem:[%s237 + $0x38] sm:$0xf]
        %v288 = vld [vmem:[%s237 + $0x3c] sm:$0xf]
        %v289 = vld [vmem:[%s237 + $0x40] sm:$0xf]
        %v290 = vld [vmem:[%s237 + $0x44] sm:$0xf]
        %v291 = vld [vmem:[%s237 + $0x48] sm:$0xf]
        %v292 = vld [vmem:[%s237 + $0x4c] sm:$0xf]
        %v293 = vld [vmem:[%s237 + $0x50] sm:$0xf]
        %v294 = vld [vmem:[%s237 + $0x54] sm:$0xf]
        %v295 = vld [vmem:[%s237 + $0x58] sm:$0xf]
        %v296 = vld [vmem:[%s237 + $0x5c] sm:$0xf]
        %v297 = vld [vmem:[%s237 + $0x60] sm:$0xf]
        %v298 = vld [vmem:[%s237 + $0x64] sm:$0xf]
        %v299 = vld [vmem:[%s237 + $0x68] sm:$0xf]
        %v300 = vld [vmem:[%s237 + $0x6c] sm:$0xf]
        %v301 = vld [vmem:[%s237 + $0x70] sm:$0xf]
        %v302 = vld [vmem:[%s237 + $0x74] sm:$0xf]
        %v303 = vld [vmem:[%s237 + $0x78] sm:$0xf]
        %v304 = vld [vmem:[%s237 + $0x7c] sm:$0xf]
        %305 = vst [vmem:[#allocation2] sm:$0xff] 0
        %306 = vst [vmem:[#allocation2 + $0x8] sm:$0xff] 0
        %s307 = scalar_lea.vmem [#allocation2], 272
        %308 = vst [vmem:[%s307] sm:$0xff] 0
        %309 = vst [vmem:[%s307 + $0x8] sm:$0xff] 0
        %s310 = scalar_lea.vmem [#allocation2], 16
        %vm311 = vcmask 1043459
        %vm312 = vsmask.f32 7950
        %vm313 = vmand %vm311, %vm312
        %v314 = vld [vmem:[%s310] sm:$0x8]
        %v315 = vsel %vm313, 0, %v314
        %316 = vst [vmem:[%s310] sm:$0x8] %v315
        %v317 = vld [vmem:[%s310 + $0x10] sm:$0x8]
        %v318 = vsel %vm313, 0, %v317
        %319 = vst [vmem:[%s310 + $0x10] sm:$0x8] %v318
        %v320 = vld [vmem:[%s310 + $0x20] sm:$0x8]
        %v321 = vsel %vm313, 0, %v320
        %322 = vst [vmem:[%s310 + $0x20] sm:$0x8] %v321
        %v323 = vld [vmem:[%s310 + $0x30] sm:$0x8]
        %v324 = vsel %vm313, 0, %v323
        %325 = vst [vmem:[%s310 + $0x30] sm:$0x8] %v324
        %v326 = vld [vmem:[%s310 + $0x40] sm:$0x8]
        %v327 = vsel %vm313, 0, %v326
        %328 = vst [vmem:[%s310 + $0x40] sm:$0x8] %v327
        %v329 = vld [vmem:[%s310 + $0x50] sm:$0x8]
        %v330 = vsel %vm313, 0, %v329
        %331 = vst [vmem:[%s310 + $0x50] sm:$0x8] %v330
        %v332 = vld [vmem:[%s310 + $0x60] sm:$0x8]
        %v333 = vsel %vm313, 0, %v332
        %334 = vst [vmem:[%s310 + $0x60] sm:$0x8] %v333
        %v335 = vld [vmem:[%s310 + $0x70] sm:$0x8]
        %v336 = vsel %vm313, 0, %v335
        %337 = vst [vmem:[%s310 + $0x70] sm:$0x8] %v336
        %v338 = vld [vmem:[%s310 + $0x80] sm:$0x8]
        %v339 = vsel %vm313, 0, %v338
        %340 = vst [vmem:[%s310 + $0x80] sm:$0x8] %v339
        %v341 = vld [vmem:[%s310 + $0x90] sm:$0x8]
        %v342 = vsel %vm313, 0, %v341
        %343 = vst [vmem:[%s310 + $0x90] sm:$0x8] %v342
        %v344 = vld [vmem:[%s310 + $0xa0] sm:$0x8]
        %v345 = vsel %vm313, 0, %v344
        %346 = vst [vmem:[%s310 + $0xa0] sm:$0x8] %v345
        %v347 = vld [vmem:[%s310 + $0xb0] sm:$0x8]
        %v348 = vsel %vm313, 0, %v347
        %349 = vst [vmem:[%s310 + $0xb0] sm:$0x8] %v348
        %v350 = vld [vmem:[%s310 + $0xc0] sm:$0x8]
        %v351 = vsel %vm313, 0, %v350
        %352 = vst [vmem:[%s310 + $0xc0] sm:$0x8] %v351
        %v353 = vld [vmem:[%s310 + $0xd0] sm:$0x8]
        %v354 = vsel %vm313, 0, %v353
        %355 = vst [vmem:[%s310 + $0xd0] sm:$0x8] %v354
        %v356 = vld [vmem:[%s310 + $0xe0] sm:$0x8]
        %v357 = vsel %vm313, 0, %v356
        %358 = vst [vmem:[%s310 + $0xe0] sm:$0x8] %v357
        %v359 = vld [vmem:[%s310 + $0xf0] sm:$0x8]
        %v360 = vsel %vm313, 0, %v359
        %361 = vst [vmem:[%s310 + $0xf0] sm:$0x8] %v360
        %vm362 = vcmask 1044484
        %vm363 = vsmask.f32 4352
        %vm364 = vmand %vm362, %vm363
        %v365 = vld [vmem:[%s310 + $0x8] sm:$0x10]
        %v366 = vsel %vm364, 0, %v365
        %367 = vst [vmem:[%s310 + $0x8] sm:$0x10] %v366
        %v368 = vld [vmem:[%s310 + $0x18] sm:$0x10]
        %v369 = vsel %vm364, 0, %v368
        %370 = vst [vmem:[%s310 + $0x18] sm:$0x10] %v369
        %v371 = vld [vmem:[%s310 + $0x28] sm:$0x10]
        %v372 = vsel %vm364, 0, %v371
        %373 = vst [vmem:[%s310 + $0x28] sm:$0x10] %v372
        %v374 = vld [vmem:[%s310 + $0x38] sm:$0x10]
        %v375 = vsel %vm364, 0, %v374
        %376 = vst [vmem:[%s310 + $0x38] sm:$0x10] %v375
        %v377 = vld [vmem:[%s310 + $0x48] sm:$0x10]
        %v378 = vsel %vm364, 0, %v377
        %379 = vst [vmem:[%s310 + $0x48] sm:$0x10] %v378
        %v380 = vld [vmem:[%s310 + $0x58] sm:$0x10]
        %v381 = vsel %vm364, 0, %v380
        %382 = vst [vmem:[%s310 + $0x58] sm:$0x10] %v381
        %v383 = vld [vmem:[%s310 + $0x68] sm:$0x10]
        %v384 = vsel %vm364, 0, %v383
        %385 = vst [vmem:[%s310 + $0x68] sm:$0x10] %v384
        %v386 = vld [vmem:[%s310 + $0x78] sm:$0x10]
        %v387 = vsel %vm364, 0, %v386
        %388 = vst [vmem:[%s310 + $0x78] sm:$0x10] %v387
        %v389 = vld [vmem:[%s310 + $0x88] sm:$0x10]
        %v390 = vsel %vm364, 0, %v389
        %391 = vst [vmem:[%s310 + $0x88] sm:$0x10] %v390
        %v392 = vld [vmem:[%s310 + $0x98] sm:$0x10]
        %v393 = vsel %vm364, 0, %v392
        %394 = vst [vmem:[%s310 + $0x98] sm:$0x10] %v393
        %v395 = vld [vmem:[%s310 + $0xa8] sm:$0x10]
        %v396 = vsel %vm364, 0, %v395
        %397 = vst [vmem:[%s310 + $0xa8] sm:$0x10] %v396
        %v398 = vld [vmem:[%s310 + $0xb8] sm:$0x10]
        %v399 = vsel %vm364, 0, %v398
        %400 = vst [vmem:[%s310 + $0xb8] sm:$0x10] %v399
        %v401 = vld [vmem:[%s310 + $0xc8] sm:$0x10]
        %v402 = vsel %vm364, 0, %v401
        %403 = vst [vmem:[%s310 + $0xc8] sm:$0x10] %v402
        %v404 = vld [vmem:[%s310 + $0xd8] sm:$0x10]
        %v405 = vsel %vm364, 0, %v404
        %406 = vst [vmem:[%s310 + $0xd8] sm:$0x10] %v405
        %v407 = vld [vmem:[%s310 + $0xe8] sm:$0x10]
        %v408 = vsel %vm364, 0, %v407
        %409 = vst [vmem:[%s310 + $0xe8] sm:$0x10] %v408
        %v410 = vld [vmem:[%s310 + $0xf8] sm:$0x10]
        %v411 = vsel %vm364, 0, %v410
        %412 = vst [vmem:[%s310 + $0xf8] sm:$0x10] %v411
        %v445 = vunpack.c.l.b16 %v273
        %v446 = vunpack.c.l.b16 %v274
        %v447 = vunpack.c.l.b16 %v275
        %v448 = vunpack.c.l.b16 %v276
        %v449 = vunpack.c.l.b16 %v277
        %v450 = vunpack.c.l.b16 %v278
        %v451 = vunpack.c.l.b16 %v279
        %v452 = vunpack.c.l.b16 %v280
        %v453 = vunpack.c.l.b16 %v281
        %v454 = vunpack.c.l.b16 %v282
        %v455 = vunpack.c.l.b16 %v283
        %v456 = vunpack.c.l.b16 %v284
        %v457 = vunpack.c.l.b16 %v285
        %v458 = vunpack.c.l.b16 %v286
        %v459 = vunpack.c.l.b16 %v287
        %v460 = vunpack.c.l.b16 %v288
        %v461 = vunpack.c.l.b16 %v289
        %v462 = vunpack.c.l.b16 %v290
        %v463 = vunpack.c.l.b16 %v291
        %v464 = vunpack.c.l.b16 %v292
        %v465 = vunpack.c.l.b16 %v293
        %v466 = vunpack.c.l.b16 %v294
        %v467 = vunpack.c.l.b16 %v295
        %v468 = vunpack.c.l.b16 %v296
        %v469 = vunpack.c.l.b16 %v297
        %v470 = vunpack.c.l.b16 %v298
        %v471 = vunpack.c.l.b16 %v299
        %v472 = vunpack.c.l.b16 %v300
        %v473 = vunpack.c.l.b16 %v301
        %v474 = vunpack.c.l.b16 %v302
        %v475 = vunpack.c.l.b16 %v303
        %v476 = vunpack.c.l.b16 %v304
        %v477 = vpack.c.b16 %v445, %v445
        %v478 = vpack.c.b16 %v446, %v446
        %v479 = vpack.c.b16 %v447, %v447
        %v480 = vpack.c.b16 %v448, %v448
        %v481 = vpack.c.b16 %v449, %v449
        %v482 = vpack.c.b16 %v450, %v450
        %v483 = vpack.c.b16 %v451, %v451
        %v484 = vpack.c.b16 %v452, %v452
        %v485 = vpack.c.b16 %v453, %v453
        %v486 = vpack.c.b16 %v454, %v454
        %v487 = vpack.c.b16 %v455, %v455
        %v488 = vpack.c.b16 %v456, %v456
        %v489 = vpack.c.b16 %v457, %v457
        %v490 = vpack.c.b16 %v458, %v458
        %v491 = vpack.c.b16 %v459, %v459
        %v492 = vpack.c.b16 %v460, %v460
        %v493 = vpack.c.b16 %v461, %v461
        %v494 = vpack.c.b16 %v462, %v462
        %v495 = vpack.c.b16 %v463, %v463
        %v496 = vpack.c.b16 %v464, %v464
        %v497 = vpack.c.b16 %v465, %v465
        %v498 = vpack.c.b16 %v466, %v466
        %v499 = vpack.c.b16 %v467, %v467
        %v500 = vpack.c.b16 %v468, %v468
        %v501 = vpack.c.b16 %v469, %v469
        %v502 = vpack.c.b16 %v470, %v470
        %v503 = vpack.c.b16 %v471, %v471
        %v504 = vpack.c.b16 %v472, %v472
        %v505 = vpack.c.b16 %v473, %v473
        %v506 = vpack.c.b16 %v474, %v474
        %v507 = vpack.c.b16 %v475, %v475
        %v508 = vpack.c.b16 %v476, %v476
        %541 = vst [vmem:[%s310] sm:$0xf0] %v477
        %542 = vst [vmem:[%s310 + $0x8] sm:$0xf] %v478
        %543 = vst [vmem:[%s310 + $0x10] sm:$0xf0] %v479
        %544 = vst [vmem:[%s310 + $0x18] sm:$0xf] %v480
        %545 = vst [vmem:[%s310 + $0x20] sm:$0xf0] %v481
        %546 = vst [vmem:[%s310 + $0x28] sm:$0xf] %v482
        %547 = vst [vmem:[%s310 + $0x30] sm:$0xf0] %v483
        %548 = vst [vmem:[%s310 + $0x38] sm:$0xf] %v484
        %549 = vst [vmem:[%s310 + $0x40] sm:$0xf0] %v485
        %550 = vst [vmem:[%s310 + $0x48] sm:$0xf] %v486
        %551 = vst [vmem:[%s310 + $0x50] sm:$0xf0] %v487
        %552 = vst [vmem:[%s310 + $0x58] sm:$0xf] %v488
        %553 = vst [vmem:[%s310 + $0x60] sm:$0xf0] %v489
        %554 = vst [vmem:[%s310 + $0x68] sm:$0xf] %v490
        %555 = vst [vmem:[%s310 + $0x70] sm:$0xf0] %v491
        %556 = vst [vmem:[%s310 + $0x78] sm:$0xf] %v492
        %557 = vst [vmem:[%s310 + $0x80] sm:$0xf0] %v493
        %558 = vst [vmem:[%s310 + $0x88] sm:$0xf] %v494
        %559 = vst [vmem:[%s310 + $0x90] sm:$0xf0] %v495
        %560 = vst [vmem:[%s310 + $0x98] sm:$0xf] %v496
        %561 = vst [vmem:[%s310 + $0xa0] sm:$0xf0] %v497
        %562 = vst [vmem:[%s310 + $0xa8] sm:$0xf] %v498
        %563 = vst [vmem:[%s310 + $0xb0] sm:$0xf0] %v499
        %564 = vst [vmem:[%s310 + $0xb8] sm:$0xf] %v500
        %565 = vst [vmem:[%s310 + $0xc0] sm:$0xf0] %v501
        %566 = vst [vmem:[%s310 + $0xc8] sm:$0xf] %v502
        %567 = vst [vmem:[%s310 + $0xd0] sm:$0xf0] %v503
        %568 = vst [vmem:[%s310 + $0xd8] sm:$0xf] %v504
        %569 = vst [vmem:[%s310 + $0xe0] sm:$0xf0] %v505
        %570 = vst [vmem:[%s310 + $0xe8] sm:$0xf] %v506
        %571 = vst [vmem:[%s310 + $0xf0] sm:$0xf0] %v507
        %572 = vst [vmem:[%s310 + $0xf8] sm:$0xf] %v508
        %v573 = vld [vmem:[#allocation2] sm:$0xf8]
        %v574 = vld [vmem:[#allocation2 + $0x8] sm:$0xf]
        %v575 = vld [vmem:[#allocation2 + $0x10] sm:$0xf8]
        %v576 = vld [vmem:[#allocation2 + $0x18] sm:$0xf]
        %v577 = vld [vmem:[#allocation2 + $0x20] sm:$0xf8]
        %v578 = vld [vmem:[#allocation2 + $0x28] sm:$0xf]
        %v579 = vld [vmem:[#allocation2 + $0x30] sm:$0xf8]
        %v580 = vld [vmem:[#allocation2 + $0x38] sm:$0xf]
        %v581 = vld [vmem:[#allocation2 + $0x40] sm:$0xf8]
        %v582 = vld [vmem:[#allocation2 + $0x48] sm:$0xf]
        %v583 = vld [vmem:[#allocation2 + $0x50] sm:$0xf8]
        %v584 = vld [vmem:[#allocation2 + $0x58] sm:$0xf]
        %v585 = vld [vmem:[#allocation2 + $0x60] sm:$0xf8]
        %v586 = vld [vmem:[#allocation2 + $0x68] sm:$0xf]
        %v587 = vld [vmem:[#allocation2 + $0x70] sm:$0xf8]
        %v588 = vld [vmem:[#allocation2 + $0x78] sm:$0xf]
        %v589 = vld [vmem:[#allocation2 + $0x80] sm:$0xf8]
        %v590 = vld [vmem:[#allocation2 + $0x88] sm:$0xf]
        %v591 = vld [vmem:[#allocation2 + $0x90] sm:$0xf8]
        %v592 = vld [vmem:[#allocation2 + $0x98] sm:$0xf]
        %v593 = vld [vmem:[#allocation2 + $0xa0] sm:$0xf8]
        %v594 = vld [vmem:[#allocation2 + $0xa8] sm:$0xf]
        %v595 = vld [vmem:[#allocation2 + $0xb0] sm:$0xf8]
        %v596 = vld [vmem:[#allocation2 + $0xb8] sm:$0xf]
        %v597 = vld [vmem:[#allocation2 + $0xc0] sm:$0xf8]
        %v598 = vld [vmem:[#allocation2 + $0xc8] sm:$0xf]
        %v599 = vld [vmem:[#allocation2 + $0xd0] sm:$0xf8]
        %v600 = vld [vmem:[#allocation2 + $0xd8] sm:$0xf]
        %v601 = vld [vmem:[#allocation2 + $0xe0] sm:$0xf8]
        %v602 = vld [vmem:[#allocation2 + $0xe8] sm:$0xf]
        %v603 = vld [vmem:[#allocation2 + $0xf0] sm:$0xf8]
        %v604 = vld [vmem:[#allocation2 + $0xf8] sm:$0xf]
        %v606 = vshrl.u32 %v573, 16
        %v608 = vrot.slane %v606, 3
        %v609 = vshll.u32 %v573, 16
        %v611 = vrot.slane %v609, 4
        %v612 = vor.u32 %v608, %v611
        %v614 = vshrl.u32 %v574, 16
        %v616 = vrot.slane %v614, 3
        %v617 = vshll.u32 %v574, 16
        %v619 = vrot.slane %v617, 4
        %v620 = vor.u32 %v616, %v619
        %v621 = vsel %vm363, %v612, %v620
        %v623 = vshrl.u32 %v575, 16
        %v625 = vrot.slane %v623, 3
        %v626 = vshll.u32 %v575, 16
        %v628 = vrot.slane %v626, 4
        %v629 = vor.u32 %v625, %v628
        %v631 = vshrl.u32 %v576, 16
        %v633 = vrot.slane %v631, 3
        %v634 = vshll.u32 %v576, 16
        %v636 = vrot.slane %v634, 4
        %v637 = vor.u32 %v633, %v636
        %v638 = vsel %vm363, %v629, %v637
        %v640 = vshrl.u32 %v577, 16
        %v642 = vrot.slane %v640, 3
        %v643 = vshll.u32 %v577, 16
        %v645 = vrot.slane %v643, 4
        %v646 = vor.u32 %v642, %v645
        %v648 = vshrl.u32 %v578, 16
        %v650 = vrot.slane %v648, 3
        %v651 = vshll.u32 %v578, 16
        %v653 = vrot.slane %v651, 4
        %v654 = vor.u32 %v650, %v653
        %v655 = vsel %vm363, %v646, %v654
        %v657 = vshrl.u32 %v579, 16
        %v659 = vrot.slane %v657, 3
        %v660 = vshll.u32 %v579, 16
        %v662 = vrot.slane %v660, 4
        %v663 = vor.u32 %v659, %v662
        %v665 = vshrl.u32 %v580, 16
        %v667 = vrot.slane %v665, 3
        %v668 = vshll.u32 %v580, 16
        %v670 = vrot.slane %v668, 4
        %v671 = vor.u32 %v667, %v670
        %v672 = vsel %vm363, %v663, %v671
        %v674 = vshrl.u32 %v581, 16
        %v676 = vrot.slane %v674, 3
        %v677 = vshll.u32 %v581, 16
        %v679 = vrot.slane %v677, 4
        %v680 = vor.u32 %v676, %v679
        %v682 = vshrl.u32 %v582, 16
        %v684 = vrot.slane %v682, 3
        %v685 = vshll.u32 %v582, 16
        %v687 = vrot.slane %v685, 4
        %v688 = vor.u32 %v684, %v687
        %v689 = vsel %vm363, %v680, %v688
        %v691 = vshrl.u32 %v583, 16
        %v693 = vrot.slane %v691, 3
        %v694 = vshll.u32 %v583, 16
        %v696 = vrot.slane %v694, 4
        %v697 = vor.u32 %v693, %v696
        %v699 = vshrl.u32 %v584, 16
        %v701 = vrot.slane %v699, 3
        %v702 = vshll.u32 %v584, 16
        %v704 = vrot.slane %v702, 4
        %v705 = vor.u32 %v701, %v704
        %v706 = vsel %vm363, %v697, %v705
        %v708 = vshrl.u32 %v585, 16
        %v710 = vrot.slane %v708, 3
        %v711 = vshll.u32 %v585, 16
        %v713 = vrot.slane %v711, 4
        %v714 = vor.u32 %v710, %v713
        %v716 = vshrl.u32 %v586, 16
        %v718 = vrot.slane %v716, 3
        %v719 = vshll.u32 %v586, 16
        %v721 = vrot.slane %v719, 4
        %v722 = vor.u32 %v718, %v721
        %v723 = vsel %vm363, %v714, %v722
        %v725 = vshrl.u32 %v587, 16
        %v727 = vrot.slane %v725, 3
        %v728 = vshll.u32 %v587, 16
        %v730 = vrot.slane %v728, 4
        %v731 = vor.u32 %v727, %v730
        %v733 = vshrl.u32 %v588, 16
        %v735 = vrot.slane %v733, 3
        %v736 = vshll.u32 %v588, 16
        %v738 = vrot.slane %v736, 4
        %v739 = vor.u32 %v735, %v738
        %v740 = vsel %vm363, %v731, %v739
        %v742 = vshrl.u32 %v589, 16
        %v744 = vrot.slane %v742, 3
        %v745 = vshll.u32 %v589, 16
        %v747 = vrot.slane %v745, 4
        %v748 = vor.u32 %v744, %v747
        %v750 = vshrl.u32 %v590, 16
        %v752 = vrot.slane %v750, 3
        %v753 = vshll.u32 %v590, 16
        %v755 = vrot.slane %v753, 4
        %v756 = vor.u32 %v752, %v755
        %v757 = vsel %vm363, %v748, %v756
        %v759 = vshrl.u32 %v591, 16
        %v761 = vrot.slane %v759, 3
        %v762 = vshll.u32 %v591, 16
        %v764 = vrot.slane %v762, 4
        %v765 = vor.u32 %v761, %v764
        %v767 = vshrl.u32 %v592, 16
        %v769 = vrot.slane %v767, 3
        %v770 = vshll.u32 %v592, 16
        %v772 = vrot.slane %v770, 4
        %v773 = vor.u32 %v769, %v772
        %v774 = vsel %vm363, %v765, %v773
        %v776 = vshrl.u32 %v593, 16
        %v778 = vrot.slane %v776, 3
        %v779 = vshll.u32 %v593, 16
        %v781 = vrot.slane %v779, 4
        %v782 = vor.u32 %v778, %v781
        %v784 = vshrl.u32 %v594, 16
        %v786 = vrot.slane %v784, 3
        %v787 = vshll.u32 %v594, 16
        %v789 = vrot.slane %v787, 4
        %v790 = vor.u32 %v786, %v789
        %v791 = vsel %vm363, %v782, %v790
        %v793 = vshrl.u32 %v595, 16
        %v795 = vrot.slane %v793, 3
        %v796 = vshll.u32 %v595, 16
        %v798 = vrot.slane %v796, 4
        %v799 = vor.u32 %v795, %v798
        %v801 = vshrl.u32 %v596, 16
        %v803 = vrot.slane %v801, 3
        %v804 = vshll.u32 %v596, 16
        %v806 = vrot.slane %v804, 4
        %v807 = vor.u32 %v803, %v806
        %v808 = vsel %vm363, %v799, %v807
        %v810 = vshrl.u32 %v597, 16
        %v812 = vrot.slane %v810, 3
        %v813 = vshll.u32 %v597, 16
        %v815 = vrot.slane %v813, 4
        %v816 = vor.u32 %v812, %v815
        %v818 = vshrl.u32 %v598, 16
        %v820 = vrot.slane %v818, 3
        %v821 = vshll.u32 %v598, 16
        %v823 = vrot.slane %v821, 4
        %v824 = vor.u32 %v820, %v823
        %v825 = vsel %vm363, %v816, %v824
        %v827 = vshrl.u32 %v599, 16
        %v829 = vrot.slane %v827, 3
        %v830 = vshll.u32 %v599, 16
        %v832 = vrot.slane %v830, 4
        %v833 = vor.u32 %v829, %v832
        %v835 = vshrl.u32 %v600, 16
        %v837 = vrot.slane %v835, 3
        %v838 = vshll.u32 %v600, 16
        %v840 = vrot.slane %v838, 4
        %v841 = vor.u32 %v837, %v840
        %v842 = vsel %vm363, %v833, %v841
        %v844 = vshrl.u32 %v601, 16
        %v846 = vrot.slane %v844, 3
        %v847 = vshll.u32 %v601, 16
        %v849 = vrot.slane %v847, 4
        %v850 = vor.u32 %v846, %v849
        %v852 = vshrl.u32 %v602, 16
        %v854 = vrot.slane %v852, 3
        %v855 = vshll.u32 %v602, 16
        %v857 = vrot.slane %v855, 4
        %v858 = vor.u32 %v854, %v857
        %v859 = vsel %vm363, %v850, %v858
        %v861 = vshrl.u32 %v603, 16
        %v863 = vrot.slane %v861, 3
        %v864 = vshll.u32 %v603, 16
        %v866 = vrot.slane %v864, 4
        %v867 = vor.u32 %v863, %v866
        %v869 = vshrl.u32 %v604, 16
        %v871 = vrot.slane %v869, 3
        %v872 = vshll.u32 %v604, 16
        %v874 = vrot.slane %v872, 4
        %v875 = vor.u32 %v871, %v874
        %v876 = vsel %vm363, %v867, %v875
        %893 = vst [vmem:[#allocation4] sm:$0xff] %v621
        %894 = vst [vmem:[#allocation4 + $0x48] sm:$0xff] %v638
        %895 = vst [vmem:[#allocation4 + $0x90] sm:$0xff] %v655
        %896 = vst [vmem:[#allocation4 + $0xd8] sm:$0xff] %v672
        %897 = vst [vmem:[#allocation4 + $0x120] sm:$0xff] %v689
        %898 = vst [vmem:[#allocation4 + $0x168] sm:$0xff] %v706
        %899 = vst [vmem:[#allocation4 + $0x1b0] sm:$0xff] %v723
        %900 = vst [vmem:[#allocation4 + $0x1f8] sm:$0xff] %v740
        %901 = vst [vmem:[#allocation4 + $0x240] sm:$0xff] %v757
        %902 = vst [vmem:[#allocation4 + $0x288] sm:$0xff] %v774
        %903 = vst [vmem:[#allocation4 + $0x2d0] sm:$0xff] %v791
        %904 = vst [vmem:[#allocation4 + $0x318] sm:$0xff] %v808
        %905 = vst [vmem:[#allocation4 + $0x360] sm:$0xff] %v825
        %906 = vst [vmem:[#allocation4 + $0x3a8] sm:$0xff] %v842
        %907 = vst [vmem:[#allocation4 + $0x3f0] sm:$0xff] %v859
        %908 = vst [vmem:[#allocation4 + $0x438] sm:$0xff] %v876
        %v909 = vld [vmem:[#allocation2] sm:$0xf0]
        %v910 = vld [vmem:[#allocation2 + $0x8] sm:$0xf]
        %v911 = vld [vmem:[#allocation2 + $0x10] sm:$0xf0]
        %v912 = vld [vmem:[#allocation2 + $0x18] sm:$0xf]
        %v913 = vld [vmem:[#allocation2 + $0x20] sm:$0xf0]
        %v914 = vld [vmem:[#allocation2 + $0x28] sm:$0xf]
        %v915 = vld [vmem:[#allocation2 + $0x30] sm:$0xf0]
        %v916 = vld [vmem:[#allocation2 + $0x38] sm:$0xf]
        %v917 = vld [vmem:[#allocation2 + $0x40] sm:$0xf0]
        %v918 = vld [vmem:[#allocation2 + $0x48] sm:$0xf]
        %v919 = vld [vmem:[#allocation2 + $0x50] sm:$0xf0]
        %v920 = vld [vmem:[#allocation2 + $0x58] sm:$0xf]
        %v921 = vld [vmem:[#allocation2 + $0x60] sm:$0xf0]
        %v922 = vld [vmem:[#allocation2 + $0x68] sm:$0xf]
        %v923 = vld [vmem:[#allocation2 + $0x70] sm:$0xf0]
        %v924 = vld [vmem:[#allocation2 + $0x78] sm:$0xf]
        %v925 = vld [vmem:[#allocation2 + $0x80] sm:$0xf0]
        %v926 = vld [vmem:[#allocation2 + $0x88] sm:$0xf]
        %v927 = vld [vmem:[#allocation2 + $0x90] sm:$0xf0]
        %v928 = vld [vmem:[#allocation2 + $0x98] sm:$0xf]
        %v929 = vld [vmem:[#allocation2 + $0xa0] sm:$0xf0]
        %v930 = vld [vmem:[#allocation2 + $0xa8] sm:$0xf]
        %v931 = vld [vmem:[#allocation2 + $0xb0] sm:$0xf0]
        %v932 = vld [vmem:[#allocation2 + $0xb8] sm:$0xf]
        %v933 = vld [vmem:[#allocation2 + $0xc0] sm:$0xf0]
        %v934 = vld [vmem:[#allocation2 + $0xc8] sm:$0xf]
        %v935 = vld [vmem:[#allocation2 + $0xd0] sm:$0xf0]
        %v936 = vld [vmem:[#allocation2 + $0xd8] sm:$0xf]
        %v937 = vld [vmem:[#allocation2 + $0xe0] sm:$0xf0]
        %v938 = vld [vmem:[#allocation2 + $0xe8] sm:$0xf]
        %v939 = vld [vmem:[#allocation2 + $0xf0] sm:$0xf0]
        %v940 = vld [vmem:[#allocation2 + $0xf8] sm:$0xf]
        %vm973 = vcmask 1043456
        %v974 = vrot.slane %v909, 4
        %v975 = vrot.slane %v910, 4
        %v976 = vsel %vm973, %v974, %v975
        %v977 = vrot.slane %v911, 4
        %v978 = vrot.slane %v912, 4
        %v979 = vsel %vm973, %v977, %v978
        %v980 = vrot.slane %v913, 4
        %v981 = vrot.slane %v914, 4
        %v982 = vsel %vm973, %v980, %v981
        %v983 = vrot.slane %v915, 4
        %v984 = vrot.slane %v916, 4
        %v985 = vsel %vm973, %v983, %v984
        %v986 = vrot.slane %v917, 4
        %v987 = vrot.slane %v918, 4
        %v988 = vsel %vm973, %v986, %v987
        %v989 = vrot.slane %v919, 4
        %v990 = vrot.slane %v920, 4
        %v991 = vsel %vm973, %v989, %v990
        %v992 = vrot.slane %v921, 4
        %v993 = vrot.slane %v922, 4
        %v994 = vsel %vm973, %v992, %v993
        %v995 = vrot.slane %v923, 4
        %v996 = vrot.slane %v924, 4
        %v997 = vsel %vm973, %v995, %v996
        %v998 = vrot.slane %v925, 4
        %v999 = vrot.slane %v926, 4
        %v1000 = vsel %vm973, %v998, %v999
        %v1001 = vrot.slane %v927, 4
        %v1002 = vrot.slane %v928, 4
        %v1003 = vsel %vm973, %v1001, %v1002
        %v1004 = vrot.slane %v929, 4
        %v1005 = vrot.slane %v930, 4
        %v1006 = vsel %vm973, %v1004, %v1005
        %v1007 = vrot.slane %v931, 4
        %v1008 = vrot.slane %v932, 4
        %v1009 = vsel %vm973, %v1007, %v1008
        %v1010 = vrot.slane %v933, 4
        %v1011 = vrot.slane %v934, 4
        %v1012 = vsel %vm973, %v1010, %v1011
        %v1013 = vrot.slane %v935, 4
        %v1014 = vrot.slane %v936, 4
        %v1015 = vsel %vm973, %v1013, %v1014
        %v1016 = vrot.slane %v937, 4
        %v1017 = vrot.slane %v938, 4
        %v1018 = vsel %vm973, %v1016, %v1017
        %v1019 = vrot.slane %v939, 4
        %v1020 = vrot.slane %v940, 4
        %v1021 = vsel %vm973, %v1019, %v1020
        %1038 = vst [vmem:[#allocation4 + $0x8] sm:$0xff] %v976
        %1039 = vst [vmem:[#allocation4 + $0x50] sm:$0xff] %v979
        %1040 = vst [vmem:[#allocation4 + $0x98] sm:$0xff] %v982
        %1041 = vst [vmem:[#allocation4 + $0xe0] sm:$0xff] %v985
        %1042 = vst [vmem:[#allocation4 + $0x128] sm:$0xff] %v988
        %1043 = vst [vmem:[#allocation4 + $0x170] sm:$0xff] %v991
        %1044 = vst [vmem:[#allocation4 + $0x1b8] sm:$0xff] %v994
        %1045 = vst [vmem:[#allocation4 + $0x200] sm:$0xff] %v997
        %1046 = vst [vmem:[#allocation4 + $0x248] sm:$0xff] %v1000
        %1047 = vst [vmem:[#allocation4 + $0x290] sm:$0xff] %v1003
        %1048 = vst [vmem:[#allocation4 + $0x2d8] sm:$0xff] %v1006
        %1049 = vst [vmem:[#allocation4 + $0x320] sm:$0xff] %v1009
        %1050 = vst [vmem:[#allocation4 + $0x368] sm:$0xff] %v1012
        %1051 = vst [vmem:[#allocation4 + $0x3b0] sm:$0xff] %v1015
        %1052 = vst [vmem:[#allocation4 + $0x3f8] sm:$0xff] %v1018
        %1053 = vst [vmem:[#allocation4 + $0x440] sm:$0xff] %v1021
        %v1054 = vld [vmem:[#allocation2] sm:$0xf0]
        %v1055 = vld [vmem:[#allocation2 + $0x8] sm:$0x1f]
        %v1056 = vld [vmem:[#allocation2 + $0x10] sm:$0xf0]
        %v1057 = vld [vmem:[#allocation2 + $0x18] sm:$0x1f]
        %v1058 = vld [vmem:[#allocation2 + $0x20] sm:$0xf0]
        %v1059 = vld [vmem:[#allocation2 + $0x28] sm:$0x1f]
        %v1060 = vld [vmem:[#allocation2 + $0x30] sm:$0xf0]
        %v1061 = vld [vmem:[#allocation2 + $0x38] sm:$0x1f]
        %v1062 = vld [vmem:[#allocation2 + $0x40] sm:$0xf0]
        %v1063 = vld [vmem:[#allocation2 + $0x48] sm:$0x1f]
        %v1064 = vld [vmem:[#allocation2 + $0x50] sm:$0xf0]
        %v1065 = vld [vmem:[#allocation2 + $0x58] sm:$0x1f]
        %v1066 = vld [vmem:[#allocation2 + $0x60] sm:$0xf0]
        %v1067 = vld [vmem:[#allocation2 + $0x68] sm:$0x1f]
        %v1068 = vld [vmem:[#allocation2 + $0x70] sm:$0xf0]
        %v1069 = vld [vmem:[#allocation2 + $0x78] sm:$0x1f]
        %v1070 = vld [vmem:[#allocation2 + $0x80] sm:$0xf0]
        %v1071 = vld [vmem:[#allocation2 + $0x88] sm:$0x1f]
        %v1072 = vld [vmem:[#allocation2 + $0x90] sm:$0xf0]
        %v1073 = vld [vmem:[#allocation2 + $0x98] sm:$0x1f]
        %v1074 = vld [vmem:[#allocation2 + $0xa0] sm:$0xf0]
        %v1075 = vld [vmem:[#allocation2 + $0xa8] sm:$0x1f]
        %v1076 = vld [vmem:[#allocation2 + $0xb0] sm:$0xf0]
        %v1077 = vld [vmem:[#allocation2 + $0xb8] sm:$0x1f]
        %v1078 = vld [vmem:[#allocation2 + $0xc0] sm:$0xf0]
        %v1079 = vld [vmem:[#allocation2 + $0xc8] sm:$0x1f]
        %v1080 = vld [vmem:[#allocation2 + $0xd0] sm:$0xf0]
        %v1081 = vld [vmem:[#allocation2 + $0xd8] sm:$0x1f]
        %v1082 = vld [vmem:[#allocation2 + $0xe0] sm:$0xf0]
        %v1083 = vld [vmem:[#allocation2 + $0xe8] sm:$0x1f]
        %v1084 = vld [vmem:[#allocation2 + $0xf0] sm:$0xf0]
        %v1085 = vld [vmem:[#allocation2 + $0xf8] sm:$0x1f]
        %vm1086 = vsmask.f32 3328
        %v1088 = vshrl.u32 %v1054, 16
        %v1090 = vrot.slane %v1088, 4
        %v1091 = vshll.u32 %v1054, 16
        %v1093 = vrot.slane %v1091, 5
        %v1094 = vor.u32 %v1090, %v1093
        %v1096 = vshrl.u32 %v1055, 16
        %v1098 = vrot.slane %v1096, 4
        %v1099 = vshll.u32 %v1055, 16
        %v1101 = vrot.slane %v1099, 5
        %v1102 = vor.u32 %v1098, %v1101
        %v1103 = vsel %vm1086, %v1094, %v1102
        %v1105 = vshrl.u32 %v1056, 16
        %v1107 = vrot.slane %v1105, 4
        %v1108 = vshll.u32 %v1056, 16
        %v1110 = vrot.slane %v1108, 5
        %v1111 = vor.u32 %v1107, %v1110
        %v1113 = vshrl.u32 %v1057, 16
        %v1115 = vrot.slane %v1113, 4
        %v1116 = vshll.u32 %v1057, 16
        %v1118 = vrot.slane %v1116, 5
        %v1119 = vor.u32 %v1115, %v1118
        %v1120 = vsel %vm1086, %v1111, %v1119
        %v1122 = vshrl.u32 %v1058, 16
        %v1124 = vrot.slane %v1122, 4
        %v1125 = vshll.u32 %v1058, 16
        %v1127 = vrot.slane %v1125, 5
        %v1128 = vor.u32 %v1124, %v1127
        %v1130 = vshrl.u32 %v1059, 16
        %v1132 = vrot.slane %v1130, 4
        %v1133 = vshll.u32 %v1059, 16
        %v1135 = vrot.slane %v1133, 5
        %v1136 = vor.u32 %v1132, %v1135
        %v1137 = vsel %vm1086, %v1128, %v1136
        %v1139 = vshrl.u32 %v1060, 16
        %v1141 = vrot.slane %v1139, 4
        %v1142 = vshll.u32 %v1060, 16
        %v1144 = vrot.slane %v1142, 5
        %v1145 = vor.u32 %v1141, %v1144
        %v1147 = vshrl.u32 %v1061, 16
        %v1149 = vrot.slane %v1147, 4
        %v1150 = vshll.u32 %v1061, 16
        %v1152 = vrot.slane %v1150, 5
        %v1153 = vor.u32 %v1149, %v1152
        %v1154 = vsel %vm1086, %v1145, %v1153
        %v1156 = vshrl.u32 %v1062, 16
        %v1158 = vrot.slane %v1156, 4
        %v1159 = vshll.u32 %v1062, 16
        %v1161 = vrot.slane %v1159, 5
        %v1162 = vor.u32 %v1158, %v1161
        %v1164 = vshrl.u32 %v1063, 16
        %v1166 = vrot.slane %v1164, 4
        %v1167 = vshll.u32 %v1063, 16
        %v1169 = vrot.slane %v1167, 5
        %v1170 = vor.u32 %v1166, %v1169
        %v1171 = vsel %vm1086, %v1162, %v1170
        %v1173 = vshrl.u32 %v1064, 16
        %v1175 = vrot.slane %v1173, 4
        %v1176 = vshll.u32 %v1064, 16
        %v1178 = vrot.slane %v1176, 5
        %v1179 = vor.u32 %v1175, %v1178
        %v1181 = vshrl.u32 %v1065, 16
        %v1183 = vrot.slane %v1181, 4
        %v1184 = vshll.u32 %v1065, 16
        %v1186 = vrot.slane %v1184, 5
        %v1187 = vor.u32 %v1183, %v1186
        %v1188 = vsel %vm1086, %v1179, %v1187
        %v1190 = vshrl.u32 %v1066, 16
        %v1192 = vrot.slane %v1190, 4
        %v1193 = vshll.u32 %v1066, 16
        %v1195 = vrot.slane %v1193, 5
        %v1196 = vor.u32 %v1192, %v1195
        %v1198 = vshrl.u32 %v1067, 16
        %v1200 = vrot.slane %v1198, 4
        %v1201 = vshll.u32 %v1067, 16
        %v1203 = vrot.slane %v1201, 5
        %v1204 = vor.u32 %v1200, %v1203
        %v1205 = vsel %vm1086, %v1196, %v1204
        %v1207 = vshrl.u32 %v1068, 16
        %v1209 = vrot.slane %v1207, 4
        %v1210 = vshll.u32 %v1068, 16
        %v1212 = vrot.slane %v1210, 5
        %v1213 = vor.u32 %v1209, %v1212
        %v1215 = vshrl.u32 %v1069, 16
        %v1217 = vrot.slane %v1215, 4
        %v1218 = vshll.u32 %v1069, 16
        %v1220 = vrot.slane %v1218, 5
        %v1221 = vor.u32 %v1217, %v1220
        %v1222 = vsel %vm1086, %v1213, %v1221
        %v1224 = vshrl.u32 %v1070, 16
        %v1226 = vrot.slane %v1224, 4
        %v1227 = vshll.u32 %v1070, 16
        %v1229 = vrot.slane %v1227, 5
        %v1230 = vor.u32 %v1226, %v1229
        %v1232 = vshrl.u32 %v1071, 16
        %v1234 = vrot.slane %v1232, 4
        %v1235 = vshll.u32 %v1071, 16
        %v1237 = vrot.slane %v1235, 5
        %v1238 = vor.u32 %v1234, %v1237
        %v1239 = vsel %vm1086, %v1230, %v1238
        %v1241 = vshrl.u32 %v1072, 16
        %v1243 = vrot.slane %v1241, 4
        %v1244 = vshll.u32 %v1072, 16
        %v1246 = vrot.slane %v1244, 5
        %v1247 = vor.u32 %v1243, %v1246
        %v1249 = vshrl.u32 %v1073, 16
        %v1251 = vrot.slane %v1249, 4
        %v1252 = vshll.u32 %v1073, 16
        %v1254 = vrot.slane %v1252, 5
        %v1255 = vor.u32 %v1251, %v1254
        %v1256 = vsel %vm1086, %v1247, %v1255
        %v1258 = vshrl.u32 %v1074, 16
        %v1260 = vrot.slane %v1258, 4
        %v1261 = vshll.u32 %v1074, 16
        %v1263 = vrot.slane %v1261, 5
        %v1264 = vor.u32 %v1260, %v1263
        %v1266 = vshrl.u32 %v1075, 16
        %v1268 = vrot.slane %v1266, 4
        %v1269 = vshll.u32 %v1075, 16
        %v1271 = vrot.slane %v1269, 5
        %v1272 = vor.u32 %v1268, %v1271
        %v1273 = vsel %vm1086, %v1264, %v1272
        %v1275 = vshrl.u32 %v1076, 16
        %v1277 = vrot.slane %v1275, 4
        %v1278 = vshll.u32 %v1076, 16
        %v1280 = vrot.slane %v1278, 5
        %v1281 = vor.u32 %v1277, %v1280
        %v1283 = vshrl.u32 %v1077, 16
        %v1285 = vrot.slane %v1283, 4
        %v1286 = vshll.u32 %v1077, 16
        %v1288 = vrot.slane %v1286, 5
        %v1289 = vor.u32 %v1285, %v1288
        %v1290 = vsel %vm1086, %v1281, %v1289
        %v1292 = vshrl.u32 %v1078, 16
        %v1294 = vrot.slane %v1292, 4
        %v1295 = vshll.u32 %v1078, 16
        %v1297 = vrot.slane %v1295, 5
        %v1298 = vor.u32 %v1294, %v1297
        %v1300 = vshrl.u32 %v1079, 16
        %v1302 = vrot.slane %v1300, 4
        %v1303 = vshll.u32 %v1079, 16
        %v1305 = vrot.slane %v1303, 5
        %v1306 = vor.u32 %v1302, %v1305
        %v1307 = vsel %vm1086, %v1298, %v1306
        %v1309 = vshrl.u32 %v1080, 16
        %v1311 = vrot.slane %v1309, 4
        %v1312 = vshll.u32 %v1080, 16
        %v1314 = vrot.slane %v1312, 5
        %v1315 = vor.u32 %v1311, %v1314
        %v1317 = vshrl.u32 %v1081, 16
        %v1319 = vrot.slane %v1317, 4
        %v1320 = vshll.u32 %v1081, 16
        %v1322 = vrot.slane %v1320, 5
        %v1323 = vor.u32 %v1319, %v1322
        %v1324 = vsel %vm1086, %v1315, %v1323
        %v1326 = vshrl.u32 %v1082, 16
        %v1328 = vrot.slane %v1326, 4
        %v1329 = vshll.u32 %v1082, 16
        %v1331 = vrot.slane %v1329, 5
        %v1332 = vor.u32 %v1328, %v1331
        %v1334 = vshrl.u32 %v1083, 16
        %v1336 = vrot.slane %v1334, 4
        %v1337 = vshll.u32 %v1083, 16
        %v1339 = vrot.slane %v1337, 5
        %v1340 = vor.u32 %v1336, %v1339
        %v1341 = vsel %vm1086, %v1332, %v1340
        %v1343 = vshrl.u32 %v1084, 16
        %v1345 = vrot.slane %v1343, 4
        %v1346 = vshll.u32 %v1084, 16
        %v1348 = vrot.slane %v1346, 5
        %v1349 = vor.u32 %v1345, %v1348
        %v1351 = vshrl.u32 %v1085, 16
        %v1353 = vrot.slane %v1351, 4
        %v1354 = vshll.u32 %v1085, 16
        %v1356 = vrot.slane %v1354, 5
        %v1357 = vor.u32 %v1353, %v1356
        %v1358 = vsel %vm1086, %v1349, %v1357
        %1375 = vst [vmem:[#allocation4 + $0x10] sm:$0xff] %v1103
        %1376 = vst [vmem:[#allocation4 + $0x58] sm:$0xff] %v1120
        %1377 = vst [vmem:[#allocation4 + $0xa0] sm:$0xff] %v1137
        %1378 = vst [vmem:[#allocation4 + $0xe8] sm:$0xff] %v1154
        %1379 = vst [vmem:[#allocation4 + $0x130] sm:$0xff] %v1171
        %1380 = vst [vmem:[#allocation4 + $0x178] sm:$0xff] %v1188
        %1381 = vst [vmem:[#allocation4 + $0x1c0] sm:$0xff] %v1205
        %1382 = vst [vmem:[#allocation4 + $0x208] sm:$0xff] %v1222
        %1383 = vst [vmem:[#allocation4 + $0x250] sm:$0xff] %v1239
        %1384 = vst [vmem:[#allocation4 + $0x298] sm:$0xff] %v1256
        %1385 = vst [vmem:[#allocation4 + $0x2e0] sm:$0xff] %v1273
        %1386 = vst [vmem:[#allocation4 + $0x328] sm:$0xff] %v1290
        %1387 = vst [vmem:[#allocation4 + $0x370] sm:$0xff] %v1307
        %1388 = vst [vmem:[#allocation4 + $0x3b8] sm:$0xff] %v1324
        %1389 = vst [vmem:[#allocation4 + $0x400] sm:$0xff] %v1341
        %1390 = vst [vmem:[#allocation4 + $0x448] sm:$0xff] %v1358
        %v1391 = vld [vmem:[%s310] sm:$0xf8]
        %v1392 = vld [vmem:[%s310 + $0x8] sm:$0xf]
        %v1393 = vld [vmem:[%s310 + $0x10] sm:$0xf8]
        %v1394 = vld [vmem:[%s310 + $0x18] sm:$0xf]
        %v1395 = vld [vmem:[%s310 + $0x20] sm:$0xf8]
        %v1396 = vld [vmem:[%s310 + $0x28] sm:$0xf]
        %v1397 = vld [vmem:[%s310 + $0x30] sm:$0xf8]
        %v1398 = vld [vmem:[%s310 + $0x38] sm:$0xf]
        %v1399 = vld [vmem:[%s310 + $0x40] sm:$0xf8]
        %v1400 = vld [vmem:[%s310 + $0x48] sm:$0xf]
        %v1401 = vld [vmem:[%s310 + $0x50] sm:$0xf8]
        %v1402 = vld [vmem:[%s310 + $0x58] sm:$0xf]
        %v1403 = vld [vmem:[%s310 + $0x60] sm:$0xf8]
        %v1404 = vld [vmem:[%s310 + $0x68] sm:$0xf]
        %v1405 = vld [vmem:[%s310 + $0x70] sm:$0xf8]
        %v1406 = vld [vmem:[%s310 + $0x78] sm:$0xf]
        %v1407 = vld [vmem:[%s310 + $0x80] sm:$0xf8]
        %v1408 = vld [vmem:[%s310 + $0x88] sm:$0xf]
        %v1409 = vld [vmem:[%s310 + $0x90] sm:$0xf8]
        %v1410 = vld [vmem:[%s310 + $0x98] sm:$0xf]
        %v1411 = vld [vmem:[%s310 + $0xa0] sm:$0xf8]
        %v1412 = vld [vmem:[%s310 + $0xa8] sm:$0xf]
        %v1413 = vld [vmem:[%s310 + $0xb0] sm:$0xf8]
        %v1414 = vld [vmem:[%s310 + $0xb8] sm:$0xf]
        %v1415 = vld [vmem:[%s310 + $0xc0] sm:$0xf8]
        %v1416 = vld [vmem:[%s310 + $0xc8] sm:$0xf]
        %v1417 = vld [vmem:[%s310 + $0xd0] sm:$0xf8]
        %v1418 = vld [vmem:[%s310 + $0xd8] sm:$0xf]
        %v1419 = vld [vmem:[%s310 + $0xe0] sm:$0xf8]
        %v1420 = vld [vmem:[%s310 + $0xe8] sm:$0xf]
        %v1421 = vld [vmem:[%s310 + $0xf0] sm:$0xf8]
        %v1422 = vld [vmem:[%s310 + $0xf8] sm:$0xf]
        %v1424 = vshrl.u32 %v1391, 16
        %v1426 = vrot.slane %v1424, 3
        %v1427 = vshll.u32 %v1391, 16
        %v1429 = vrot.slane %v1427, 4
        %v1430 = vor.u32 %v1426, %v1429
        %v1432 = vshrl.u32 %v1392, 16
        %v1434 = vrot.slane %v1432, 3
        %v1435 = vshll.u32 %v1392, 16
        %v1437 = vrot.slane %v1435, 4
        %v1438 = vor.u32 %v1434, %v1437
        %v1439 = vsel %vm363, %v1430, %v1438
        %v1441 = vshrl.u32 %v1393, 16
        %v1443 = vrot.slane %v1441, 3
        %v1444 = vshll.u32 %v1393, 16
        %v1446 = vrot.slane %v1444, 4
        %v1447 = vor.u32 %v1443, %v1446
        %v1449 = vshrl.u32 %v1394, 16
        %v1451 = vrot.slane %v1449, 3
        %v1452 = vshll.u32 %v1394, 16
        %v1454 = vrot.slane %v1452, 4
        %v1455 = vor.u32 %v1451, %v1454
        %v1456 = vsel %vm363, %v1447, %v1455
        %v1458 = vshrl.u32 %v1395, 16
        %v1460 = vrot.slane %v1458, 3
        %v1461 = vshll.u32 %v1395, 16
        %v1463 = vrot.slane %v1461, 4
        %v1464 = vor.u32 %v1460, %v1463
        %v1466 = vshrl.u32 %v1396, 16
        %v1468 = vrot.slane %v1466, 3
        %v1469 = vshll.u32 %v1396, 16
        %v1471 = vrot.slane %v1469, 4
        %v1472 = vor.u32 %v1468, %v1471
        %v1473 = vsel %vm363, %v1464, %v1472
        %v1475 = vshrl.u32 %v1397, 16
        %v1477 = vrot.slane %v1475, 3
        %v1478 = vshll.u32 %v1397, 16
        %v1480 = vrot.slane %v1478, 4
        %v1481 = vor.u32 %v1477, %v1480
        %v1483 = vshrl.u32 %v1398, 16
        %v1485 = vrot.slane %v1483, 3
        %v1486 = vshll.u32 %v1398, 16
        %v1488 = vrot.slane %v1486, 4
        %v1489 = vor.u32 %v1485, %v1488
        %v1490 = vsel %vm363, %v1481, %v1489
        %v1492 = vshrl.u32 %v1399, 16
        %v1494 = vrot.slane %v1492, 3
        %v1495 = vshll.u32 %v1399, 16
        %v1497 = vrot.slane %v1495, 4
        %v1498 = vor.u32 %v1494, %v1497
        %v1500 = vshrl.u32 %v1400, 16
        %v1502 = vrot.slane %v1500, 3
        %v1503 = vshll.u32 %v1400, 16
        %v1505 = vrot.slane %v1503, 4
        %v1506 = vor.u32 %v1502, %v1505
        %v1507 = vsel %vm363, %v1498, %v1506
        %v1509 = vshrl.u32 %v1401, 16
        %v1511 = vrot.slane %v1509, 3
        %v1512 = vshll.u32 %v1401, 16
        %v1514 = vrot.slane %v1512, 4
        %v1515 = vor.u32 %v1511, %v1514
        %v1517 = vshrl.u32 %v1402, 16
        %v1519 = vrot.slane %v1517, 3
        %v1520 = vshll.u32 %v1402, 16
        %v1522 = vrot.slane %v1520, 4
        %v1523 = vor.u32 %v1519, %v1522
        %v1524 = vsel %vm363, %v1515, %v1523
        %v1526 = vshrl.u32 %v1403, 16
        %v1528 = vrot.slane %v1526, 3
        %v1529 = vshll.u32 %v1403, 16
        %v1531 = vrot.slane %v1529, 4
        %v1532 = vor.u32 %v1528, %v1531
        %v1534 = vshrl.u32 %v1404, 16
        %v1536 = vrot.slane %v1534, 3
        %v1537 = vshll.u32 %v1404, 16
        %v1539 = vrot.slane %v1537, 4
        %v1540 = vor.u32 %v1536, %v1539
        %v1541 = vsel %vm363, %v1532, %v1540
        %v1543 = vshrl.u32 %v1405, 16
        %v1545 = vrot.slane %v1543, 3
        %v1546 = vshll.u32 %v1405, 16
        %v1548 = vrot.slane %v1546, 4
        %v1549 = vor.u32 %v1545, %v1548
        %v1551 = vshrl.u32 %v1406, 16
        %v1553 = vrot.slane %v1551, 3
        %v1554 = vshll.u32 %v1406, 16
        %v1556 = vrot.slane %v1554, 4
        %v1557 = vor.u32 %v1553, %v1556
        %v1558 = vsel %vm363, %v1549, %v1557
        %v1560 = vshrl.u32 %v1407, 16
        %v1562 = vrot.slane %v1560, 3
        %v1563 = vshll.u32 %v1407, 16
        %v1565 = vrot.slane %v1563, 4
        %v1566 = vor.u32 %v1562, %v1565
        %v1568 = vshrl.u32 %v1408, 16
        %v1570 = vrot.slane %v1568, 3
        %v1571 = vshll.u32 %v1408, 16
        %v1573 = vrot.slane %v1571, 4
        %v1574 = vor.u32 %v1570, %v1573
        %v1575 = vsel %vm363, %v1566, %v1574
        %v1577 = vshrl.u32 %v1409, 16
        %v1579 = vrot.slane %v1577, 3
        %v1580 = vshll.u32 %v1409, 16
        %v1582 = vrot.slane %v1580, 4
        %v1583 = vor.u32 %v1579, %v1582
        %v1585 = vshrl.u32 %v1410, 16
        %v1587 = vrot.slane %v1585, 3
        %v1588 = vshll.u32 %v1410, 16
        %v1590 = vrot.slane %v1588, 4
        %v1591 = vor.u32 %v1587, %v1590
        %v1592 = vsel %vm363, %v1583, %v1591
        %v1594 = vshrl.u32 %v1411, 16
        %v1596 = vrot.slane %v1594, 3
        %v1597 = vshll.u32 %v1411, 16
        %v1599 = vrot.slane %v1597, 4
        %v1600 = vor.u32 %v1596, %v1599
        %v1602 = vshrl.u32 %v1412, 16
        %v1604 = vrot.slane %v1602, 3
        %v1605 = vshll.u32 %v1412, 16
        %v1607 = vrot.slane %v1605, 4
        %v1608 = vor.u32 %v1604, %v1607
        %v1609 = vsel %vm363, %v1600, %v1608
        %v1611 = vshrl.u32 %v1413, 16
        %v1613 = vrot.slane %v1611, 3
        %v1614 = vshll.u32 %v1413, 16
        %v1616 = vrot.slane %v1614, 4
        %v1617 = vor.u32 %v1613, %v1616
        %v1619 = vshrl.u32 %v1414, 16
        %v1621 = vrot.slane %v1619, 3
        %v1622 = vshll.u32 %v1414, 16
        %v1624 = vrot.slane %v1622, 4
        %v1625 = vor.u32 %v1621, %v1624
        %v1626 = vsel %vm363, %v1617, %v1625
        %v1628 = vshrl.u32 %v1415, 16
        %v1630 = vrot.slane %v1628, 3
        %v1631 = vshll.u32 %v1415, 16
        %v1633 = vrot.slane %v1631, 4
        %v1634 = vor.u32 %v1630, %v1633
        %v1636 = vshrl.u32 %v1416, 16
        %v1638 = vrot.slane %v1636, 3
        %v1639 = vshll.u32 %v1416, 16
        %v1641 = vrot.slane %v1639, 4
        %v1642 = vor.u32 %v1638, %v1641
        %v1643 = vsel %vm363, %v1634, %v1642
        %v1645 = vshrl.u32 %v1417, 16
        %v1647 = vrot.slane %v1645, 3
        %v1648 = vshll.u32 %v1417, 16
        %v1650 = vrot.slane %v1648, 4
        %v1651 = vor.u32 %v1647, %v1650
        %v1653 = vshrl.u32 %v1418, 16
        %v1655 = vrot.slane %v1653, 3
        %v1656 = vshll.u32 %v1418, 16
        %v1658 = vrot.slane %v1656, 4
        %v1659 = vor.u32 %v1655, %v1658
        %v1660 = vsel %vm363, %v1651, %v1659
        %v1662 = vshrl.u32 %v1419, 16
        %v1664 = vrot.slane %v1662, 3
        %v1665 = vshll.u32 %v1419, 16
        %v1667 = vrot.slane %v1665, 4
        %v1668 = vor.u32 %v1664, %v1667
        %v1670 = vshrl.u32 %v1420, 16
        %v1672 = vrot.slane %v1670, 3
        %v1673 = vshll.u32 %v1420, 16
        %v1675 = vrot.slane %v1673, 4
        %v1676 = vor.u32 %v1672, %v1675
        %v1677 = vsel %vm363, %v1668, %v1676
        %v1679 = vshrl.u32 %v1421, 16
        %v1681 = vrot.slane %v1679, 3
        %v1682 = vshll.u32 %v1421, 16
        %v1684 = vrot.slane %v1682, 4
        %v1685 = vor.u32 %v1681, %v1684
        %v1687 = vshrl.u32 %v1422, 16
        %v1689 = vrot.slane %v1687, 3
        %v1690 = vshll.u32 %v1422, 16
        %v1692 = vrot.slane %v1690, 4
        %v1693 = vor.u32 %v1689, %v1692
        %v1694 = vsel %vm363, %v1685, %v1693
        %1711 = vst [vmem:[#allocation4 + $0x18] sm:$0xff] %v1439
        %1712 = vst [vmem:[#allocation4 + $0x60] sm:$0xff] %v1456
        %1713 = vst [vmem:[#allocation4 + $0xa8] sm:$0xff] %v1473
        %1714 = vst [vmem:[#allocation4 + $0xf0] sm:$0xff] %v1490
        %1715 = vst [vmem:[#allocation4 + $0x138] sm:$0xff] %v1507
        %1716 = vst [vmem:[#allocation4 + $0x180] sm:$0xff] %v1524
        %1717 = vst [vmem:[#allocation4 + $0x1c8] sm:$0xff] %v1541
        %1718 = vst [vmem:[#allocation4 + $0x210] sm:$0xff] %v1558
        %1719 = vst [vmem:[#allocation4 + $0x258] sm:$0xff] %v1575
        %1720 = vst [vmem:[#allocation4 + $0x2a0] sm:$0xff] %v1592
        %1721 = vst [vmem:[#allocation4 + $0x2e8] sm:$0xff] %v1609
        %1722 = vst [vmem:[#allocation4 + $0x330] sm:$0xff] %v1626
        %1723 = vst [vmem:[#allocation4 + $0x378] sm:$0xff] %v1643
        %1724 = vst [vmem:[#allocation4 + $0x3c0] sm:$0xff] %v1660
        %1725 = vst [vmem:[#allocation4 + $0x408] sm:$0xff] %v1677
        %1726 = vst [vmem:[#allocation4 + $0x450] sm:$0xff] %v1694
        %v1727 = vld [vmem:[%s310] sm:$0xf0]
        %v1728 = vld [vmem:[%s310 + $0x8] sm:$0xf]
        %v1729 = vld [vmem:[%s310 + $0x10] sm:$0xf0]
        %v1730 = vld [vmem:[%s310 + $0x18] sm:$0xf]
        %v1731 = vld [vmem:[%s310 + $0x20] sm:$0xf0]
        %v1732 = vld [vmem:[%s310 + $0x28] sm:$0xf]
        %v1733 = vld [vmem:[%s310 + $0x30] sm:$0xf0]
        %v1734 = vld [vmem:[%s310 + $0x38] sm:$0xf]
        %v1735 = vld [vmem:[%s310 + $0x40] sm:$0xf0]
        %v1736 = vld [vmem:[%s310 + $0x48] sm:$0xf]
        %v1737 = vld [vmem:[%s310 + $0x50] sm:$0xf0]
        %v1738 = vld [vmem:[%s310 + $0x58] sm:$0xf]
        %v1739 = vld [vmem:[%s310 + $0x60] sm:$0xf0]
        %v1740 = vld [vmem:[%s310 + $0x68] sm:$0xf]
        %v1741 = vld [vmem:[%s310 + $0x70] sm:$0xf0]
        %v1742 = vld [vmem:[%s310 + $0x78] sm:$0xf]
        %v1743 = vld [vmem:[%s310 + $0x80] sm:$0xf0]
        %v1744 = vld [vmem:[%s310 + $0x88] sm:$0xf]
        %v1745 = vld [vmem:[%s310 + $0x90] sm:$0xf0]
        %v1746 = vld [vmem:[%s310 + $0x98] sm:$0xf]
        %v1747 = vld [vmem:[%s310 + $0xa0] sm:$0xf0]
        %v1748 = vld [vmem:[%s310 + $0xa8] sm:$0xf]
        %v1749 = vld [vmem:[%s310 + $0xb0] sm:$0xf0]
        %v1750 = vld [vmem:[%s310 + $0xb8] sm:$0xf]
        %v1751 = vld [vmem:[%s310 + $0xc0] sm:$0xf0]
        %v1752 = vld [vmem:[%s310 + $0xc8] sm:$0xf]
        %v1753 = vld [vmem:[%s310 + $0xd0] sm:$0xf0]
        %v1754 = vld [vmem:[%s310 + $0xd8] sm:$0xf]
        %v1755 = vld [vmem:[%s310 + $0xe0] sm:$0xf0]
        %v1756 = vld [vmem:[%s310 + $0xe8] sm:$0xf]
        %v1757 = vld [vmem:[%s310 + $0xf0] sm:$0xf0]
        %v1758 = vld [vmem:[%s310 + $0xf8] sm:$0xf]
        %v1791 = vrot.slane %v1727, 4
        %v1792 = vrot.slane %v1728, 4
        %v1793 = vsel %vm973, %v1791, %v1792
        %v1794 = vrot.slane %v1729, 4
        %v1795 = vrot.slane %v1730, 4
        %v1796 = vsel %vm973, %v1794, %v1795
        %v1797 = vrot.slane %v1731, 4
        %v1798 = vrot.slane %v1732, 4
        %v1799 = vsel %vm973, %v1797, %v1798
        %v1800 = vrot.slane %v1733, 4
        %v1801 = vrot.slane %v1734, 4
        %v1802 = vsel %vm973, %v1800, %v1801
        %v1803 = vrot.slane %v1735, 4
        %v1804 = vrot.slane %v1736, 4
        %v1805 = vsel %vm973, %v1803, %v1804
        %v1806 = vrot.slane %v1737, 4
        %v1807 = vrot.slane %v1738, 4
        %v1808 = vsel %vm973, %v1806, %v1807
        %v1809 = vrot.slane %v1739, 4
        %v1810 = vrot.slane %v1740, 4
        %v1811 = vsel %vm973, %v1809, %v1810
        %v1812 = vrot.slane %v1741, 4
        %v1813 = vrot.slane %v1742, 4
        %v1814 = vsel %vm973, %v1812, %v1813
        %v1815 = vrot.slane %v1743, 4
        %v1816 = vrot.slane %v1744, 4
        %v1817 = vsel %vm973, %v1815, %v1816
        %v1818 = vrot.slane %v1745, 4
        %v1819 = vrot.slane %v1746, 4
        %v1820 = vsel %vm973, %v1818, %v1819
        %v1821 = vrot.slane %v1747, 4
        %v1822 = vrot.slane %v1748, 4
        %v1823 = vsel %vm973, %v1821, %v1822
        %v1824 = vrot.slane %v1749, 4
        %v1825 = vrot.slane %v1750, 4
        %v1826 = vsel %vm973, %v1824, %v1825
        %v1827 = vrot.slane %v1751, 4
        %v1828 = vrot.slane %v1752, 4
        %v1829 = vsel %vm973, %v1827, %v1828
        %v1830 = vrot.slane %v1753, 4
        %v1831 = vrot.slane %v1754, 4
        %v1832 = vsel %vm973, %v1830, %v1831
        %v1833 = vrot.slane %v1755, 4
        %v1834 = vrot.slane %v1756, 4
        %v1835 = vsel %vm973, %v1833, %v1834
        %v1836 = vrot.slane %v1757, 4
        %v1837 = vrot.slane %v1758, 4
        %v1838 = vsel %vm973, %v1836, %v1837
        %1855 = vst [vmem:[#allocation4 + $0x20] sm:$0xff] %v1793
        %1856 = vst [vmem:[#allocation4 + $0x68] sm:$0xff] %v1796
        %1857 = vst [vmem:[#allocation4 + $0xb0] sm:$0xff] %v1799
        %1858 = vst [vmem:[#allocation4 + $0xf8] sm:$0xff] %v1802
        %1859 = vst [vmem:[#allocation4 + $0x140] sm:$0xff] %v1805
        %1860 = vst [vmem:[#allocation4 + $0x188] sm:$0xff] %v1808
        %1861 = vst [vmem:[#allocation4 + $0x1d0] sm:$0xff] %v1811
        %1862 = vst [vmem:[#allocation4 + $0x218] sm:$0xff] %v1814
        %1863 = vst [vmem:[#allocation4 + $0x260] sm:$0xff] %v1817
        %1864 = vst [vmem:[#allocation4 + $0x2a8] sm:$0xff] %v1820
        %1865 = vst [vmem:[#allocation4 + $0x2f0] sm:$0xff] %v1823
        %1866 = vst [vmem:[#allocation4 + $0x338] sm:$0xff] %v1826
        %1867 = vst [vmem:[#allocation4 + $0x380] sm:$0xff] %v1829
        %1868 = vst [vmem:[#allocation4 + $0x3c8] sm:$0xff] %v1832
        %1869 = vst [vmem:[#allocation4 + $0x410] sm:$0xff] %v1835
        %1870 = vst [vmem:[#allocation4 + $0x458] sm:$0xff] %v1838
        %v1871 = vld [vmem:[%s310] sm:$0xf0]
        %v1872 = vld [vmem:[%s310 + $0x8] sm:$0x1f]
        %v1873 = vld [vmem:[%s310 + $0x10] sm:$0xf0]
        %v1874 = vld [vmem:[%s310 + $0x18] sm:$0x1f]
        %v1875 = vld [vmem:[%s310 + $0x20] sm:$0xf0]
        %v1876 = vld [vmem:[%s310 + $0x28] sm:$0x1f]
        %v1877 = vld [vmem:[%s310 + $0x30] sm:$0xf0]
        %v1878 = vld [vmem:[%s310 + $0x38] sm:$0x1f]
        %v1879 = vld [vmem:[%s310 + $0x40] sm:$0xf0]
        %v1880 = vld [vmem:[%s310 + $0x48] sm:$0x1f]
        %v1881 = vld [vmem:[%s310 + $0x50] sm:$0xf0]
        %v1882 = vld [vmem:[%s310 + $0x58] sm:$0x1f]
        %v1883 = vld [vmem:[%s310 + $0x60] sm:$0xf0]
        %v1884 = vld [vmem:[%s310 + $0x68] sm:$0x1f]
        %v1885 = vld [vmem:[%s310 + $0x70] sm:$0xf0]
        %v1886 = vld [vmem:[%s310 + $0x78] sm:$0x1f]
        %v1887 = vld [vmem:[%s310 + $0x80] sm:$0xf0]
        %v1888 = vld [vmem:[%s310 + $0x88] sm:$0x1f]
        %v1889 = vld [vmem:[%s310 + $0x90] sm:$0xf0]
        %v1890 = vld [vmem:[%s310 + $0x98] sm:$0x1f]
        %v1891 = vld [vmem:[%s310 + $0xa0] sm:$0xf0]
        %v1892 = vld [vmem:[%s310 + $0xa8] sm:$0x1f]
        %v1893 = vld [vmem:[%s310 + $0xb0] sm:$0xf0]
        %v1894 = vld [vmem:[%s310 + $0xb8] sm:$0x1f]
        %v1895 = vld [vmem:[%s310 + $0xc0] sm:$0xf0]
        %v1896 = vld [vmem:[%s310 + $0xc8] sm:$0x1f]
        %v1897 = vld [vmem:[%s310 + $0xd0] sm:$0xf0]
        %v1898 = vld [vmem:[%s310 + $0xd8] sm:$0x1f]
        %v1899 = vld [vmem:[%s310 + $0xe0] sm:$0xf0]
        %v1900 = vld [vmem:[%s310 + $0xe8] sm:$0x1f]
        %v1901 = vld [vmem:[%s310 + $0xf0] sm:$0xf0]
        %v1902 = vld [vmem:[%s310 + $0xf8] sm:$0x1f]
        %v1904 = vshrl.u32 %v1871, 16
        %v1906 = vrot.slane %v1904, 4
        %v1907 = vshll.u32 %v1871, 16
        %v1909 = vrot.slane %v1907, 5
        %v1910 = vor.u32 %v1906, %v1909
        %v1912 = vshrl.u32 %v1872, 16
        %v1914 = vrot.slane %v1912, 4
        %v1915 = vshll.u32 %v1872, 16
        %v1917 = vrot.slane %v1915, 5
        %v1918 = vor.u32 %v1914, %v1917
        %v1919 = vsel %vm1086, %v1910, %v1918
        %v1921 = vshrl.u32 %v1873, 16
        %v1923 = vrot.slane %v1921, 4
        %v1924 = vshll.u32 %v1873, 16
        %v1926 = vrot.slane %v1924, 5
        %v1927 = vor.u32 %v1923, %v1926
        %v1929 = vshrl.u32 %v1874, 16
        %v1931 = vrot.slane %v1929, 4
        %v1932 = vshll.u32 %v1874, 16
        %v1934 = vrot.slane %v1932, 5
        %v1935 = vor.u32 %v1931, %v1934
        %v1936 = vsel %vm1086, %v1927, %v1935
        %v1938 = vshrl.u32 %v1875, 16
        %v1940 = vrot.slane %v1938, 4
        %v1941 = vshll.u32 %v1875, 16
        %v1943 = vrot.slane %v1941, 5
        %v1944 = vor.u32 %v1940, %v1943
        %v1946 = vshrl.u32 %v1876, 16
        %v1948 = vrot.slane %v1946, 4
        %v1949 = vshll.u32 %v1876, 16
        %v1951 = vrot.slane %v1949, 5
        %v1952 = vor.u32 %v1948, %v1951
        %v1953 = vsel %vm1086, %v1944, %v1952
        %v1955 = vshrl.u32 %v1877, 16
        %v1957 = vrot.slane %v1955, 4
        %v1958 = vshll.u32 %v1877, 16
        %v1960 = vrot.slane %v1958, 5
        %v1961 = vor.u32 %v1957, %v1960
        %v1963 = vshrl.u32 %v1878, 16
        %v1965 = vrot.slane %v1963, 4
        %v1966 = vshll.u32 %v1878, 16
        %v1968 = vrot.slane %v1966, 5
        %v1969 = vor.u32 %v1965, %v1968
        %v1970 = vsel %vm1086, %v1961, %v1969
        %v1972 = vshrl.u32 %v1879, 16
        %v1974 = vrot.slane %v1972, 4
        %v1975 = vshll.u32 %v1879, 16
        %v1977 = vrot.slane %v1975, 5
        %v1978 = vor.u32 %v1974, %v1977
        %v1980 = vshrl.u32 %v1880, 16
        %v1982 = vrot.slane %v1980, 4
        %v1983 = vshll.u32 %v1880, 16
        %v1985 = vrot.slane %v1983, 5
        %v1986 = vor.u32 %v1982, %v1985
        %v1987 = vsel %vm1086, %v1978, %v1986
        %v1989 = vshrl.u32 %v1881, 16
        %v1991 = vrot.slane %v1989, 4
        %v1992 = vshll.u32 %v1881, 16
        %v1994 = vrot.slane %v1992, 5
        %v1995 = vor.u32 %v1991, %v1994
        %v1997 = vshrl.u32 %v1882, 16
        %v1999 = vrot.slane %v1997, 4
        %v2000 = vshll.u32 %v1882, 16
        %v2002 = vrot.slane %v2000, 5
        %v2003 = vor.u32 %v1999, %v2002
        %v2004 = vsel %vm1086, %v1995, %v2003
        %v2006 = vshrl.u32 %v1883, 16
        %v2008 = vrot.slane %v2006, 4
        %v2009 = vshll.u32 %v1883, 16
        %v2011 = vrot.slane %v2009, 5
        %v2012 = vor.u32 %v2008, %v2011
        %v2014 = vshrl.u32 %v1884, 16
        %v2016 = vrot.slane %v2014, 4
        %v2017 = vshll.u32 %v1884, 16
        %v2019 = vrot.slane %v2017, 5
        %v2020 = vor.u32 %v2016, %v2019
        %v2021 = vsel %vm1086, %v2012, %v2020
        %v2023 = vshrl.u32 %v1885, 16
        %v2025 = vrot.slane %v2023, 4
        %v2026 = vshll.u32 %v1885, 16
        %v2028 = vrot.slane %v2026, 5
        %v2029 = vor.u32 %v2025, %v2028
        %v2031 = vshrl.u32 %v1886, 16
        %v2033 = vrot.slane %v2031, 4
        %v2034 = vshll.u32 %v1886, 16
        %v2036 = vrot.slane %v2034, 5
        %v2037 = vor.u32 %v2033, %v2036
        %v2038 = vsel %vm1086, %v2029, %v2037
        %v2040 = vshrl.u32 %v1887, 16
        %v2042 = vrot.slane %v2040, 4
        %v2043 = vshll.u32 %v1887, 16
        %v2045 = vrot.slane %v2043, 5
        %v2046 = vor.u32 %v2042, %v2045
        %v2048 = vshrl.u32 %v1888, 16
        %v2050 = vrot.slane %v2048, 4
        %v2051 = vshll.u32 %v1888, 16
        %v2053 = vrot.slane %v2051, 5
        %v2054 = vor.u32 %v2050, %v2053
        %v2055 = vsel %vm1086, %v2046, %v2054
        %v2057 = vshrl.u32 %v1889, 16
        %v2059 = vrot.slane %v2057, 4
        %v2060 = vshll.u32 %v1889, 16
        %v2062 = vrot.slane %v2060, 5
        %v2063 = vor.u32 %v2059, %v2062
        %v2065 = vshrl.u32 %v1890, 16
        %v2067 = vrot.slane %v2065, 4
        %v2068 = vshll.u32 %v1890, 16
        %v2070 = vrot.slane %v2068, 5
        %v2071 = vor.u32 %v2067, %v2070
        %v2072 = vsel %vm1086, %v2063, %v2071
        %v2074 = vshrl.u32 %v1891, 16
        %v2076 = vrot.slane %v2074, 4
        %v2077 = vshll.u32 %v1891, 16
        %v2079 = vrot.slane %v2077, 5
        %v2080 = vor.u32 %v2076, %v2079
        %v2082 = vshrl.u32 %v1892, 16
        %v2084 = vrot.slane %v2082, 4
        %v2085 = vshll.u32 %v1892, 16
        %v2087 = vrot.slane %v2085, 5
        %v2088 = vor.u32 %v2084, %v2087
        %v2089 = vsel %vm1086, %v2080, %v2088
        %v2091 = vshrl.u32 %v1893, 16
        %v2093 = vrot.slane %v2091, 4
        %v2094 = vshll.u32 %v1893, 16
        %v2096 = vrot.slane %v2094, 5
        %v2097 = vor.u32 %v2093, %v2096
        %v2099 = vshrl.u32 %v1894, 16
        %v2101 = vrot.slane %v2099, 4
        %v2102 = vshll.u32 %v1894, 16
        %v2104 = vrot.slane %v2102, 5
        %v2105 = vor.u32 %v2101, %v2104
        %v2106 = vsel %vm1086, %v2097, %v2105
        %v2108 = vshrl.u32 %v1895, 16
        %v2110 = vrot.slane %v2108, 4
        %v2111 = vshll.u32 %v1895, 16
        %v2113 = vrot.slane %v2111, 5
        %v2114 = vor.u32 %v2110, %v2113
        %v2116 = vshrl.u32 %v1896, 16
        %v2118 = vrot.slane %v2116, 4
        %v2119 = vshll.u32 %v1896, 16
        %v2121 = vrot.slane %v2119, 5
        %v2122 = vor.u32 %v2118, %v2121
        %v2123 = vsel %vm1086, %v2114, %v2122
        %v2125 = vshrl.u32 %v1897, 16
        %v2127 = vrot.slane %v2125, 4
        %v2128 = vshll.u32 %v1897, 16
        %v2130 = vrot.slane %v2128, 5
        %v2131 = vor.u32 %v2127, %v2130
        %v2133 = vshrl.u32 %v1898, 16
        %v2135 = vrot.slane %v2133, 4
        %v2136 = vshll.u32 %v1898, 16
        %v2138 = vrot.slane %v2136, 5
        %v2139 = vor.u32 %v2135, %v2138
        %v2140 = vsel %vm1086, %v2131, %v2139
        %v2142 = vshrl.u32 %v1899, 16
        %v2144 = vrot.slane %v2142, 4
        %v2145 = vshll.u32 %v1899, 16
        %v2147 = vrot.slane %v2145, 5
        %v2148 = vor.u32 %v2144, %v2147
        %v2150 = vshrl.u32 %v1900, 16
        %v2152 = vrot.slane %v2150, 4
        %v2153 = vshll.u32 %v1900, 16
        %v2155 = vrot.slane %v2153, 5
        %v2156 = vor.u32 %v2152, %v2155
        %v2157 = vsel %vm1086, %v2148, %v2156
        %v2159 = vshrl.u32 %v1901, 16
        %v2161 = vrot.slane %v2159, 4
        %v2162 = vshll.u32 %v1901, 16
        %v2164 = vrot.slane %v2162, 5
        %v2165 = vor.u32 %v2161, %v2164
        %v2167 = vshrl.u32 %v1902, 16
        %v2169 = vrot.slane %v2167, 4
        %v2170 = vshll.u32 %v1902, 16
        %v2172 = vrot.slane %v2170, 5
        %v2173 = vor.u32 %v2169, %v2172
        %v2174 = vsel %vm1086, %v2165, %v2173
        %2191 = vst [vmem:[#allocation4 + $0x28] sm:$0xff] %v1919
        %2192 = vst [vmem:[#allocation4 + $0x70] sm:$0xff] %v1936
        %2193 = vst [vmem:[#allocation4 + $0xb8] sm:$0xff] %v1953
        %2194 = vst [vmem:[#allocation4 + $0x100] sm:$0xff] %v1970
        %2195 = vst [vmem:[#allocation4 + $0x148] sm:$0xff] %v1987
        %2196 = vst [vmem:[#allocation4 + $0x190] sm:$0xff] %v2004
        %2197 = vst [vmem:[#allocation4 + $0x1d8] sm:$0xff] %v2021
        %2198 = vst [vmem:[#allocation4 + $0x220] sm:$0xff] %v2038
        %2199 = vst [vmem:[#allocation4 + $0x268] sm:$0xff] %v2055
        %2200 = vst [vmem:[#allocation4 + $0x2b0] sm:$0xff] %v2072
        %2201 = vst [vmem:[#allocation4 + $0x2f8] sm:$0xff] %v2089
        %2202 = vst [vmem:[#allocation4 + $0x340] sm:$0xff] %v2106
        %2203 = vst [vmem:[#allocation4 + $0x388] sm:$0xff] %v2123
        %2204 = vst [vmem:[#allocation4 + $0x3d0] sm:$0xff] %v2140
        %2205 = vst [vmem:[#allocation4 + $0x418] sm:$0xff] %v2157
        %2206 = vst [vmem:[#allocation4 + $0x460] sm:$0xff] %v2174
        %s2207 = scalar_lea.vmem [#allocation2], 32
        %v2208 = vld [vmem:[%s2207] sm:$0xf8]
        %v2209 = vld [vmem:[%s2207 + $0x8] sm:$0xf]
        %v2210 = vld [vmem:[%s2207 + $0x10] sm:$0xf8]
        %v2211 = vld [vmem:[%s2207 + $0x18] sm:$0xf]
        %v2212 = vld [vmem:[%s2207 + $0x20] sm:$0xf8]
        %v2213 = vld [vmem:[%s2207 + $0x28] sm:$0xf]
        %v2214 = vld [vmem:[%s2207 + $0x30] sm:$0xf8]
        %v2215 = vld [vmem:[%s2207 + $0x38] sm:$0xf]
        %v2216 = vld [vmem:[%s2207 + $0x40] sm:$0xf8]
        %v2217 = vld [vmem:[%s2207 + $0x48] sm:$0xf]
        %v2218 = vld [vmem:[%s2207 + $0x50] sm:$0xf8]
        %v2219 = vld [vmem:[%s2207 + $0x58] sm:$0xf]
        %v2220 = vld [vmem:[%s2207 + $0x60] sm:$0xf8]
        %v2221 = vld [vmem:[%s2207 + $0x68] sm:$0xf]
        %v2222 = vld [vmem:[%s2207 + $0x70] sm:$0xf8]
        %v2223 = vld [vmem:[%s2207 + $0x78] sm:$0xf]
        %v2224 = vld [vmem:[%s2207 + $0x80] sm:$0xf8]
        %v2225 = vld [vmem:[%s2207 + $0x88] sm:$0xf]
        %v2226 = vld [vmem:[%s2207 + $0x90] sm:$0xf8]
        %v2227 = vld [vmem:[%s2207 + $0x98] sm:$0xf]
        %v2228 = vld [vmem:[%s2207 + $0xa0] sm:$0xf8]
        %v2229 = vld [vmem:[%s2207 + $0xa8] sm:$0xf]
        %v2230 = vld [vmem:[%s2207 + $0xb0] sm:$0xf8]
        %v2231 = vld [vmem:[%s2207 + $0xb8] sm:$0xf]
        %v2232 = vld [vmem:[%s2207 + $0xc0] sm:$0xf8]
        %v2233 = vld [vmem:[%s2207 + $0xc8] sm:$0xf]
        %v2234 = vld [vmem:[%s2207 + $0xd0] sm:$0xf8]
        %v2235 = vld [vmem:[%s2207 + $0xd8] sm:$0xf]
        %v2236 = vld [vmem:[%s2207 + $0xe0] sm:$0xf8]
        %v2237 = vld [vmem:[%s2207 + $0xe8] sm:$0xf]
        %v2238 = vld [vmem:[%s2207 + $0xf0] sm:$0xf8]
        %v2239 = vld [vmem:[%s2207 + $0xf8] sm:$0xf]
        %v2241 = vshrl.u32 %v2208, 16
        %v2243 = vrot.slane %v2241, 3
        %v2244 = vshll.u32 %v2208, 16
        %v2246 = vrot.slane %v2244, 4
        %v2247 = vor.u32 %v2243, %v2246
        %v2249 = vshrl.u32 %v2209, 16
        %v2251 = vrot.slane %v2249, 3
        %v2252 = vshll.u32 %v2209, 16
        %v2254 = vrot.slane %v2252, 4
        %v2255 = vor.u32 %v2251, %v2254
        %v2256 = vsel %vm363, %v2247, %v2255
        %v2258 = vshrl.u32 %v2210, 16
        %v2260 = vrot.slane %v2258, 3
        %v2261 = vshll.u32 %v2210, 16
        %v2263 = vrot.slane %v2261, 4
        %v2264 = vor.u32 %v2260, %v2263
        %v2266 = vshrl.u32 %v2211, 16
        %v2268 = vrot.slane %v2266, 3
        %v2269 = vshll.u32 %v2211, 16
        %v2271 = vrot.slane %v2269, 4
        %v2272 = vor.u32 %v2268, %v2271
        %v2273 = vsel %vm363, %v2264, %v2272
        %v2275 = vshrl.u32 %v2212, 16
        %v2277 = vrot.slane %v2275, 3
        %v2278 = vshll.u32 %v2212, 16
        %v2280 = vrot.slane %v2278, 4
        %v2281 = vor.u32 %v2277, %v2280
        %v2283 = vshrl.u32 %v2213, 16
        %v2285 = vrot.slane %v2283, 3
        %v2286 = vshll.u32 %v2213, 16
        %v2288 = vrot.slane %v2286, 4
        %v2289 = vor.u32 %v2285, %v2288
        %v2290 = vsel %vm363, %v2281, %v2289
        %v2292 = vshrl.u32 %v2214, 16
        %v2294 = vrot.slane %v2292, 3
        %v2295 = vshll.u32 %v2214, 16
        %v2297 = vrot.slane %v2295, 4
        %v2298 = vor.u32 %v2294, %v2297
        %v2300 = vshrl.u32 %v2215, 16
        %v2302 = vrot.slane %v2300, 3
        %v2303 = vshll.u32 %v2215, 16
        %v2305 = vrot.slane %v2303, 4
        %v2306 = vor.u32 %v2302, %v2305
        %v2307 = vsel %vm363, %v2298, %v2306
        %v2309 = vshrl.u32 %v2216, 16
        %v2311 = vrot.slane %v2309, 3
        %v2312 = vshll.u32 %v2216, 16
        %v2314 = vrot.slane %v2312, 4
        %v2315 = vor.u32 %v2311, %v2314
        %v2317 = vshrl.u32 %v2217, 16
        %v2319 = vrot.slane %v2317, 3
        %v2320 = vshll.u32 %v2217, 16
        %v2322 = vrot.slane %v2320, 4
        %v2323 = vor.u32 %v2319, %v2322
        %v2324 = vsel %vm363, %v2315, %v2323
        %v2326 = vshrl.u32 %v2218, 16
        %v2328 = vrot.slane %v2326, 3
        %v2329 = vshll.u32 %v2218, 16
        %v2331 = vrot.slane %v2329, 4
        %v2332 = vor.u32 %v2328, %v2331
        %v2334 = vshrl.u32 %v2219, 16
        %v2336 = vrot.slane %v2334, 3
        %v2337 = vshll.u32 %v2219, 16
        %v2339 = vrot.slane %v2337, 4
        %v2340 = vor.u32 %v2336, %v2339
        %v2341 = vsel %vm363, %v2332, %v2340
        %v2343 = vshrl.u32 %v2220, 16
        %v2345 = vrot.slane %v2343, 3
        %v2346 = vshll.u32 %v2220, 16
        %v2348 = vrot.slane %v2346, 4
        %v2349 = vor.u32 %v2345, %v2348
        %v2351 = vshrl.u32 %v2221, 16
        %v2353 = vrot.slane %v2351, 3
        %v2354 = vshll.u32 %v2221, 16
        %v2356 = vrot.slane %v2354, 4
        %v2357 = vor.u32 %v2353, %v2356
        %v2358 = vsel %vm363, %v2349, %v2357
        %v2360 = vshrl.u32 %v2222, 16
        %v2362 = vrot.slane %v2360, 3
        %v2363 = vshll.u32 %v2222, 16
        %v2365 = vrot.slane %v2363, 4
        %v2366 = vor.u32 %v2362, %v2365
        %v2368 = vshrl.u32 %v2223, 16
        %v2370 = vrot.slane %v2368, 3
        %v2371 = vshll.u32 %v2223, 16
        %v2373 = vrot.slane %v2371, 4
        %v2374 = vor.u32 %v2370, %v2373
        %v2375 = vsel %vm363, %v2366, %v2374
        %v2377 = vshrl.u32 %v2224, 16
        %v2379 = vrot.slane %v2377, 3
        %v2380 = vshll.u32 %v2224, 16
        %v2382 = vrot.slane %v2380, 4
        %v2383 = vor.u32 %v2379, %v2382
        %v2385 = vshrl.u32 %v2225, 16
        %v2387 = vrot.slane %v2385, 3
        %v2388 = vshll.u32 %v2225, 16
        %v2390 = vrot.slane %v2388, 4
        %v2391 = vor.u32 %v2387, %v2390
        %v2392 = vsel %vm363, %v2383, %v2391
        %v2394 = vshrl.u32 %v2226, 16
        %v2396 = vrot.slane %v2394, 3
        %v2397 = vshll.u32 %v2226, 16
        %v2399 = vrot.slane %v2397, 4
        %v2400 = vor.u32 %v2396, %v2399
        %v2402 = vshrl.u32 %v2227, 16
        %v2404 = vrot.slane %v2402, 3
        %v2405 = vshll.u32 %v2227, 16
        %v2407 = vrot.slane %v2405, 4
        %v2408 = vor.u32 %v2404, %v2407
        %v2409 = vsel %vm363, %v2400, %v2408
        %v2411 = vshrl.u32 %v2228, 16
        %v2413 = vrot.slane %v2411, 3
        %v2414 = vshll.u32 %v2228, 16
        %v2416 = vrot.slane %v2414, 4
        %v2417 = vor.u32 %v2413, %v2416
        %v2419 = vshrl.u32 %v2229, 16
        %v2421 = vrot.slane %v2419, 3
        %v2422 = vshll.u32 %v2229, 16
        %v2424 = vrot.slane %v2422, 4
        %v2425 = vor.u32 %v2421, %v2424
        %v2426 = vsel %vm363, %v2417, %v2425
        %v2428 = vshrl.u32 %v2230, 16
        %v2430 = vrot.slane %v2428, 3
        %v2431 = vshll.u32 %v2230, 16
        %v2433 = vrot.slane %v2431, 4
        %v2434 = vor.u32 %v2430, %v2433
        %v2436 = vshrl.u32 %v2231, 16
        %v2438 = vrot.slane %v2436, 3
        %v2439 = vshll.u32 %v2231, 16
        %v2441 = vrot.slane %v2439, 4
        %v2442 = vor.u32 %v2438, %v2441
        %v2443 = vsel %vm363, %v2434, %v2442
        %v2445 = vshrl.u32 %v2232, 16
        %v2447 = vrot.slane %v2445, 3
        %v2448 = vshll.u32 %v2232, 16
        %v2450 = vrot.slane %v2448, 4
        %v2451 = vor.u32 %v2447, %v2450
        %v2453 = vshrl.u32 %v2233, 16
        %v2455 = vrot.slane %v2453, 3
        %v2456 = vshll.u32 %v2233, 16
        %v2458 = vrot.slane %v2456, 4
        %v2459 = vor.u32 %v2455, %v2458
        %v2460 = vsel %vm363, %v2451, %v2459
        %v2462 = vshrl.u32 %v2234, 16
        %v2464 = vrot.slane %v2462, 3
        %v2465 = vshll.u32 %v2234, 16
        %v2467 = vrot.slane %v2465, 4
        %v2468 = vor.u32 %v2464, %v2467
        %v2470 = vshrl.u32 %v2235, 16
        %v2472 = vrot.slane %v2470, 3
        %v2473 = vshll.u32 %v2235, 16
        %v2475 = vrot.slane %v2473, 4
        %v2476 = vor.u32 %v2472, %v2475
        %v2477 = vsel %vm363, %v2468, %v2476
        %v2479 = vshrl.u32 %v2236, 16
        %v2481 = vrot.slane %v2479, 3
        %v2482 = vshll.u32 %v2236, 16
        %v2484 = vrot.slane %v2482, 4
        %v2485 = vor.u32 %v2481, %v2484
        %v2487 = vshrl.u32 %v2237, 16
        %v2489 = vrot.slane %v2487, 3
        %v2490 = vshll.u32 %v2237, 16
        %v2492 = vrot.slane %v2490, 4
        %v2493 = vor.u32 %v2489, %v2492
        %v2494 = vsel %vm363, %v2485, %v2493
        %v2496 = vshrl.u32 %v2238, 16
        %v2498 = vrot.slane %v2496, 3
        %v2499 = vshll.u32 %v2238, 16
        %v2501 = vrot.slane %v2499, 4
        %v2502 = vor.u32 %v2498, %v2501
        %v2504 = vshrl.u32 %v2239, 16
        %v2506 = vrot.slane %v2504, 3
        %v2507 = vshll.u32 %v2239, 16
        %v2509 = vrot.slane %v2507, 4
        %v2510 = vor.u32 %v2506, %v2509
        %v2511 = vsel %vm363, %v2502, %v2510
        %2528 = vst [vmem:[#allocation4 + $0x30] sm:$0xff] %v2256
        %2529 = vst [vmem:[#allocation4 + $0x78] sm:$0xff] %v2273
        %2530 = vst [vmem:[#allocation4 + $0xc0] sm:$0xff] %v2290
        %2531 = vst [vmem:[#allocation4 + $0x108] sm:$0xff] %v2307
        %2532 = vst [vmem:[#allocation4 + $0x150] sm:$0xff] %v2324
        %2533 = vst [vmem:[#allocation4 + $0x198] sm:$0xff] %v2341
        %2534 = vst [vmem:[#allocation4 + $0x1e0] sm:$0xff] %v2358
        %2535 = vst [vmem:[#allocation4 + $0x228] sm:$0xff] %v2375
        %2536 = vst [vmem:[#allocation4 + $0x270] sm:$0xff] %v2392
        %2537 = vst [vmem:[#allocation4 + $0x2b8] sm:$0xff] %v2409
        %2538 = vst [vmem:[#allocation4 + $0x300] sm:$0xff] %v2426
        %2539 = vst [vmem:[#allocation4 + $0x348] sm:$0xff] %v2443
        %2540 = vst [vmem:[#allocation4 + $0x390] sm:$0xff] %v2460
        %2541 = vst [vmem:[#allocation4 + $0x3d8] sm:$0xff] %v2477
        %2542 = vst [vmem:[#allocation4 + $0x420] sm:$0xff] %v2494
        %2543 = vst [vmem:[#allocation4 + $0x468] sm:$0xff] %v2511
        %v2544 = vld [vmem:[%s2207] sm:$0xf0]
        %v2545 = vld [vmem:[%s2207 + $0x8] sm:$0xf]
        %v2546 = vld [vmem:[%s2207 + $0x10] sm:$0xf0]
        %v2547 = vld [vmem:[%s2207 + $0x18] sm:$0xf]
        %v2548 = vld [vmem:[%s2207 + $0x20] sm:$0xf0]
        %v2549 = vld [vmem:[%s2207 + $0x28] sm:$0xf]
        %v2550 = vld [vmem:[%s2207 + $0x30] sm:$0xf0]
        %v2551 = vld [vmem:[%s2207 + $0x38] sm:$0xf]
        %v2552 = vld [vmem:[%s2207 + $0x40] sm:$0xf0]
        %v2553 = vld [vmem:[%s2207 + $0x48] sm:$0xf]
        %v2554 = vld [vmem:[%s2207 + $0x50] sm:$0xf0]
        %v2555 = vld [vmem:[%s2207 + $0x58] sm:$0xf]
        %v2556 = vld [vmem:[%s2207 + $0x60] sm:$0xf0]
        %v2557 = vld [vmem:[%s2207 + $0x68] sm:$0xf]
        %v2558 = vld [vmem:[%s2207 + $0x70] sm:$0xf0]
        %v2559 = vld [vmem:[%s2207 + $0x78] sm:$0xf]
        %v2560 = vld [vmem:[%s2207 + $0x80] sm:$0xf0]
        %v2561 = vld [vmem:[%s2207 + $0x88] sm:$0xf]
        %v2562 = vld [vmem:[%s2207 + $0x90] sm:$0xf0]
        %v2563 = vld [vmem:[%s2207 + $0x98] sm:$0xf]
        %v2564 = vld [vmem:[%s2207 + $0xa0] sm:$0xf0]
        %v2565 = vld [vmem:[%s2207 + $0xa8] sm:$0xf]
        %v2566 = vld [vmem:[%s2207 + $0xb0] sm:$0xf0]
        %v2567 = vld [vmem:[%s2207 + $0xb8] sm:$0xf]
        %v2568 = vld [vmem:[%s2207 + $0xc0] sm:$0xf0]
        %v2569 = vld [vmem:[%s2207 + $0xc8] sm:$0xf]
        %v2570 = vld [vmem:[%s2207 + $0xd0] sm:$0xf0]
        %v2571 = vld [vmem:[%s2207 + $0xd8] sm:$0xf]
        %v2572 = vld [vmem:[%s2207 + $0xe0] sm:$0xf0]
        %v2573 = vld [vmem:[%s2207 + $0xe8] sm:$0xf]
        %v2574 = vld [vmem:[%s2207 + $0xf0] sm:$0xf0]
        %v2575 = vld [vmem:[%s2207 + $0xf8] sm:$0xf]
        %v2608 = vrot.slane %v2544, 4
        %v2609 = vrot.slane %v2545, 4
        %v2610 = vsel %vm973, %v2608, %v2609
        %v2611 = vrot.slane %v2546, 4
        %v2612 = vrot.slane %v2547, 4
        %v2613 = vsel %vm973, %v2611, %v2612
        %v2614 = vrot.slane %v2548, 4
        %v2615 = vrot.slane %v2549, 4
        %v2616 = vsel %vm973, %v2614, %v2615
        %v2617 = vrot.slane %v2550, 4
        %v2618 = vrot.slane %v2551, 4
        %v2619 = vsel %vm973, %v2617, %v2618
        %v2620 = vrot.slane %v2552, 4
        %v2621 = vrot.slane %v2553, 4
        %v2622 = vsel %vm973, %v2620, %v2621
        %v2623 = vrot.slane %v2554, 4
        %v2624 = vrot.slane %v2555, 4
        %v2625 = vsel %vm973, %v2623, %v2624
        %v2626 = vrot.slane %v2556, 4
        %v2627 = vrot.slane %v2557, 4
        %v2628 = vsel %vm973, %v2626, %v2627
        %v2629 = vrot.slane %v2558, 4
        %v2630 = vrot.slane %v2559, 4
        %v2631 = vsel %vm973, %v2629, %v2630
        %v2632 = vrot.slane %v2560, 4
        %v2633 = vrot.slane %v2561, 4
        %v2634 = vsel %vm973, %v2632, %v2633
        %v2635 = vrot.slane %v2562, 4
        %v2636 = vrot.slane %v2563, 4
        %v2637 = vsel %vm973, %v2635, %v2636
        %v2638 = vrot.slane %v2564, 4
        %v2639 = vrot.slane %v2565, 4
        %v2640 = vsel %vm973, %v2638, %v2639
        %v2641 = vrot.slane %v2566, 4
        %v2642 = vrot.slane %v2567, 4
        %v2643 = vsel %vm973, %v2641, %v2642
        %v2644 = vrot.slane %v2568, 4
        %v2645 = vrot.slane %v2569, 4
        %v2646 = vsel %vm973, %v2644, %v2645
        %v2647 = vrot.slane %v2570, 4
        %v2648 = vrot.slane %v2571, 4
        %v2649 = vsel %vm973, %v2647, %v2648
        %v2650 = vrot.slane %v2572, 4
        %v2651 = vrot.slane %v2573, 4
        %v2652 = vsel %vm973, %v2650, %v2651
        %v2653 = vrot.slane %v2574, 4
        %v2654 = vrot.slane %v2575, 4
        %v2655 = vsel %vm973, %v2653, %v2654
        %2672 = vst [vmem:[#allocation4 + $0x38] sm:$0xff] %v2610
        %2673 = vst [vmem:[#allocation4 + $0x80] sm:$0xff] %v2613
        %2674 = vst [vmem:[#allocation4 + $0xc8] sm:$0xff] %v2616
        %2675 = vst [vmem:[#allocation4 + $0x110] sm:$0xff] %v2619
        %2676 = vst [vmem:[#allocation4 + $0x158] sm:$0xff] %v2622
        %2677 = vst [vmem:[#allocation4 + $0x1a0] sm:$0xff] %v2625
        %2678 = vst [vmem:[#allocation4 + $0x1e8] sm:$0xff] %v2628
        %2679 = vst [vmem:[#allocation4 + $0x230] sm:$0xff] %v2631
        %2680 = vst [vmem:[#allocation4 + $0x278] sm:$0xff] %v2634
        %2681 = vst [vmem:[#allocation4 + $0x2c0] sm:$0xff] %v2637
        %2682 = vst [vmem:[#allocation4 + $0x308] sm:$0xff] %v2640
        %2683 = vst [vmem:[#allocation4 + $0x350] sm:$0xff] %v2643
        %2684 = vst [vmem:[#allocation4 + $0x398] sm:$0xff] %v2646
        %2685 = vst [vmem:[#allocation4 + $0x3e0] sm:$0xff] %v2649
        %2686 = vst [vmem:[#allocation4 + $0x428] sm:$0xff] %v2652
        %2687 = vst [vmem:[#allocation4 + $0x470] sm:$0xff] %v2655
        %v2688 = vld [vmem:[%s2207] sm:$0xf0]
        %v2689 = vld [vmem:[%s2207 + $0x8] sm:$0x1f]
        %v2690 = vld [vmem:[%s2207 + $0x10] sm:$0xf0]
        %v2691 = vld [vmem:[%s2207 + $0x18] sm:$0x1f]
        %v2692 = vld [vmem:[%s2207 + $0x20] sm:$0xf0]
        %v2693 = vld [vmem:[%s2207 + $0x28] sm:$0x1f]
        %v2694 = vld [vmem:[%s2207 + $0x30] sm:$0xf0]
        %v2695 = vld [vmem:[%s2207 + $0x38] sm:$0x1f]
        %v2696 = vld [vmem:[%s2207 + $0x40] sm:$0xf0]
        %v2697 = vld [vmem:[%s2207 + $0x48] sm:$0x1f]
        %v2698 = vld [vmem:[%s2207 + $0x50] sm:$0xf0]
        %v2699 = vld [vmem:[%s2207 + $0x58] sm:$0x1f]
        %v2700 = vld [vmem:[%s2207 + $0x60] sm:$0xf0]
        %v2701 = vld [vmem:[%s2207 + $0x68] sm:$0x1f]
        %v2702 = vld [vmem:[%s2207 + $0x70] sm:$0xf0]
        %v2703 = vld [vmem:[%s2207 + $0x78] sm:$0x1f]
        %v2704 = vld [vmem:[%s2207 + $0x80] sm:$0xf0]
        %v2705 = vld [vmem:[%s2207 + $0x88] sm:$0x1f]
        %v2706 = vld [vmem:[%s2207 + $0x90] sm:$0xf0]
        %v2707 = vld [vmem:[%s2207 + $0x98] sm:$0x1f]
        %v2708 = vld [vmem:[%s2207 + $0xa0] sm:$0xf0]
        %v2709 = vld [vmem:[%s2207 + $0xa8] sm:$0x1f]
        %v2710 = vld [vmem:[%s2207 + $0xb0] sm:$0xf0]
        %v2711 = vld [vmem:[%s2207 + $0xb8] sm:$0x1f]
        %v2712 = vld [vmem:[%s2207 + $0xc0] sm:$0xf0]
        %v2713 = vld [vmem:[%s2207 + $0xc8] sm:$0x1f]
        %v2714 = vld [vmem:[%s2207 + $0xd0] sm:$0xf0]
        %v2715 = vld [vmem:[%s2207 + $0xd8] sm:$0x1f]
        %v2716 = vld [vmem:[%s2207 + $0xe0] sm:$0xf0]
        %v2717 = vld [vmem:[%s2207 + $0xe8] sm:$0x1f]
        %v2718 = vld [vmem:[%s2207 + $0xf0] sm:$0xf0]
        %v2719 = vld [vmem:[%s2207 + $0xf8] sm:$0x1f]
        %v2721 = vshrl.u32 %v2688, 16
        %v2723 = vrot.slane %v2721, 4
        %v2724 = vshll.u32 %v2688, 16
        %v2726 = vrot.slane %v2724, 5
        %v2727 = vor.u32 %v2723, %v2726
        %v2729 = vshrl.u32 %v2689, 16
        %v2731 = vrot.slane %v2729, 4
        %v2732 = vshll.u32 %v2689, 16
        %v2734 = vrot.slane %v2732, 5
        %v2735 = vor.u32 %v2731, %v2734
        %v2736 = vsel %vm1086, %v2727, %v2735
        %v2738 = vshrl.u32 %v2690, 16
        %v2740 = vrot.slane %v2738, 4
        %v2741 = vshll.u32 %v2690, 16
        %v2743 = vrot.slane %v2741, 5
        %v2744 = vor.u32 %v2740, %v2743
        %v2746 = vshrl.u32 %v2691, 16
        %v2748 = vrot.slane %v2746, 4
        %v2749 = vshll.u32 %v2691, 16
        %v2751 = vrot.slane %v2749, 5
        %v2752 = vor.u32 %v2748, %v2751
        %v2753 = vsel %vm1086, %v2744, %v2752
        %v2755 = vshrl.u32 %v2692, 16
        %v2757 = vrot.slane %v2755, 4
        %v2758 = vshll.u32 %v2692, 16
        %v2760 = vrot.slane %v2758, 5
        %v2761 = vor.u32 %v2757, %v2760
        %v2763 = vshrl.u32 %v2693, 16
        %v2765 = vrot.slane %v2763, 4
        %v2766 = vshll.u32 %v2693, 16
        %v2768 = vrot.slane %v2766, 5
        %v2769 = vor.u32 %v2765, %v2768
        %v2770 = vsel %vm1086, %v2761, %v2769
        %v2772 = vshrl.u32 %v2694, 16
        %v2774 = vrot.slane %v2772, 4
        %v2775 = vshll.u32 %v2694, 16
        %v2777 = vrot.slane %v2775, 5
        %v2778 = vor.u32 %v2774, %v2777
        %v2780 = vshrl.u32 %v2695, 16
        %v2782 = vrot.slane %v2780, 4
        %v2783 = vshll.u32 %v2695, 16
        %v2785 = vrot.slane %v2783, 5
        %v2786 = vor.u32 %v2782, %v2785
        %v2787 = vsel %vm1086, %v2778, %v2786
        %v2789 = vshrl.u32 %v2696, 16
        %v2791 = vrot.slane %v2789, 4
        %v2792 = vshll.u32 %v2696, 16
        %v2794 = vrot.slane %v2792, 5
        %v2795 = vor.u32 %v2791, %v2794
        %v2797 = vshrl.u32 %v2697, 16
        %v2799 = vrot.slane %v2797, 4
        %v2800 = vshll.u32 %v2697, 16
        %v2802 = vrot.slane %v2800, 5
        %v2803 = vor.u32 %v2799, %v2802
        %v2804 = vsel %vm1086, %v2795, %v2803
        %v2806 = vshrl.u32 %v2698, 16
        %v2808 = vrot.slane %v2806, 4
        %v2809 = vshll.u32 %v2698, 16
        %v2811 = vrot.slane %v2809, 5
        %v2812 = vor.u32 %v2808, %v2811
        %v2814 = vshrl.u32 %v2699, 16
        %v2816 = vrot.slane %v2814, 4
        %v2817 = vshll.u32 %v2699, 16
        %v2819 = vrot.slane %v2817, 5
        %v2820 = vor.u32 %v2816, %v2819
        %v2821 = vsel %vm1086, %v2812, %v2820
        %v2823 = vshrl.u32 %v2700, 16
        %v2825 = vrot.slane %v2823, 4
        %v2826 = vshll.u32 %v2700, 16
        %v2828 = vrot.slane %v2826, 5
        %v2829 = vor.u32 %v2825, %v2828
        %v2831 = vshrl.u32 %v2701, 16
        %v2833 = vrot.slane %v2831, 4
        %v2834 = vshll.u32 %v2701, 16
        %v2836 = vrot.slane %v2834, 5
        %v2837 = vor.u32 %v2833, %v2836
        %v2838 = vsel %vm1086, %v2829, %v2837
        %v2840 = vshrl.u32 %v2702, 16
        %v2842 = vrot.slane %v2840, 4
        %v2843 = vshll.u32 %v2702, 16
        %v2845 = vrot.slane %v2843, 5
        %v2846 = vor.u32 %v2842, %v2845
        %v2848 = vshrl.u32 %v2703, 16
        %v2850 = vrot.slane %v2848, 4
        %v2851 = vshll.u32 %v2703, 16
        %v2853 = vrot.slane %v2851, 5
        %v2854 = vor.u32 %v2850, %v2853
        %v2855 = vsel %vm1086, %v2846, %v2854
        %v2857 = vshrl.u32 %v2704, 16
        %v2859 = vrot.slane %v2857, 4
        %v2860 = vshll.u32 %v2704, 16
        %v2862 = vrot.slane %v2860, 5
        %v2863 = vor.u32 %v2859, %v2862
        %v2865 = vshrl.u32 %v2705, 16
        %v2867 = vrot.slane %v2865, 4
        %v2868 = vshll.u32 %v2705, 16
        %v2870 = vrot.slane %v2868, 5
        %v2871 = vor.u32 %v2867, %v2870
        %v2872 = vsel %vm1086, %v2863, %v2871
        %v2874 = vshrl.u32 %v2706, 16
        %v2876 = vrot.slane %v2874, 4
        %v2877 = vshll.u32 %v2706, 16
        %v2879 = vrot.slane %v2877, 5
        %v2880 = vor.u32 %v2876, %v2879
        %v2882 = vshrl.u32 %v2707, 16
        %v2884 = vrot.slane %v2882, 4
        %v2885 = vshll.u32 %v2707, 16
        %v2887 = vrot.slane %v2885, 5
        %v2888 = vor.u32 %v2884, %v2887
        %v2889 = vsel %vm1086, %v2880, %v2888
        %v2891 = vshrl.u32 %v2708, 16
        %v2893 = vrot.slane %v2891, 4
        %v2894 = vshll.u32 %v2708, 16
        %v2896 = vrot.slane %v2894, 5
        %v2897 = vor.u32 %v2893, %v2896
        %v2899 = vshrl.u32 %v2709, 16
        %v2901 = vrot.slane %v2899, 4
        %v2902 = vshll.u32 %v2709, 16
        %v2904 = vrot.slane %v2902, 5
        %v2905 = vor.u32 %v2901, %v2904
        %v2906 = vsel %vm1086, %v2897, %v2905
        %v2908 = vshrl.u32 %v2710, 16
        %v2910 = vrot.slane %v2908, 4
        %v2911 = vshll.u32 %v2710, 16
        %v2913 = vrot.slane %v2911, 5
        %v2914 = vor.u32 %v2910, %v2913
        %v2916 = vshrl.u32 %v2711, 16
        %v2918 = vrot.slane %v2916, 4
        %v2919 = vshll.u32 %v2711, 16
        %v2921 = vrot.slane %v2919, 5
        %v2922 = vor.u32 %v2918, %v2921
        %v2923 = vsel %vm1086, %v2914, %v2922
        %v2925 = vshrl.u32 %v2712, 16
        %v2927 = vrot.slane %v2925, 4
        %v2928 = vshll.u32 %v2712, 16
        %v2930 = vrot.slane %v2928, 5
        %v2931 = vor.u32 %v2927, %v2930
        %v2933 = vshrl.u32 %v2713, 16
        %v2935 = vrot.slane %v2933, 4
        %v2936 = vshll.u32 %v2713, 16
        %v2938 = vrot.slane %v2936, 5
        %v2939 = vor.u32 %v2935, %v2938
        %v2940 = vsel %vm1086, %v2931, %v2939
        %v2942 = vshrl.u32 %v2714, 16
        %v2944 = vrot.slane %v2942, 4
        %v2945 = vshll.u32 %v2714, 16
        %v2947 = vrot.slane %v2945, 5
        %v2948 = vor.u32 %v2944, %v2947
        %v2950 = vshrl.u32 %v2715, 16
        %v2952 = vrot.slane %v2950, 4
        %v2953 = vshll.u32 %v2715, 16
        %v2955 = vrot.slane %v2953, 5
        %v2956 = vor.u32 %v2952, %v2955
        %v2957 = vsel %vm1086, %v2948, %v2956
        %v2959 = vshrl.u32 %v2716, 16
        %v2961 = vrot.slane %v2959, 4
        %v2962 = vshll.u32 %v2716, 16
        %v2964 = vrot.slane %v2962, 5
        %v2965 = vor.u32 %v2961, %v2964
        %v2967 = vshrl.u32 %v2717, 16
        %v2969 = vrot.slane %v2967, 4
        %v2970 = vshll.u32 %v2717, 16
        %v2972 = vrot.slane %v2970, 5
        %v2973 = vor.u32 %v2969, %v2972
        %v2974 = vsel %vm1086, %v2965, %v2973
        %v2976 = vshrl.u32 %v2718, 16
        %v2978 = vrot.slane %v2976, 4
        %v2979 = vshll.u32 %v2718, 16
        %v2981 = vrot.slane %v2979, 5
        %v2982 = vor.u32 %v2978, %v2981
        %v2984 = vshrl.u32 %v2719, 16
        %v2986 = vrot.slane %v2984, 4
        %v2987 = vshll.u32 %v2719, 16
        %v2989 = vrot.slane %v2987, 5
        %v2990 = vor.u32 %v2986, %v2989
        %v2991 = vsel %vm1086, %v2982, %v2990
        %3008 = vst [vmem:[#allocation4 + $0x40] sm:$0xff] %v2736
        %3009 = vst [vmem:[#allocation4 + $0x88] sm:$0xff] %v2753
        %3010 = vst [vmem:[#allocation4 + $0xd0] sm:$0xff] %v2770
        %3011 = vst [vmem:[#allocation4 + $0x118] sm:$0xff] %v2787
        %3012 = vst [vmem:[#allocation4 + $0x160] sm:$0xff] %v2804
        %3013 = vst [vmem:[#allocation4 + $0x1a8] sm:$0xff] %v2821
        %3014 = vst [vmem:[#allocation4 + $0x1f0] sm:$0xff] %v2838
        %3015 = vst [vmem:[#allocation4 + $0x238] sm:$0xff] %v2855
        %3016 = vst [vmem:[#allocation4 + $0x280] sm:$0xff] %v2872
        %3017 = vst [vmem:[#allocation4 + $0x2c8] sm:$0xff] %v2889
        %3018 = vst [vmem:[#allocation4 + $0x310] sm:$0xff] %v2906
        %3019 = vst [vmem:[#allocation4 + $0x358] sm:$0xff] %v2923
        %3020 = vst [vmem:[#allocation4 + $0x3a0] sm:$0xff] %v2940
        %3021 = vst [vmem:[#allocation4 + $0x3e8] sm:$0xff] %v2957
        %3022 = vst [vmem:[#allocation4 + $0x430] sm:$0xff] %v2974
        %3023 = vst [vmem:[#allocation4 + $0x478] sm:$0xff] %v2991
        %v3024 = vld [vmem:[#allocation4] sm:$0xff]
        %v3025 = vld [vmem:[#allocation4 + $0x8] sm:$0xff]
        %v3026 = vld [vmem:[#allocation4 + $0x10] sm:$0xff]
        %v3027 = vld [vmem:[#allocation4 + $0x18] sm:$0xff]
        %v3028 = vld [vmem:[#allocation4 + $0x20] sm:$0xff]
        %v3029 = vld [vmem:[#allocation4 + $0x28] sm:$0xff]
        %v3030 = vld [vmem:[#allocation4 + $0x30] sm:$0xff]
        %v3031 = vld [vmem:[#allocation4 + $0x38] sm:$0xff]
        %v3032 = vld [vmem:[#allocation4 + $0x40] sm:$0xff]
        %v3033 = vld [vmem:[#allocation4 + $0x48] sm:$0xff]
        %v3034 = vld [vmem:[#allocation4 + $0x50] sm:$0xff]
        %v3035 = vld [vmem:[#allocation4 + $0x58] sm:$0xff]
        %v3036 = vld [vmem:[#allocation4 + $0x60] sm:$0xff]
        %v3037 = vld [vmem:[#allocation4 + $0x68] sm:$0xff]
        %v3038 = vld [vmem:[#allocation4 + $0x70] sm:$0xff]
        %v3039 = vld [vmem:[#allocation4 + $0x78] sm:$0xff]
        %v3040 = vld [vmem:[#allocation4 + $0x80] sm:$0xff]
        %v3041 = vld [vmem:[#allocation4 + $0x88] sm:$0xff]
        %v3042 = vld [vmem:[#allocation4 + $0x90] sm:$0xff]
        %v3043 = vld [vmem:[#allocation4 + $0x98] sm:$0xff]
        %v3044 = vld [vmem:[#allocation4 + $0xa0] sm:$0xff]
        %v3045 = vld [vmem:[#allocation4 + $0xa8] sm:$0xff]
        %v3046 = vld [vmem:[#allocation4 + $0xb0] sm:$0xff]
        %v3047 = vld [vmem:[#allocation4 + $0xb8] sm:$0xff]
        %v3048 = vld [vmem:[#allocation4 + $0xc0] sm:$0xff]
        %v3049 = vld [vmem:[#allocation4 + $0xc8] sm:$0xff]
        %v3050 = vld [vmem:[#allocation4 + $0xd0] sm:$0xff]
        %v3051 = vld [vmem:[#allocation4 + $0xd8] sm:$0xff]
        %v3052 = vld [vmem:[#allocation4 + $0xe0] sm:$0xff]
        %v3053 = vld [vmem:[#allocation4 + $0xe8] sm:$0xff]
        %v3054 = vld [vmem:[#allocation4 + $0xf0] sm:$0xff]
        %v3055 = vld [vmem:[#allocation4 + $0xf8] sm:$0xff]
        %v3056 = vld [vmem:[#allocation4 + $0x100] sm:$0xff]
        %v3057 = vld [vmem:[#allocation4 + $0x108] sm:$0xff]
        %v3058 = vld [vmem:[#allocation4 + $0x110] sm:$0xff]
        %v3059 = vld [vmem:[#allocation4 + $0x118] sm:$0xff]
        %v3060 = vld [vmem:[#allocation4 + $0x120] sm:$0xff]
        %v3061 = vld [vmem:[#allocation4 + $0x128] sm:$0xff]
        %v3062 = vld [vmem:[#allocation4 + $0x130] sm:$0xff]
        %v3063 = vld [vmem:[#allocation4 + $0x138] sm:$0xff]
        %v3064 = vld [vmem:[#allocation4 + $0x140] sm:$0xff]
        %v3065 = vld [vmem:[#allocation4 + $0x148] sm:$0xff]
        %v3066 = vld [vmem:[#allocation4 + $0x150] sm:$0xff]
        %v3067 = vld [vmem:[#allocation4 + $0x158] sm:$0xff]
        %v3068 = vld [vmem:[#allocation4 + $0x160] sm:$0xff]
        %v3069 = vld [vmem:[#allocation4 + $0x168] sm:$0xff]
        %v3070 = vld [vmem:[#allocation4 + $0x170] sm:$0xff]
        %v3071 = vld [vmem:[#allocation4 + $0x178] sm:$0xff]
        %v3072 = vld [vmem:[#allocation4 + $0x180] sm:$0xff]
        %v3073 = vld [vmem:[#allocation4 + $0x188] sm:$0xff]
        %v3074 = vld [vmem:[#allocation4 + $0x190] sm:$0xff]
        %v3075 = vld [vmem:[#allocation4 + $0x198] sm:$0xff]
        %v3076 = vld [vmem:[#allocation4 + $0x1a0] sm:$0xff]
        %v3077 = vld [vmem:[#allocation4 + $0x1a8] sm:$0xff]
        %v3078 = vld [vmem:[#allocation4 + $0x1b0] sm:$0xff]
        %v3079 = vld [vmem:[#allocation4 + $0x1b8] sm:$0xff]
        %v3080 = vld [vmem:[#allocation4 + $0x1c0] sm:$0xff]
        %v3081 = vld [vmem:[#allocation4 + $0x1c8] sm:$0xff]
        %v3082 = vld [vmem:[#allocation4 + $0x1d0] sm:$0xff]
        %v3083 = vld [vmem:[#allocation4 + $0x1d8] sm:$0xff]
        %v3084 = vld [vmem:[#allocation4 + $0x1e0] sm:$0xff]
        %v3085 = vld [vmem:[#allocation4 + $0x1e8] sm:$0xff]
        %v3086 = vld [vmem:[#allocation4 + $0x1f0] sm:$0xff]
        %v3087 = vld [vmem:[#allocation4 + $0x1f8] sm:$0xff]
        %v3088 = vld [vmem:[#allocation4 + $0x200] sm:$0xff]
        %v3089 = vld [vmem:[#allocation4 + $0x208] sm:$0xff]
        %v3090 = vld [vmem:[#allocation4 + $0x210] sm:$0xff]
        %v3091 = vld [vmem:[#allocation4 + $0x218] sm:$0xff]
        %v3092 = vld [vmem:[#allocation4 + $0x220] sm:$0xff]
        %v3093 = vld [vmem:[#allocation4 + $0x228] sm:$0xff]
        %v3094 = vld [vmem:[#allocation4 + $0x230] sm:$0xff]
        %v3095 = vld [vmem:[#allocation4 + $0x238] sm:$0xff]
        %v3096 = vld [vmem:[#allocation4 + $0x240] sm:$0xff]
        %v3097 = vld [vmem:[#allocation4 + $0x248] sm:$0xff]
        %v3098 = vld [vmem:[#allocation4 + $0x250] sm:$0xff]
        %v3099 = vld [vmem:[#allocation4 + $0x258] sm:$0xff]
        %v3100 = vld [vmem:[#allocation4 + $0x260] sm:$0xff]
        %v3101 = vld [vmem:[#allocation4 + $0x268] sm:$0xff]
        %v3102 = vld [vmem:[#allocation4 + $0x270] sm:$0xff]
        %v3103 = vld [vmem:[#allocation4 + $0x278] sm:$0xff]
        %v3104 = vld [vmem:[#allocation4 + $0x280] sm:$0xff]
        %v3105 = vld [vmem:[#allocation4 + $0x288] sm:$0xff]
        %v3106 = vld [vmem:[#allocation4 + $0x290] sm:$0xff]
        %v3107 = vld [vmem:[#allocation4 + $0x298] sm:$0xff]
        %v3108 = vld [vmem:[#allocation4 + $0x2a0] sm:$0xff]
        %v3109 = vld [vmem:[#allocation4 + $0x2a8] sm:$0xff]
        %v3110 = vld [vmem:[#allocation4 + $0x2b0] sm:$0xff]
        %v3111 = vld [vmem:[#allocation4 + $0x2b8] sm:$0xff]
        %v3112 = vld [vmem:[#allocation4 + $0x2c0] sm:$0xff]
        %v3113 = vld [vmem:[#allocation4 + $0x2c8] sm:$0xff]
        %v3114 = vld [vmem:[#allocation4 + $0x2d0] sm:$0xff]
        %v3115 = vld [vmem:[#allocation4 + $0x2d8] sm:$0xff]
        %v3116 = vld [vmem:[#allocation4 + $0x2e0] sm:$0xff]
        %v3117 = vld [vmem:[#allocation4 + $0x2e8] sm:$0xff]
        %v3118 = vld [vmem:[#allocation4 + $0x2f0] sm:$0xff]
        %v3119 = vld [vmem:[#allocation4 + $0x2f8] sm:$0xff]
        %v3120 = vld [vmem:[#allocation4 + $0x300] sm:$0xff]
        %v3121 = vld [vmem:[#allocation4 + $0x308] sm:$0xff]
        %v3122 = vld [vmem:[#allocation4 + $0x310] sm:$0xff]
        %v3123 = vld [vmem:[#allocation4 + $0x318] sm:$0xff]
        %v3124 = vld [vmem:[#allocation4 + $0x320] sm:$0xff]
        %v3125 = vld [vmem:[#allocation4 + $0x328] sm:$0xff]
        %v3126 = vld [vmem:[#allocation4 + $0x330] sm:$0xff]
        %v3127 = vld [vmem:[#allocation4 + $0x338] sm:$0xff]
        %v3128 = vld [vmem:[#allocation4 + $0x340] sm:$0xff]
        %v3129 = vld [vmem:[#allocation4 + $0x348] sm:$0xff]
        %v3130 = vld [vmem:[#allocation4 + $0x350] sm:$0xff]
        %v3131 = vld [vmem:[#allocation4 + $0x358] sm:$0xff]
        %v3132 = vld [vmem:[#allocation4 + $0x360] sm:$0xff]
        %v3133 = vld [vmem:[#allocation4 + $0x368] sm:$0xff]
        %v3134 = vld [vmem:[#allocation4 + $0x370] sm:$0xff]
        %v3135 = vld [vmem:[#allocation4 + $0x378] sm:$0xff]
        %v3136 = vld [vmem:[#allocation4 + $0x380] sm:$0xff]
        %v3137 = vld [vmem:[#allocation4 + $0x388] sm:$0xff]
        %v3138 = vld [vmem:[#allocation4 + $0x390] sm:$0xff]
        %v3139 = vld [vmem:[#allocation4 + $0x398] sm:$0xff]
        %v3140 = vld [vmem:[#allocation4 + $0x3a0] sm:$0xff]
        %v3141 = vld [vmem:[#allocation4 + $0x3a8] sm:$0xff]
        %v3142 = vld [vmem:[#allocation4 + $0x3b0] sm:$0xff]
        %v3143 = vld [vmem:[#allocation4 + $0x3b8] sm:$0xff]
        %v3144 = vld [vmem:[#allocation4 + $0x3c0] sm:$0xff]
        %v3145 = vld [vmem:[#allocation4 + $0x3c8] sm:$0xff]
        %v3146 = vld [vmem:[#allocation4 + $0x3d0] sm:$0xff]
        %v3147 = vld [vmem:[#allocation4 + $0x3d8] sm:$0xff]
        %v3148 = vld [vmem:[#allocation4 + $0x3e0] sm:$0xff]
        %v3149 = vld [vmem:[#allocation4 + $0x3e8] sm:$0xff]
        %v3150 = vld [vmem:[#allocation4 + $0x3f0] sm:$0xff]
        %v3151 = vld [vmem:[#allocation4 + $0x3f8] sm:$0xff]
        %v3152 = vld [vmem:[#allocation4 + $0x400] sm:$0xff]
        %v3153 = vld [vmem:[#allocation4 + $0x408] sm:$0xff]
        %v3154 = vld [vmem:[#allocation4 + $0x410] sm:$0xff]
        %v3155 = vld [vmem:[#allocation4 + $0x418] sm:$0xff]
        %v3156 = vld [vmem:[#allocation4 + $0x420] sm:$0xff]
        %v3157 = vld [vmem:[#allocation4 + $0x428] sm:$0xff]
        %v3158 = vld [vmem:[#allocation4 + $0x430] sm:$0xff]
        %v3159 = vld [vmem:[#allocation4 + $0x438] sm:$0xff]
        %v3160 = vld [vmem:[#allocation4 + $0x440] sm:$0xff]
        %v3161 = vld [vmem:[#allocation4 + $0x448] sm:$0xff]
        %v3162 = vld [vmem:[#allocation4 + $0x450] sm:$0xff]
        %v3163 = vld [vmem:[#allocation4 + $0x458] sm:$0xff]
        %v3164 = vld [vmem:[#allocation4 + $0x460] sm:$0xff]
        %v3165 = vld [vmem:[#allocation4 + $0x468] sm:$0xff]
        %v3166 = vld [vmem:[#allocation4 + $0x470] sm:$0xff]
        %v3167 = vld [vmem:[#allocation4 + $0x478] sm:$0xff]
        %v3168 = vld [vmem:[#allocation9] sm:$0xf]
        %v3169 = vld [vmem:[#allocation9 + $0x4] sm:$0xf]
        %v3170 = vld [vmem:[#allocation9 + $0x8] sm:$0xf]
        %v3171 = vld [vmem:[#allocation9 + $0xc] sm:$0xf]
        %v3172 = vld [vmem:[#allocation9 + $0x10] sm:$0xf]
        %v3173 = vld [vmem:[#allocation9 + $0x14] sm:$0xf]
        %v3174 = vld [vmem:[#allocation9 + $0x18] sm:$0xf]
        %v3175 = vld [vmem:[#allocation9 + $0x1c] sm:$0xf]
        %v3176 = vld [vmem:[#allocation9 + $0x20] sm:$0xf]
        %v3177 = vld [vmem:[#allocation9 + $0x24] sm:$0xf]
        %v3178 = vld [vmem:[#allocation9 + $0x28] sm:$0xf]
        %v3179 = vld [vmem:[#allocation9 + $0x2c] sm:$0xf]
        %v3180 = vld [vmem:[#allocation9 + $0x30] sm:$0xf]
        %v3181 = vld [vmem:[#allocation9 + $0x34] sm:$0xf]
        %v3182 = vld [vmem:[#allocation9 + $0x38] sm:$0xf]
        %v3183 = vld [vmem:[#allocation9 + $0x3c] sm:$0xf]
        %v3184 = vld [vmem:[#allocation9 + $0x40] sm:$0xf]
        %v3185 = vld [vmem:[#allocation9 + $0x44] sm:$0xf]
        %v3186 = vld [vmem:[#allocation9 + $0x48] sm:$0xf]
        %v3187 = vld [vmem:[#allocation9 + $0x4c] sm:$0xf]
        %v3188 = vld [vmem:[#allocation9 + $0x50] sm:$0xf]
        %v3189 = vld [vmem:[#allocation9 + $0x54] sm:$0xf]
        %v3190 = vld [vmem:[#allocation9 + $0x58] sm:$0xf]
        %v3191 = vld [vmem:[#allocation9 + $0x5c] sm:$0xf]
        %v3192 = vld [vmem:[#allocation9 + $0x60] sm:$0xf]
        %v3193 = vld [vmem:[#allocation9 + $0x64] sm:$0xf]
        %v3194 = vld [vmem:[#allocation9 + $0x68] sm:$0xf]
        %v3195 = vld [vmem:[#allocation9 + $0x6c] sm:$0xf]
        %v3196 = vld [vmem:[#allocation9 + $0x70] sm:$0xf]
        %v3197 = vld [vmem:[#allocation9 + $0x74] sm:$0xf]
        %v3198 = vld [vmem:[#allocation9 + $0x78] sm:$0xf]
        %v3199 = vld [vmem:[#allocation9 + $0x7c] sm:$0xf]
        %v3200 = vld [vmem:[#allocation9 + $0x80] sm:$0xf]
        %v3201 = vld [vmem:[#allocation9 + $0x84] sm:$0xf]
        %v3202 = vld [vmem:[#allocation9 + $0x88] sm:$0xf]
        %v3203 = vld [vmem:[#allocation9 + $0x8c] sm:$0xf]
        %v3204 = vld [vmem:[#allocation9 + $0x90] sm:$0xf]
        %v3205 = vld [vmem:[#allocation9 + $0x94] sm:$0xf]
        %v3206 = vld [vmem:[#allocation9 + $0x98] sm:$0xf]
        %v3207 = vld [vmem:[#allocation9 + $0x9c] sm:$0xf]
        %v3208 = vld [vmem:[#allocation9 + $0xa0] sm:$0xf]
        %v3209 = vld [vmem:[#allocation9 + $0xa4] sm:$0xf]
        %v3210 = vld [vmem:[#allocation9 + $0xa8] sm:$0xf]
        %v3211 = vld [vmem:[#allocation9 + $0xac] sm:$0xf]
        %v3212 = vld [vmem:[#allocation9 + $0xb0] sm:$0xf]
        %v3213 = vld [vmem:[#allocation9 + $0xb4] sm:$0xf]
        %v3214 = vld [vmem:[#allocation9 + $0xb8] sm:$0xf]
        %v3215 = vld [vmem:[#allocation9 + $0xbc] sm:$0xf]
        %v3216 = vld [vmem:[#allocation9 + $0xc0] sm:$0xf]
        %v3217 = vld [vmem:[#allocation9 + $0xc4] sm:$0xf]
        %v3218 = vld [vmem:[#allocation9 + $0xc8] sm:$0xf]
        %v3219 = vld [vmem:[#allocation9 + $0xcc] sm:$0xf]
        %v3220 = vld [vmem:[#allocation9 + $0xd0] sm:$0xf]
        %v3221 = vld [vmem:[#allocation9 + $0xd4] sm:$0xf]
        %v3222 = vld [vmem:[#allocation9 + $0xd8] sm:$0xf]
        %v3223 = vld [vmem:[#allocation9 + $0xdc] sm:$0xf]
        %v3224 = vld [vmem:[#allocation9 + $0xe0] sm:$0xf]
        %v3225 = vld [vmem:[#allocation9 + $0xe4] sm:$0xf]
        %v3226 = vld [vmem:[#allocation9 + $0xe8] sm:$0xf]
        %v3227 = vld [vmem:[#allocation9 + $0xec] sm:$0xf]
        %v3228 = vld [vmem:[#allocation9 + $0xf0] sm:$0xf]
        %v3229 = vld [vmem:[#allocation9 + $0xf4] sm:$0xf]
        %v3230 = vld [vmem:[#allocation9 + $0xf8] sm:$0xf]
        %v3231 = vld [vmem:[#allocation9 + $0xfc] sm:$0xf]
        %v3232 = vld [vmem:[#allocation9 + $0x100] sm:$0xf]
        %v3233 = vld [vmem:[#allocation9 + $0x104] sm:$0xf]
        %v3234 = vld [vmem:[#allocation9 + $0x108] sm:$0xf]
        %v3235 = vld [vmem:[#allocation9 + $0x10c] sm:$0xf]
        %v3236 = vld [vmem:[#allocation9 + $0x110] sm:$0xf]
        %v3237 = vld [vmem:[#allocation9 + $0x114] sm:$0xf]
        %v3238 = vld [vmem:[#allocation9 + $0x118] sm:$0xf]
        %v3239 = vld [vmem:[#allocation9 + $0x11c] sm:$0xf]
        %v3240 = vld [vmem:[#allocation9 + $0x120] sm:$0xf]
        %v3241 = vld [vmem:[#allocation9 + $0x124] sm:$0xf]
        %v3242 = vld [vmem:[#allocation9 + $0x128] sm:$0xf]
        %v3243 = vld [vmem:[#allocation9 + $0x12c] sm:$0xf]
        %v3244 = vld [vmem:[#allocation9 + $0x130] sm:$0xf]
        %v3245 = vld [vmem:[#allocation9 + $0x134] sm:$0xf]
        %v3246 = vld [vmem:[#allocation9 + $0x138] sm:$0xf]
        %v3247 = vld [vmem:[#allocation9 + $0x13c] sm:$0xf]
        %v3248 = vld [vmem:[#allocation9 + $0x140] sm:$0xf]
        %v3249 = vld [vmem:[#allocation9 + $0x144] sm:$0xf]
        %v3250 = vld [vmem:[#allocation9 + $0x148] sm:$0xf]
        %v3251 = vld [vmem:[#allocation9 + $0x14c] sm:$0xf]
        %v3252 = vld [vmem:[#allocation9 + $0x150] sm:$0xf]
        %v3253 = vld [vmem:[#allocation9 + $0x154] sm:$0xf]
        %v3254 = vld [vmem:[#allocation9 + $0x158] sm:$0xf]
        %v3255 = vld [vmem:[#allocation9 + $0x15c] sm:$0xf]
        %v3256 = vld [vmem:[#allocation9 + $0x160] sm:$0xf]
        %v3257 = vld [vmem:[#allocation9 + $0x164] sm:$0xf]
        %v3258 = vld [vmem:[#allocation9 + $0x168] sm:$0xf]
        %v3259 = vld [vmem:[#allocation9 + $0x16c] sm:$0xf]
        %v3260 = vld [vmem:[#allocation9 + $0x170] sm:$0xf]
        %v3261 = vld [vmem:[#allocation9 + $0x174] sm:$0xf]
        %v3262 = vld [vmem:[#allocation9 + $0x178] sm:$0xf]
        %v3263 = vld [vmem:[#allocation9 + $0x17c] sm:$0xf]
        %v3264 = vld [vmem:[#allocation9 + $0x180] sm:$0xf]
        %v3265 = vld [vmem:[#allocation9 + $0x184] sm:$0xf]
        %v3266 = vld [vmem:[#allocation9 + $0x188] sm:$0xf]
        %v3267 = vld [vmem:[#allocation9 + $0x18c] sm:$0xf]
        %v3268 = vld [vmem:[#allocation9 + $0x190] sm:$0xf]
        %v3269 = vld [vmem:[#allocation9 + $0x194] sm:$0xf]
        %v3270 = vld [vmem:[#allocation9 + $0x198] sm:$0xf]
        %v3271 = vld [vmem:[#allocation9 + $0x19c] sm:$0xf]
        %v3272 = vld [vmem:[#allocation9 + $0x1a0] sm:$0xf]
        %v3273 = vld [vmem:[#allocation9 + $0x1a4] sm:$0xf]
        %v3274 = vld [vmem:[#allocation9 + $0x1a8] sm:$0xf]
        %v3275 = vld [vmem:[#allocation9 + $0x1ac] sm:$0xf]
        %v3276 = vld [vmem:[#allocation9 + $0x1b0] sm:$0xf]
        %v3277 = vld [vmem:[#allocation9 + $0x1b4] sm:$0xf]
        %v3278 = vld [vmem:[#allocation9 + $0x1b8] sm:$0xf]
        %v3279 = vld [vmem:[#allocation9 + $0x1bc] sm:$0xf]
        %v3280 = vld [vmem:[#allocation9 + $0x1c0] sm:$0xf]
        %v3281 = vld [vmem:[#allocation9 + $0x1c4] sm:$0xf]
        %v3282 = vld [vmem:[#allocation9 + $0x1c8] sm:$0xf]
        %v3283 = vld [vmem:[#allocation9 + $0x1cc] sm:$0xf]
        %v3284 = vld [vmem:[#allocation9 + $0x1d0] sm:$0xf]
        %v3285 = vld [vmem:[#allocation9 + $0x1d4] sm:$0xf]
        %v3286 = vld [vmem:[#allocation9 + $0x1d8] sm:$0xf]
        %v3287 = vld [vmem:[#allocation9 + $0x1dc] sm:$0xf]
        %v3288 = vld [vmem:[#allocation9 + $0x1e0] sm:$0xf]
        %v3289 = vld [vmem:[#allocation9 + $0x1e4] sm:$0xf]
        %v3290 = vld [vmem:[#allocation9 + $0x1e8] sm:$0xf]
        %v3291 = vld [vmem:[#allocation9 + $0x1ec] sm:$0xf]
        %v3292 = vld [vmem:[#allocation9 + $0x1f0] sm:$0xf]
        %v3293 = vld [vmem:[#allocation9 + $0x1f4] sm:$0xf]
        %v3294 = vld [vmem:[#allocation9 + $0x1f8] sm:$0xf]
        %v3295 = vld [vmem:[#allocation9 + $0x1fc] sm:$0xf]
        %v3296 = vld [vmem:[#allocation9 + $0x200] sm:$0xf]
        %v3297 = vld [vmem:[#allocation9 + $0x204] sm:$0xf]
        %v3298 = vld [vmem:[#allocation9 + $0x208] sm:$0xf]
        %v3299 = vld [vmem:[#allocation9 + $0x20c] sm:$0xf]
        %v3300 = vld [vmem:[#allocation9 + $0x210] sm:$0xf]
        %v3301 = vld [vmem:[#allocation9 + $0x214] sm:$0xf]
        %v3302 = vld [vmem:[#allocation9 + $0x218] sm:$0xf]
        %v3303 = vld [vmem:[#allocation9 + $0x21c] sm:$0xf]
        %v3304 = vld [vmem:[#allocation9 + $0x220] sm:$0xf]
        %v3305 = vld [vmem:[#allocation9 + $0x224] sm:$0xf]
        %v3306 = vld [vmem:[#allocation9 + $0x228] sm:$0xf]
        %v3307 = vld [vmem:[#allocation9 + $0x22c] sm:$0xf]
        %v3308 = vld [vmem:[#allocation9 + $0x230] sm:$0xf]
        %v3309 = vld [vmem:[#allocation9 + $0x234] sm:$0xf]
        %v3310 = vld [vmem:[#allocation9 + $0x238] sm:$0xf]
        %v3311 = vld [vmem:[#allocation9 + $0x23c] sm:$0xf]
        %v3312 = vld [vmem:[%s2] sm:$0x1]
        %v3314 = vlaneseq
        %v3315 = vshrl.u32 %v3314, 7
        %v3316 = vsub.s32 0, %v3315
        %v3317 = vrot.slane %v3312, %v3316
        %v3463 = vunpack.c.l.b16 %v3168
        %v3464 = vunpack.c.l.b16 %v3169
        %v3465 = vunpack.c.l.b16 %v3170
        %v3466 = vunpack.c.l.b16 %v3171
        %v3467 = vunpack.c.l.b16 %v3172
        %v3468 = vunpack.c.l.b16 %v3173
        %v3469 = vunpack.c.l.b16 %v3174
        %v3470 = vunpack.c.l.b16 %v3175
        %v3471 = vunpack.c.l.b16 %v3176
        %v3472 = vunpack.c.l.b16 %v3177
        %v3473 = vunpack.c.l.b16 %v3178
        %v3474 = vunpack.c.l.b16 %v3179
        %v3475 = vunpack.c.l.b16 %v3180
        %v3476 = vunpack.c.l.b16 %v3181
        %v3477 = vunpack.c.l.b16 %v3182
        %v3478 = vunpack.c.l.b16 %v3183
        %v3479 = vunpack.c.l.b16 %v3184
        %v3480 = vunpack.c.l.b16 %v3185
        %v3481 = vunpack.c.l.b16 %v3186
        %v3482 = vunpack.c.l.b16 %v3187
        %v3483 = vunpack.c.l.b16 %v3188
        %v3484 = vunpack.c.l.b16 %v3189
        %v3485 = vunpack.c.l.b16 %v3190
        %v3486 = vunpack.c.l.b16 %v3191
        %v3487 = vunpack.c.l.b16 %v3192
        %v3488 = vunpack.c.l.b16 %v3193
        %v3489 = vunpack.c.l.b16 %v3194
        %v3490 = vunpack.c.l.b16 %v3195
        %v3491 = vunpack.c.l.b16 %v3196
        %v3492 = vunpack.c.l.b16 %v3197
        %v3493 = vunpack.c.l.b16 %v3198
        %v3494 = vunpack.c.l.b16 %v3199
        %v3495 = vunpack.c.l.b16 %v3200
        %v3496 = vunpack.c.l.b16 %v3201
        %v3497 = vunpack.c.l.b16 %v3202
        %v3498 = vunpack.c.l.b16 %v3203
        %v3499 = vunpack.c.l.b16 %v3204
        %v3500 = vunpack.c.l.b16 %v3205
        %v3501 = vunpack.c.l.b16 %v3206
        %v3502 = vunpack.c.l.b16 %v3207
        %v3503 = vunpack.c.l.b16 %v3208
        %v3504 = vunpack.c.l.b16 %v3209
        %v3505 = vunpack.c.l.b16 %v3210
        %v3506 = vunpack.c.l.b16 %v3211
        %v3507 = vunpack.c.l.b16 %v3212
        %v3508 = vunpack.c.l.b16 %v3213
        %v3509 = vunpack.c.l.b16 %v3214
        %v3510 = vunpack.c.l.b16 %v3215
        %v3511 = vunpack.c.l.b16 %v3216
        %v3512 = vunpack.c.l.b16 %v3217
        %v3513 = vunpack.c.l.b16 %v3218
        %v3514 = vunpack.c.l.b16 %v3219
        %v3515 = vunpack.c.l.b16 %v3220
        %v3516 = vunpack.c.l.b16 %v3221
        %v3517 = vunpack.c.l.b16 %v3222
        %v3518 = vunpack.c.l.b16 %v3223
        %v3519 = vunpack.c.l.b16 %v3224
        %v3520 = vunpack.c.l.b16 %v3225
        %v3521 = vunpack.c.l.b16 %v3226
        %v3522 = vunpack.c.l.b16 %v3227
        %v3523 = vunpack.c.l.b16 %v3228
        %v3524 = vunpack.c.l.b16 %v3229
        %v3525 = vunpack.c.l.b16 %v3230
        %v3526 = vunpack.c.l.b16 %v3231
        %v3527 = vunpack.c.l.b16 %v3232
        %v3528 = vunpack.c.l.b16 %v3233
        %v3529 = vunpack.c.l.b16 %v3234
        %v3530 = vunpack.c.l.b16 %v3235
        %v3531 = vunpack.c.l.b16 %v3236
        %v3532 = vunpack.c.l.b16 %v3237
        %v3533 = vunpack.c.l.b16 %v3238
        %v3534 = vunpack.c.l.b16 %v3239
        %v3535 = vunpack.c.l.b16 %v3240
        %v3536 = vunpack.c.l.b16 %v3241
        %v3537 = vunpack.c.l.b16 %v3242
        %v3538 = vunpack.c.l.b16 %v3243
        %v3539 = vunpack.c.l.b16 %v3244
        %v3540 = vunpack.c.l.b16 %v3245
        %v3541 = vunpack.c.l.b16 %v3246
        %v3542 = vunpack.c.l.b16 %v3247
        %v3543 = vunpack.c.l.b16 %v3248
        %v3544 = vunpack.c.l.b16 %v3249
        %v3545 = vunpack.c.l.b16 %v3250
        %v3546 = vunpack.c.l.b16 %v3251
        %v3547 = vunpack.c.l.b16 %v3252
        %v3548 = vunpack.c.l.b16 %v3253
        %v3549 = vunpack.c.l.b16 %v3254
        %v3550 = vunpack.c.l.b16 %v3255
        %v3551 = vunpack.c.l.b16 %v3256
        %v3552 = vunpack.c.l.b16 %v3257
        %v3553 = vunpack.c.l.b16 %v3258
        %v3554 = vunpack.c.l.b16 %v3259
        %v3555 = vunpack.c.l.b16 %v3260
        %v3556 = vunpack.c.l.b16 %v3261
        %v3557 = vunpack.c.l.b16 %v3262
        %v3558 = vunpack.c.l.b16 %v3263
        %v3559 = vunpack.c.l.b16 %v3264
        %v3560 = vunpack.c.l.b16 %v3265
        %v3561 = vunpack.c.l.b16 %v3266
        %v3562 = vunpack.c.l.b16 %v3267
        %v3563 = vunpack.c.l.b16 %v3268
        %v3564 = vunpack.c.l.b16 %v3269
        %v3565 = vunpack.c.l.b16 %v3270
        %v3566 = vunpack.c.l.b16 %v3271
        %v3567 = vunpack.c.l.b16 %v3272
        %v3568 = vunpack.c.l.b16 %v3273
        %v3569 = vunpack.c.l.b16 %v3274
        %v3570 = vunpack.c.l.b16 %v3275
        %v3571 = vunpack.c.l.b16 %v3276
        %v3572 = vunpack.c.l.b16 %v3277
        %v3573 = vunpack.c.l.b16 %v3278
        %v3574 = vunpack.c.l.b16 %v3279
        %v3575 = vunpack.c.l.b16 %v3280
        %v3576 = vunpack.c.l.b16 %v3281
        %v3577 = vunpack.c.l.b16 %v3282
        %v3578 = vunpack.c.l.b16 %v3283
        %v3579 = vunpack.c.l.b16 %v3284
        %v3580 = vunpack.c.l.b16 %v3285
        %v3581 = vunpack.c.l.b16 %v3286
        %v3582 = vunpack.c.l.b16 %v3287
        %v3583 = vunpack.c.l.b16 %v3288
        %v3584 = vunpack.c.l.b16 %v3289
        %v3585 = vunpack.c.l.b16 %v3290
        %v3586 = vunpack.c.l.b16 %v3291
        %v3587 = vunpack.c.l.b16 %v3292
        %v3588 = vunpack.c.l.b16 %v3293
        %v3589 = vunpack.c.l.b16 %v3294
        %v3590 = vunpack.c.l.b16 %v3295
        %v3591 = vunpack.c.l.b16 %v3296
        %v3592 = vunpack.c.l.b16 %v3297
        %v3593 = vunpack.c.l.b16 %v3298
        %v3594 = vunpack.c.l.b16 %v3299
        %v3595 = vunpack.c.l.b16 %v3300
        %v3596 = vunpack.c.l.b16 %v3301
        %v3597 = vunpack.c.l.b16 %v3302
        %v3598 = vunpack.c.l.b16 %v3303
        %v3599 = vunpack.c.l.b16 %v3304
        %v3600 = vunpack.c.l.b16 %v3305
        %v3601 = vunpack.c.l.b16 %v3306
        %v3602 = vunpack.c.l.b16 %v3307
        %v3603 = vunpack.c.l.b16 %v3308
        %v3604 = vunpack.c.l.b16 %v3309
        %v3605 = vunpack.c.l.b16 %v3310
        %v3606 = vunpack.c.l.b16 %v3311
        %v3607 = vpack.c.b16 %v3464, %v3463
        %v3608 = vpack.c.b16 %v3466, %v3465
        %v3609 = vpack.c.b16 %v3468, %v3467
        %v3610 = vpack.c.b16 %v3470, %v3469
        %v3611 = vpack.c.b16 %v3472, %v3471
        %v3612 = vpack.c.b16 %v3474, %v3473
        %v3613 = vpack.c.b16 %v3476, %v3475
        %v3614 = vpack.c.b16 %v3478, %v3477
        %v3615 = vpack.c.b16 %v3480, %v3479
        %v3616 = vpack.c.b16 %v3482, %v3481
        %v3617 = vpack.c.b16 %v3484, %v3483
        %v3618 = vpack.c.b16 %v3486, %v3485
        %v3619 = vpack.c.b16 %v3488, %v3487
        %v3620 = vpack.c.b16 %v3490, %v3489
        %v3621 = vpack.c.b16 %v3492, %v3491
        %v3622 = vpack.c.b16 %v3494, %v3493
        %v3623 = vpack.c.b16 %v3496, %v3495
        %v3624 = vpack.c.b16 %v3498, %v3497
        %v3625 = vpack.c.b16 %v3500, %v3499
        %v3626 = vpack.c.b16 %v3502, %v3501
        %v3627 = vpack.c.b16 %v3504, %v3503
        %v3628 = vpack.c.b16 %v3506, %v3505
        %v3629 = vpack.c.b16 %v3508, %v3507
        %v3630 = vpack.c.b16 %v3510, %v3509
        %v3631 = vpack.c.b16 %v3512, %v3511
        %v3632 = vpack.c.b16 %v3514, %v3513
        %v3633 = vpack.c.b16 %v3516, %v3515
        %v3634 = vpack.c.b16 %v3518, %v3517
        %v3635 = vpack.c.b16 %v3520, %v3519
        %v3636 = vpack.c.b16 %v3522, %v3521
        %v3637 = vpack.c.b16 %v3524, %v3523
        %v3638 = vpack.c.b16 %v3526, %v3525
        %v3639 = vpack.c.b16 %v3528, %v3527
        %v3640 = vpack.c.b16 %v3530, %v3529
        %v3641 = vpack.c.b16 %v3532, %v3531
        %v3642 = vpack.c.b16 %v3534, %v3533
        %v3643 = vpack.c.b16 %v3536, %v3535
        %v3644 = vpack.c.b16 %v3538, %v3537
        %v3645 = vpack.c.b16 %v3540, %v3539
        %v3646 = vpack.c.b16 %v3542, %v3541
        %v3647 = vpack.c.b16 %v3544, %v3543
        %v3648 = vpack.c.b16 %v3546, %v3545
        %v3649 = vpack.c.b16 %v3548, %v3547
        %v3650 = vpack.c.b16 %v3550, %v3549
        %v3651 = vpack.c.b16 %v3552, %v3551
        %v3652 = vpack.c.b16 %v3554, %v3553
        %v3653 = vpack.c.b16 %v3556, %v3555
        %v3654 = vpack.c.b16 %v3558, %v3557
        %v3655 = vpack.c.b16 %v3560, %v3559
        %v3656 = vpack.c.b16 %v3562, %v3561
        %v3657 = vpack.c.b16 %v3564, %v3563
        %v3658 = vpack.c.b16 %v3566, %v3565
        %v3659 = vpack.c.b16 %v3568, %v3567
        %v3660 = vpack.c.b16 %v3570, %v3569
        %v3661 = vpack.c.b16 %v3572, %v3571
        %v3662 = vpack.c.b16 %v3574, %v3573
        %v3663 = vpack.c.b16 %v3576, %v3575
        %v3664 = vpack.c.b16 %v3578, %v3577
        %v3665 = vpack.c.b16 %v3580, %v3579
        %v3666 = vpack.c.b16 %v3582, %v3581
        %v3667 = vpack.c.b16 %v3584, %v3583
        %v3668 = vpack.c.b16 %v3586, %v3585
        %v3669 = vpack.c.b16 %v3588, %v3587
        %v3670 = vpack.c.b16 %v3590, %v3589
        %v3671 = vpack.c.b16 %v3592, %v3591
        %v3672 = vpack.c.b16 %v3594, %v3593
        %v3673 = vpack.c.b16 %v3596, %v3595
        %v3674 = vpack.c.b16 %v3598, %v3597
        %v3675 = vpack.c.b16 %v3600, %v3599
        %v3676 = vpack.c.b16 %v3602, %v3601
        %v3677 = vpack.c.b16 %v3604, %v3603
        %v3678 = vpack.c.b16 %v3606, %v3605
        %3751 = vmatprep.subr.bf16.mxu0 0
        %3752 = vmatpush1.bf16.msra.mxu0 %v3607
        %3753 = vmatprep.subr.bf16.mxu0 0
        %3754 = vmatpush1.bf16.msra.mxu0 %v3608
        %3755 = vmatprep.subr.bf16.mxu0 0
        %3756 = vmatpush1.bf16.msra.mxu0 %v3609
        %3757 = vmatprep.subr.bf16.mxu0 0
        %3758 = vmatpush1.bf16.msra.mxu0 %v3610
        %3759 = vmatprep.subr.bf16.mxu0 0
        %3760 = vmatpush1.bf16.msra.mxu0 %v3611
        %3761 = vmatprep.subr.bf16.mxu0 0
        %3762 = vmatpush1.bf16.msra.mxu0 %v3612
        %3763 = vmatprep.subr.bf16.mxu0 0
        %3764 = vmatpush1.bf16.msra.mxu0 %v3613
        %3765 = vmatprep.subr.bf16.mxu0 0
        %3766 = vmatpush1.bf16.msra.mxu0 %v3614
        %3767 = vmatprep.subr.bf16.mxu0 0
        %3768 = vmatpush1.bf16.msra.mxu0 %v3615
        %3769 = vmatprep.subr.bf16.mxu0 0
        %3770 = vmatpush1.bf16.msra.mxu0 %v3616
        %3771 = vmatprep.subr.bf16.mxu0 0
        %3772 = vmatpush1.bf16.msra.mxu0 %v3617
        %3773 = vmatprep.subr.bf16.mxu0 0
        %3774 = vmatpush1.bf16.msra.mxu0 %v3618
        %3775 = vmatprep.subr.bf16.mxu0 0
        %3776 = vmatpush1.bf16.msra.mxu0 %v3619
        %3777 = vmatprep.subr.bf16.mxu0 0
        %3778 = vmatpush1.bf16.msra.mxu0 %v3620
        %3779 = vmatprep.subr.bf16.mxu0 0
        %3780 = vmatpush1.bf16.msra.mxu0 %v3621
        %3781 = vmatprep.subr.bf16.mxu0 0
        %3782 = vmatpush1.bf16.msra.mxu0 %v3622
        %3783 = vmatprep.mubr.bf16.mxu0 %v3025
        %3784 = vmatmul.mubr.bf16.gmra.mrb[0].mxu0 %v3024
        %v3785 = vpop.f32.mrb[0].mxu0
        %v3786 = vadd.f32 %v3317, %v3785
        %v3787 = vpop.f32.mrb[0].mxu0
        %v3788 = vpop.f32.mrb[0].mxu0
        %v3789 = vadd.f32 %v3317, %v3788
        %v3790 = vpop.f32.mrb[0].mxu0
        %3791 = vmatprep.mubr.bf16.mxu0 %v3034
        %3792 = vmatmul.mubr.bf16.gmra.mrb[0].mxu0 %v3033
        %v3793 = vpop.f32.mrb[0].mxu0
        %v3794 = vadd.f32 %v3317, %v3793
        %v3795 = vpop.f32.mrb[0].mxu0
        %v3796 = vpop.f32.mrb[0].mxu0
        %v3797 = vadd.f32 %v3317, %v3796
        %v3798 = vpop.f32.mrb[0].mxu0
        %3799 = vmatprep.mubr.bf16.mxu0 %v3043
        %3800 = vmatmul.mubr.bf16.gmra.mrb[0].mxu0 %v3042
        %v3801 = vpop.f32.mrb[0].mxu0
        %v3802 = vadd.f32 %v3317, %v3801
        %v3803 = vpop.f32.mrb[0].mxu0
        %v3804 = vpop.f32.mrb[0].mxu0
        %v3805 = vadd.f32 %v3317, %v3804
        %v3806 = vpop.f32.mrb[0].mxu0
        %3807 = vmatprep.mubr.bf16.mxu0 %v3052
        %3808 = vmatmul.mubr.bf16.gmra.mrb[0].mxu0 %v3051
        %v3809 = vpop.f32.mrb[0].mxu0
        %v3810 = vadd.f32 %v3317, %v3809
        %v3811 = vpop.f32.mrb[0].mxu0
        %v3812 = vpop.f32.mrb[0].mxu0
        %v3813 = vadd.f32 %v3317, %v3812
        %v3814 = vpop.f32.mrb[0].mxu0
        %3815 = vmatprep.mubr.bf16.mxu0 %v3061
        %3816 = vmatmul.mubr.bf16.gmra.mrb[0].mxu0 %v3060
        %v3817 = vpop.f32.mrb[0].mxu0
        %v3818 = vadd.f32 %v3317, %v3817
        %v3819 = vpop.f32.mrb[0].mxu0
        %v3820 = vpop.f32.mrb[0].mxu0
        %v3821 = vadd.f32 %v3317, %v3820
        %v3822 = vpop.f32.mrb[0].mxu0
        %3823 = vmatprep.mubr.bf16.mxu0 %v3070
        %3824 = vmatmul.mubr.bf16.gmra.mrb[0].mxu0 %v3069
        %v3825 = vpop.f32.mrb[0].mxu0
        %v3826 = vadd.f32 %v3317, %v3825
        %v3827 = vpop.f32.mrb[0].mxu0
        %v3828 = vpop.f32.mrb[0].mxu0
        %v3829 = vadd.f32 %v3317, %v3828
        %v3830 = vpop.f32.mrb[0].mxu0
        %3831 = vmatprep.mubr.bf16.mxu0 %v3079
        %3832 = vmatmul.mubr.bf16.gmra.mrb[0].mxu0 %v3078
        %v3833 = vpop.f32.mrb[0].mxu0
        %v3834 = vadd.f32 %v3317, %v3833
        %v3835 = vpop.f32.mrb[0].mxu0
        %v3836 = vpop.f32.mrb[0].mxu0
        %v3837 = vadd.f32 %v3317, %v3836
        %v3838 = vpop.f32.mrb[0].mxu0
        %3839 = vmatprep.mubr.bf16.mxu0 %v3088
        %3840 = vmatmul.mubr.bf16.gmra.mrb[0].mxu0 %v3087
        %v3841 = vpop.f32.mrb[0].mxu0
        %v3842 = vadd.f32 %v3317, %v3841
        %v3843 = vpop.f32.mrb[0].mxu0
        %v3844 = vpop.f32.mrb[0].mxu0
        %v3845 = vadd.f32 %v3317, %v3844
        %v3846 = vpop.f32.mrb[0].mxu0
        %3847 = vmatprep.mubr.bf16.mxu0 %v3097
        %3848 = vmatmul.mubr.bf16.gmra.mrb[0].mxu0 %v3096
        %v3849 = vpop.f32.mrb[0].mxu0
        %v3850 = vadd.f32 %v3317, %v3849
        %v3851 = vpop.f32.mrb[0].mxu0
        %v3852 = vpop.f32.mrb[0].mxu0
        %v3853 = vadd.f32 %v3317, %v3852
        %v3854 = vpop.f32.mrb[0].mxu0
        %3855 = vmatprep.mubr.bf16.mxu0 %v3106
        %3856 = vmatmul.mubr.bf16.gmra.mrb[0].mxu0 %v3105
        %v3857 = vpop.f32.mrb[0].mxu0
        %v3858 = vadd.f32 %v3317, %v3857
        %v3859 = vpop.f32.mrb[0].mxu0
        %v3860 = vpop.f32.mrb[0].mxu0
        %v3861 = vadd.f32 %v3317, %v3860
        %v3862 = vpop.f32.mrb[0].mxu0
        %3863 = vmatprep.mubr.bf16.mxu0 %v3115
        %3864 = vmatmul.mubr.bf16.gmra.mrb[0].mxu0 %v3114
        %v3865 = vpop.f32.mrb[0].mxu0
        %v3866 = vadd.f32 %v3317, %v3865
        %v3867 = vpop.f32.mrb[0].mxu0
        %v3868 = vpop.f32.mrb[0].mxu0
        %v3869 = vadd.f32 %v3317, %v3868
        %v3870 = vpop.f32.mrb[0].mxu0
        %3871 = vmatprep.mubr.bf16.mxu0 %v3124
        %3872 = vmatmul.mubr.bf16.gmra.mrb[0].mxu0 %v3123
        %v3873 = vpop.f32.mrb[0].mxu0
        %v3874 = vadd.f32 %v3317, %v3873
        %v3875 = vpop.f32.mrb[0].mxu0
        %v3876 = vpop.f32.mrb[0].mxu0
        %v3877 = vadd.f32 %v3317, %v3876
        %v3878 = vpop.f32.mrb[0].mxu0
        %3879 = vmatprep.mubr.bf16.mxu0 %v3133
        %3880 = vmatmul.mubr.bf16.gmra.mrb[0].mxu0 %v3132
        %v3881 = vpop.f32.mrb[0].mxu0
        %v3882 = vadd.f32 %v3317, %v3881
        %v3883 = vpop.f32.mrb[0].mxu0
        %v3884 = vpop.f32.mrb[0].mxu0
        %v3885 = vadd.f32 %v3317, %v3884
        %v3886 = vpop.f32.mrb[0].mxu0
        %3887 = vmatprep.mubr.bf16.mxu0 %v3142
        %3888 = vmatmul.mubr.bf16.gmra.mrb[0].mxu0 %v3141
        %v3889 = vpop.f32.mrb[0].mxu0
        %v3890 = vadd.f32 %v3317, %v3889
        %v3891 = vpop.f32.mrb[0].mxu0
        %v3892 = vpop.f32.mrb[0].mxu0
        %v3893 = vadd.f32 %v3317, %v3892
        %v3894 = vpop.f32.mrb[0].mxu0
        %3895 = vmatprep.mubr.bf16.mxu0 %v3151
        %3896 = vmatmul.mubr.bf16.gmra.mrb[0].mxu0 %v3150
        %v3897 = vpop.f32.mrb[0].mxu0
        %v3898 = vadd.f32 %v3317, %v3897
        %v3899 = vpop.f32.mrb[0].mxu0
        %v3900 = vpop.f32.mrb[0].mxu0
        %v3901 = vadd.f32 %v3317, %v3900
        %v3902 = vpop.f32.mrb[0].mxu0
        %3903 = vmatprep.mubr.bf16.mxu0 %v3160
        %3904 = vmatmul.mubr.bf16.gmra.mrb[0].mxu0 %v3159
        %v3905 = vpop.f32.mrb[0].mxu0
        %v3906 = vadd.f32 %v3317, %v3905
        %v3907 = vpop.f32.mrb[0].mxu0
        %v3908 = vpop.f32.mrb[0].mxu0
        %v3909 = vadd.f32 %v3317, %v3908
        %v3910 = vpop.f32.mrb[0].mxu0
        %3911 = vdwg.mxu0
        %3912 = vmatprep.subr.bf16.mxu0 0
        %3913 = vmatpush1.bf16.msra.mxu0 %v3623
        %3914 = vmatprep.subr.bf16.mxu0 0
        %3915 = vmatpush1.bf16.msra.mxu0 %v3624
        %3916 = vmatprep.subr.bf16.mxu0 0
        %3917 = vmatpush1.bf16.msra.mxu0 %v3625
        %3918 = vmatprep.subr.bf16.mxu0 0
        %3919 = vmatpush1.bf16.msra.mxu0 %v3626
        %3920 = vmatprep.subr.bf16.mxu0 0
        %3921 = vmatpush1.bf16.msra.mxu0 %v3627
        %3922 = vmatprep.subr.bf16.mxu0 0
        %3923 = vmatpush1.bf16.msra.mxu0 %v3628
        %3924 = vmatprep.subr.bf16.mxu0 0
        %3925 = vmatpush1.bf16.msra.mxu0 %v3629
        %3926 = vmatprep.subr.bf16.mxu0 0
        %3927 = vmatpush1.bf16.msra.mxu0 %v3630
        %3928 = vmatprep.subr.bf16.mxu0 0
        %3929 = vmatpush1.bf16.msra.mxu0 %v3631
        %3930 = vmatprep.subr.bf16.mxu0 0
        %3931 = vmatpush1.bf16.msra.mxu0 %v3632
        %3932 = vmatprep.subr.bf16.mxu0 0
        %3933 = vmatpush1.bf16.msra.mxu0 %v3633
        %3934 = vmatprep.subr.bf16.mxu0 0
        %3935 = vmatpush1.bf16.msra.mxu0 %v3634
        %3936 = vmatprep.subr.bf16.mxu0 0
        %3937 = vmatpush1.bf16.msra.mxu0 %v3635
        %3938 = vmatprep.subr.bf16.mxu0 0
        %3939 = vmatpush1.bf16.msra.mxu0 %v3636
        %3940 = vmatprep.subr.bf16.mxu0 0
        %3941 = vmatpush1.bf16.msra.mxu0 %v3637
        %3942 = vmatprep.subr.bf16.mxu0 0
        %3943 = vmatpush1.bf16.msra.mxu0 %v3638
        %3944 = vmatprep.mubr.bf16.mxu0 %v3027
        %3945 = vmatmul.mubr.bf16.gmra.mrb[0].mxu0 %v3026
        %v3946 = vpop.f32.mrb[0].mxu0
        %v3947 = vadd.f32 %v3786, %v3946
        %v3948 = vpop.f32.mrb[0].mxu0
        %v3949 = vpop.f32.mrb[0].mxu0
        %v3950 = vadd.f32 %v3789, %v3949
        %v3951 = vpop.f32.mrb[0].mxu0
        %3952 = vmatprep.mubr.bf16.mxu0 %v3036
        %3953 = vmatmul.mubr.bf16.gmra.mrb[0].mxu0 %v3035
        %v3954 = vpop.f32.mrb[0].mxu0
        %v3955 = vadd.f32 %v3794, %v3954
        %v3956 = vpop.f32.mrb[0].mxu0
        %v3957 = vpop.f32.mrb[0].mxu0
        %v3958 = vadd.f32 %v3797, %v3957
        %v3959 = vpop.f32.mrb[0].mxu0
        %3960 = vmatprep.mubr.bf16.mxu0 %v3045
        %3961 = vmatmul.mubr.bf16.gmra.mrb[0].mxu0 %v3044
        %v3962 = vpop.f32.mrb[0].mxu0
        %v3963 = vadd.f32 %v3802, %v3962
        %v3964 = vpop.f32.mrb[0].mxu0
        %v3965 = vpop.f32.mrb[0].mxu0
        %v3966 = vadd.f32 %v3805, %v3965
        %v3967 = vpop.f32.mrb[0].mxu0
        %3968 = vmatprep.mubr.bf16.mxu0 %v3054
        %3969 = vmatmul.mubr.bf16.gmra.mrb[0].mxu0 %v3053
        %v3970 = vpop.f32.mrb[0].mxu0
        %v3971 = vadd.f32 %v3810, %v3970
        %v3972 = vpop.f32.mrb[0].mxu0
        %v3973 = vpop.f32.mrb[0].mxu0
        %v3974 = vadd.f32 %v3813, %v3973
        %v3975 = vpop.f32.mrb[0].mxu0
        %3976 = vmatprep.mubr.bf16.mxu0 %v3063
        %3977 = vmatmul.mubr.bf16.gmra.mrb[0].mxu0 %v3062
        %v3978 = vpop.f32.mrb[0].mxu0
        %v3979 = vadd.f32 %v3818, %v3978
        %v3980 = vpop.f32.mrb[0].mxu0
        %v3981 = vpop.f32.mrb[0].mxu0
        %v3982 = vadd.f32 %v3821, %v3981
        %v3983 = vpop.f32.mrb[0].mxu0
        %3984 = vmatprep.mubr.bf16.mxu0 %v3072
        %3985 = vmatmul.mubr.bf16.gmra.mrb[0].mxu0 %v3071
        %v3986 = vpop.f32.mrb[0].mxu0
        %v3987 = vadd.f32 %v3826, %v3986
        %v3988 = vpop.f32.mrb[0].mxu0
        %v3989 = vpop.f32.mrb[0].mxu0
        %v3990 = vadd.f32 %v3829, %v3989
        %v3991 = vpop.f32.mrb[0].mxu0
        %3992 = vmatprep.mubr.bf16.mxu0 %v3081
        %3993 = vmatmul.mubr.bf16.gmra.mrb[0].mxu0 %v3080
        %v3994 = vpop.f32.mrb[0].mxu0
        %v3995 = vadd.f32 %v3834, %v3994
        %v3996 = vpop.f32.mrb[0].mxu0
        %v3997 = vpop.f32.mrb[0].mxu0
        %v3998 = vadd.f32 %v3837, %v3997
        %v3999 = vpop.f32.mrb[0].mxu0
        %4000 = vmatprep.mubr.bf16.mxu0 %v3090
        %4001 = vmatmul.mubr.bf16.gmra.mrb[0].mxu0 %v3089
        %v4002 = vpop.f32.mrb[0].mxu0
        %v4003 = vadd.f32 %v3842, %v4002
        %v4004 = vpop.f32.mrb[0].mxu0
        %v4005 = vpop.f32.mrb[0].mxu0
        %v4006 = vadd.f32 %v3845, %v4005
        %v4007 = vpop.f32.mrb[0].mxu0
        %4008 = vmatprep.mubr.bf16.mxu0 %v3099
        %4009 = vmatmul.mubr.bf16.gmra.mrb[0].mxu0 %v3098
        %v4010 = vpop.f32.mrb[0].mxu0
        %v4011 = vadd.f32 %v3850, %v4010
        %v4012 = vpop.f32.mrb[0].mxu0
        %v4013 = vpop.f32.mrb[0].mxu0
        %v4014 = vadd.f32 %v3853, %v4013
        %v4015 = vpop.f32.mrb[0].mxu0
        %4016 = vmatprep.mubr.bf16.mxu0 %v3108
        %4017 = vmatmul.mubr.bf16.gmra.mrb[0].mxu0 %v3107
        %v4018 = vpop.f32.mrb[0].mxu0
        %v4019 = vadd.f32 %v3858, %v4018
        %v4020 = vpop.f32.mrb[0].mxu0
        %v4021 = vpop.f32.mrb[0].mxu0
        %v4022 = vadd.f32 %v3861, %v4021
        %v4023 = vpop.f32.mrb[0].mxu0
        %4024 = vmatprep.mubr.bf16.mxu0 %v3117
        %4025 = vmatmul.mubr.bf16.gmra.mrb[0].mxu0 %v3116
        %v4026 = vpop.f32.mrb[0].mxu0
        %v4027 = vadd.f32 %v3866, %v4026
        %v4028 = vpop.f32.mrb[0].mxu0
        %v4029 = vpop.f32.mrb[0].mxu0
        %v4030 = vadd.f32 %v3869, %v4029
        %v4031 = vpop.f32.mrb[0].mxu0
        %4032 = vmatprep.mubr.bf16.mxu0 %v3126
        %4033 = vmatmul.mubr.bf16.gmra.mrb[0].mxu0 %v3125
        %v4034 = vpop.f32.mrb[0].mxu0
        %v4035 = vadd.f32 %v3874, %v4034
        %v4036 = vpop.f32.mrb[0].mxu0
        %v4037 = vpop.f32.mrb[0].mxu0
        %v4038 = vadd.f32 %v3877, %v4037
        %v4039 = vpop.f32.mrb[0].mxu0
        %4040 = vmatprep.mubr.bf16.mxu0 %v3135
        %4041 = vmatmul.mubr.bf16.gmra.mrb[0].mxu0 %v3134
        %v4042 = vpop.f32.mrb[0].mxu0
        %v4043 = vadd.f32 %v3882, %v4042
        %v4044 = vpop.f32.mrb[0].mxu0
        %v4045 = vpop.f32.mrb[0].mxu0
        %v4046 = vadd.f32 %v3885, %v4045
        %v4047 = vpop.f32.mrb[0].mxu0
        %4048 = vmatprep.mubr.bf16.mxu0 %v3144
        %4049 = vmatmul.mubr.bf16.gmra.mrb[0].mxu0 %v3143
        %v4050 = vpop.f32.mrb[0].mxu0
        %v4051 = vadd.f32 %v3890, %v4050
        %v4052 = vpop.f32.mrb[0].mxu0
        %v4053 = vpop.f32.mrb[0].mxu0
        %v4054 = vadd.f32 %v3893, %v4053
        %v4055 = vpop.f32.mrb[0].mxu0
        %4056 = vmatprep.mubr.bf16.mxu0 %v3153
        %4057 = vmatmul.mubr.bf16.gmra.mrb[0].mxu0 %v3152
        %v4058 = vpop.f32.mrb[0].mxu0
        %v4059 = vadd.f32 %v3898, %v4058
        %v4060 = vpop.f32.mrb[0].mxu0
        %v4061 = vpop.f32.mrb[0].mxu0
        %v4062 = vadd.f32 %v3901, %v4061
        %v4063 = vpop.f32.mrb[0].mxu0
        %4064 = vmatprep.mubr.bf16.mxu0 %v3162
        %4065 = vmatmul.mubr.bf16.gmra.mrb[0].mxu0 %v3161
        %v4066 = vpop.f32.mrb[0].mxu0
        %v4067 = vadd.f32 %v3906, %v4066
        %v4068 = vpop.f32.mrb[0].mxu0
        %v4069 = vpop.f32.mrb[0].mxu0
        %v4070 = vadd.f32 %v3909, %v4069
        %v4071 = vpop.f32.mrb[0].mxu0
        %4072 = vdwg.mxu0
        %4073 = vmatprep.subr.bf16.mxu0 0
        %4074 = vmatpush1.bf16.msra.mxu0 %v3639
        %4075 = vmatprep.subr.bf16.mxu0 0
        %4076 = vmatpush1.bf16.msra.mxu0 %v3640
        %4077 = vmatprep.subr.bf16.mxu0 0
        %4078 = vmatpush1.bf16.msra.mxu0 %v3641
        %4079 = vmatprep.subr.bf16.mxu0 0
        %4080 = vmatpush1.bf16.msra.mxu0 %v3642
        %4081 = vmatprep.subr.bf16.mxu0 0
        %4082 = vmatpush1.bf16.msra.mxu0 %v3643
        %4083 = vmatprep.subr.bf16.mxu0 0
        %4084 = vmatpush1.bf16.msra.mxu0 %v3644
        %4085 = vmatprep.subr.bf16.mxu0 0
        %4086 = vmatpush1.bf16.msra.mxu0 %v3645
        %4087 = vmatprep.subr.bf16.mxu0 0
        %4088 = vmatpush1.bf16.msra.mxu0 %v3646
        %4089 = vmatprep.subr.bf16.mxu0 0
        %4090 = vmatpush1.bf16.msra.mxu0 %v3647
        %4091 = vmatprep.subr.bf16.mxu0 0
        %4092 = vmatpush1.bf16.msra.mxu0 %v3648
        %4093 = vmatprep.subr.bf16.mxu0 0
        %4094 = vmatpush1.bf16.msra.mxu0 %v3649
        %4095 = vmatprep.subr.bf16.mxu0 0
        %4096 = vmatpush1.bf16.msra.mxu0 %v3650
        %4097 = vmatprep.subr.bf16.mxu0 0
        %4098 = vmatpush1.bf16.msra.mxu0 %v3651
        %4099 = vmatprep.subr.bf16.mxu0 0
        %4100 = vmatpush1.bf16.msra.mxu0 %v3652
        %4101 = vmatprep.subr.bf16.mxu0 0
        %4102 = vmatpush1.bf16.msra.mxu0 %v3653
        %4103 = vmatprep.subr.bf16.mxu0 0
        %4104 = vmatpush1.bf16.msra.mxu0 %v3654
        %4105 = vmatprep.mubr.bf16.mxu0 %v3029
        %4106 = vmatmul.mubr.bf16.gmra.mrb[0].mxu0 %v3028
        %v4107 = vpop.f32.mrb[0].mxu0
        %v4108 = vadd.f32 %v3947, %v4107
        %v4109 = vpop.f32.mrb[0].mxu0
        %v4110 = vpop.f32.mrb[0].mxu0
        %v4111 = vadd.f32 %v3950, %v4110
        %v4112 = vpop.f32.mrb[0].mxu0
        %4113 = vmatprep.mubr.bf16.mxu0 %v3038
        %4114 = vmatmul.mubr.bf16.gmra.mrb[0].mxu0 %v3037
        %v4115 = vpop.f32.mrb[0].mxu0
        %v4116 = vadd.f32 %v3955, %v4115
        %v4117 = vpop.f32.mrb[0].mxu0
        %v4118 = vpop.f32.mrb[0].mxu0
        %v4119 = vadd.f32 %v3958, %v4118
        %v4120 = vpop.f32.mrb[0].mxu0
        %4121 = vmatprep.mubr.bf16.mxu0 %v3047
        %4122 = vmatmul.mubr.bf16.gmra.mrb[0].mxu0 %v3046
        %v4123 = vpop.f32.mrb[0].mxu0
        %v4124 = vadd.f32 %v3963, %v4123
        %v4125 = vpop.f32.mrb[0].mxu0
        %v4126 = vpop.f32.mrb[0].mxu0
        %v4127 = vadd.f32 %v3966, %v4126
        %v4128 = vpop.f32.mrb[0].mxu0
        %4129 = vmatprep.mubr.bf16.mxu0 %v3056
        %4130 = vmatmul.mubr.bf16.gmra.mrb[0].mxu0 %v3055
        %v4131 = vpop.f32.mrb[0].mxu0
        %v4132 = vadd.f32 %v3971, %v4131
        %v4133 = vpop.f32.mrb[0].mxu0
        %v4134 = vpop.f32.mrb[0].mxu0
        %v4135 = vadd.f32 %v3974, %v4134
        %v4136 = vpop.f32.mrb[0].mxu0
        %4137 = vmatprep.mubr.bf16.mxu0 %v3065
        %4138 = vmatmul.mubr.bf16.gmra.mrb[0].mxu0 %v3064
        %v4139 = vpop.f32.mrb[0].mxu0
        %v4140 = vadd.f32 %v3979, %v4139
        %v4141 = vpop.f32.mrb[0].mxu0
        %v4142 = vpop.f32.mrb[0].mxu0
        %v4143 = vadd.f32 %v3982, %v4142
        %v4144 = vpop.f32.mrb[0].mxu0
        %4145 = vmatprep.mubr.bf16.mxu0 %v3074
        %4146 = vmatmul.mubr.bf16.gmra.mrb[0].mxu0 %v3073
        %v4147 = vpop.f32.mrb[0].mxu0
        %v4148 = vadd.f32 %v3987, %v4147
        %v4149 = vpop.f32.mrb[0].mxu0
        %v4150 = vpop.f32.mrb[0].mxu0
        %v4151 = vadd.f32 %v3990, %v4150
        %v4152 = vpop.f32.mrb[0].mxu0
        %4153 = vmatprep.mubr.bf16.mxu0 %v3083
        %4154 = vmatmul.mubr.bf16.gmra.mrb[0].mxu0 %v3082
        %v4155 = vpop.f32.mrb[0].mxu0
        %v4156 = vadd.f32 %v3995, %v4155
        %v4157 = vpop.f32.mrb[0].mxu0
        %v4158 = vpop.f32.mrb[0].mxu0
        %v4159 = vadd.f32 %v3998, %v4158
        %v4160 = vpop.f32.mrb[0].mxu0
        %4161 = vmatprep.mubr.bf16.mxu0 %v3092
        %4162 = vmatmul.mubr.bf16.gmra.mrb[0].mxu0 %v3091
        %v4163 = vpop.f32.mrb[0].mxu0
        %v4164 = vadd.f32 %v4003, %v4163
        %v4165 = vpop.f32.mrb[0].mxu0
        %v4166 = vpop.f32.mrb[0].mxu0
        %v4167 = vadd.f32 %v4006, %v4166
        %v4168 = vpop.f32.mrb[0].mxu0
        %4169 = vmatprep.mubr.bf16.mxu0 %v3101
        %4170 = vmatmul.mubr.bf16.gmra.mrb[0].mxu0 %v3100
        %v4171 = vpop.f32.mrb[0].mxu0
        %v4172 = vadd.f32 %v4011, %v4171
        %v4173 = vpop.f32.mrb[0].mxu0
        %v4174 = vpop.f32.mrb[0].mxu0
        %v4175 = vadd.f32 %v4014, %v4174
        %v4176 = vpop.f32.mrb[0].mxu0
        %4177 = vmatprep.mubr.bf16.mxu0 %v3110
        %4178 = vmatmul.mubr.bf16.gmra.mrb[0].mxu0 %v3109
        %v4179 = vpop.f32.mrb[0].mxu0
        %v4180 = vadd.f32 %v4019, %v4179
        %v4181 = vpop.f32.mrb[0].mxu0
        %v4182 = vpop.f32.mrb[0].mxu0
        %v4183 = vadd.f32 %v4022, %v4182
        %v4184 = vpop.f32.mrb[0].mxu0
        %4185 = vmatprep.mubr.bf16.mxu0 %v3119
        %4186 = vmatmul.mubr.bf16.gmra.mrb[0].mxu0 %v3118
        %v4187 = vpop.f32.mrb[0].mxu0
        %v4188 = vadd.f32 %v4027, %v4187
        %v4189 = vpop.f32.mrb[0].mxu0
        %v4190 = vpop.f32.mrb[0].mxu0
        %v4191 = vadd.f32 %v4030, %v4190
        %v4192 = vpop.f32.mrb[0].mxu0
        %4193 = vmatprep.mubr.bf16.mxu0 %v3128
        %4194 = vmatmul.mubr.bf16.gmra.mrb[0].mxu0 %v3127
        %v4195 = vpop.f32.mrb[0].mxu0
        %v4196 = vadd.f32 %v4035, %v4195
        %v4197 = vpop.f32.mrb[0].mxu0
        %v4198 = vpop.f32.mrb[0].mxu0
        %v4199 = vadd.f32 %v4038, %v4198
        %v4200 = vpop.f32.mrb[0].mxu0
        %4201 = vmatprep.mubr.bf16.mxu0 %v3137
        %4202 = vmatmul.mubr.bf16.gmra.mrb[0].mxu0 %v3136
        %v4203 = vpop.f32.mrb[0].mxu0
        %v4204 = vadd.f32 %v4043, %v4203
        %v4205 = vpop.f32.mrb[0].mxu0
        %v4206 = vpop.f32.mrb[0].mxu0
        %v4207 = vadd.f32 %v4046, %v4206
        %v4208 = vpop.f32.mrb[0].mxu0
        %4209 = vmatprep.mubr.bf16.mxu0 %v3146
        %4210 = vmatmul.mubr.bf16.gmra.mrb[0].mxu0 %v3145
        %v4211 = vpop.f32.mrb[0].mxu0
        %v4212 = vadd.f32 %v4051, %v4211
        %v4213 = vpop.f32.mrb[0].mxu0
        %v4214 = vpop.f32.mrb[0].mxu0
        %v4215 = vadd.f32 %v4054, %v4214
        %v4216 = vpop.f32.mrb[0].mxu0
        %4217 = vmatprep.mubr.bf16.mxu0 %v3155
        %4218 = vmatmul.mubr.bf16.gmra.mrb[0].mxu0 %v3154
        %v4219 = vpop.f32.mrb[0].mxu0
        %v4220 = vadd.f32 %v4059, %v4219
        %v4221 = vpop.f32.mrb[0].mxu0
        %v4222 = vpop.f32.mrb[0].mxu0
        %v4223 = vadd.f32 %v4062, %v4222
        %v4224 = vpop.f32.mrb[0].mxu0
        %4225 = vmatprep.mubr.bf16.mxu0 %v3164
        %4226 = vmatmul.mubr.bf16.gmra.mrb[0].mxu0 %v3163
        %v4227 = vpop.f32.mrb[0].mxu0
        %v4228 = vadd.f32 %v4067, %v4227
        %v4229 = vpop.f32.mrb[0].mxu0
        %v4230 = vpop.f32.mrb[0].mxu0
        %v4231 = vadd.f32 %v4070, %v4230
        %v4232 = vpop.f32.mrb[0].mxu0
        %4233 = vdwg.mxu0
        %4234 = vmatprep.subr.bf16.mxu0 0
        %4235 = vmatpush1.bf16.msra.mxu0 %v3655
        %4236 = vmatprep.subr.bf16.mxu0 0
        %4237 = vmatpush1.bf16.msra.mxu0 %v3656
        %4238 = vmatprep.subr.bf16.mxu0 0
        %4239 = vmatpush1.bf16.msra.mxu0 %v3657
        %4240 = vmatprep.subr.bf16.mxu0 0
        %4241 = vmatpush1.bf16.msra.mxu0 %v3658
        %4242 = vmatprep.subr.bf16.mxu0 0
        %4243 = vmatpush1.bf16.msra.mxu0 %v3659
        %4244 = vmatprep.subr.bf16.mxu0 0
        %4245 = vmatpush1.bf16.msra.mxu0 %v3660
        %4246 = vmatprep.subr.bf16.mxu0 0
        %4247 = vmatpush1.bf16.msra.mxu0 %v3661
        %4248 = vmatprep.subr.bf16.mxu0 0
        %4249 = vmatpush1.bf16.msra.mxu0 %v3662
        %4250 = vmatprep.subr.bf16.mxu0 0
        %4251 = vmatpush1.bf16.msra.mxu0 %v3663
        %4252 = vmatprep.subr.bf16.mxu0 0
        %4253 = vmatpush1.bf16.msra.mxu0 %v3664
        %4254 = vmatprep.subr.bf16.mxu0 0
        %4255 = vmatpush1.bf16.msra.mxu0 %v3665
        %4256 = vmatprep.subr.bf16.mxu0 0
        %4257 = vmatpush1.bf16.msra.mxu0 %v3666
        %4258 = vmatprep.subr.bf16.mxu0 0
        %4259 = vmatpush1.bf16.msra.mxu0 %v3667
        %4260 = vmatprep.subr.bf16.mxu0 0
        %4261 = vmatpush1.bf16.msra.mxu0 %v3668
        %4262 = vmatprep.subr.bf16.mxu0 0
        %4263 = vmatpush1.bf16.msra.mxu0 %v3669
        %4264 = vmatprep.subr.bf16.mxu0 0
        %4265 = vmatpush1.bf16.msra.mxu0 %v3670
        %4266 = vmatprep.mubr.bf16.mxu0 %v3031
        %4267 = vmatmul.mubr.bf16.gmra.mrb[0].mxu0 %v3030
        %v4268 = vpop.f32.mrb[0].mxu0
        %v4269 = vadd.f32 %v4108, %v4268
        %v4270 = vpop.f32.mrb[0].mxu0
        %v4271 = vpop.f32.mrb[0].mxu0
        %v4272 = vadd.f32 %v4111, %v4271
        %v4273 = vpop.f32.mrb[0].mxu0
        %4274 = vmatprep.mubr.bf16.mxu0 %v3040
        %4275 = vmatmul.mubr.bf16.gmra.mrb[0].mxu0 %v3039
        %v4276 = vpop.f32.mrb[0].mxu0
        %v4277 = vadd.f32 %v4116, %v4276
        %v4278 = vpop.f32.mrb[0].mxu0
        %v4279 = vpop.f32.mrb[0].mxu0
        %v4280 = vadd.f32 %v4119, %v4279
        %v4281 = vpop.f32.mrb[0].mxu0
        %4282 = vmatprep.mubr.bf16.mxu0 %v3049
        %4283 = vmatmul.mubr.bf16.gmra.mrb[0].mxu0 %v3048
        %v4284 = vpop.f32.mrb[0].mxu0
        %v4285 = vadd.f32 %v4124, %v4284
        %v4286 = vpop.f32.mrb[0].mxu0
        %v4287 = vpop.f32.mrb[0].mxu0
        %v4288 = vadd.f32 %v4127, %v4287
        %v4289 = vpop.f32.mrb[0].mxu0
        %4290 = vmatprep.mubr.bf16.mxu0 %v3058
        %4291 = vmatmul.mubr.bf16.gmra.mrb[0].mxu0 %v3057
        %v4292 = vpop.f32.mrb[0].mxu0
        %v4293 = vadd.f32 %v4132, %v4292
        %v4294 = vpop.f32.mrb[0].mxu0
        %v4295 = vpop.f32.mrb[0].mxu0
        %v4296 = vadd.f32 %v4135, %v4295
        %v4297 = vpop.f32.mrb[0].mxu0
        %4298 = vmatprep.mubr.bf16.mxu0 %v3067
        %4299 = vmatmul.mubr.bf16.gmra.mrb[0].mxu0 %v3066
        %v4300 = vpop.f32.mrb[0].mxu0
        %v4301 = vadd.f32 %v4140, %v4300
        %v4302 = vpop.f32.mrb[0].mxu0
        %v4303 = vpop.f32.mrb[0].mxu0
        %v4304 = vadd.f32 %v4143, %v4303
        %v4305 = vpop.f32.mrb[0].mxu0
        %4306 = vmatprep.mubr.bf16.mxu0 %v3076
        %4307 = vmatmul.mubr.bf16.gmra.mrb[0].mxu0 %v3075
        %v4308 = vpop.f32.mrb[0].mxu0
        %v4309 = vadd.f32 %v4148, %v4308
        %v4310 = vpop.f32.mrb[0].mxu0
        %v4311 = vpop.f32.mrb[0].mxu0
        %v4312 = vadd.f32 %v4151, %v4311
        %v4313 = vpop.f32.mrb[0].mxu0
        %4314 = vmatprep.mubr.bf16.mxu0 %v3085
        %4315 = vmatmul.mubr.bf16.gmra.mrb[0].mxu0 %v3084
        %v4316 = vpop.f32.mrb[0].mxu0
        %v4317 = vadd.f32 %v4156, %v4316
        %v4318 = vpop.f32.mrb[0].mxu0
        %v4319 = vpop.f32.mrb[0].mxu0
        %v4320 = vadd.f32 %v4159, %v4319
        %v4321 = vpop.f32.mrb[0].mxu0
        %4322 = vmatprep.mubr.bf16.mxu0 %v3094
        %4323 = vmatmul.mubr.bf16.gmra.mrb[0].mxu0 %v3093
        %v4324 = vpop.f32.mrb[0].mxu0
        %v4325 = vadd.f32 %v4164, %v4324
        %v4326 = vpop.f32.mrb[0].mxu0
        %v4327 = vpop.f32.mrb[0].mxu0
        %v4328 = vadd.f32 %v4167, %v4327
        %v4329 = vpop.f32.mrb[0].mxu0
        %4330 = vmatprep.mubr.bf16.mxu0 %v3103
        %4331 = vmatmul.mubr.bf16.gmra.mrb[0].mxu0 %v3102
        %v4332 = vpop.f32.mrb[0].mxu0
        %v4333 = vadd.f32 %v4172, %v4332
        %v4334 = vpop.f32.mrb[0].mxu0
        %v4335 = vpop.f32.mrb[0].mxu0
        %v4336 = vadd.f32 %v4175, %v4335
        %v4337 = vpop.f32.mrb[0].mxu0
        %4338 = vmatprep.mubr.bf16.mxu0 %v3112
        %4339 = vmatmul.mubr.bf16.gmra.mrb[0].mxu0 %v3111
        %v4340 = vpop.f32.mrb[0].mxu0
        %v4341 = vadd.f32 %v4180, %v4340
        %v4342 = vpop.f32.mrb[0].mxu0
        %v4343 = vpop.f32.mrb[0].mxu0
        %v4344 = vadd.f32 %v4183, %v4343
        %v4345 = vpop.f32.mrb[0].mxu0
        %4346 = vmatprep.mubr.bf16.mxu0 %v3121
        %4347 = vmatmul.mubr.bf16.gmra.mrb[0].mxu0 %v3120
        %v4348 = vpop.f32.mrb[0].mxu0
        %v4349 = vadd.f32 %v4188, %v4348
        %v4350 = vpop.f32.mrb[0].mxu0
        %v4351 = vpop.f32.mrb[0].mxu0
        %v4352 = vadd.f32 %v4191, %v4351
        %v4353 = vpop.f32.mrb[0].mxu0
        %4354 = vmatprep.mubr.bf16.mxu0 %v3130
        %4355 = vmatmul.mubr.bf16.gmra.mrb[0].mxu0 %v3129
        %v4356 = vpop.f32.mrb[0].mxu0
        %v4357 = vadd.f32 %v4196, %v4356
        %v4358 = vpop.f32.mrb[0].mxu0
        %v4359 = vpop.f32.mrb[0].mxu0
        %v4360 = vadd.f32 %v4199, %v4359
        %v4361 = vpop.f32.mrb[0].mxu0
        %4362 = vmatprep.mubr.bf16.mxu0 %v3139
        %4363 = vmatmul.mubr.bf16.gmra.mrb[0].mxu0 %v3138
        %v4364 = vpop.f32.mrb[0].mxu0
        %v4365 = vadd.f32 %v4204, %v4364
        %v4366 = vpop.f32.mrb[0].mxu0
        %v4367 = vpop.f32.mrb[0].mxu0
        %v4368 = vadd.f32 %v4207, %v4367
        %v4369 = vpop.f32.mrb[0].mxu0
        %4370 = vmatprep.mubr.bf16.mxu0 %v3148
        %4371 = vmatmul.mubr.bf16.gmra.mrb[0].mxu0 %v3147
        %v4372 = vpop.f32.mrb[0].mxu0
        %v4373 = vadd.f32 %v4212, %v4372
        %v4374 = vpop.f32.mrb[0].mxu0
        %v4375 = vpop.f32.mrb[0].mxu0
        %v4376 = vadd.f32 %v4215, %v4375
        %v4377 = vpop.f32.mrb[0].mxu0
        %4378 = vmatprep.mubr.bf16.mxu0 %v3157
        %4379 = vmatmul.mubr.bf16.gmra.mrb[0].mxu0 %v3156
        %v4380 = vpop.f32.mrb[0].mxu0
        %v4381 = vadd.f32 %v4220, %v4380
        %v4382 = vpop.f32.mrb[0].mxu0
        %v4383 = vpop.f32.mrb[0].mxu0
        %v4384 = vadd.f32 %v4223, %v4383
        %v4385 = vpop.f32.mrb[0].mxu0
        %4386 = vmatprep.mubr.bf16.mxu0 %v3166
        %4387 = vmatmul.mubr.bf16.gmra.mrb[0].mxu0 %v3165
        %v4388 = vpop.f32.mrb[0].mxu0
        %v4389 = vadd.f32 %v4228, %v4388
        %v4390 = vpop.f32.mrb[0].mxu0
        %v4391 = vpop.f32.mrb[0].mxu0
        %v4392 = vadd.f32 %v4231, %v4391
        %v4393 = vpop.f32.mrb[0].mxu0
        %4394 = vdwg.mxu0
        %4395 = vmatprep.subr.bf16.mxu0 0
        %4396 = vmatpush1.bf16.msra.mxu0 %v3671
        %4397 = vmatprep.subr.bf16.mxu0 0
        %4398 = vmatpush1.bf16.msra.mxu0 %v3672
        %4399 = vmatprep.subr.bf16.mxu0 0
        %4400 = vmatpush1.bf16.msra.mxu0 %v3673
        %4401 = vmatprep.subr.bf16.mxu0 0
        %4402 = vmatpush1.bf16.msra.mxu0 %v3674
        %4403 = vmatprep.subr.bf16.mxu0 0
        %4404 = vmatpush1.bf16.msra.mxu0 %v3675
        %4405 = vmatprep.subr.bf16.mxu0 0
        %4406 = vmatpush1.bf16.msra.mxu0 %v3676
        %4407 = vmatprep.subr.bf16.mxu0 0
        %4408 = vmatpush1.bf16.msra.mxu0 %v3677
        %4409 = vmatprep.subr.bf16.mxu0 0
        %4410 = vmatpush1.bf16.msra.mxu0 %v3678
        %4411 = vmatprep.subr.bf16.mxu0 0
        %4412 = vmatpush1.bf16.msra.mxu0 0
        %4413 = vmatprep.subr.bf16.mxu0 0
        %4414 = vmatpush1.bf16.msra.mxu0 0
        %4415 = vmatprep.subr.bf16.mxu0 0
        %4416 = vmatpush1.bf16.msra.mxu0 0
        %4417 = vmatprep.subr.bf16.mxu0 0
        %4418 = vmatpush1.bf16.msra.mxu0 0
        %4419 = vmatprep.subr.bf16.mxu0 0
        %4420 = vmatpush1.bf16.msra.mxu0 0
        %4421 = vmatprep.subr.bf16.mxu0 0
        %4422 = vmatpush1.bf16.msra.mxu0 0
        %4423 = vmatprep.subr.bf16.mxu0 0
        %4424 = vmatpush1.bf16.msra.mxu0 0
        %4425 = vmatprep.subr.bf16.mxu0 0
        %4426 = vmatpush1.bf16.msra.mxu0 0
        %4427 = vmatprep.mubr.bf16.mxu0 0
        %4428 = vmatmul.mubr.bf16.gmra.mrb[0].mxu0 %v3032
        %v4429 = vpop.f32.mrb[0].mxu0
        %v4430 = vadd.f32 %v4269, %v4429
        %v4431 = vpop.f32.mrb[0].mxu0
        %v4432 = vpop.f32.mrb[0].mxu0
        %v4433 = vadd.f32 %v4272, %v4432
        %v4434 = vpop.f32.mrb[0].mxu0
        %4435 = vmatprep.mubr.bf16.mxu0 0
        %4436 = vmatmul.mubr.bf16.gmra.mrb[0].mxu0 %v3041
        %v4437 = vpop.f32.mrb[0].mxu0
        %v4438 = vadd.f32 %v4277, %v4437
        %v4439 = vpop.f32.mrb[0].mxu0
        %v4440 = vpop.f32.mrb[0].mxu0
        %v4441 = vadd.f32 %v4280, %v4440
        %v4442 = vpop.f32.mrb[0].mxu0
        %4443 = vmatprep.mubr.bf16.mxu0 0
        %4444 = vmatmul.mubr.bf16.gmra.mrb[0].mxu0 %v3050
        %v4445 = vpop.f32.mrb[0].mxu0
        %v4446 = vadd.f32 %v4285, %v4445
        %v4447 = vpop.f32.mrb[0].mxu0
        %v4448 = vpop.f32.mrb[0].mxu0
        %v4449 = vadd.f32 %v4288, %v4448
        %v4450 = vpop.f32.mrb[0].mxu0
        %4451 = vmatprep.mubr.bf16.mxu0 0
        %4452 = vmatmul.mubr.bf16.gmra.mrb[0].mxu0 %v3059
        %v4453 = vpop.f32.mrb[0].mxu0
        %v4454 = vadd.f32 %v4293, %v4453
        %v4455 = vpop.f32.mrb[0].mxu0
        %v4456 = vpop.f32.mrb[0].mxu0
        %v4457 = vadd.f32 %v4296, %v4456
        %v4458 = vpop.f32.mrb[0].mxu0
        %4459 = vmatprep.mubr.bf16.mxu0 0
        %4460 = vmatmul.mubr.bf16.gmra.mrb[0].mxu0 %v3068
        %v4461 = vpop.f32.mrb[0].mxu0
        %v4462 = vadd.f32 %v4301, %v4461
        %v4463 = vpop.f32.mrb[0].mxu0
        %v4464 = vpop.f32.mrb[0].mxu0
        %v4465 = vadd.f32 %v4304, %v4464
        %v4466 = vpop.f32.mrb[0].mxu0
        %4467 = vmatprep.mubr.bf16.mxu0 0
        %4468 = vmatmul.mubr.bf16.gmra.mrb[0].mxu0 %v3077
        %v4469 = vpop.f32.mrb[0].mxu0
        %v4470 = vadd.f32 %v4309, %v4469
        %v4471 = vpop.f32.mrb[0].mxu0
        %v4472 = vpop.f32.mrb[0].mxu0
        %v4473 = vadd.f32 %v4312, %v4472
        %v4474 = vpop.f32.mrb[0].mxu0
        %4475 = vmatprep.mubr.bf16.mxu0 0
        %4476 = vmatmul.mubr.bf16.gmra.mrb[0].mxu0 %v3086
        %v4477 = vpop.f32.mrb[0].mxu0
        %v4478 = vadd.f32 %v4317, %v4477
        %v4479 = vpop.f32.mrb[0].mxu0
        %v4480 = vpop.f32.mrb[0].mxu0
        %v4481 = vadd.f32 %v4320, %v4480
        %v4482 = vpop.f32.mrb[0].mxu0
        %4483 = vmatprep.mubr.bf16.mxu0 0
        %4484 = vmatmul.mubr.bf16.gmra.mrb[0].mxu0 %v3095
        %v4485 = vpop.f32.mrb[0].mxu0
        %v4486 = vadd.f32 %v4325, %v4485
        %v4487 = vpop.f32.mrb[0].mxu0
        %v4488 = vpop.f32.mrb[0].mxu0
        %v4489 = vadd.f32 %v4328, %v4488
        %v4490 = vpop.f32.mrb[0].mxu0
        %4491 = vmatprep.mubr.bf16.mxu0 0
        %4492 = vmatmul.mubr.bf16.gmra.mrb[0].mxu0 %v3104
        %v4493 = vpop.f32.mrb[0].mxu0
        %v4494 = vadd.f32 %v4333, %v4493
        %v4495 = vpop.f32.mrb[0].mxu0
        %v4496 = vpop.f32.mrb[0].mxu0
        %v4497 = vadd.f32 %v4336, %v4496
        %v4498 = vpop.f32.mrb[0].mxu0
        %4499 = vmatprep.mubr.bf16.mxu0 0
        %4500 = vmatmul.mubr.bf16.gmra.mrb[0].mxu0 %v3113
        %v4501 = vpop.f32.mrb[0].mxu0
        %v4502 = vadd.f32 %v4341, %v4501
        %v4503 = vpop.f32.mrb[0].mxu0
        %v4504 = vpop.f32.mrb[0].mxu0
        %v4505 = vadd.f32 %v4344, %v4504
        %v4506 = vpop.f32.mrb[0].mxu0
        %4507 = vmatprep.mubr.bf16.mxu0 0
        %4508 = vmatmul.mubr.bf16.gmra.mrb[0].mxu0 %v3122
        %v4509 = vpop.f32.mrb[0].mxu0
        %v4510 = vadd.f32 %v4349, %v4509
        %v4511 = vpop.f32.mrb[0].mxu0
        %v4512 = vpop.f32.mrb[0].mxu0
        %v4513 = vadd.f32 %v4352, %v4512
        %v4514 = vpop.f32.mrb[0].mxu0
        %4515 = vmatprep.mubr.bf16.mxu0 0
        %4516 = vmatmul.mubr.bf16.gmra.mrb[0].mxu0 %v3131
        %v4517 = vpop.f32.mrb[0].mxu0
        %v4518 = vadd.f32 %v4357, %v4517
        %v4519 = vpop.f32.mrb[0].mxu0
        %v4520 = vpop.f32.mrb[0].mxu0
        %v4521 = vadd.f32 %v4360, %v4520
        %v4522 = vpop.f32.mrb[0].mxu0
        %4523 = vmatprep.mubr.bf16.mxu0 0
        %4524 = vmatmul.mubr.bf16.gmra.mrb[0].mxu0 %v3140
        %v4525 = vpop.f32.mrb[0].mxu0
        %v4526 = vadd.f32 %v4365, %v4525
        %v4527 = vpop.f32.mrb[0].mxu0
        %v4528 = vpop.f32.mrb[0].mxu0
        %v4529 = vadd.f32 %v4368, %v4528
        %v4530 = vpop.f32.mrb[0].mxu0
        %4531 = vmatprep.mubr.bf16.mxu0 0
        %4532 = vmatmul.mubr.bf16.gmra.mrb[0].mxu0 %v3149
        %v4533 = vpop.f32.mrb[0].mxu0
        %v4534 = vadd.f32 %v4373, %v4533
        %v4535 = vpop.f32.mrb[0].mxu0
        %v4536 = vpop.f32.mrb[0].mxu0
        %v4537 = vadd.f32 %v4376, %v4536
        %v4538 = vpop.f32.mrb[0].mxu0
        %4539 = vmatprep.mubr.bf16.mxu0 0
        %4540 = vmatmul.mubr.bf16.gmra.mrb[0].mxu0 %v3158
        %v4541 = vpop.f32.mrb[0].mxu0
        %v4542 = vadd.f32 %v4381, %v4541
        %v4543 = vpop.f32.mrb[0].mxu0
        %v4544 = vpop.f32.mrb[0].mxu0
        %v4545 = vadd.f32 %v4384, %v4544
        %v4546 = vpop.f32.mrb[0].mxu0
        %4547 = vmatprep.mubr.bf16.mxu0 0
        %4548 = vmatmul.mubr.bf16.gmra.mrb[0].mxu0 %v3167
        %v4549 = vpop.f32.mrb[0].mxu0
        %v4550 = vadd.f32 %v4389, %v4549
        %v4551 = vpop.f32.mrb[0].mxu0
        %v4552 = vpop.f32.mrb[0].mxu0
        %v4553 = vadd.f32 %v4392, %v4552
        %v4554 = vpop.f32.mrb[0].mxu0
        %4555 = vdwg.mxu0
        %vm4556 = vcmp.ge.f32.partialorder %v4430, 0.0
        %vm4557 = vcmp.ge.f32.partialorder %v4433, 0.0
        %vm4558 = vcmp.ge.f32.partialorder %v4438, 0.0
        %vm4559 = vcmp.ge.f32.partialorder %v4441, 0.0
        %vm4560 = vcmp.ge.f32.partialorder %v4446, 0.0
        %vm4561 = vcmp.ge.f32.partialorder %v4449, 0.0
        %vm4562 = vcmp.ge.f32.partialorder %v4454, 0.0
        %vm4563 = vcmp.ge.f32.partialorder %v4457, 0.0
        %vm4564 = vcmp.ge.f32.partialorder %v4462, 0.0
        %vm4565 = vcmp.ge.f32.partialorder %v4465, 0.0
        %vm4566 = vcmp.ge.f32.partialorder %v4470, 0.0
        %vm4567 = vcmp.ge.f32.partialorder %v4473, 0.0
        %vm4568 = vcmp.ge.f32.partialorder %v4478, 0.0
        %vm4569 = vcmp.ge.f32.partialorder %v4481, 0.0
        %vm4570 = vcmp.ge.f32.partialorder %v4486, 0.0
        %vm4571 = vcmp.ge.f32.partialorder %v4489, 0.0
        %vm4572 = vcmp.ge.f32.partialorder %v4494, 0.0
        %vm4573 = vcmp.ge.f32.partialorder %v4497, 0.0
        %vm4574 = vcmp.ge.f32.partialorder %v4502, 0.0
        %vm4575 = vcmp.ge.f32.partialorder %v4505, 0.0
        %vm4576 = vcmp.ge.f32.partialorder %v4510, 0.0
        %vm4577 = vcmp.ge.f32.partialorder %v4513, 0.0
        %vm4578 = vcmp.ge.f32.partialorder %v4518, 0.0
        %vm4579 = vcmp.ge.f32.partialorder %v4521, 0.0
        %vm4580 = vcmp.ge.f32.partialorder %v4526, 0.0
        %vm4581 = vcmp.ge.f32.partialorder %v4529, 0.0
        %vm4582 = vcmp.ge.f32.partialorder %v4534, 0.0
        %vm4583 = vcmp.ge.f32.partialorder %v4537, 0.0
        %vm4584 = vcmp.ge.f32.partialorder %v4542, 0.0
        %vm4585 = vcmp.ge.f32.partialorder %v4545, 0.0
        %vm4586 = vcmp.ge.f32.partialorder %v4550, 0.0
        %vm4587 = vcmp.ge.f32.partialorder %v4553, 0.0
        %v4588 = vmul.f32 %v4430, 0.01
        %v4589 = vmul.f32 %v4433, 0.01
        %v4590 = vmul.f32 %v4438, 0.01
        %v4591 = vmul.f32 %v4441, 0.01
        %v4592 = vmul.f32 %v4446, 0.01
        %v4593 = vmul.f32 %v4449, 0.01
        %v4594 = vmul.f32 %v4454, 0.01
        %v4595 = vmul.f32 %v4457, 0.01
        %v4596 = vmul.f32 %v4462, 0.01
        %v4597 = vmul.f32 %v4465, 0.01
        %v4598 = vmul.f32 %v4470, 0.01
        %v4599 = vmul.f32 %v4473, 0.01
        %v4600 = vmul.f32 %v4478, 0.01
        %v4601 = vmul.f32 %v4481, 0.01
        %v4602 = vmul.f32 %v4486, 0.01
        %v4603 = vmul.f32 %v4489, 0.01
        %v4604 = vmul.f32 %v4494, 0.01
        %v4605 = vmul.f32 %v4497, 0.01
        %v4606 = vmul.f32 %v4502, 0.01
        %v4607 = vmul.f32 %v4505, 0.01
        %v4608 = vmul.f32 %v4510, 0.01
        %v4609 = vmul.f32 %v4513, 0.01
        %v4610 = vmul.f32 %v4518, 0.01
        %v4611 = vmul.f32 %v4521, 0.01
        %v4612 = vmul.f32 %v4526, 0.01
        %v4613 = vmul.f32 %v4529, 0.01
        %v4614 = vmul.f32 %v4534, 0.01
        %v4615 = vmul.f32 %v4537, 0.01
        %v4616 = vmul.f32 %v4542, 0.01
        %v4617 = vmul.f32 %v4545, 0.01
        %v4618 = vmul.f32 %v4550, 0.01
        %v4619 = vmul.f32 %v4553, 0.01
        %v4620 = vsel %vm4556, %v4430, %v4588
        %v4621 = vsel %vm4557, %v4433, %v4589
        %v4622 = vsel %vm4558, %v4438, %v4590
        %v4623 = vsel %vm4559, %v4441, %v4591
        %v4624 = vsel %vm4560, %v4446, %v4592
        %v4625 = vsel %vm4561, %v4449, %v4593
        %v4626 = vsel %vm4562, %v4454, %v4594
        %v4627 = vsel %vm4563, %v4457, %v4595
        %v4628 = vsel %vm4564, %v4462, %v4596
        %v4629 = vsel %vm4565, %v4465, %v4597
        %v4630 = vsel %vm4566, %v4470, %v4598
        %v4631 = vsel %vm4567, %v4473, %v4599
        %v4632 = vsel %vm4568, %v4478, %v4600
        %v4633 = vsel %vm4569, %v4481, %v4601
        %v4634 = vsel %vm4570, %v4486, %v4602
        %v4635 = vsel %vm4571, %v4489, %v4603
        %v4636 = vsel %vm4572, %v4494, %v4604
        %v4637 = vsel %vm4573, %v4497, %v4605
        %v4638 = vsel %vm4574, %v4502, %v4606
        %v4639 = vsel %vm4575, %v4505, %v4607
        %v4640 = vsel %vm4576, %v4510, %v4608
        %v4641 = vsel %vm4577, %v4513, %v4609
        %v4642 = vsel %vm4578, %v4518, %v4610
        %v4643 = vsel %vm4579, %v4521, %v4611
        %v4644 = vsel %vm4580, %v4526, %v4612
        %v4645 = vsel %vm4581, %v4529, %v4613
        %v4646 = vsel %vm4582, %v4534, %v4614
        %v4647 = vsel %vm4583, %v4537, %v4615
        %v4648 = vsel %vm4584, %v4542, %v4616
        %v4649 = vsel %vm4585, %v4545, %v4617
        %v4650 = vsel %vm4586, %v4550, %v4618
        %v4651 = vsel %vm4587, %v4553, %v4619
        %v4652 = vpack.c.bf16 %v4621, %v4620
        %v4653 = vpack.c.bf16 %v4623, %v4622
        %v4654 = vpack.c.bf16 %v4625, %v4624
        %v4655 = vpack.c.bf16 %v4627, %v4626
        %v4656 = vpack.c.bf16 %v4629, %v4628
        %v4657 = vpack.c.bf16 %v4631, %v4630
        %v4658 = vpack.c.bf16 %v4633, %v4632
        %v4659 = vpack.c.bf16 %v4635, %v4634
        %v4660 = vpack.c.bf16 %v4637, %v4636
        %v4661 = vpack.c.bf16 %v4639, %v4638
        %v4662 = vpack.c.bf16 %v4641, %v4640
        %v4663 = vpack.c.bf16 %v4643, %v4642
        %v4664 = vpack.c.bf16 %v4645, %v4644
        %v4665 = vpack.c.bf16 %v4647, %v4646
        %v4666 = vpack.c.bf16 %v4649, %v4648
        %v4667 = vpack.c.bf16 %v4651, %v4650
        %4668 = vst [vmem:[#allocation3] sm:$0xff] 0
        %4669 = vst [vmem:[#allocation3 + $0x8] sm:$0xff] 0
        %s4670 = scalar_lea.vmem [#allocation3], 272
        %4671 = vst [vmem:[%s4670] sm:$0xff] 0
        %4672 = vst [vmem:[%s4670 + $0x8] sm:$0xff] 0
        %s4673 = scalar_lea.vmem [#allocation3], 16
        %v4674 = vld [vmem:[%s4673] sm:$0x8]
        %v4675 = vsel %vm313, 0, %v4674
        %4676 = vst [vmem:[%s4673] sm:$0x8] %v4675
        %v4677 = vld [vmem:[%s4673 + $0x10] sm:$0x8]
        %v4678 = vsel %vm313, 0, %v4677
        %4679 = vst [vmem:[%s4673 + $0x10] sm:$0x8] %v4678
        %v4680 = vld [vmem:[%s4673 + $0x20] sm:$0x8]
        %v4681 = vsel %vm313, 0, %v4680
        %4682 = vst [vmem:[%s4673 + $0x20] sm:$0x8] %v4681
        %v4683 = vld [vmem:[%s4673 + $0x30] sm:$0x8]
        %v4684 = vsel %vm313, 0, %v4683
        %4685 = vst [vmem:[%s4673 + $0x30] sm:$0x8] %v4684
        %v4686 = vld [vmem:[%s4673 + $0x40] sm:$0x8]
        %v4687 = vsel %vm313, 0, %v4686
        %4688 = vst [vmem:[%s4673 + $0x40] sm:$0x8] %v4687
        %v4689 = vld [vmem:[%s4673 + $0x50] sm:$0x8]
        %v4690 = vsel %vm313, 0, %v4689
        %4691 = vst [vmem:[%s4673 + $0x50] sm:$0x8] %v4690
        %v4692 = vld [vmem:[%s4673 + $0x60] sm:$0x8]
        %v4693 = vsel %vm313, 0, %v4692
        %4694 = vst [vmem:[%s4673 + $0x60] sm:$0x8] %v4693
        %v4695 = vld [vmem:[%s4673 + $0x70] sm:$0x8]
        %v4696 = vsel %vm313, 0, %v4695
        %4697 = vst [vmem:[%s4673 + $0x70] sm:$0x8] %v4696
        %v4698 = vld [vmem:[%s4673 + $0x80] sm:$0x8]
        %v4699 = vsel %vm313, 0, %v4698
        %4700 = vst [vmem:[%s4673 + $0x80] sm:$0x8] %v4699
        %v4701 = vld [vmem:[%s4673 + $0x90] sm:$0x8]
        %v4702 = vsel %vm313, 0, %v4701
        %4703 = vst [vmem:[%s4673 + $0x90] sm:$0x8] %v4702
        %v4704 = vld [vmem:[%s4673 + $0xa0] sm:$0x8]
        %v4705 = vsel %vm313, 0, %v4704
        %4706 = vst [vmem:[%s4673 + $0xa0] sm:$0x8] %v4705
        %v4707 = vld [vmem:[%s4673 + $0xb0] sm:$0x8]
        %v4708 = vsel %vm313, 0, %v4707
        %4709 = vst [vmem:[%s4673 + $0xb0] sm:$0x8] %v4708
        %v4710 = vld [vmem:[%s4673 + $0xc0] sm:$0x8]
        %v4711 = vsel %vm313, 0, %v4710
        %4712 = vst [vmem:[%s4673 + $0xc0] sm:$0x8] %v4711
        %v4713 = vld [vmem:[%s4673 + $0xd0] sm:$0x8]
        %v4714 = vsel %vm313, 0, %v4713
        %4715 = vst [vmem:[%s4673 + $0xd0] sm:$0x8] %v4714
        %v4716 = vld [vmem:[%s4673 + $0xe0] sm:$0x8]
        %v4717 = vsel %vm313, 0, %v4716
        %4718 = vst [vmem:[%s4673 + $0xe0] sm:$0x8] %v4717
        %v4719 = vld [vmem:[%s4673 + $0xf0] sm:$0x8]
        %v4720 = vsel %vm313, 0, %v4719
        %4721 = vst [vmem:[%s4673 + $0xf0] sm:$0x8] %v4720
        %v4722 = vld [vmem:[%s4673 + $0x8] sm:$0x10]
        %v4723 = vsel %vm364, 0, %v4722
        %4724 = vst [vmem:[%s4673 + $0x8] sm:$0x10] %v4723
        %v4725 = vld [vmem:[%s4673 + $0x18] sm:$0x10]
        %v4726 = vsel %vm364, 0, %v4725
        %4727 = vst [vmem:[%s4673 + $0x18] sm:$0x10] %v4726
        %v4728 = vld [vmem:[%s4673 + $0x28] sm:$0x10]
        %v4729 = vsel %vm364, 0, %v4728
        %4730 = vst [vmem:[%s4673 + $0x28] sm:$0x10] %v4729
        %v4731 = vld [vmem:[%s4673 + $0x38] sm:$0x10]
        %v4732 = vsel %vm364, 0, %v4731
        %4733 = vst [vmem:[%s4673 + $0x38] sm:$0x10] %v4732
        %v4734 = vld [vmem:[%s4673 + $0x48] sm:$0x10]
        %v4735 = vsel %vm364, 0, %v4734
        %4736 = vst [vmem:[%s4673 + $0x48] sm:$0x10] %v4735
        %v4737 = vld [vmem:[%s4673 + $0x58] sm:$0x10]
        %v4738 = vsel %vm364, 0, %v4737
        %4739 = vst [vmem:[%s4673 + $0x58] sm:$0x10] %v4738
        %v4740 = vld [vmem:[%s4673 + $0x68] sm:$0x10]
        %v4741 = vsel %vm364, 0, %v4740
        %4742 = vst [vmem:[%s4673 + $0x68] sm:$0x10] %v4741
        %v4743 = vld [vmem:[%s4673 + $0x78] sm:$0x10]
        %v4744 = vsel %vm364, 0, %v4743
        %4745 = vst [vmem:[%s4673 + $0x78] sm:$0x10] %v4744
        %v4746 = vld [vmem:[%s4673 + $0x88] sm:$0x10]
        %v4747 = vsel %vm364, 0, %v4746
        %4748 = vst [vmem:[%s4673 + $0x88] sm:$0x10] %v4747
        %v4749 = vld [vmem:[%s4673 + $0x98] sm:$0x10]
        %v4750 = vsel %vm364, 0, %v4749
        %4751 = vst [vmem:[%s4673 + $0x98] sm:$0x10] %v4750
        %v4752 = vld [vmem:[%s4673 + $0xa8] sm:$0x10]
        %v4753 = vsel %vm364, 0, %v4752
        %4754 = vst [vmem:[%s4673 + $0xa8] sm:$0x10] %v4753
        %v4755 = vld [vmem:[%s4673 + $0xb8] sm:$0x10]
        %v4756 = vsel %vm364, 0, %v4755
        %4757 = vst [vmem:[%s4673 + $0xb8] sm:$0x10] %v4756
        %v4758 = vld [vmem:[%s4673 + $0xc8] sm:$0x10]
        %v4759 = vsel %vm364, 0, %v4758
        %4760 = vst [vmem:[%s4673 + $0xc8] sm:$0x10] %v4759
        %v4761 = vld [vmem:[%s4673 + $0xd8] sm:$0x10]
        %v4762 = vsel %vm364, 0, %v4761
        %4763 = vst [vmem:[%s4673 + $0xd8] sm:$0x10] %v4762
        %v4764 = vld [vmem:[%s4673 + $0xe8] sm:$0x10]
        %v4765 = vsel %vm364, 0, %v4764
        %4766 = vst [vmem:[%s4673 + $0xe8] sm:$0x10] %v4765
        %v4767 = vld [vmem:[%s4673 + $0xf8] sm:$0x10]
        %v4768 = vsel %vm364, 0, %v4767
        %4769 = vst [vmem:[%s4673 + $0xf8] sm:$0x10] %v4768
        %v4786 = vrot.slane %v4652, 4
        %v4787 = vrot.slane %v4653, 4
        %v4788 = vrot.slane %v4654, 4
        %v4789 = vrot.slane %v4655, 4
        %v4790 = vrot.slane %v4656, 4
        %v4791 = vrot.slane %v4657, 4
        %v4792 = vrot.slane %v4658, 4
        %v4793 = vrot.slane %v4659, 4
        %v4794 = vrot.slane %v4660, 4
        %v4795 = vrot.slane %v4661, 4
        %v4796 = vrot.slane %v4662, 4
        %v4797 = vrot.slane %v4663, 4
        %v4798 = vrot.slane %v4664, 4
        %v4799 = vrot.slane %v4665, 4
        %v4800 = vrot.slane %v4666, 4
        %v4801 = vrot.slane %v4667, 4
        %4818 = vst [vmem:[%s4673] sm:$0xf0] %v4786
        %4819 = vst [vmem:[%s4673 + $0x8] sm:$0xf] %v4786
        %4820 = vst [vmem:[%s4673 + $0x10] sm:$0xf0] %v4787
        %4821 = vst [vmem:[%s4673 + $0x18] sm:$0xf] %v4787
        %4822 = vst [vmem:[%s4673 + $0x20] sm:$0xf0] %v4788
        %4823 = vst [vmem:[%s4673 + $0x28] sm:$0xf] %v4788
        %4824 = vst [vmem:[%s4673 + $0x30] sm:$0xf0] %v4789
        %4825 = vst [vmem:[%s4673 + $0x38] sm:$0xf] %v4789
        %4826 = vst [vmem:[%s4673 + $0x40] sm:$0xf0] %v4790
        %4827 = vst [vmem:[%s4673 + $0x48] sm:$0xf] %v4790
        %4828 = vst [vmem:[%s4673 + $0x50] sm:$0xf0] %v4791
        %4829 = vst [vmem:[%s4673 + $0x58] sm:$0xf] %v4791
        %4830 = vst [vmem:[%s4673 + $0x60] sm:$0xf0] %v4792
        %4831 = vst [vmem:[%s4673 + $0x68] sm:$0xf] %v4792
        %4832 = vst [vmem:[%s4673 + $0x70] sm:$0xf0] %v4793
        %4833 = vst [vmem:[%s4673 + $0x78] sm:$0xf] %v4793
        %4834 = vst [vmem:[%s4673 + $0x80] sm:$0xf0] %v4794
        %4835 = vst [vmem:[%s4673 + $0x88] sm:$0xf] %v4794
        %4836 = vst [vmem:[%s4673 + $0x90] sm:$0xf0] %v4795
        %4837 = vst [vmem:[%s4673 + $0x98] sm:$0xf] %v4795
        %4838 = vst [vmem:[%s4673 + $0xa0] sm:$0xf0] %v4796
        %4839 = vst [vmem:[%s4673 + $0xa8] sm:$0xf] %v4796
        %4840 = vst [vmem:[%s4673 + $0xb0] sm:$0xf0] %v4797
        %4841 = vst [vmem:[%s4673 + $0xb8] sm:$0xf] %v4797
        %4842 = vst [vmem:[%s4673 + $0xc0] sm:$0xf0] %v4798
        %4843 = vst [vmem:[%s4673 + $0xc8] sm:$0xf] %v4798
        %4844 = vst [vmem:[%s4673 + $0xd0] sm:$0xf0] %v4799
        %4845 = vst [vmem:[%s4673 + $0xd8] sm:$0xf] %v4799
        %4846 = vst [vmem:[%s4673 + $0xe0] sm:$0xf0] %v4800
        %4847 = vst [vmem:[%s4673 + $0xe8] sm:$0xf] %v4800
        %4848 = vst [vmem:[%s4673 + $0xf0] sm:$0xf0] %v4801
        %4849 = vst [vmem:[%s4673 + $0xf8] sm:$0xf] %v4801
        %v4850 = vld [vmem:[#allocation3] sm:$0xf8]
        %v4851 = vld [vmem:[#allocation3 + $0x8] sm:$0xf]
        %v4852 = vld [vmem:[#allocation3 + $0x10] sm:$0xf8]
        %v4853 = vld [vmem:[#allocation3 + $0x18] sm:$0xf]
        %v4854 = vld [vmem:[#allocation3 + $0x20] sm:$0xf8]
        %v4855 = vld [vmem:[#allocation3 + $0x28] sm:$0xf]
        %v4856 = vld [vmem:[#allocation3 + $0x30] sm:$0xf8]
        %v4857 = vld [vmem:[#allocation3 + $0x38] sm:$0xf]
        %v4858 = vld [vmem:[#allocation3 + $0x40] sm:$0xf8]
        %v4859 = vld [vmem:[#allocation3 + $0x48] sm:$0xf]
        %v4860 = vld [vmem:[#allocation3 + $0x50] sm:$0xf8]
        %v4861 = vld [vmem:[#allocation3 + $0x58] sm:$0xf]
        %v4862 = vld [vmem:[#allocation3 + $0x60] sm:$0xf8]
        %v4863 = vld [vmem:[#allocation3 + $0x68] sm:$0xf]
        %v4864 = vld [vmem:[#allocation3 + $0x70] sm:$0xf8]
        %v4865 = vld [vmem:[#allocation3 + $0x78] sm:$0xf]
        %v4866 = vld [vmem:[#allocation3 + $0x80] sm:$0xf8]
        %v4867 = vld [vmem:[#allocation3 + $0x88] sm:$0xf]
        %v4868 = vld [vmem:[#allocation3 + $0x90] sm:$0xf8]
        %v4869 = vld [vmem:[#allocation3 + $0x98] sm:$0xf]
        %v4870 = vld [vmem:[#allocation3 + $0xa0] sm:$0xf8]
        %v4871 = vld [vmem:[#allocation3 + $0xa8] sm:$0xf]
        %v4872 = vld [vmem:[#allocation3 + $0xb0] sm:$0xf8]
        %v4873 = vld [vmem:[#allocation3 + $0xb8] sm:$0xf]
        %v4874 = vld [vmem:[#allocation3 + $0xc0] sm:$0xf8]
        %v4875 = vld [vmem:[#allocation3 + $0xc8] sm:$0xf]
        %v4876 = vld [vmem:[#allocation3 + $0xd0] sm:$0xf8]
        %v4877 = vld [vmem:[#allocation3 + $0xd8] sm:$0xf]
        %v4878 = vld [vmem:[#allocation3 + $0xe0] sm:$0xf8]
        %v4879 = vld [vmem:[#allocation3 + $0xe8] sm:$0xf]
        %v4880 = vld [vmem:[#allocation3 + $0xf0] sm:$0xf8]
        %v4881 = vld [vmem:[#allocation3 + $0xf8] sm:$0xf]
        %v4883 = vshrl.u32 %v4850, 16
        %v4885 = vrot.slane %v4883, 3
        %v4886 = vshll.u32 %v4850, 16
        %v4888 = vrot.slane %v4886, 4
        %v4889 = vor.u32 %v4885, %v4888
        %v4891 = vshrl.u32 %v4851, 16
        %v4893 = vrot.slane %v4891, 3
        %v4894 = vshll.u32 %v4851, 16
        %v4896 = vrot.slane %v4894, 4
        %v4897 = vor.u32 %v4893, %v4896
        %v4898 = vsel %vm363, %v4889, %v4897
        %v4900 = vshrl.u32 %v4852, 16
        %v4902 = vrot.slane %v4900, 3
        %v4903 = vshll.u32 %v4852, 16
        %v4905 = vrot.slane %v4903, 4
        %v4906 = vor.u32 %v4902, %v4905
        %v4908 = vshrl.u32 %v4853, 16
        %v4910 = vrot.slane %v4908, 3
        %v4911 = vshll.u32 %v4853, 16
        %v4913 = vrot.slane %v4911, 4
        %v4914 = vor.u32 %v4910, %v4913
        %v4915 = vsel %vm363, %v4906, %v4914
        %v4917 = vshrl.u32 %v4854, 16
        %v4919 = vrot.slane %v4917, 3
        %v4920 = vshll.u32 %v4854, 16
        %v4922 = vrot.slane %v4920, 4
        %v4923 = vor.u32 %v4919, %v4922
        %v4925 = vshrl.u32 %v4855, 16
        %v4927 = vrot.slane %v4925, 3
        %v4928 = vshll.u32 %v4855, 16
        %v4930 = vrot.slane %v4928, 4
        %v4931 = vor.u32 %v4927, %v4930
        %v4932 = vsel %vm363, %v4923, %v4931
        %v4934 = vshrl.u32 %v4856, 16
        %v4936 = vrot.slane %v4934, 3
        %v4937 = vshll.u32 %v4856, 16
        %v4939 = vrot.slane %v4937, 4
        %v4940 = vor.u32 %v4936, %v4939
        %v4942 = vshrl.u32 %v4857, 16
        %v4944 = vrot.slane %v4942, 3
        %v4945 = vshll.u32 %v4857, 16
        %v4947 = vrot.slane %v4945, 4
        %v4948 = vor.u32 %v4944, %v4947
        %v4949 = vsel %vm363, %v4940, %v4948
        %v4951 = vshrl.u32 %v4858, 16
        %v4953 = vrot.slane %v4951, 3
        %v4954 = vshll.u32 %v4858, 16
        %v4956 = vrot.slane %v4954, 4
        %v4957 = vor.u32 %v4953, %v4956
        %v4959 = vshrl.u32 %v4859, 16
        %v4961 = vrot.slane %v4959, 3
        %v4962 = vshll.u32 %v4859, 16
        %v4964 = vrot.slane %v4962, 4
        %v4965 = vor.u32 %v4961, %v4964
        %v4966 = vsel %vm363, %v4957, %v4965
        %v4968 = vshrl.u32 %v4860, 16
        %v4970 = vrot.slane %v4968, 3
        %v4971 = vshll.u32 %v4860, 16
        %v4973 = vrot.slane %v4971, 4
        %v4974 = vor.u32 %v4970, %v4973
        %v4976 = vshrl.u32 %v4861, 16
        %v4978 = vrot.slane %v4976, 3
        %v4979 = vshll.u32 %v4861, 16
        %v4981 = vrot.slane %v4979, 4
        %v4982 = vor.u32 %v4978, %v4981
        %v4983 = vsel %vm363, %v4974, %v4982
        %v4985 = vshrl.u32 %v4862, 16
        %v4987 = vrot.slane %v4985, 3
        %v4988 = vshll.u32 %v4862, 16
        %v4990 = vrot.slane %v4988, 4
        %v4991 = vor.u32 %v4987, %v4990
        %v4993 = vshrl.u32 %v4863, 16
        %v4995 = vrot.slane %v4993, 3
        %v4996 = vshll.u32 %v4863, 16
        %v4998 = vrot.slane %v4996, 4
        %v4999 = vor.u32 %v4995, %v4998
        %v5000 = vsel %vm363, %v4991, %v4999
        %v5002 = vshrl.u32 %v4864, 16
        %v5004 = vrot.slane %v5002, 3
        %v5005 = vshll.u32 %v4864, 16
        %v5007 = vrot.slane %v5005, 4
        %v5008 = vor.u32 %v5004, %v5007
        %v5010 = vshrl.u32 %v4865, 16
        %v5012 = vrot.slane %v5010, 3
        %v5013 = vshll.u32 %v4865, 16
        %v5015 = vrot.slane %v5013, 4
        %v5016 = vor.u32 %v5012, %v5015
        %v5017 = vsel %vm363, %v5008, %v5016
        %v5019 = vshrl.u32 %v4866, 16
        %v5021 = vrot.slane %v5019, 3
        %v5022 = vshll.u32 %v4866, 16
        %v5024 = vrot.slane %v5022, 4
        %v5025 = vor.u32 %v5021, %v5024
        %v5027 = vshrl.u32 %v4867, 16
        %v5029 = vrot.slane %v5027, 3
        %v5030 = vshll.u32 %v4867, 16
        %v5032 = vrot.slane %v5030, 4
        %v5033 = vor.u32 %v5029, %v5032
        %v5034 = vsel %vm363, %v5025, %v5033
        %v5036 = vshrl.u32 %v4868, 16
        %v5038 = vrot.slane %v5036, 3
        %v5039 = vshll.u32 %v4868, 16
        %v5041 = vrot.slane %v5039, 4
        %v5042 = vor.u32 %v5038, %v5041
        %v5044 = vshrl.u32 %v4869, 16
        %v5046 = vrot.slane %v5044, 3
        %v5047 = vshll.u32 %v4869, 16
        %v5049 = vrot.slane %v5047, 4
        %v5050 = vor.u32 %v5046, %v5049
        %v5051 = vsel %vm363, %v5042, %v5050
        %v5053 = vshrl.u32 %v4870, 16
        %v5055 = vrot.slane %v5053, 3
        %v5056 = vshll.u32 %v4870, 16
        %v5058 = vrot.slane %v5056, 4
        %v5059 = vor.u32 %v5055, %v5058
        %v5061 = vshrl.u32 %v4871, 16
        %v5063 = vrot.slane %v5061, 3
        %v5064 = vshll.u32 %v4871, 16
        %v5066 = vrot.slane %v5064, 4
        %v5067 = vor.u32 %v5063, %v5066
        %v5068 = vsel %vm363, %v5059, %v5067
        %v5070 = vshrl.u32 %v4872, 16
        %v5072 = vrot.slane %v5070, 3
        %v5073 = vshll.u32 %v4872, 16
        %v5075 = vrot.slane %v5073, 4
        %v5076 = vor.u32 %v5072, %v5075
        %v5078 = vshrl.u32 %v4873, 16
        %v5080 = vrot.slane %v5078, 3
        %v5081 = vshll.u32 %v4873, 16
        %v5083 = vrot.slane %v5081, 4
        %v5084 = vor.u32 %v5080, %v5083
        %v5085 = vsel %vm363, %v5076, %v5084
        %v5087 = vshrl.u32 %v4874, 16
        %v5089 = vrot.slane %v5087, 3
        %v5090 = vshll.u32 %v4874, 16
        %v5092 = vrot.slane %v5090, 4
        %v5093 = vor.u32 %v5089, %v5092
        %v5095 = vshrl.u32 %v4875, 16
        %v5097 = vrot.slane %v5095, 3
        %v5098 = vshll.u32 %v4875, 16
        %v5100 = vrot.slane %v5098, 4
        %v5101 = vor.u32 %v5097, %v5100
        %v5102 = vsel %vm363, %v5093, %v5101
        %v5104 = vshrl.u32 %v4876, 16
        %v5106 = vrot.slane %v5104, 3
        %v5107 = vshll.u32 %v4876, 16
        %v5109 = vrot.slane %v5107, 4
        %v5110 = vor.u32 %v5106, %v5109
        %v5112 = vshrl.u32 %v4877, 16
        %v5114 = vrot.slane %v5112, 3
        %v5115 = vshll.u32 %v4877, 16
        %v5117 = vrot.slane %v5115, 4
        %v5118 = vor.u32 %v5114, %v5117
        %v5119 = vsel %vm363, %v5110, %v5118
        %v5121 = vshrl.u32 %v4878, 16
        %v5123 = vrot.slane %v5121, 3
        %v5124 = vshll.u32 %v4878, 16
        %v5126 = vrot.slane %v5124, 4
        %v5127 = vor.u32 %v5123, %v5126
        %v5129 = vshrl.u32 %v4879, 16
        %v5131 = vrot.slane %v5129, 3
        %v5132 = vshll.u32 %v4879, 16
        %v5134 = vrot.slane %v5132, 4
        %v5135 = vor.u32 %v5131, %v5134
        %v5136 = vsel %vm363, %v5127, %v5135
        %v5138 = vshrl.u32 %v4880, 16
        %v5140 = vrot.slane %v5138, 3
        %v5141 = vshll.u32 %v4880, 16
        %v5143 = vrot.slane %v5141, 4
        %v5144 = vor.u32 %v5140, %v5143
        %v5146 = vshrl.u32 %v4881, 16
        %v5148 = vrot.slane %v5146, 3
        %v5149 = vshll.u32 %v4881, 16
        %v5151 = vrot.slane %v5149, 4
        %v5152 = vor.u32 %v5148, %v5151
        %v5153 = vsel %vm363, %v5144, %v5152
        %5170 = vst [vmem:[#allocation5] sm:$0xff] %v4898
        %5171 = vst [vmem:[#allocation5 + $0x48] sm:$0xff] %v4915
        %5172 = vst [vmem:[#allocation5 + $0x90] sm:$0xff] %v4932
        %5173 = vst [vmem:[#allocation5 + $0xd8] sm:$0xff] %v4949
        %5174 = vst [vmem:[#allocation5 + $0x120] sm:$0xff] %v4966
        %5175 = vst [vmem:[#allocation5 + $0x168] sm:$0xff] %v4983
        %5176 = vst [vmem:[#allocation5 + $0x1b0] sm:$0xff] %v5000
        %5177 = vst [vmem:[#allocation5 + $0x1f8] sm:$0xff] %v5017
        %5178 = vst [vmem:[#allocation5 + $0x240] sm:$0xff] %v5034
        %5179 = vst [vmem:[#allocation5 + $0x288] sm:$0xff] %v5051
        %5180 = vst [vmem:[#allocation5 + $0x2d0] sm:$0xff] %v5068
        %5181 = vst [vmem:[#allocation5 + $0x318] sm:$0xff] %v5085
        %5182 = vst [vmem:[#allocation5 + $0x360] sm:$0xff] %v5102
        %5183 = vst [vmem:[#allocation5 + $0x3a8] sm:$0xff] %v5119
        %5184 = vst [vmem:[#allocation5 + $0x3f0] sm:$0xff] %v5136
        %5185 = vst [vmem:[#allocation5 + $0x438] sm:$0xff] %v5153
        %v5186 = vld [vmem:[#allocation3] sm:$0xf0]
        %v5187 = vld [vmem:[#allocation3 + $0x8] sm:$0xf]
        %v5188 = vld [vmem:[#allocation3 + $0x10] sm:$0xf0]
        %v5189 = vld [vmem:[#allocation3 + $0x18] sm:$0xf]
        %v5190 = vld [vmem:[#allocation3 + $0x20] sm:$0xf0]
        %v5191 = vld [vmem:[#allocation3 + $0x28] sm:$0xf]
        %v5192 = vld [vmem:[#allocation3 + $0x30] sm:$0xf0]
        %v5193 = vld [vmem:[#allocation3 + $0x38] sm:$0xf]
        %v5194 = vld [vmem:[#allocation3 + $0x40] sm:$0xf0]
        %v5195 = vld [vmem:[#allocation3 + $0x48] sm:$0xf]
        %v5196 = vld [vmem:[#allocation3 + $0x50] sm:$0xf0]
        %v5197 = vld [vmem:[#allocation3 + $0x58] sm:$0xf]
        %v5198 = vld [vmem:[#allocation3 + $0x60] sm:$0xf0]
        %v5199 = vld [vmem:[#allocation3 + $0x68] sm:$0xf]
        %v5200 = vld [vmem:[#allocation3 + $0x70] sm:$0xf0]
        %v5201 = vld [vmem:[#allocation3 + $0x78] sm:$0xf]
        %v5202 = vld [vmem:[#allocation3 + $0x80] sm:$0xf0]
        %v5203 = vld [vmem:[#allocation3 + $0x88] sm:$0xf]
        %v5204 = vld [vmem:[#allocation3 + $0x90] sm:$0xf0]
        %v5205 = vld [vmem:[#allocation3 + $0x98] sm:$0xf]
        %v5206 = vld [vmem:[#allocation3 + $0xa0] sm:$0xf0]
        %v5207 = vld [vmem:[#allocation3 + $0xa8] sm:$0xf]
        %v5208 = vld [vmem:[#allocation3 + $0xb0] sm:$0xf0]
        %v5209 = vld [vmem:[#allocation3 + $0xb8] sm:$0xf]
        %v5210 = vld [vmem:[#allocation3 + $0xc0] sm:$0xf0]
        %v5211 = vld [vmem:[#allocation3 + $0xc8] sm:$0xf]
        %v5212 = vld [vmem:[#allocation3 + $0xd0] sm:$0xf0]
        %v5213 = vld [vmem:[#allocation3 + $0xd8] sm:$0xf]
        %v5214 = vld [vmem:[#allocation3 + $0xe0] sm:$0xf0]
        %v5215 = vld [vmem:[#allocation3 + $0xe8] sm:$0xf]
        %v5216 = vld [vmem:[#allocation3 + $0xf0] sm:$0xf0]
        %v5217 = vld [vmem:[#allocation3 + $0xf8] sm:$0xf]
        %v5250 = vrot.slane %v5186, 4
        %v5251 = vrot.slane %v5187, 4
        %v5252 = vsel %vm973, %v5250, %v5251
        %v5253 = vrot.slane %v5188, 4
        %v5254 = vrot.slane %v5189, 4
        %v5255 = vsel %vm973, %v5253, %v5254
        %v5256 = vrot.slane %v5190, 4
        %v5257 = vrot.slane %v5191, 4
        %v5258 = vsel %vm973, %v5256, %v5257
        %v5259 = vrot.slane %v5192, 4
        %v5260 = vrot.slane %v5193, 4
        %v5261 = vsel %vm973, %v5259, %v5260
        %v5262 = vrot.slane %v5194, 4
        %v5263 = vrot.slane %v5195, 4
        %v5264 = vsel %vm973, %v5262, %v5263
        %v5265 = vrot.slane %v5196, 4
        %v5266 = vrot.slane %v5197, 4
        %v5267 = vsel %vm973, %v5265, %v5266
        %v5268 = vrot.slane %v5198, 4
        %v5269 = vrot.slane %v5199, 4
        %v5270 = vsel %vm973, %v5268, %v5269
        %v5271 = vrot.slane %v5200, 4
        %v5272 = vrot.slane %v5201, 4
        %v5273 = vsel %vm973, %v5271, %v5272
        %v5274 = vrot.slane %v5202, 4
        %v5275 = vrot.slane %v5203, 4
        %v5276 = vsel %vm973, %v5274, %v5275
        %v5277 = vrot.slane %v5204, 4
        %v5278 = vrot.slane %v5205, 4
        %v5279 = vsel %vm973, %v5277, %v5278
        %v5280 = vrot.slane %v5206, 4
        %v5281 = vrot.slane %v5207, 4
        %v5282 = vsel %vm973, %v5280, %v5281
        %v5283 = vrot.slane %v5208, 4
        %v5284 = vrot.slane %v5209, 4
        %v5285 = vsel %vm973, %v5283, %v5284
        %v5286 = vrot.slane %v5210, 4
        %v5287 = vrot.slane %v5211, 4
        %v5288 = vsel %vm973, %v5286, %v5287
        %v5289 = vrot.slane %v5212, 4
        %v5290 = vrot.slane %v5213, 4
        %v5291 = vsel %vm973, %v5289, %v5290
        %v5292 = vrot.slane %v5214, 4
        %v5293 = vrot.slane %v5215, 4
        %v5294 = vsel %vm973, %v5292, %v5293
        %v5295 = vrot.slane %v5216, 4
        %v5296 = vrot.slane %v5217, 4
        %v5297 = vsel %vm973, %v5295, %v5296
        %5314 = vst [vmem:[#allocation5 + $0x8] sm:$0xff] %v5252
        %5315 = vst [vmem:[#allocation5 + $0x50] sm:$0xff] %v5255
        %5316 = vst [vmem:[#allocation5 + $0x98] sm:$0xff] %v5258
        %5317 = vst [vmem:[#allocation5 + $0xe0] sm:$0xff] %v5261
        %5318 = vst [vmem:[#allocation5 + $0x128] sm:$0xff] %v5264
        %5319 = vst [vmem:[#allocation5 + $0x170] sm:$0xff] %v5267
        %5320 = vst [vmem:[#allocation5 + $0x1b8] sm:$0xff] %v5270
        %5321 = vst [vmem:[#allocation5 + $0x200] sm:$0xff] %v5273
        %5322 = vst [vmem:[#allocation5 + $0x248] sm:$0xff] %v5276
        %5323 = vst [vmem:[#allocation5 + $0x290] sm:$0xff] %v5279
        %5324 = vst [vmem:[#allocation5 + $0x2d8] sm:$0xff] %v5282
        %5325 = vst [vmem:[#allocation5 + $0x320] sm:$0xff] %v5285
        %5326 = vst [vmem:[#allocation5 + $0x368] sm:$0xff] %v5288
        %5327 = vst [vmem:[#allocation5 + $0x3b0] sm:$0xff] %v5291
        %5328 = vst [vmem:[#allocation5 + $0x3f8] sm:$0xff] %v5294
        %5329 = vst [vmem:[#allocation5 + $0x440] sm:$0xff] %v5297
        %v5330 = vld [vmem:[#allocation3] sm:$0xf0]
        %v5331 = vld [vmem:[#allocation3 + $0x8] sm:$0x1f]
        %v5332 = vld [vmem:[#allocation3 + $0x10] sm:$0xf0]
        %v5333 = vld [vmem:[#allocation3 + $0x18] sm:$0x1f]
        %v5334 = vld [vmem:[#allocation3 + $0x20] sm:$0xf0]
        %v5335 = vld [vmem:[#allocation3 + $0x28] sm:$0x1f]
        %v5336 = vld [vmem:[#allocation3 + $0x30] sm:$0xf0]
        %v5337 = vld [vmem:[#allocation3 + $0x38] sm:$0x1f]
        %v5338 = vld [vmem:[#allocation3 + $0x40] sm:$0xf0]
        %v5339 = vld [vmem:[#allocation3 + $0x48] sm:$0x1f]
        %v5340 = vld [vmem:[#allocation3 + $0x50] sm:$0xf0]
        %v5341 = vld [vmem:[#allocation3 + $0x58] sm:$0x1f]
        %v5342 = vld [vmem:[#allocation3 + $0x60] sm:$0xf0]
        %v5343 = vld [vmem:[#allocation3 + $0x68] sm:$0x1f]
        %v5344 = vld [vmem:[#allocation3 + $0x70] sm:$0xf0]
        %v5345 = vld [vmem:[#allocation3 + $0x78] sm:$0x1f]
        %v5346 = vld [vmem:[#allocation3 + $0x80] sm:$0xf0]
        %v5347 = vld [vmem:[#allocation3 + $0x88] sm:$0x1f]
        %v5348 = vld [vmem:[#allocation3 + $0x90] sm:$0xf0]
        %v5349 = vld [vmem:[#allocation3 + $0x98] sm:$0x1f]
        %v5350 = vld [vmem:[#allocation3 + $0xa0] sm:$0xf0]
        %v5351 = vld [vmem:[#allocation3 + $0xa8] sm:$0x1f]
        %v5352 = vld [vmem:[#allocation3 + $0xb0] sm:$0xf0]
        %v5353 = vld [vmem:[#allocation3 + $0xb8] sm:$0x1f]
        %v5354 = vld [vmem:[#allocation3 + $0xc0] sm:$0xf0]
        %v5355 = vld [vmem:[#allocation3 + $0xc8] sm:$0x1f]
        %v5356 = vld [vmem:[#allocation3 + $0xd0] sm:$0xf0]
        %v5357 = vld [vmem:[#allocation3 + $0xd8] sm:$0x1f]
        %v5358 = vld [vmem:[#allocation3 + $0xe0] sm:$0xf0]
        %v5359 = vld [vmem:[#allocation3 + $0xe8] sm:$0x1f]
        %v5360 = vld [vmem:[#allocation3 + $0xf0] sm:$0xf0]
        %v5361 = vld [vmem:[#allocation3 + $0xf8] sm:$0x1f]
        %v5363 = vshrl.u32 %v5330, 16
        %v5365 = vrot.slane %v5363, 4
        %v5366 = vshll.u32 %v5330, 16
        %v5368 = vrot.slane %v5366, 5
        %v5369 = vor.u32 %v5365, %v5368
        %v5371 = vshrl.u32 %v5331, 16
        %v5373 = vrot.slane %v5371, 4
        %v5374 = vshll.u32 %v5331, 16
        %v5376 = vrot.slane %v5374, 5
        %v5377 = vor.u32 %v5373, %v5376
        %v5378 = vsel %vm1086, %v5369, %v5377
        %v5380 = vshrl.u32 %v5332, 16
        %v5382 = vrot.slane %v5380, 4
        %v5383 = vshll.u32 %v5332, 16
        %v5385 = vrot.slane %v5383, 5
        %v5386 = vor.u32 %v5382, %v5385
        %v5388 = vshrl.u32 %v5333, 16
        %v5390 = vrot.slane %v5388, 4
        %v5391 = vshll.u32 %v5333, 16
        %v5393 = vrot.slane %v5391, 5
        %v5394 = vor.u32 %v5390, %v5393
        %v5395 = vsel %vm1086, %v5386, %v5394
        %v5397 = vshrl.u32 %v5334, 16
        %v5399 = vrot.slane %v5397, 4
        %v5400 = vshll.u32 %v5334, 16
        %v5402 = vrot.slane %v5400, 5
        %v5403 = vor.u32 %v5399, %v5402
        %v5405 = vshrl.u32 %v5335, 16
        %v5407 = vrot.slane %v5405, 4
        %v5408 = vshll.u32 %v5335, 16
        %v5410 = vrot.slane %v5408, 5
        %v5411 = vor.u32 %v5407, %v5410
        %v5412 = vsel %vm1086, %v5403, %v5411
        %v5414 = vshrl.u32 %v5336, 16
        %v5416 = vrot.slane %v5414, 4
        %v5417 = vshll.u32 %v5336, 16
        %v5419 = vrot.slane %v5417, 5
        %v5420 = vor.u32 %v5416, %v5419
        %v5422 = vshrl.u32 %v5337, 16
        %v5424 = vrot.slane %v5422, 4
        %v5425 = vshll.u32 %v5337, 16
        %v5427 = vrot.slane %v5425, 5
        %v5428 = vor.u32 %v5424, %v5427
        %v5429 = vsel %vm1086, %v5420, %v5428
        %v5431 = vshrl.u32 %v5338, 16
        %v5433 = vrot.slane %v5431, 4
        %v5434 = vshll.u32 %v5338, 16
        %v5436 = vrot.slane %v5434, 5
        %v5437 = vor.u32 %v5433, %v5436
        %v5439 = vshrl.u32 %v5339, 16
        %v5441 = vrot.slane %v5439, 4
        %v5442 = vshll.u32 %v5339, 16
        %v5444 = vrot.slane %v5442, 5
        %v5445 = vor.u32 %v5441, %v5444
        %v5446 = vsel %vm1086, %v5437, %v5445
        %v5448 = vshrl.u32 %v5340, 16
        %v5450 = vrot.slane %v5448, 4
        %v5451 = vshll.u32 %v5340, 16
        %v5453 = vrot.slane %v5451, 5
        %v5454 = vor.u32 %v5450, %v5453
        %v5456 = vshrl.u32 %v5341, 16
        %v5458 = vrot.slane %v5456, 4
        %v5459 = vshll.u32 %v5341, 16
        %v5461 = vrot.slane %v5459, 5
        %v5462 = vor.u32 %v5458, %v5461
        %v5463 = vsel %vm1086, %v5454, %v5462
        %v5465 = vshrl.u32 %v5342, 16
        %v5467 = vrot.slane %v5465, 4
        %v5468 = vshll.u32 %v5342, 16
        %v5470 = vrot.slane %v5468, 5
        %v5471 = vor.u32 %v5467, %v5470
        %v5473 = vshrl.u32 %v5343, 16
        %v5475 = vrot.slane %v5473, 4
        %v5476 = vshll.u32 %v5343, 16
        %v5478 = vrot.slane %v5476, 5
        %v5479 = vor.u32 %v5475, %v5478
        %v5480 = vsel %vm1086, %v5471, %v5479
        %v5482 = vshrl.u32 %v5344, 16
        %v5484 = vrot.slane %v5482, 4
        %v5485 = vshll.u32 %v5344, 16
        %v5487 = vrot.slane %v5485, 5
        %v5488 = vor.u32 %v5484, %v5487
        %v5490 = vshrl.u32 %v5345, 16
        %v5492 = vrot.slane %v5490, 4
        %v5493 = vshll.u32 %v5345, 16
        %v5495 = vrot.slane %v5493, 5
        %v5496 = vor.u32 %v5492, %v5495
        %v5497 = vsel %vm1086, %v5488, %v5496
        %v5499 = vshrl.u32 %v5346, 16
        %v5501 = vrot.slane %v5499, 4
        %v5502 = vshll.u32 %v5346, 16
        %v5504 = vrot.slane %v5502, 5
        %v5505 = vor.u32 %v5501, %v5504
        %v5507 = vshrl.u32 %v5347, 16
        %v5509 = vrot.slane %v5507, 4
        %v5510 = vshll.u32 %v5347, 16
        %v5512 = vrot.slane %v5510, 5
        %v5513 = vor.u32 %v5509, %v5512
        %v5514 = vsel %vm1086, %v5505, %v5513
        %v5516 = vshrl.u32 %v5348, 16
        %v5518 = vrot.slane %v5516, 4
        %v5519 = vshll.u32 %v5348, 16
        %v5521 = vrot.slane %v5519, 5
        %v5522 = vor.u32 %v5518, %v5521
        %v5524 = vshrl.u32 %v5349, 16
        %v5526 = vrot.slane %v5524, 4
        %v5527 = vshll.u32 %v5349, 16
        %v5529 = vrot.slane %v5527, 5
        %v5530 = vor.u32 %v5526, %v5529
        %v5531 = vsel %vm1086, %v5522, %v5530
        %v5533 = vshrl.u32 %v5350, 16
        %v5535 = vrot.slane %v5533, 4
        %v5536 = vshll.u32 %v5350, 16
        %v5538 = vrot.slane %v5536, 5
        %v5539 = vor.u32 %v5535, %v5538
        %v5541 = vshrl.u32 %v5351, 16
        %v5543 = vrot.slane %v5541, 4
        %v5544 = vshll.u32 %v5351, 16
        %v5546 = vrot.slane %v5544, 5
        %v5547 = vor.u32 %v5543, %v5546
        %v5548 = vsel %vm1086, %v5539, %v5547
        %v5550 = vshrl.u32 %v5352, 16
        %v5552 = vrot.slane %v5550, 4
        %v5553 = vshll.u32 %v5352, 16
        %v5555 = vrot.slane %v5553, 5
        %v5556 = vor.u32 %v5552, %v5555
        %v5558 = vshrl.u32 %v5353, 16
        %v5560 = vrot.slane %v5558, 4
        %v5561 = vshll.u32 %v5353, 16
        %v5563 = vrot.slane %v5561, 5
        %v5564 = vor.u32 %v5560, %v5563
        %v5565 = vsel %vm1086, %v5556, %v5564
        %v5567 = vshrl.u32 %v5354, 16
        %v5569 = vrot.slane %v5567, 4
        %v5570 = vshll.u32 %v5354, 16
        %v5572 = vrot.slane %v5570, 5
        %v5573 = vor.u32 %v5569, %v5572
        %v5575 = vshrl.u32 %v5355, 16
        %v5577 = vrot.slane %v5575, 4
        %v5578 = vshll.u32 %v5355, 16
        %v5580 = vrot.slane %v5578, 5
        %v5581 = vor.u32 %v5577, %v5580
        %v5582 = vsel %vm1086, %v5573, %v5581
        %v5584 = vshrl.u32 %v5356, 16
        %v5586 = vrot.slane %v5584, 4
        %v5587 = vshll.u32 %v5356, 16
        %v5589 = vrot.slane %v5587, 5
        %v5590 = vor.u32 %v5586, %v5589
        %v5592 = vshrl.u32 %v5357, 16
        %v5594 = vrot.slane %v5592, 4
        %v5595 = vshll.u32 %v5357, 16
        %v5597 = vrot.slane %v5595, 5
        %v5598 = vor.u32 %v5594, %v5597
        %v5599 = vsel %vm1086, %v5590, %v5598
        %v5601 = vshrl.u32 %v5358, 16
        %v5603 = vrot.slane %v5601, 4
        %v5604 = vshll.u32 %v5358, 16
        %v5606 = vrot.slane %v5604, 5
        %v5607 = vor.u32 %v5603, %v5606
        %v5609 = vshrl.u32 %v5359, 16
        %v5611 = vrot.slane %v5609, 4
        %v5612 = vshll.u32 %v5359, 16
        %v5614 = vrot.slane %v5612, 5
        %v5615 = vor.u32 %v5611, %v5614
        %v5616 = vsel %vm1086, %v5607, %v5615
        %v5618 = vshrl.u32 %v5360, 16
        %v5620 = vrot.slane %v5618, 4
        %v5621 = vshll.u32 %v5360, 16
        %v5623 = vrot.slane %v5621, 5
        %v5624 = vor.u32 %v5620, %v5623
        %v5626 = vshrl.u32 %v5361, 16
        %v5628 = vrot.slane %v5626, 4
        %v5629 = vshll.u32 %v5361, 16
        %v5631 = vrot.slane %v5629, 5
        %v5632 = vor.u32 %v5628, %v5631
        %v5633 = vsel %vm1086, %v5624, %v5632
        %5650 = vst [vmem:[#allocation5 + $0x10] sm:$0xff] %v5378
        %5651 = vst [vmem:[#allocation5 + $0x58] sm:$0xff] %v5395
        %5652 = vst [vmem:[#allocation5 + $0xa0] sm:$0xff] %v5412
        %5653 = vst [vmem:[#allocation5 + $0xe8] sm:$0xff] %v5429
        %5654 = vst [vmem:[#allocation5 + $0x130] sm:$0xff] %v5446
        %5655 = vst [vmem:[#allocation5 + $0x178] sm:$0xff] %v5463
        %5656 = vst [vmem:[#allocation5 + $0x1c0] sm:$0xff] %v5480
        %5657 = vst [vmem:[#allocation5 + $0x208] sm:$0xff] %v5497
        %5658 = vst [vmem:[#allocation5 + $0x250] sm:$0xff] %v5514
        %5659 = vst [vmem:[#allocation5 + $0x298] sm:$0xff] %v5531
        %5660 = vst [vmem:[#allocation5 + $0x2e0] sm:$0xff] %v5548
        %5661 = vst [vmem:[#allocation5 + $0x328] sm:$0xff] %v5565
        %5662 = vst [vmem:[#allocation5 + $0x370] sm:$0xff] %v5582
        %5663 = vst [vmem:[#allocation5 + $0x3b8] sm:$0xff] %v5599
        %5664 = vst [vmem:[#allocation5 + $0x400] sm:$0xff] %v5616
        %5665 = vst [vmem:[#allocation5 + $0x448] sm:$0xff] %v5633
        %v5666 = vld [vmem:[%s4673] sm:$0xf8]
        %v5667 = vld [vmem:[%s4673 + $0x8] sm:$0xf]
        %v5668 = vld [vmem:[%s4673 + $0x10] sm:$0xf8]
        %v5669 = vld [vmem:[%s4673 + $0x18] sm:$0xf]
        %v5670 = vld [vmem:[%s4673 + $0x20] sm:$0xf8]
        %v5671 = vld [vmem:[%s4673 + $0x28] sm:$0xf]
        %v5672 = vld [vmem:[%s4673 + $0x30] sm:$0xf8]
        %v5673 = vld [vmem:[%s4673 + $0x38] sm:$0xf]
        %v5674 = vld [vmem:[%s4673 + $0x40] sm:$0xf8]
        %v5675 = vld [vmem:[%s4673 + $0x48] sm:$0xf]
        %v5676 = vld [vmem:[%s4673 + $0x50] sm:$0xf8]
        %v5677 = vld [vmem:[%s4673 + $0x58] sm:$0xf]
        %v5678 = vld [vmem:[%s4673 + $0x60] sm:$0xf8]
        %v5679 = vld [vmem:[%s4673 + $0x68] sm:$0xf]
        %v5680 = vld [vmem:[%s4673 + $0x70] sm:$0xf8]
        %v5681 = vld [vmem:[%s4673 + $0x78] sm:$0xf]
        %v5682 = vld [vmem:[%s4673 + $0x80] sm:$0xf8]
        %v5683 = vld [vmem:[%s4673 + $0x88] sm:$0xf]
        %v5684 = vld [vmem:[%s4673 + $0x90] sm:$0xf8]
        %v5685 = vld [vmem:[%s4673 + $0x98] sm:$0xf]
        %v5686 = vld [vmem:[%s4673 + $0xa0] sm:$0xf8]
        %v5687 = vld [vmem:[%s4673 + $0xa8] sm:$0xf]
        %v5688 = vld [vmem:[%s4673 + $0xb0] sm:$0xf8]
        %v5689 = vld [vmem:[%s4673 + $0xb8] sm:$0xf]
        %v5690 = vld [vmem:[%s4673 + $0xc0] sm:$0xf8]
        %v5691 = vld [vmem:[%s4673 + $0xc8] sm:$0xf]
        %v5692 = vld [vmem:[%s4673 + $0xd0] sm:$0xf8]
        %v5693 = vld [vmem:[%s4673 + $0xd8] sm:$0xf]
        %v5694 = vld [vmem:[%s4673 + $0xe0] sm:$0xf8]
        %v5695 = vld [vmem:[%s4673 + $0xe8] sm:$0xf]
        %v5696 = vld [vmem:[%s4673 + $0xf0] sm:$0xf8]
        %v5697 = vld [vmem:[%s4673 + $0xf8] sm:$0xf]
        %v5699 = vshrl.u32 %v5666, 16
        %v5701 = vrot.slane %v5699, 3
        %v5702 = vshll.u32 %v5666, 16
        %v5704 = vrot.slane %v5702, 4
        %v5705 = vor.u32 %v5701, %v5704
        %v5707 = vshrl.u32 %v5667, 16
        %v5709 = vrot.slane %v5707, 3
        %v5710 = vshll.u32 %v5667, 16
        %v5712 = vrot.slane %v5710, 4
        %v5713 = vor.u32 %v5709, %v5712
        %v5714 = vsel %vm363, %v5705, %v5713
        %v5716 = vshrl.u32 %v5668, 16
        %v5718 = vrot.slane %v5716, 3
        %v5719 = vshll.u32 %v5668, 16
        %v5721 = vrot.slane %v5719, 4
        %v5722 = vor.u32 %v5718, %v5721
        %v5724 = vshrl.u32 %v5669, 16
        %v5726 = vrot.slane %v5724, 3
        %v5727 = vshll.u32 %v5669, 16
        %v5729 = vrot.slane %v5727, 4
        %v5730 = vor.u32 %v5726, %v5729
        %v5731 = vsel %vm363, %v5722, %v5730
        %v5733 = vshrl.u32 %v5670, 16
        %v5735 = vrot.slane %v5733, 3
        %v5736 = vshll.u32 %v5670, 16
        %v5738 = vrot.slane %v5736, 4
        %v5739 = vor.u32 %v5735, %v5738
        %v5741 = vshrl.u32 %v5671, 16
        %v5743 = vrot.slane %v5741, 3
        %v5744 = vshll.u32 %v5671, 16
        %v5746 = vrot.slane %v5744, 4
        %v5747 = vor.u32 %v5743, %v5746
        %v5748 = vsel %vm363, %v5739, %v5747
        %v5750 = vshrl.u32 %v5672, 16
        %v5752 = vrot.slane %v5750, 3
        %v5753 = vshll.u32 %v5672, 16
        %v5755 = vrot.slane %v5753, 4
        %v5756 = vor.u32 %v5752, %v5755
        %v5758 = vshrl.u32 %v5673, 16
        %v5760 = vrot.slane %v5758, 3
        %v5761 = vshll.u32 %v5673, 16
        %v5763 = vrot.slane %v5761, 4
        %v5764 = vor.u32 %v5760, %v5763
        %v5765 = vsel %vm363, %v5756, %v5764
        %v5767 = vshrl.u32 %v5674, 16
        %v5769 = vrot.slane %v5767, 3
        %v5770 = vshll.u32 %v5674, 16
        %v5772 = vrot.slane %v5770, 4
        %v5773 = vor.u32 %v5769, %v5772
        %v5775 = vshrl.u32 %v5675, 16
        %v5777 = vrot.slane %v5775, 3
        %v5778 = vshll.u32 %v5675, 16
        %v5780 = vrot.slane %v5778, 4
        %v5781 = vor.u32 %v5777, %v5780
        %v5782 = vsel %vm363, %v5773, %v5781
        %v5784 = vshrl.u32 %v5676, 16
        %v5786 = vrot.slane %v5784, 3
        %v5787 = vshll.u32 %v5676, 16
        %v5789 = vrot.slane %v5787, 4
        %v5790 = vor.u32 %v5786, %v5789
        %v5792 = vshrl.u32 %v5677, 16
        %v5794 = vrot.slane %v5792, 3
        %v5795 = vshll.u32 %v5677, 16
        %v5797 = vrot.slane %v5795, 4
        %v5798 = vor.u32 %v5794, %v5797
        %v5799 = vsel %vm363, %v5790, %v5798
        %v5801 = vshrl.u32 %v5678, 16
        %v5803 = vrot.slane %v5801, 3
        %v5804 = vshll.u32 %v5678, 16
        %v5806 = vrot.slane %v5804, 4
        %v5807 = vor.u32 %v5803, %v5806
        %v5809 = vshrl.u32 %v5679, 16
        %v5811 = vrot.slane %v5809, 3
        %v5812 = vshll.u32 %v5679, 16
        %v5814 = vrot.slane %v5812, 4
        %v5815 = vor.u32 %v5811, %v5814
        %v5816 = vsel %vm363, %v5807, %v5815
        %v5818 = vshrl.u32 %v5680, 16
        %v5820 = vrot.slane %v5818, 3
        %v5821 = vshll.u32 %v5680, 16
        %v5823 = vrot.slane %v5821, 4
        %v5824 = vor.u32 %v5820, %v5823
        %v5826 = vshrl.u32 %v5681, 16
        %v5828 = vrot.slane %v5826, 3
        %v5829 = vshll.u32 %v5681, 16
        %v5831 = vrot.slane %v5829, 4
        %v5832 = vor.u32 %v5828, %v5831
        %v5833 = vsel %vm363, %v5824, %v5832
        %v5835 = vshrl.u32 %v5682, 16
        %v5837 = vrot.slane %v5835, 3
        %v5838 = vshll.u32 %v5682, 16
        %v5840 = vrot.slane %v5838, 4
        %v5841 = vor.u32 %v5837, %v5840
        %v5843 = vshrl.u32 %v5683, 16
        %v5845 = vrot.slane %v5843, 3
        %v5846 = vshll.u32 %v5683, 16
        %v5848 = vrot.slane %v5846, 4
        %v5849 = vor.u32 %v5845, %v5848
        %v5850 = vsel %vm363, %v5841, %v5849
        %v5852 = vshrl.u32 %v5684, 16
        %v5854 = vrot.slane %v5852, 3
        %v5855 = vshll.u32 %v5684, 16
        %v5857 = vrot.slane %v5855, 4
        %v5858 = vor.u32 %v5854, %v5857
        %v5860 = vshrl.u32 %v5685, 16
        %v5862 = vrot.slane %v5860, 3
        %v5863 = vshll.u32 %v5685, 16
        %v5865 = vrot.slane %v5863, 4
        %v5866 = vor.u32 %v5862, %v5865
        %v5867 = vsel %vm363, %v5858, %v5866
        %v5869 = vshrl.u32 %v5686, 16
        %v5871 = vrot.slane %v5869, 3
        %v5872 = vshll.u32 %v5686, 16
        %v5874 = vrot.slane %v5872, 4
        %v5875 = vor.u32 %v5871, %v5874
        %v5877 = vshrl.u32 %v5687, 16
        %v5879 = vrot.slane %v5877, 3
        %v5880 = vshll.u32 %v5687, 16
        %v5882 = vrot.slane %v5880, 4
        %v5883 = vor.u32 %v5879, %v5882
        %v5884 = vsel %vm363, %v5875, %v5883
        %v5886 = vshrl.u32 %v5688, 16
        %v5888 = vrot.slane %v5886, 3
        %v5889 = vshll.u32 %v5688, 16
        %v5891 = vrot.slane %v5889, 4
        %v5892 = vor.u32 %v5888, %v5891
        %v5894 = vshrl.u32 %v5689, 16
        %v5896 = vrot.slane %v5894, 3
        %v5897 = vshll.u32 %v5689, 16
        %v5899 = vrot.slane %v5897, 4
        %v5900 = vor.u32 %v5896, %v5899
        %v5901 = vsel %vm363, %v5892, %v5900
        %v5903 = vshrl.u32 %v5690, 16
        %v5905 = vrot.slane %v5903, 3
        %v5906 = vshll.u32 %v5690, 16
        %v5908 = vrot.slane %v5906, 4
        %v5909 = vor.u32 %v5905, %v5908
        %v5911 = vshrl.u32 %v5691, 16
        %v5913 = vrot.slane %v5911, 3
        %v5914 = vshll.u32 %v5691, 16
        %v5916 = vrot.slane %v5914, 4
        %v5917 = vor.u32 %v5913, %v5916
        %v5918 = vsel %vm363, %v5909, %v5917
        %v5920 = vshrl.u32 %v5692, 16
        %v5922 = vrot.slane %v5920, 3
        %v5923 = vshll.u32 %v5692, 16
        %v5925 = vrot.slane %v5923, 4
        %v5926 = vor.u32 %v5922, %v5925
        %v5928 = vshrl.u32 %v5693, 16
        %v5930 = vrot.slane %v5928, 3
        %v5931 = vshll.u32 %v5693, 16
        %v5933 = vrot.slane %v5931, 4
        %v5934 = vor.u32 %v5930, %v5933
        %v5935 = vsel %vm363, %v5926, %v5934
        %v5937 = vshrl.u32 %v5694, 16
        %v5939 = vrot.slane %v5937, 3
        %v5940 = vshll.u32 %v5694, 16
        %v5942 = vrot.slane %v5940, 4
        %v5943 = vor.u32 %v5939, %v5942
        %v5945 = vshrl.u32 %v5695, 16
        %v5947 = vrot.slane %v5945, 3
        %v5948 = vshll.u32 %v5695, 16
        %v5950 = vrot.slane %v5948, 4
        %v5951 = vor.u32 %v5947, %v5950
        %v5952 = vsel %vm363, %v5943, %v5951
        %v5954 = vshrl.u32 %v5696, 16
        %v5956 = vrot.slane %v5954, 3
        %v5957 = vshll.u32 %v5696, 16
        %v5959 = vrot.slane %v5957, 4
        %v5960 = vor.u32 %v5956, %v5959
        %v5962 = vshrl.u32 %v5697, 16
        %v5964 = vrot.slane %v5962, 3
        %v5965 = vshll.u32 %v5697, 16
        %v5967 = vrot.slane %v5965, 4
        %v5968 = vor.u32 %v5964, %v5967
        %v5969 = vsel %vm363, %v5960, %v5968
        %5986 = vst [vmem:[#allocation5 + $0x18] sm:$0xff] %v5714
        %5987 = vst [vmem:[#allocation5 + $0x60] sm:$0xff] %v5731
        %5988 = vst [vmem:[#allocation5 + $0xa8] sm:$0xff] %v5748
        %5989 = vst [vmem:[#allocation5 + $0xf0] sm:$0xff] %v5765
        %5990 = vst [vmem:[#allocation5 + $0x138] sm:$0xff] %v5782
        %5991 = vst [vmem:[#allocation5 + $0x180] sm:$0xff] %v5799
        %5992 = vst [vmem:[#allocation5 + $0x1c8] sm:$0xff] %v5816
        %5993 = vst [vmem:[#allocation5 + $0x210] sm:$0xff] %v5833
        %5994 = vst [vmem:[#allocation5 + $0x258] sm:$0xff] %v5850
        %5995 = vst [vmem:[#allocation5 + $0x2a0] sm:$0xff] %v5867
        %5996 = vst [vmem:[#allocation5 + $0x2e8] sm:$0xff] %v5884
        %5997 = vst [vmem:[#allocation5 + $0x330] sm:$0xff] %v5901
        %5998 = vst [vmem:[#allocation5 + $0x378] sm:$0xff] %v5918
        %5999 = vst [vmem:[#allocation5 + $0x3c0] sm:$0xff] %v5935
        %6000 = vst [vmem:[#allocation5 + $0x408] sm:$0xff] %v5952
        %6001 = vst [vmem:[#allocation5 + $0x450] sm:$0xff] %v5969
        %v6002 = vld [vmem:[%s4673] sm:$0xf0]
        %v6003 = vld [vmem:[%s4673 + $0x8] sm:$0xf]
        %v6004 = vld [vmem:[%s4673 + $0x10] sm:$0xf0]
        %v6005 = vld [vmem:[%s4673 + $0x18] sm:$0xf]
        %v6006 = vld [vmem:[%s4673 + $0x20] sm:$0xf0]
        %v6007 = vld [vmem:[%s4673 + $0x28] sm:$0xf]
        %v6008 = vld [vmem:[%s4673 + $0x30] sm:$0xf0]
        %v6009 = vld [vmem:[%s4673 + $0x38] sm:$0xf]
        %v6010 = vld [vmem:[%s4673 + $0x40] sm:$0xf0]
        %v6011 = vld [vmem:[%s4673 + $0x48] sm:$0xf]
        %v6012 = vld [vmem:[%s4673 + $0x50] sm:$0xf0]
        %v6013 = vld [vmem:[%s4673 + $0x58] sm:$0xf]
        %v6014 = vld [vmem:[%s4673 + $0x60] sm:$0xf0]
        %v6015 = vld [vmem:[%s4673 + $0x68] sm:$0xf]
        %v6016 = vld [vmem:[%s4673 + $0x70] sm:$0xf0]
        %v6017 = vld [vmem:[%s4673 + $0x78] sm:$0xf]
        %v6018 = vld [vmem:[%s4673 + $0x80] sm:$0xf0]
        %v6019 = vld [vmem:[%s4673 + $0x88] sm:$0xf]
        %v6020 = vld [vmem:[%s4673 + $0x90] sm:$0xf0]
        %v6021 = vld [vmem:[%s4673 + $0x98] sm:$0xf]
        %v6022 = vld [vmem:[%s4673 + $0xa0] sm:$0xf0]
        %v6023 = vld [vmem:[%s4673 + $0xa8] sm:$0xf]
        %v6024 = vld [vmem:[%s4673 + $0xb0] sm:$0xf0]
        %v6025 = vld [vmem:[%s4673 + $0xb8] sm:$0xf]
        %v6026 = vld [vmem:[%s4673 + $0xc0] sm:$0xf0]
        %v6027 = vld [vmem:[%s4673 + $0xc8] sm:$0xf]
        %v6028 = vld [vmem:[%s4673 + $0xd0] sm:$0xf0]
        %v6029 = vld [vmem:[%s4673 + $0xd8] sm:$0xf]
        %v6030 = vld [vmem:[%s4673 + $0xe0] sm:$0xf0]
        %v6031 = vld [vmem:[%s4673 + $0xe8] sm:$0xf]
        %v6032 = vld [vmem:[%s4673 + $0xf0] sm:$0xf0]
        %v6033 = vld [vmem:[%s4673 + $0xf8] sm:$0xf]
        %v6066 = vrot.slane %v6002, 4
        %v6067 = vrot.slane %v6003, 4
        %v6068 = vsel %vm973, %v6066, %v6067
        %v6069 = vrot.slane %v6004, 4
        %v6070 = vrot.slane %v6005, 4
        %v6071 = vsel %vm973, %v6069, %v6070
        %v6072 = vrot.slane %v6006, 4
        %v6073 = vrot.slane %v6007, 4
        %v6074 = vsel %vm973, %v6072, %v6073
        %v6075 = vrot.slane %v6008, 4
        %v6076 = vrot.slane %v6009, 4
        %v6077 = vsel %vm973, %v6075, %v6076
        %v6078 = vrot.slane %v6010, 4
        %v6079 = vrot.slane %v6011, 4
        %v6080 = vsel %vm973, %v6078, %v6079
        %v6081 = vrot.slane %v6012, 4
        %v6082 = vrot.slane %v6013, 4
        %v6083 = vsel %vm973, %v6081, %v6082
        %v6084 = vrot.slane %v6014, 4
        %v6085 = vrot.slane %v6015, 4
        %v6086 = vsel %vm973, %v6084, %v6085
        %v6087 = vrot.slane %v6016, 4
        %v6088 = vrot.slane %v6017, 4
        %v6089 = vsel %vm973, %v6087, %v6088
        %v6090 = vrot.slane %v6018, 4
        %v6091 = vrot.slane %v6019, 4
        %v6092 = vsel %vm973, %v6090, %v6091
        %v6093 = vrot.slane %v6020, 4
        %v6094 = vrot.slane %v6021, 4
        %v6095 = vsel %vm973, %v6093, %v6094
        %v6096 = vrot.slane %v6022, 4
        %v6097 = vrot.slane %v6023, 4
        %v6098 = vsel %vm973, %v6096, %v6097
        %v6099 = vrot.slane %v6024, 4
        %v6100 = vrot.slane %v6025, 4
        %v6101 = vsel %vm973, %v6099, %v6100
        %v6102 = vrot.slane %v6026, 4
        %v6103 = vrot.slane %v6027, 4
        %v6104 = vsel %vm973, %v6102, %v6103
        %v6105 = vrot.slane %v6028, 4
        %v6106 = vrot.slane %v6029, 4
        %v6107 = vsel %vm973, %v6105, %v6106
        %v6108 = vrot.slane %v6030, 4
        %v6109 = vrot.slane %v6031, 4
        %v6110 = vsel %vm973, %v6108, %v6109
        %v6111 = vrot.slane %v6032, 4
        %v6112 = vrot.slane %v6033, 4
        %v6113 = vsel %vm973, %v6111, %v6112
        %6130 = vst [vmem:[#allocation5 + $0x20] sm:$0xff] %v6068
        %6131 = vst [vmem:[#allocation5 + $0x68] sm:$0xff] %v6071
        %6132 = vst [vmem:[#allocation5 + $0xb0] sm:$0xff] %v6074
        %6133 = vst [vmem:[#allocation5 + $0xf8] sm:$0xff] %v6077
        %6134 = vst [vmem:[#allocation5 + $0x140] sm:$0xff] %v6080
        %6135 = vst [vmem:[#allocation5 + $0x188] sm:$0xff] %v6083
        %6136 = vst [vmem:[#allocation5 + $0x1d0] sm:$0xff] %v6086
        %6137 = vst [vmem:[#allocation5 + $0x218] sm:$0xff] %v6089
        %6138 = vst [vmem:[#allocation5 + $0x260] sm:$0xff] %v6092
        %6139 = vst [vmem:[#allocation5 + $0x2a8] sm:$0xff] %v6095
        %6140 = vst [vmem:[#allocation5 + $0x2f0] sm:$0xff] %v6098
        %6141 = vst [vmem:[#allocation5 + $0x338] sm:$0xff] %v6101
        %6142 = vst [vmem:[#allocation5 + $0x380] sm:$0xff] %v6104
        %6143 = vst [vmem:[#allocation5 + $0x3c8] sm:$0xff] %v6107
        %6144 = vst [vmem:[#allocation5 + $0x410] sm:$0xff] %v6110
        %6145 = vst [vmem:[#allocation5 + $0x458] sm:$0xff] %v6113
        %v6146 = vld [vmem:[%s4673] sm:$0xf0]
        %v6147 = vld [vmem:[%s4673 + $0x8] sm:$0x1f]
        %v6148 = vld [vmem:[%s4673 + $0x10] sm:$0xf0]
        %v6149 = vld [vmem:[%s4673 + $0x18] sm:$0x1f]
        %v6150 = vld [vmem:[%s4673 + $0x20] sm:$0xf0]
        %v6151 = vld [vmem:[%s4673 + $0x28] sm:$0x1f]
        %v6152 = vld [vmem:[%s4673 + $0x30] sm:$0xf0]
        %v6153 = vld [vmem:[%s4673 + $0x38] sm:$0x1f]
        %v6154 = vld [vmem:[%s4673 + $0x40] sm:$0xf0]
        %v6155 = vld [vmem:[%s4673 + $0x48] sm:$0x1f]
        %v6156 = vld [vmem:[%s4673 + $0x50] sm:$0xf0]
        %v6157 = vld [vmem:[%s4673 + $0x58] sm:$0x1f]
        %v6158 = vld [vmem:[%s4673 + $0x60] sm:$0xf0]
        %v6159 = vld [vmem:[%s4673 + $0x68] sm:$0x1f]
        %v6160 = vld [vmem:[%s4673 + $0x70] sm:$0xf0]
        %v6161 = vld [vmem:[%s4673 + $0x78] sm:$0x1f]
        %v6162 = vld [vmem:[%s4673 + $0x80] sm:$0xf0]
        %v6163 = vld [vmem:[%s4673 + $0x88] sm:$0x1f]
        %v6164 = vld [vmem:[%s4673 + $0x90] sm:$0xf0]
        %v6165 = vld [vmem:[%s4673 + $0x98] sm:$0x1f]
        %v6166 = vld [vmem:[%s4673 + $0xa0] sm:$0xf0]
        %v6167 = vld [vmem:[%s4673 + $0xa8] sm:$0x1f]
        %v6168 = vld [vmem:[%s4673 + $0xb0] sm:$0xf0]
        %v6169 = vld [vmem:[%s4673 + $0xb8] sm:$0x1f]
        %v6170 = vld [vmem:[%s4673 + $0xc0] sm:$0xf0]
        %v6171 = vld [vmem:[%s4673 + $0xc8] sm:$0x1f]
        %v6172 = vld [vmem:[%s4673 + $0xd0] sm:$0xf0]
        %v6173 = vld [vmem:[%s4673 + $0xd8] sm:$0x1f]
        %v6174 = vld [vmem:[%s4673 + $0xe0] sm:$0xf0]
        %v6175 = vld [vmem:[%s4673 + $0xe8] sm:$0x1f]
        %v6176 = vld [vmem:[%s4673 + $0xf0] sm:$0xf0]
        %v6177 = vld [vmem:[%s4673 + $0xf8] sm:$0x1f]
        %v6179 = vshrl.u32 %v6146, 16
        %v6181 = vrot.slane %v6179, 4
        %v6182 = vshll.u32 %v6146, 16
        %v6184 = vrot.slane %v6182, 5
        %v6185 = vor.u32 %v6181, %v6184
        %v6187 = vshrl.u32 %v6147, 16
        %v6189 = vrot.slane %v6187, 4
        %v6190 = vshll.u32 %v6147, 16
        %v6192 = vrot.slane %v6190, 5
        %v6193 = vor.u32 %v6189, %v6192
        %v6194 = vsel %vm1086, %v6185, %v6193
        %v6196 = vshrl.u32 %v6148, 16
        %v6198 = vrot.slane %v6196, 4
        %v6199 = vshll.u32 %v6148, 16
        %v6201 = vrot.slane %v6199, 5
        %v6202 = vor.u32 %v6198, %v6201
        %v6204 = vshrl.u32 %v6149, 16
        %v6206 = vrot.slane %v6204, 4
        %v6207 = vshll.u32 %v6149, 16
        %v6209 = vrot.slane %v6207, 5
        %v6210 = vor.u32 %v6206, %v6209
        %v6211 = vsel %vm1086, %v6202, %v6210
        %v6213 = vshrl.u32 %v6150, 16
        %v6215 = vrot.slane %v6213, 4
        %v6216 = vshll.u32 %v6150, 16
        %v6218 = vrot.slane %v6216, 5
        %v6219 = vor.u32 %v6215, %v6218
        %v6221 = vshrl.u32 %v6151, 16
        %v6223 = vrot.slane %v6221, 4
        %v6224 = vshll.u32 %v6151, 16
        %v6226 = vrot.slane %v6224, 5
        %v6227 = vor.u32 %v6223, %v6226
        %v6228 = vsel %vm1086, %v6219, %v6227
        %v6230 = vshrl.u32 %v6152, 16
        %v6232 = vrot.slane %v6230, 4
        %v6233 = vshll.u32 %v6152, 16
        %v6235 = vrot.slane %v6233, 5
        %v6236 = vor.u32 %v6232, %v6235
        %v6238 = vshrl.u32 %v6153, 16
        %v6240 = vrot.slane %v6238, 4
        %v6241 = vshll.u32 %v6153, 16
        %v6243 = vrot.slane %v6241, 5
        %v6244 = vor.u32 %v6240, %v6243
        %v6245 = vsel %vm1086, %v6236, %v6244
        %v6247 = vshrl.u32 %v6154, 16
        %v6249 = vrot.slane %v6247, 4
        %v6250 = vshll.u32 %v6154, 16
        %v6252 = vrot.slane %v6250, 5
        %v6253 = vor.u32 %v6249, %v6252
        %v6255 = vshrl.u32 %v6155, 16
        %v6257 = vrot.slane %v6255, 4
        %v6258 = vshll.u32 %v6155, 16
        %v6260 = vrot.slane %v6258, 5
        %v6261 = vor.u32 %v6257, %v6260
        %v6262 = vsel %vm1086, %v6253, %v6261
        %v6264 = vshrl.u32 %v6156, 16
        %v6266 = vrot.slane %v6264, 4
        %v6267 = vshll.u32 %v6156, 16
        %v6269 = vrot.slane %v6267, 5
        %v6270 = vor.u32 %v6266, %v6269
        %v6272 = vshrl.u32 %v6157, 16
        %v6274 = vrot.slane %v6272, 4
        %v6275 = vshll.u32 %v6157, 16
        %v6277 = vrot.slane %v6275, 5
        %v6278 = vor.u32 %v6274, %v6277
        %v6279 = vsel %vm1086, %v6270, %v6278
        %v6281 = vshrl.u32 %v6158, 16
        %v6283 = vrot.slane %v6281, 4
        %v6284 = vshll.u32 %v6158, 16
        %v6286 = vrot.slane %v6284, 5
        %v6287 = vor.u32 %v6283, %v6286
        %v6289 = vshrl.u32 %v6159, 16
        %v6291 = vrot.slane %v6289, 4
        %v6292 = vshll.u32 %v6159, 16
        %v6294 = vrot.slane %v6292, 5
        %v6295 = vor.u32 %v6291, %v6294
        %v6296 = vsel %vm1086, %v6287, %v6295
        %v6298 = vshrl.u32 %v6160, 16
        %v6300 = vrot.slane %v6298, 4
        %v6301 = vshll.u32 %v6160, 16
        %v6303 = vrot.slane %v6301, 5
        %v6304 = vor.u32 %v6300, %v6303
        %v6306 = vshrl.u32 %v6161, 16
        %v6308 = vrot.slane %v6306, 4
        %v6309 = vshll.u32 %v6161, 16
        %v6311 = vrot.slane %v6309, 5
        %v6312 = vor.u32 %v6308, %v6311
        %v6313 = vsel %vm1086, %v6304, %v6312
        %v6315 = vshrl.u32 %v6162, 16
        %v6317 = vrot.slane %v6315, 4
        %v6318 = vshll.u32 %v6162, 16
        %v6320 = vrot.slane %v6318, 5
        %v6321 = vor.u32 %v6317, %v6320
        %v6323 = vshrl.u32 %v6163, 16
        %v6325 = vrot.slane %v6323, 4
        %v6326 = vshll.u32 %v6163, 16
        %v6328 = vrot.slane %v6326, 5
        %v6329 = vor.u32 %v6325, %v6328
        %v6330 = vsel %vm1086, %v6321, %v6329
        %v6332 = vshrl.u32 %v6164, 16
        %v6334 = vrot.slane %v6332, 4
        %v6335 = vshll.u32 %v6164, 16
        %v6337 = vrot.slane %v6335, 5
        %v6338 = vor.u32 %v6334, %v6337
        %v6340 = vshrl.u32 %v6165, 16
        %v6342 = vrot.slane %v6340, 4
        %v6343 = vshll.u32 %v6165, 16
        %v6345 = vrot.slane %v6343, 5
        %v6346 = vor.u32 %v6342, %v6345
        %v6347 = vsel %vm1086, %v6338, %v6346
        %v6349 = vshrl.u32 %v6166, 16
        %v6351 = vrot.slane %v6349, 4
        %v6352 = vshll.u32 %v6166, 16
        %v6354 = vrot.slane %v6352, 5
        %v6355 = vor.u32 %v6351, %v6354
        %v6357 = vshrl.u32 %v6167, 16
        %v6359 = vrot.slane %v6357, 4
        %v6360 = vshll.u32 %v6167, 16
        %v6362 = vrot.slane %v6360, 5
        %v6363 = vor.u32 %v6359, %v6362
        %v6364 = vsel %vm1086, %v6355, %v6363
        %v6366 = vshrl.u32 %v6168, 16
        %v6368 = vrot.slane %v6366, 4
        %v6369 = vshll.u32 %v6168, 16
        %v6371 = vrot.slane %v6369, 5
        %v6372 = vor.u32 %v6368, %v6371
        %v6374 = vshrl.u32 %v6169, 16
        %v6376 = vrot.slane %v6374, 4
        %v6377 = vshll.u32 %v6169, 16
        %v6379 = vrot.slane %v6377, 5
        %v6380 = vor.u32 %v6376, %v6379
        %v6381 = vsel %vm1086, %v6372, %v6380
        %v6383 = vshrl.u32 %v6170, 16
        %v6385 = vrot.slane %v6383, 4
        %v6386 = vshll.u32 %v6170, 16
        %v6388 = vrot.slane %v6386, 5
        %v6389 = vor.u32 %v6385, %v6388
        %v6391 = vshrl.u32 %v6171, 16
        %v6393 = vrot.slane %v6391, 4
        %v6394 = vshll.u32 %v6171, 16
        %v6396 = vrot.slane %v6394, 5
        %v6397 = vor.u32 %v6393, %v6396
        %v6398 = vsel %vm1086, %v6389, %v6397
        %v6400 = vshrl.u32 %v6172, 16
        %v6402 = vrot.slane %v6400, 4
        %v6403 = vshll.u32 %v6172, 16
        %v6405 = vrot.slane %v6403, 5
        %v6406 = vor.u32 %v6402, %v6405
        %v6408 = vshrl.u32 %v6173, 16
        %v6410 = vrot.slane %v6408, 4
        %v6411 = vshll.u32 %v6173, 16
        %v6413 = vrot.slane %v6411, 5
        %v6414 = vor.u32 %v6410, %v6413
        %v6415 = vsel %vm1086, %v6406, %v6414
        %v6417 = vshrl.u32 %v6174, 16
        %v6419 = vrot.slane %v6417, 4
        %v6420 = vshll.u32 %v6174, 16
        %v6422 = vrot.slane %v6420, 5
        %v6423 = vor.u32 %v6419, %v6422
        %v6425 = vshrl.u32 %v6175, 16
        %v6427 = vrot.slane %v6425, 4
        %v6428 = vshll.u32 %v6175, 16
        %v6430 = vrot.slane %v6428, 5
        %v6431 = vor.u32 %v6427, %v6430
        %v6432 = vsel %vm1086, %v6423, %v6431
        %v6434 = vshrl.u32 %v6176, 16
        %v6436 = vrot.slane %v6434, 4
        %v6437 = vshll.u32 %v6176, 16
        %v6439 = vrot.slane %v6437, 5
        %v6440 = vor.u32 %v6436, %v6439
        %v6442 = vshrl.u32 %v6177, 16
        %v6444 = vrot.slane %v6442, 4
        %v6445 = vshll.u32 %v6177, 16
        %v6447 = vrot.slane %v6445, 5
        %v6448 = vor.u32 %v6444, %v6447
        %v6449 = vsel %vm1086, %v6440, %v6448
        %6466 = vst [vmem:[#allocation5 + $0x28] sm:$0xff] %v6194
        %6467 = vst [vmem:[#allocation5 + $0x70] sm:$0xff] %v6211
        %6468 = vst [vmem:[#allocation5 + $0xb8] sm:$0xff] %v6228
        %6469 = vst [vmem:[#allocation5 + $0x100] sm:$0xff] %v6245
        %6470 = vst [vmem:[#allocation5 + $0x148] sm:$0xff] %v6262
        %6471 = vst [vmem:[#allocation5 + $0x190] sm:$0xff] %v6279
        %6472 = vst [vmem:[#allocation5 + $0x1d8] sm:$0xff] %v6296
        %6473 = vst [vmem:[#allocation5 + $0x220] sm:$0xff] %v6313
        %6474 = vst [vmem:[#allocation5 + $0x268] sm:$0xff] %v6330
        %6475 = vst [vmem:[#allocation5 + $0x2b0] sm:$0xff] %v6347
        %6476 = vst [vmem:[#allocation5 + $0x2f8] sm:$0xff] %v6364
        %6477 = vst [vmem:[#allocation5 + $0x340] sm:$0xff] %v6381
        %6478 = vst [vmem:[#allocation5 + $0x388] sm:$0xff] %v6398
        %6479 = vst [vmem:[#allocation5 + $0x3d0] sm:$0xff] %v6415
        %6480 = vst [vmem:[#allocation5 + $0x418] sm:$0xff] %v6432
        %6481 = vst [vmem:[#allocation5 + $0x460] sm:$0xff] %v6449
        %s6482 = scalar_lea.vmem [#allocation3], 32
        %v6483 = vld [vmem:[%s6482] sm:$0xf8]
        %v6484 = vld [vmem:[%s6482 + $0x8] sm:$0xf]
        %v6485 = vld [vmem:[%s6482 + $0x10] sm:$0xf8]
        %v6486 = vld [vmem:[%s6482 + $0x18] sm:$0xf]
        %v6487 = vld [vmem:[%s6482 + $0x20] sm:$0xf8]
        %v6488 = vld [vmem:[%s6482 + $0x28] sm:$0xf]
        %v6489 = vld [vmem:[%s6482 + $0x30] sm:$0xf8]
        %v6490 = vld [vmem:[%s6482 + $0x38] sm:$0xf]
        %v6491 = vld [vmem:[%s6482 + $0x40] sm:$0xf8]
        %v6492 = vld [vmem:[%s6482 + $0x48] sm:$0xf]
        %v6493 = vld [vmem:[%s6482 + $0x50] sm:$0xf8]
        %v6494 = vld [vmem:[%s6482 + $0x58] sm:$0xf]
        %v6495 = vld [vmem:[%s6482 + $0x60] sm:$0xf8]
        %v6496 = vld [vmem:[%s6482 + $0x68] sm:$0xf]
        %v6497 = vld [vmem:[%s6482 + $0x70] sm:$0xf8]
        %v6498 = vld [vmem:[%s6482 + $0x78] sm:$0xf]
        %v6499 = vld [vmem:[%s6482 + $0x80] sm:$0xf8]
        %v6500 = vld [vmem:[%s6482 + $0x88] sm:$0xf]
        %v6501 = vld [vmem:[%s6482 + $0x90] sm:$0xf8]
        %v6502 = vld [vmem:[%s6482 + $0x98] sm:$0xf]
        %v6503 = vld [vmem:[%s6482 + $0xa0] sm:$0xf8]
        %v6504 = vld [vmem:[%s6482 + $0xa8] sm:$0xf]
        %v6505 = vld [vmem:[%s6482 + $0xb0] sm:$0xf8]
        %v6506 = vld [vmem:[%s6482 + $0xb8] sm:$0xf]
        %v6507 = vld [vmem:[%s6482 + $0xc0] sm:$0xf8]
        %v6508 = vld [vmem:[%s6482 + $0xc8] sm:$0xf]
        %v6509 = vld [vmem:[%s6482 + $0xd0] sm:$0xf8]
        %v6510 = vld [vmem:[%s6482 + $0xd8] sm:$0xf]
        %v6511 = vld [vmem:[%s6482 + $0xe0] sm:$0xf8]
        %v6512 = vld [vmem:[%s6482 + $0xe8] sm:$0xf]
        %v6513 = vld [vmem:[%s6482 + $0xf0] sm:$0xf8]
        %v6514 = vld [vmem:[%s6482 + $0xf8] sm:$0xf]
        %v6516 = vshrl.u32 %v6483, 16
        %v6518 = vrot.slane %v6516, 3
        %v6519 = vshll.u32 %v6483, 16
        %v6521 = vrot.slane %v6519, 4
        %v6522 = vor.u32 %v6518, %v6521
        %v6524 = vshrl.u32 %v6484, 16
        %v6526 = vrot.slane %v6524, 3
        %v6527 = vshll.u32 %v6484, 16
        %v6529 = vrot.slane %v6527, 4
        %v6530 = vor.u32 %v6526, %v6529
        %v6531 = vsel %vm363, %v6522, %v6530
        %v6533 = vshrl.u32 %v6485, 16
        %v6535 = vrot.slane %v6533, 3
        %v6536 = vshll.u32 %v6485, 16
        %v6538 = vrot.slane %v6536, 4
        %v6539 = vor.u32 %v6535, %v6538
        %v6541 = vshrl.u32 %v6486, 16
        %v6543 = vrot.slane %v6541, 3
        %v6544 = vshll.u32 %v6486, 16
        %v6546 = vrot.slane %v6544, 4
        %v6547 = vor.u32 %v6543, %v6546
        %v6548 = vsel %vm363, %v6539, %v6547
        %v6550 = vshrl.u32 %v6487, 16
        %v6552 = vrot.slane %v6550, 3
        %v6553 = vshll.u32 %v6487, 16
        %v6555 = vrot.slane %v6553, 4
        %v6556 = vor.u32 %v6552, %v6555
        %v6558 = vshrl.u32 %v6488, 16
        %v6560 = vrot.slane %v6558, 3
        %v6561 = vshll.u32 %v6488, 16
        %v6563 = vrot.slane %v6561, 4
        %v6564 = vor.u32 %v6560, %v6563
        %v6565 = vsel %vm363, %v6556, %v6564
        %v6567 = vshrl.u32 %v6489, 16
        %v6569 = vrot.slane %v6567, 3
        %v6570 = vshll.u32 %v6489, 16
        %v6572 = vrot.slane %v6570, 4
        %v6573 = vor.u32 %v6569, %v6572
        %v6575 = vshrl.u32 %v6490, 16
        %v6577 = vrot.slane %v6575, 3
        %v6578 = vshll.u32 %v6490, 16
        %v6580 = vrot.slane %v6578, 4
        %v6581 = vor.u32 %v6577, %v6580
        %v6582 = vsel %vm363, %v6573, %v6581
        %v6584 = vshrl.u32 %v6491, 16
        %v6586 = vrot.slane %v6584, 3
        %v6587 = vshll.u32 %v6491, 16
        %v6589 = vrot.slane %v6587, 4
        %v6590 = vor.u32 %v6586, %v6589
        %v6592 = vshrl.u32 %v6492, 16
        %v6594 = vrot.slane %v6592, 3
        %v6595 = vshll.u32 %v6492, 16
        %v6597 = vrot.slane %v6595, 4
        %v6598 = vor.u32 %v6594, %v6597
        %v6599 = vsel %vm363, %v6590, %v6598
        %v6601 = vshrl.u32 %v6493, 16
        %v6603 = vrot.slane %v6601, 3
        %v6604 = vshll.u32 %v6493, 16
        %v6606 = vrot.slane %v6604, 4
        %v6607 = vor.u32 %v6603, %v6606
        %v6609 = vshrl.u32 %v6494, 16
        %v6611 = vrot.slane %v6609, 3
        %v6612 = vshll.u32 %v6494, 16
        %v6614 = vrot.slane %v6612, 4
        %v6615 = vor.u32 %v6611, %v6614
        %v6616 = vsel %vm363, %v6607, %v6615
        %v6618 = vshrl.u32 %v6495, 16
        %v6620 = vrot.slane %v6618, 3
        %v6621 = vshll.u32 %v6495, 16
        %v6623 = vrot.slane %v6621, 4
        %v6624 = vor.u32 %v6620, %v6623
        %v6626 = vshrl.u32 %v6496, 16
        %v6628 = vrot.slane %v6626, 3
        %v6629 = vshll.u32 %v6496, 16
        %v6631 = vrot.slane %v6629, 4
        %v6632 = vor.u32 %v6628, %v6631
        %v6633 = vsel %vm363, %v6624, %v6632
        %v6635 = vshrl.u32 %v6497, 16
        %v6637 = vrot.slane %v6635, 3
        %v6638 = vshll.u32 %v6497, 16
        %v6640 = vrot.slane %v6638, 4
        %v6641 = vor.u32 %v6637, %v6640
        %v6643 = vshrl.u32 %v6498, 16
        %v6645 = vrot.slane %v6643, 3
        %v6646 = vshll.u32 %v6498, 16
        %v6648 = vrot.slane %v6646, 4
        %v6649 = vor.u32 %v6645, %v6648
        %v6650 = vsel %vm363, %v6641, %v6649
        %v6652 = vshrl.u32 %v6499, 16
        %v6654 = vrot.slane %v6652, 3
        %v6655 = vshll.u32 %v6499, 16
        %v6657 = vrot.slane %v6655, 4
        %v6658 = vor.u32 %v6654, %v6657
        %v6660 = vshrl.u32 %v6500, 16
        %v6662 = vrot.slane %v6660, 3
        %v6663 = vshll.u32 %v6500, 16
        %v6665 = vrot.slane %v6663, 4
        %v6666 = vor.u32 %v6662, %v6665
        %v6667 = vsel %vm363, %v6658, %v6666
        %v6669 = vshrl.u32 %v6501, 16
        %v6671 = vrot.slane %v6669, 3
        %v6672 = vshll.u32 %v6501, 16
        %v6674 = vrot.slane %v6672, 4
        %v6675 = vor.u32 %v6671, %v6674
        %v6677 = vshrl.u32 %v6502, 16
        %v6679 = vrot.slane %v6677, 3
        %v6680 = vshll.u32 %v6502, 16
        %v6682 = vrot.slane %v6680, 4
        %v6683 = vor.u32 %v6679, %v6682
        %v6684 = vsel %vm363, %v6675, %v6683
        %v6686 = vshrl.u32 %v6503, 16
        %v6688 = vrot.slane %v6686, 3
        %v6689 = vshll.u32 %v6503, 16
        %v6691 = vrot.slane %v6689, 4
        %v6692 = vor.u32 %v6688, %v6691
        %v6694 = vshrl.u32 %v6504, 16
        %v6696 = vrot.slane %v6694, 3
        %v6697 = vshll.u32 %v6504, 16
        %v6699 = vrot.slane %v6697, 4
        %v6700 = vor.u32 %v6696, %v6699
        %v6701 = vsel %vm363, %v6692, %v6700
        %v6703 = vshrl.u32 %v6505, 16
        %v6705 = vrot.slane %v6703, 3
        %v6706 = vshll.u32 %v6505, 16
        %v6708 = vrot.slane %v6706, 4
        %v6709 = vor.u32 %v6705, %v6708
        %v6711 = vshrl.u32 %v6506, 16
        %v6713 = vrot.slane %v6711, 3
        %v6714 = vshll.u32 %v6506, 16
        %v6716 = vrot.slane %v6714, 4
        %v6717 = vor.u32 %v6713, %v6716
        %v6718 = vsel %vm363, %v6709, %v6717
        %v6720 = vshrl.u32 %v6507, 16
        %v6722 = vrot.slane %v6720, 3
        %v6723 = vshll.u32 %v6507, 16
        %v6725 = vrot.slane %v6723, 4
        %v6726 = vor.u32 %v6722, %v6725
        %v6728 = vshrl.u32 %v6508, 16
        %v6730 = vrot.slane %v6728, 3
        %v6731 = vshll.u32 %v6508, 16
        %v6733 = vrot.slane %v6731, 4
        %v6734 = vor.u32 %v6730, %v6733
        %v6735 = vsel %vm363, %v6726, %v6734
        %v6737 = vshrl.u32 %v6509, 16
        %v6739 = vrot.slane %v6737, 3
        %v6740 = vshll.u32 %v6509, 16
        %v6742 = vrot.slane %v6740, 4
        %v6743 = vor.u32 %v6739, %v6742
        %v6745 = vshrl.u32 %v6510, 16
        %v6747 = vrot.slane %v6745, 3
        %v6748 = vshll.u32 %v6510, 16
        %v6750 = vrot.slane %v6748, 4
        %v6751 = vor.u32 %v6747, %v6750
        %v6752 = vsel %vm363, %v6743, %v6751
        %v6754 = vshrl.u32 %v6511, 16
        %v6756 = vrot.slane %v6754, 3
        %v6757 = vshll.u32 %v6511, 16
        %v6759 = vrot.slane %v6757, 4
        %v6760 = vor.u32 %v6756, %v6759
        %v6762 = vshrl.u32 %v6512, 16
        %v6764 = vrot.slane %v6762, 3
        %v6765 = vshll.u32 %v6512, 16
        %v6767 = vrot.slane %v6765, 4
        %v6768 = vor.u32 %v6764, %v6767
        %v6769 = vsel %vm363, %v6760, %v6768
        %v6771 = vshrl.u32 %v6513, 16
        %v6773 = vrot.slane %v6771, 3
        %v6774 = vshll.u32 %v6513, 16
        %v6776 = vrot.slane %v6774, 4
        %v6777 = vor.u32 %v6773, %v6776
        %v6779 = vshrl.u32 %v6514, 16
        %v6781 = vrot.slane %v6779, 3
        %v6782 = vshll.u32 %v6514, 16
        %v6784 = vrot.slane %v6782, 4
        %v6785 = vor.u32 %v6781, %v6784
        %v6786 = vsel %vm363, %v6777, %v6785
        %6803 = vst [vmem:[#allocation5 + $0x30] sm:$0xff] %v6531
        %6804 = vst [vmem:[#allocation5 + $0x78] sm:$0xff] %v6548
        %6805 = vst [vmem:[#allocation5 + $0xc0] sm:$0xff] %v6565
        %6806 = vst [vmem:[#allocation5 + $0x108] sm:$0xff] %v6582
        %6807 = vst [vmem:[#allocation5 + $0x150] sm:$0xff] %v6599
        %6808 = vst [vmem:[#allocation5 + $0x198] sm:$0xff] %v6616
        %6809 = vst [vmem:[#allocation5 + $0x1e0] sm:$0xff] %v6633
        %6810 = vst [vmem:[#allocation5 + $0x228] sm:$0xff] %v6650
        %6811 = vst [vmem:[#allocation5 + $0x270] sm:$0xff] %v6667
        %6812 = vst [vmem:[#allocation5 + $0x2b8] sm:$0xff] %v6684
        %6813 = vst [vmem:[#allocation5 + $0x300] sm:$0xff] %v6701
        %6814 = vst [vmem:[#allocation5 + $0x348] sm:$0xff] %v6718
        %6815 = vst [vmem:[#allocation5 + $0x390] sm:$0xff] %v6735
        %6816 = vst [vmem:[#allocation5 + $0x3d8] sm:$0xff] %v6752
        %6817 = vst [vmem:[#allocation5 + $0x420] sm:$0xff] %v6769
        %6818 = vst [vmem:[#allocation5 + $0x468] sm:$0xff] %v6786
        %v6819 = vld [vmem:[%s6482] sm:$0xf0]
        %v6820 = vld [vmem:[%s6482 + $0x8] sm:$0xf]
        %v6821 = vld [vmem:[%s6482 + $0x10] sm:$0xf0]
        %v6822 = vld [vmem:[%s6482 + $0x18] sm:$0xf]
        %v6823 = vld [vmem:[%s6482 + $0x20] sm:$0xf0]
        %v6824 = vld [vmem:[%s6482 + $0x28] sm:$0xf]
        %v6825 = vld [vmem:[%s6482 + $0x30] sm:$0xf0]
        %v6826 = vld [vmem:[%s6482 + $0x38] sm:$0xf]
        %v6827 = vld [vmem:[%s6482 + $0x40] sm:$0xf0]
        %v6828 = vld [vmem:[%s6482 + $0x48] sm:$0xf]
        %v6829 = vld [vmem:[%s6482 + $0x50] sm:$0xf0]
        %v6830 = vld [vmem:[%s6482 + $0x58] sm:$0xf]
        %v6831 = vld [vmem:[%s6482 + $0x60] sm:$0xf0]
        %v6832 = vld [vmem:[%s6482 + $0x68] sm:$0xf]
        %v6833 = vld [vmem:[%s6482 + $0x70] sm:$0xf0]
        %v6834 = vld [vmem:[%s6482 + $0x78] sm:$0xf]
        %v6835 = vld [vmem:[%s6482 + $0x80] sm:$0xf0]
        %v6836 = vld [vmem:[%s6482 + $0x88] sm:$0xf]
        %v6837 = vld [vmem:[%s6482 + $0x90] sm:$0xf0]
        %v6838 = vld [vmem:[%s6482 + $0x98] sm:$0xf]
        %v6839 = vld [vmem:[%s6482 + $0xa0] sm:$0xf0]
        %v6840 = vld [vmem:[%s6482 + $0xa8] sm:$0xf]
        %v6841 = vld [vmem:[%s6482 + $0xb0] sm:$0xf0]
        %v6842 = vld [vmem:[%s6482 + $0xb8] sm:$0xf]
        %v6843 = vld [vmem:[%s6482 + $0xc0] sm:$0xf0]
        %v6844 = vld [vmem:[%s6482 + $0xc8] sm:$0xf]
        %v6845 = vld [vmem:[%s6482 + $0xd0] sm:$0xf0]
        %v6846 = vld [vmem:[%s6482 + $0xd8] sm:$0xf]
        %v6847 = vld [vmem:[%s6482 + $0xe0] sm:$0xf0]
        %v6848 = vld [vmem:[%s6482 + $0xe8] sm:$0xf]
        %v6849 = vld [vmem:[%s6482 + $0xf0] sm:$0xf0]
        %v6850 = vld [vmem:[%s6482 + $0xf8] sm:$0xf]
        %v6883 = vrot.slane %v6819, 4
        %v6884 = vrot.slane %v6820, 4
        %v6885 = vsel %vm973, %v6883, %v6884
        %v6886 = vrot.slane %v6821, 4
        %v6887 = vrot.slane %v6822, 4
        %v6888 = vsel %vm973, %v6886, %v6887
        %v6889 = vrot.slane %v6823, 4
        %v6890 = vrot.slane %v6824, 4
        %v6891 = vsel %vm973, %v6889, %v6890
        %v6892 = vrot.slane %v6825, 4
        %v6893 = vrot.slane %v6826, 4
        %v6894 = vsel %vm973, %v6892, %v6893
        %v6895 = vrot.slane %v6827, 4
        %v6896 = vrot.slane %v6828, 4
        %v6897 = vsel %vm973, %v6895, %v6896
        %v6898 = vrot.slane %v6829, 4
        %v6899 = vrot.slane %v6830, 4
        %v6900 = vsel %vm973, %v6898, %v6899
        %v6901 = vrot.slane %v6831, 4
        %v6902 = vrot.slane %v6832, 4
        %v6903 = vsel %vm973, %v6901, %v6902
        %v6904 = vrot.slane %v6833, 4
        %v6905 = vrot.slane %v6834, 4
        %v6906 = vsel %vm973, %v6904, %v6905
        %v6907 = vrot.slane %v6835, 4
        %v6908 = vrot.slane %v6836, 4
        %v6909 = vsel %vm973, %v6907, %v6908
        %v6910 = vrot.slane %v6837, 4
        %v6911 = vrot.slane %v6838, 4
        %v6912 = vsel %vm973, %v6910, %v6911
        %v6913 = vrot.slane %v6839, 4
        %v6914 = vrot.slane %v6840, 4
        %v6915 = vsel %vm973, %v6913, %v6914
        %v6916 = vrot.slane %v6841, 4
        %v6917 = vrot.slane %v6842, 4
        %v6918 = vsel %vm973, %v6916, %v6917
        %v6919 = vrot.slane %v6843, 4
        %v6920 = vrot.slane %v6844, 4
        %v6921 = vsel %vm973, %v6919, %v6920
        %v6922 = vrot.slane %v6845, 4
        %v6923 = vrot.slane %v6846, 4
        %v6924 = vsel %vm973, %v6922, %v6923
        %v6925 = vrot.slane %v6847, 4
        %v6926 = vrot.slane %v6848, 4
        %v6927 = vsel %vm973, %v6925, %v6926
        %v6928 = vrot.slane %v6849, 4
        %v6929 = vrot.slane %v6850, 4
        %v6930 = vsel %vm973, %v6928, %v6929
        %6947 = vst [vmem:[#allocation5 + $0x38] sm:$0xff] %v6885
        %6948 = vst [vmem:[#allocation5 + $0x80] sm:$0xff] %v6888
        %6949 = vst [vmem:[#allocation5 + $0xc8] sm:$0xff] %v6891
        %6950 = vst [vmem:[#allocation5 + $0x110] sm:$0xff] %v6894
        %6951 = vst [vmem:[#allocation5 + $0x158] sm:$0xff] %v6897
        %6952 = vst [vmem:[#allocation5 + $0x1a0] sm:$0xff] %v6900
        %6953 = vst [vmem:[#allocation5 + $0x1e8] sm:$0xff] %v6903
        %6954 = vst [vmem:[#allocation5 + $0x230] sm:$0xff] %v6906
        %6955 = vst [vmem:[#allocation5 + $0x278] sm:$0xff] %v6909
        %6956 = vst [vmem:[#allocation5 + $0x2c0] sm:$0xff] %v6912
        %6957 = vst [vmem:[#allocation5 + $0x308] sm:$0xff] %v6915
        %6958 = vst [vmem:[#allocation5 + $0x350] sm:$0xff] %v6918
        %6959 = vst [vmem:[#allocation5 + $0x398] sm:$0xff] %v6921
        %6960 = vst [vmem:[#allocation5 + $0x3e0] sm:$0xff] %v6924
        %6961 = vst [vmem:[#allocation5 + $0x428] sm:$0xff] %v6927
        %6962 = vst [vmem:[#allocation5 + $0x470] sm:$0xff] %v6930
        %v6963 = vld [vmem:[%s6482] sm:$0xf0]
        %v6964 = vld [vmem:[%s6482 + $0x8] sm:$0x1f]
        %v6965 = vld [vmem:[%s6482 + $0x10] sm:$0xf0]
        %v6966 = vld [vmem:[%s6482 + $0x18] sm:$0x1f]
        %v6967 = vld [vmem:[%s6482 + $0x20] sm:$0xf0]
        %v6968 = vld [vmem:[%s6482 + $0x28] sm:$0x1f]
        %v6969 = vld [vmem:[%s6482 + $0x30] sm:$0xf0]
        %v6970 = vld [vmem:[%s6482 + $0x38] sm:$0x1f]
        %v6971 = vld [vmem:[%s6482 + $0x40] sm:$0xf0]
        %v6972 = vld [vmem:[%s6482 + $0x48] sm:$0x1f]
        %v6973 = vld [vmem:[%s6482 + $0x50] sm:$0xf0]
        %v6974 = vld [vmem:[%s6482 + $0x58] sm:$0x1f]
        %v6975 = vld [vmem:[%s6482 + $0x60] sm:$0xf0]
        %v6976 = vld [vmem:[%s6482 + $0x68] sm:$0x1f]
        %v6977 = vld [vmem:[%s6482 + $0x70] sm:$0xf0]
        %v6978 = vld [vmem:[%s6482 + $0x78] sm:$0x1f]
        %v6979 = vld [vmem:[%s6482 + $0x80] sm:$0xf0]
        %v6980 = vld [vmem:[%s6482 + $0x88] sm:$0x1f]
        %v6981 = vld [vmem:[%s6482 + $0x90] sm:$0xf0]
        %v6982 = vld [vmem:[%s6482 + $0x98] sm:$0x1f]
        %v6983 = vld [vmem:[%s6482 + $0xa0] sm:$0xf0]
        %v6984 = vld [vmem:[%s6482 + $0xa8] sm:$0x1f]
        %v6985 = vld [vmem:[%s6482 + $0xb0] sm:$0xf0]
        %v6986 = vld [vmem:[%s6482 + $0xb8] sm:$0x1f]
        %v6987 = vld [vmem:[%s6482 + $0xc0] sm:$0xf0]
        %v6988 = vld [vmem:[%s6482 + $0xc8] sm:$0x1f]
        %v6989 = vld [vmem:[%s6482 + $0xd0] sm:$0xf0]
        %v6990 = vld [vmem:[%s6482 + $0xd8] sm:$0x1f]
        %v6991 = vld [vmem:[%s6482 + $0xe0] sm:$0xf0]
        %v6992 = vld [vmem:[%s6482 + $0xe8] sm:$0x1f]
        %v6993 = vld [vmem:[%s6482 + $0xf0] sm:$0xf0]
        %v6994 = vld [vmem:[%s6482 + $0xf8] sm:$0x1f]
        %v6996 = vshrl.u32 %v6963, 16
        %v6998 = vrot.slane %v6996, 4
        %v6999 = vshll.u32 %v6963, 16
        %v7001 = vrot.slane %v6999, 5
        %v7002 = vor.u32 %v6998, %v7001
        %v7004 = vshrl.u32 %v6964, 16
        %v7006 = vrot.slane %v7004, 4
        %v7007 = vshll.u32 %v6964, 16
        %v7009 = vrot.slane %v7007, 5
        %v7010 = vor.u32 %v7006, %v7009
        %v7011 = vsel %vm1086, %v7002, %v7010
        %v7013 = vshrl.u32 %v6965, 16
        %v7015 = vrot.slane %v7013, 4
        %v7016 = vshll.u32 %v6965, 16
        %v7018 = vrot.slane %v7016, 5
        %v7019 = vor.u32 %v7015, %v7018
        %v7021 = vshrl.u32 %v6966, 16
        %v7023 = vrot.slane %v7021, 4
        %v7024 = vshll.u32 %v6966, 16
        %v7026 = vrot.slane %v7024, 5
        %v7027 = vor.u32 %v7023, %v7026
        %v7028 = vsel %vm1086, %v7019, %v7027
        %v7030 = vshrl.u32 %v6967, 16
        %v7032 = vrot.slane %v7030, 4
        %v7033 = vshll.u32 %v6967, 16
        %v7035 = vrot.slane %v7033, 5
        %v7036 = vor.u32 %v7032, %v7035
        %v7038 = vshrl.u32 %v6968, 16
        %v7040 = vrot.slane %v7038, 4
        %v7041 = vshll.u32 %v6968, 16
        %v7043 = vrot.slane %v7041, 5
        %v7044 = vor.u32 %v7040, %v7043
        %v7045 = vsel %vm1086, %v7036, %v7044
        %v7047 = vshrl.u32 %v6969, 16
        %v7049 = vrot.slane %v7047, 4
        %v7050 = vshll.u32 %v6969, 16
        %v7052 = vrot.slane %v7050, 5
        %v7053 = vor.u32 %v7049, %v7052
        %v7055 = vshrl.u32 %v6970, 16
        %v7057 = vrot.slane %v7055, 4
        %v7058 = vshll.u32 %v6970, 16
        %v7060 = vrot.slane %v7058, 5
        %v7061 = vor.u32 %v7057, %v7060
        %v7062 = vsel %vm1086, %v7053, %v7061
        %v7064 = vshrl.u32 %v6971, 16
        %v7066 = vrot.slane %v7064, 4
        %v7067 = vshll.u32 %v6971, 16
        %v7069 = vrot.slane %v7067, 5
        %v7070 = vor.u32 %v7066, %v7069
        %v7072 = vshrl.u32 %v6972, 16
        %v7074 = vrot.slane %v7072, 4
        %v7075 = vshll.u32 %v6972, 16
        %v7077 = vrot.slane %v7075, 5
        %v7078 = vor.u32 %v7074, %v7077
        %v7079 = vsel %vm1086, %v7070, %v7078
        %v7081 = vshrl.u32 %v6973, 16
        %v7083 = vrot.slane %v7081, 4
        %v7084 = vshll.u32 %v6973, 16
        %v7086 = vrot.slane %v7084, 5
        %v7087 = vor.u32 %v7083, %v7086
        %v7089 = vshrl.u32 %v6974, 16
        %v7091 = vrot.slane %v7089, 4
        %v7092 = vshll.u32 %v6974, 16
        %v7094 = vrot.slane %v7092, 5
        %v7095 = vor.u32 %v7091, %v7094
        %v7096 = vsel %vm1086, %v7087, %v7095
        %v7098 = vshrl.u32 %v6975, 16
        %v7100 = vrot.slane %v7098, 4
        %v7101 = vshll.u32 %v6975, 16
        %v7103 = vrot.slane %v7101, 5
        %v7104 = vor.u32 %v7100, %v7103
        %v7106 = vshrl.u32 %v6976, 16
        %v7108 = vrot.slane %v7106, 4
        %v7109 = vshll.u32 %v6976, 16
        %v7111 = vrot.slane %v7109, 5
        %v7112 = vor.u32 %v7108, %v7111
        %v7113 = vsel %vm1086, %v7104, %v7112
        %v7115 = vshrl.u32 %v6977, 16
        %v7117 = vrot.slane %v7115, 4
        %v7118 = vshll.u32 %v6977, 16
        %v7120 = vrot.slane %v7118, 5
        %v7121 = vor.u32 %v7117, %v7120
        %v7123 = vshrl.u32 %v6978, 16
        %v7125 = vrot.slane %v7123, 4
        %v7126 = vshll.u32 %v6978, 16
        %v7128 = vrot.slane %v7126, 5
        %v7129 = vor.u32 %v7125, %v7128
        %v7130 = vsel %vm1086, %v7121, %v7129
        %v7132 = vshrl.u32 %v6979, 16
        %v7134 = vrot.slane %v7132, 4
        %v7135 = vshll.u32 %v6979, 16
        %v7137 = vrot.slane %v7135, 5
        %v7138 = vor.u32 %v7134, %v7137
        %v7140 = vshrl.u32 %v6980, 16
        %v7142 = vrot.slane %v7140, 4
        %v7143 = vshll.u32 %v6980, 16
        %v7145 = vrot.slane %v7143, 5
        %v7146 = vor.u32 %v7142, %v7145
        %v7147 = vsel %vm1086, %v7138, %v7146
        %v7149 = vshrl.u32 %v6981, 16
        %v7151 = vrot.slane %v7149, 4
        %v7152 = vshll.u32 %v6981, 16
        %v7154 = vrot.slane %v7152, 5
        %v7155 = vor.u32 %v7151, %v7154
        %v7157 = vshrl.u32 %v6982, 16
        %v7159 = vrot.slane %v7157, 4
        %v7160 = vshll.u32 %v6982, 16
        %v7162 = vrot.slane %v7160, 5
        %v7163 = vor.u32 %v7159, %v7162
        %v7164 = vsel %vm1086, %v7155, %v7163
        %v7166 = vshrl.u32 %v6983, 16
        %v7168 = vrot.slane %v7166, 4
        %v7169 = vshll.u32 %v6983, 16
        %v7171 = vrot.slane %v7169, 5
        %v7172 = vor.u32 %v7168, %v7171
        %v7174 = vshrl.u32 %v6984, 16
        %v7176 = vrot.slane %v7174, 4
        %v7177 = vshll.u32 %v6984, 16
        %v7179 = vrot.slane %v7177, 5
        %v7180 = vor.u32 %v7176, %v7179
        %v7181 = vsel %vm1086, %v7172, %v7180
        %v7183 = vshrl.u32 %v6985, 16
        %v7185 = vrot.slane %v7183, 4
        %v7186 = vshll.u32 %v6985, 16
        %v7188 = vrot.slane %v7186, 5
        %v7189 = vor.u32 %v7185, %v7188
        %v7191 = vshrl.u32 %v6986, 16
        %v7193 = vrot.slane %v7191, 4
        %v7194 = vshll.u32 %v6986, 16
        %v7196 = vrot.slane %v7194, 5
        %v7197 = vor.u32 %v7193, %v7196
        %v7198 = vsel %vm1086, %v7189, %v7197
        %v7200 = vshrl.u32 %v6987, 16
        %v7202 = vrot.slane %v7200, 4
        %v7203 = vshll.u32 %v6987, 16
        %v7205 = vrot.slane %v7203, 5
        %v7206 = vor.u32 %v7202, %v7205
        %v7208 = vshrl.u32 %v6988, 16
        %v7210 = vrot.slane %v7208, 4
        %v7211 = vshll.u32 %v6988, 16
        %v7213 = vrot.slane %v7211, 5
        %v7214 = vor.u32 %v7210, %v7213
        %v7215 = vsel %vm1086, %v7206, %v7214
        %v7217 = vshrl.u32 %v6989, 16
        %v7219 = vrot.slane %v7217, 4
        %v7220 = vshll.u32 %v6989, 16
        %v7222 = vrot.slane %v7220, 5
        %v7223 = vor.u32 %v7219, %v7222
        %v7225 = vshrl.u32 %v6990, 16
        %v7227 = vrot.slane %v7225, 4
        %v7228 = vshll.u32 %v6990, 16
        %v7230 = vrot.slane %v7228, 5
        %v7231 = vor.u32 %v7227, %v7230
        %v7232 = vsel %vm1086, %v7223, %v7231
        %v7234 = vshrl.u32 %v6991, 16
        %v7236 = vrot.slane %v7234, 4
        %v7237 = vshll.u32 %v6991, 16
        %v7239 = vrot.slane %v7237, 5
        %v7240 = vor.u32 %v7236, %v7239
        %v7242 = vshrl.u32 %v6992, 16
        %v7244 = vrot.slane %v7242, 4
        %v7245 = vshll.u32 %v6992, 16
        %v7247 = vrot.slane %v7245, 5
        %v7248 = vor.u32 %v7244, %v7247
        %v7249 = vsel %vm1086, %v7240, %v7248
        %v7251 = vshrl.u32 %v6993, 16
        %v7253 = vrot.slane %v7251, 4
        %v7254 = vshll.u32 %v6993, 16
        %v7256 = vrot.slane %v7254, 5
        %v7257 = vor.u32 %v7253, %v7256
        %v7259 = vshrl.u32 %v6994, 16
        %v7261 = vrot.slane %v7259, 4
        %v7262 = vshll.u32 %v6994, 16
        %v7264 = vrot.slane %v7262, 5
        %v7265 = vor.u32 %v7261, %v7264
        %v7266 = vsel %vm1086, %v7257, %v7265
        %7283 = vst [vmem:[#allocation5 + $0x40] sm:$0xff] %v7011
        %7284 = vst [vmem:[#allocation5 + $0x88] sm:$0xff] %v7028
        %7285 = vst [vmem:[#allocation5 + $0xd0] sm:$0xff] %v7045
        %7286 = vst [vmem:[#allocation5 + $0x118] sm:$0xff] %v7062
        %7287 = vst [vmem:[#allocation5 + $0x160] sm:$0xff] %v7079
        %7288 = vst [vmem:[#allocation5 + $0x1a8] sm:$0xff] %v7096
        %7289 = vst [vmem:[#allocation5 + $0x1f0] sm:$0xff] %v7113
        %7290 = vst [vmem:[#allocation5 + $0x238] sm:$0xff] %v7130
        %7291 = vst [vmem:[#allocation5 + $0x280] sm:$0xff] %v7147
        %7292 = vst [vmem:[#allocation5 + $0x2c8] sm:$0xff] %v7164
        %7293 = vst [vmem:[#allocation5 + $0x310] sm:$0xff] %v7181
        %7294 = vst [vmem:[#allocation5 + $0x358] sm:$0xff] %v7198
        %7295 = vst [vmem:[#allocation5 + $0x3a0] sm:$0xff] %v7215
        %7296 = vst [vmem:[#allocation5 + $0x3e8] sm:$0xff] %v7232
        %7297 = vst [vmem:[#allocation5 + $0x430] sm:$0xff] %v7249
        %7298 = vst [vmem:[#allocation5 + $0x478] sm:$0xff] %v7266
        %v7299 = vld [vmem:[#allocation5] sm:$0xff]
        %v7300 = vld [vmem:[#allocation5 + $0x8] sm:$0xff]
        %v7301 = vld [vmem:[#allocation5 + $0x10] sm:$0xff]
        %v7302 = vld [vmem:[#allocation5 + $0x18] sm:$0xff]
        %v7303 = vld [vmem:[#allocation5 + $0x20] sm:$0xff]
        %v7304 = vld [vmem:[#allocation5 + $0x28] sm:$0xff]
        %v7305 = vld [vmem:[#allocation5 + $0x30] sm:$0xff]
        %v7306 = vld [vmem:[#allocation5 + $0x38] sm:$0xff]
        %v7307 = vld [vmem:[#allocation5 + $0x40] sm:$0xff]
        %v7308 = vld [vmem:[#allocation5 + $0x48] sm:$0xff]
        %v7309 = vld [vmem:[#allocation5 + $0x50] sm:$0xff]
        %v7310 = vld [vmem:[#allocation5 + $0x58] sm:$0xff]
        %v7311 = vld [vmem:[#allocation5 + $0x60] sm:$0xff]
        %v7312 = vld [vmem:[#allocation5 + $0x68] sm:$0xff]
        %v7313 = vld [vmem:[#allocation5 + $0x70] sm:$0xff]
        %v7314 = vld [vmem:[#allocation5 + $0x78] sm:$0xff]
        %v7315 = vld [vmem:[#allocation5 + $0x80] sm:$0xff]
        %v7316 = vld [vmem:[#allocation5 + $0x88] sm:$0xff]
        %v7317 = vld [vmem:[#allocation5 + $0x90] sm:$0xff]
        %v7318 = vld [vmem:[#allocation5 + $0x98] sm:$0xff]
        %v7319 = vld [vmem:[#allocation5 + $0xa0] sm:$0xff]
        %v7320 = vld [vmem:[#allocation5 + $0xa8] sm:$0xff]
        %v7321 = vld [vmem:[#allocation5 + $0xb0] sm:$0xff]
        %v7322 = vld [vmem:[#allocation5 + $0xb8] sm:$0xff]
        %v7323 = vld [vmem:[#allocation5 + $0xc0] sm:$0xff]
        %v7324 = vld [vmem:[#allocation5 + $0xc8] sm:$0xff]
        %v7325 = vld [vmem:[#allocation5 + $0xd0] sm:$0xff]
        %v7326 = vld [vmem:[#allocation5 + $0xd8] sm:$0xff]
        %v7327 = vld [vmem:[#allocation5 + $0xe0] sm:$0xff]
        %v7328 = vld [vmem:[#allocation5 + $0xe8] sm:$0xff]
        %v7329 = vld [vmem:[#allocation5 + $0xf0] sm:$0xff]
        %v7330 = vld [vmem:[#allocation5 + $0xf8] sm:$0xff]
        %v7331 = vld [vmem:[#allocation5 + $0x100] sm:$0xff]
        %v7332 = vld [vmem:[#allocation5 + $0x108] sm:$0xff]
        %v7333 = vld [vmem:[#allocation5 + $0x110] sm:$0xff]
        %v7334 = vld [vmem:[#allocation5 + $0x118] sm:$0xff]
        %v7335 = vld [vmem:[#allocation5 + $0x120] sm:$0xff]
        %v7336 = vld [vmem:[#allocation5 + $0x128] sm:$0xff]
        %v7337 = vld [vmem:[#allocation5 + $0x130] sm:$0xff]
        %v7338 = vld [vmem:[#allocation5 + $0x138] sm:$0xff]
        %v7339 = vld [vmem:[#allocation5 + $0x140] sm:$0xff]
        %v7340 = vld [vmem:[#allocation5 + $0x148] sm:$0xff]
        %v7341 = vld [vmem:[#allocation5 + $0x150] sm:$0xff]
        %v7342 = vld [vmem:[#allocation5 + $0x158] sm:$0xff]
        %v7343 = vld [vmem:[#allocation5 + $0x160] sm:$0xff]
        %v7344 = vld [vmem:[#allocation5 + $0x168] sm:$0xff]
        %v7345 = vld [vmem:[#allocation5 + $0x170] sm:$0xff]
        %v7346 = vld [vmem:[#allocation5 + $0x178] sm:$0xff]
        %v7347 = vld [vmem:[#allocation5 + $0x180] sm:$0xff]
        %v7348 = vld [vmem:[#allocation5 + $0x188] sm:$0xff]
        %v7349 = vld [vmem:[#allocation5 + $0x190] sm:$0xff]
        %v7350 = vld [vmem:[#allocation5 + $0x198] sm:$0xff]
        %v7351 = vld [vmem:[#allocation5 + $0x1a0] sm:$0xff]
        %v7352 = vld [vmem:[#allocation5 + $0x1a8] sm:$0xff]
        %v7353 = vld [vmem:[#allocation5 + $0x1b0] sm:$0xff]
        %v7354 = vld [vmem:[#allocation5 + $0x1b8] sm:$0xff]
        %v7355 = vld [vmem:[#allocation5 + $0x1c0] sm:$0xff]
        %v7356 = vld [vmem:[#allocation5 + $0x1c8] sm:$0xff]
        %v7357 = vld [vmem:[#allocation5 + $0x1d0] sm:$0xff]
        %v7358 = vld [vmem:[#allocation5 + $0x1d8] sm:$0xff]
        %v7359 = vld [vmem:[#allocation5 + $0x1e0] sm:$0xff]
        %v7360 = vld [vmem:[#allocation5 + $0x1e8] sm:$0xff]
        %v7361 = vld [vmem:[#allocation5 + $0x1f0] sm:$0xff]
        %v7362 = vld [vmem:[#allocation5 + $0x1f8] sm:$0xff]
        %v7363 = vld [vmem:[#allocation5 + $0x200] sm:$0xff]
        %v7364 = vld [vmem:[#allocation5 + $0x208] sm:$0xff]
        %v7365 = vld [vmem:[#allocation5 + $0x210] sm:$0xff]
        %v7366 = vld [vmem:[#allocation5 + $0x218] sm:$0xff]
        %v7367 = vld [vmem:[#allocation5 + $0x220] sm:$0xff]
        %v7368 = vld [vmem:[#allocation5 + $0x228] sm:$0xff]
        %v7369 = vld [vmem:[#allocation5 + $0x230] sm:$0xff]
        %v7370 = vld [vmem:[#allocation5 + $0x238] sm:$0xff]
        %v7371 = vld [vmem:[#allocation5 + $0x240] sm:$0xff]
        %v7372 = vld [vmem:[#allocation5 + $0x248] sm:$0xff]
        %v7373 = vld [vmem:[#allocation5 + $0x250] sm:$0xff]
        %v7374 = vld [vmem:[#allocation5 + $0x258] sm:$0xff]
        %v7375 = vld [vmem:[#allocation5 + $0x260] sm:$0xff]
        %v7376 = vld [vmem:[#allocation5 + $0x268] sm:$0xff]
        %v7377 = vld [vmem:[#allocation5 + $0x270] sm:$0xff]
        %v7378 = vld [vmem:[#allocation5 + $0x278] sm:$0xff]
        %v7379 = vld [vmem:[#allocation5 + $0x280] sm:$0xff]
        %v7380 = vld [vmem:[#allocation5 + $0x288] sm:$0xff]
        %v7381 = vld [vmem:[#allocation5 + $0x290] sm:$0xff]
        %v7382 = vld [vmem:[#allocation5 + $0x298] sm:$0xff]
        %v7383 = vld [vmem:[#allocation5 + $0x2a0] sm:$0xff]
        %v7384 = vld [vmem:[#allocation5 + $0x2a8] sm:$0xff]
        %v7385 = vld [vmem:[#allocation5 + $0x2b0] sm:$0xff]
        %v7386 = vld [vmem:[#allocation5 + $0x2b8] sm:$0xff]
        %v7387 = vld [vmem:[#allocation5 + $0x2c0] sm:$0xff]
        %v7388 = vld [vmem:[#allocation5 + $0x2c8] sm:$0xff]
        %v7389 = vld [vmem:[#allocation5 + $0x2d0] sm:$0xff]
        %v7390 = vld [vmem:[#allocation5 + $0x2d8] sm:$0xff]
        %v7391 = vld [vmem:[#allocation5 + $0x2e0] sm:$0xff]
        %v7392 = vld [vmem:[#allocation5 + $0x2e8] sm:$0xff]
        %v7393 = vld [vmem:[#allocation5 + $0x2f0] sm:$0xff]
        %v7394 = vld [vmem:[#allocation5 + $0x2f8] sm:$0xff]
        %v7395 = vld [vmem:[#allocation5 + $0x300] sm:$0xff]
        %v7396 = vld [vmem:[#allocation5 + $0x308] sm:$0xff]
        %v7397 = vld [vmem:[#allocation5 + $0x310] sm:$0xff]
        %v7398 = vld [vmem:[#allocation5 + $0x318] sm:$0xff]
        %v7399 = vld [vmem:[#allocation5 + $0x320] sm:$0xff]
        %v7400 = vld [vmem:[#allocation5 + $0x328] sm:$0xff]
        %v7401 = vld [vmem:[#allocation5 + $0x330] sm:$0xff]
        %v7402 = vld [vmem:[#allocation5 + $0x338] sm:$0xff]
        %v7403 = vld [vmem:[#allocation5 + $0x340] sm:$0xff]
        %v7404 = vld [vmem:[#allocation5 + $0x348] sm:$0xff]
        %v7405 = vld [vmem:[#allocation5 + $0x350] sm:$0xff]
        %v7406 = vld [vmem:[#allocation5 + $0x358] sm:$0xff]
        %v7407 = vld [vmem:[#allocation5 + $0x360] sm:$0xff]
        %v7408 = vld [vmem:[#allocation5 + $0x368] sm:$0xff]
        %v7409 = vld [vmem:[#allocation5 + $0x370] sm:$0xff]
        %v7410 = vld [vmem:[#allocation5 + $0x378] sm:$0xff]
        %v7411 = vld [vmem:[#allocation5 + $0x380] sm:$0xff]
        %v7412 = vld [vmem:[#allocation5 + $0x388] sm:$0xff]
        %v7413 = vld [vmem:[#allocation5 + $0x390] sm:$0xff]
        %v7414 = vld [vmem:[#allocation5 + $0x398] sm:$0xff]
        %v7415 = vld [vmem:[#allocation5 + $0x3a0] sm:$0xff]
        %v7416 = vld [vmem:[#allocation5 + $0x3a8] sm:$0xff]
        %v7417 = vld [vmem:[#allocation5 + $0x3b0] sm:$0xff]
        %v7418 = vld [vmem:[#allocation5 + $0x3b8] sm:$0xff]
        %v7419 = vld [vmem:[#allocation5 + $0x3c0] sm:$0xff]
        %v7420 = vld [vmem:[#allocation5 + $0x3c8] sm:$0xff]
        %v7421 = vld [vmem:[#allocation5 + $0x3d0] sm:$0xff]
        %v7422 = vld [vmem:[#allocation5 + $0x3d8] sm:$0xff]
        %v7423 = vld [vmem:[#allocation5 + $0x3e0] sm:$0xff]
        %v7424 = vld [vmem:[#allocation5 + $0x3e8] sm:$0xff]
        %v7425 = vld [vmem:[#allocation5 + $0x3f0] sm:$0xff]
        %v7426 = vld [vmem:[#allocation5 + $0x3f8] sm:$0xff]
        %v7427 = vld [vmem:[#allocation5 + $0x400] sm:$0xff]
        %v7428 = vld [vmem:[#allocation5 + $0x408] sm:$0xff]
        %v7429 = vld [vmem:[#allocation5 + $0x410] sm:$0xff]
        %v7430 = vld [vmem:[#allocation5 + $0x418] sm:$0xff]
        %v7431 = vld [vmem:[#allocation5 + $0x420] sm:$0xff]
        %v7432 = vld [vmem:[#allocation5 + $0x428] sm:$0xff]
        %v7433 = vld [vmem:[#allocation5 + $0x430] sm:$0xff]
        %v7434 = vld [vmem:[#allocation5 + $0x438] sm:$0xff]
        %v7435 = vld [vmem:[#allocation5 + $0x440] sm:$0xff]
        %v7436 = vld [vmem:[#allocation5 + $0x448] sm:$0xff]
        %v7437 = vld [vmem:[#allocation5 + $0x450] sm:$0xff]
        %v7438 = vld [vmem:[#allocation5 + $0x458] sm:$0xff]
        %v7439 = vld [vmem:[#allocation5 + $0x460] sm:$0xff]
        %v7440 = vld [vmem:[#allocation5 + $0x468] sm:$0xff]
        %v7441 = vld [vmem:[#allocation5 + $0x470] sm:$0xff]
        %v7442 = vld [vmem:[#allocation5 + $0x478] sm:$0xff]
        %v7443 = vld [vmem:[#allocation11] sm:$0xf]
        %v7444 = vld [vmem:[#allocation11 + $0x4] sm:$0xf]
        %v7445 = vld [vmem:[#allocation11 + $0x8] sm:$0xf]
        %v7446 = vld [vmem:[#allocation11 + $0xc] sm:$0xf]
        %v7447 = vld [vmem:[#allocation11 + $0x10] sm:$0xf]
        %v7448 = vld [vmem:[#allocation11 + $0x14] sm:$0xf]
        %v7449 = vld [vmem:[#allocation11 + $0x18] sm:$0xf]
        %v7450 = vld [vmem:[#allocation11 + $0x1c] sm:$0xf]
        %v7451 = vld [vmem:[#allocation11 + $0x20] sm:$0xf]
        %v7452 = vld [vmem:[#allocation11 + $0x24] sm:$0xf]
        %v7453 = vld [vmem:[#allocation11 + $0x28] sm:$0xf]
        %v7454 = vld [vmem:[#allocation11 + $0x2c] sm:$0xf]
        %v7455 = vld [vmem:[#allocation11 + $0x30] sm:$0xf]
        %v7456 = vld [vmem:[#allocation11 + $0x34] sm:$0xf]
        %v7457 = vld [vmem:[#allocation11 + $0x38] sm:$0xf]
        %v7458 = vld [vmem:[#allocation11 + $0x3c] sm:$0xf]
        %v7459 = vld [vmem:[#allocation11 + $0x40] sm:$0xf]
        %v7460 = vld [vmem:[#allocation11 + $0x44] sm:$0xf]
        %v7461 = vld [vmem:[#allocation11 + $0x48] sm:$0xf]
        %v7462 = vld [vmem:[#allocation11 + $0x4c] sm:$0xf]
        %v7463 = vld [vmem:[#allocation11 + $0x50] sm:$0xf]
        %v7464 = vld [vmem:[#allocation11 + $0x54] sm:$0xf]
        %v7465 = vld [vmem:[#allocation11 + $0x58] sm:$0xf]
        %v7466 = vld [vmem:[#allocation11 + $0x5c] sm:$0xf]
        %v7467 = vld [vmem:[#allocation11 + $0x60] sm:$0xf]
        %v7468 = vld [vmem:[#allocation11 + $0x64] sm:$0xf]
        %v7469 = vld [vmem:[#allocation11 + $0x68] sm:$0xf]
        %v7470 = vld [vmem:[#allocation11 + $0x6c] sm:$0xf]
        %v7471 = vld [vmem:[#allocation11 + $0x70] sm:$0xf]
        %v7472 = vld [vmem:[#allocation11 + $0x74] sm:$0xf]
        %v7473 = vld [vmem:[#allocation11 + $0x78] sm:$0xf]
        %v7474 = vld [vmem:[#allocation11 + $0x7c] sm:$0xf]
        %v7475 = vld [vmem:[#allocation11 + $0x80] sm:$0xf]
        %v7476 = vld [vmem:[#allocation11 + $0x84] sm:$0xf]
        %v7477 = vld [vmem:[#allocation11 + $0x88] sm:$0xf]
        %v7478 = vld [vmem:[#allocation11 + $0x8c] sm:$0xf]
        %v7479 = vld [vmem:[#allocation11 + $0x90] sm:$0xf]
        %v7480 = vld [vmem:[#allocation11 + $0x94] sm:$0xf]
        %v7481 = vld [vmem:[#allocation11 + $0x98] sm:$0xf]
        %v7482 = vld [vmem:[#allocation11 + $0x9c] sm:$0xf]
        %v7483 = vld [vmem:[#allocation11 + $0xa0] sm:$0xf]
        %v7484 = vld [vmem:[#allocation11 + $0xa4] sm:$0xf]
        %v7485 = vld [vmem:[#allocation11 + $0xa8] sm:$0xf]
        %v7486 = vld [vmem:[#allocation11 + $0xac] sm:$0xf]
        %v7487 = vld [vmem:[#allocation11 + $0xb0] sm:$0xf]
        %v7488 = vld [vmem:[#allocation11 + $0xb4] sm:$0xf]
        %v7489 = vld [vmem:[#allocation11 + $0xb8] sm:$0xf]
        %v7490 = vld [vmem:[#allocation11 + $0xbc] sm:$0xf]
        %v7491 = vld [vmem:[#allocation11 + $0xc0] sm:$0xf]
        %v7492 = vld [vmem:[#allocation11 + $0xc4] sm:$0xf]
        %v7493 = vld [vmem:[#allocation11 + $0xc8] sm:$0xf]
        %v7494 = vld [vmem:[#allocation11 + $0xcc] sm:$0xf]
        %v7495 = vld [vmem:[#allocation11 + $0xd0] sm:$0xf]
        %v7496 = vld [vmem:[#allocation11 + $0xd4] sm:$0xf]
        %v7497 = vld [vmem:[#allocation11 + $0xd8] sm:$0xf]
        %v7498 = vld [vmem:[#allocation11 + $0xdc] sm:$0xf]
        %v7499 = vld [vmem:[#allocation11 + $0xe0] sm:$0xf]
        %v7500 = vld [vmem:[#allocation11 + $0xe4] sm:$0xf]
        %v7501 = vld [vmem:[#allocation11 + $0xe8] sm:$0xf]
        %v7502 = vld [vmem:[#allocation11 + $0xec] sm:$0xf]
        %v7503 = vld [vmem:[#allocation11 + $0xf0] sm:$0xf]
        %v7504 = vld [vmem:[#allocation11 + $0xf4] sm:$0xf]
        %v7505 = vld [vmem:[#allocation11 + $0xf8] sm:$0xf]
        %v7506 = vld [vmem:[#allocation11 + $0xfc] sm:$0xf]
        %v7507 = vld [vmem:[#allocation11 + $0x100] sm:$0xf]
        %v7508 = vld [vmem:[#allocation11 + $0x104] sm:$0xf]
        %v7509 = vld [vmem:[#allocation11 + $0x108] sm:$0xf]
        %v7510 = vld [vmem:[#allocation11 + $0x10c] sm:$0xf]
        %v7511 = vld [vmem:[#allocation11 + $0x110] sm:$0xf]
        %v7512 = vld [vmem:[#allocation11 + $0x114] sm:$0xf]
        %v7513 = vld [vmem:[#allocation11 + $0x118] sm:$0xf]
        %v7514 = vld [vmem:[#allocation11 + $0x11c] sm:$0xf]
        %v7515 = vld [vmem:[#allocation11 + $0x120] sm:$0xf]
        %v7516 = vld [vmem:[#allocation11 + $0x124] sm:$0xf]
        %v7517 = vld [vmem:[#allocation11 + $0x128] sm:$0xf]
        %v7518 = vld [vmem:[#allocation11 + $0x12c] sm:$0xf]
        %v7519 = vld [vmem:[#allocation11 + $0x130] sm:$0xf]
        %v7520 = vld [vmem:[#allocation11 + $0x134] sm:$0xf]
        %v7521 = vld [vmem:[#allocation11 + $0x138] sm:$0xf]
        %v7522 = vld [vmem:[#allocation11 + $0x13c] sm:$0xf]
        %v7523 = vld [vmem:[#allocation11 + $0x140] sm:$0xf]
        %v7524 = vld [vmem:[#allocation11 + $0x144] sm:$0xf]
        %v7525 = vld [vmem:[#allocation11 + $0x148] sm:$0xf]
        %v7526 = vld [vmem:[#allocation11 + $0x14c] sm:$0xf]
        %v7527 = vld [vmem:[#allocation11 + $0x150] sm:$0xf]
        %v7528 = vld [vmem:[#allocation11 + $0x154] sm:$0xf]
        %v7529 = vld [vmem:[#allocation11 + $0x158] sm:$0xf]
        %v7530 = vld [vmem:[#allocation11 + $0x15c] sm:$0xf]
        %v7531 = vld [vmem:[#allocation11 + $0x160] sm:$0xf]
        %v7532 = vld [vmem:[#allocation11 + $0x164] sm:$0xf]
        %v7533 = vld [vmem:[#allocation11 + $0x168] sm:$0xf]
        %v7534 = vld [vmem:[#allocation11 + $0x16c] sm:$0xf]
        %v7535 = vld [vmem:[#allocation11 + $0x170] sm:$0xf]
        %v7536 = vld [vmem:[#allocation11 + $0x174] sm:$0xf]
        %v7537 = vld [vmem:[#allocation11 + $0x178] sm:$0xf]
        %v7538 = vld [vmem:[#allocation11 + $0x17c] sm:$0xf]
        %v7539 = vld [vmem:[#allocation11 + $0x180] sm:$0xf]
        %v7540 = vld [vmem:[#allocation11 + $0x184] sm:$0xf]
        %v7541 = vld [vmem:[#allocation11 + $0x188] sm:$0xf]
        %v7542 = vld [vmem:[#allocation11 + $0x18c] sm:$0xf]
        %v7543 = vld [vmem:[#allocation11 + $0x190] sm:$0xf]
        %v7544 = vld [vmem:[#allocation11 + $0x194] sm:$0xf]
        %v7545 = vld [vmem:[#allocation11 + $0x198] sm:$0xf]
        %v7546 = vld [vmem:[#allocation11 + $0x19c] sm:$0xf]
        %v7547 = vld [vmem:[#allocation11 + $0x1a0] sm:$0xf]
        %v7548 = vld [vmem:[#allocation11 + $0x1a4] sm:$0xf]
        %v7549 = vld [vmem:[#allocation11 + $0x1a8] sm:$0xf]
        %v7550 = vld [vmem:[#allocation11 + $0x1ac] sm:$0xf]
        %v7551 = vld [vmem:[#allocation11 + $0x1b0] sm:$0xf]
        %v7552 = vld [vmem:[#allocation11 + $0x1b4] sm:$0xf]
        %v7553 = vld [vmem:[#allocation11 + $0x1b8] sm:$0xf]
        %v7554 = vld [vmem:[#allocation11 + $0x1bc] sm:$0xf]
        %v7555 = vld [vmem:[#allocation11 + $0x1c0] sm:$0xf]
        %v7556 = vld [vmem:[#allocation11 + $0x1c4] sm:$0xf]
        %v7557 = vld [vmem:[#allocation11 + $0x1c8] sm:$0xf]
        %v7558 = vld [vmem:[#allocation11 + $0x1cc] sm:$0xf]
        %v7559 = vld [vmem:[#allocation11 + $0x1d0] sm:$0xf]
        %v7560 = vld [vmem:[#allocation11 + $0x1d4] sm:$0xf]
        %v7561 = vld [vmem:[#allocation11 + $0x1d8] sm:$0xf]
        %v7562 = vld [vmem:[#allocation11 + $0x1dc] sm:$0xf]
        %v7563 = vld [vmem:[#allocation11 + $0x1e0] sm:$0xf]
        %v7564 = vld [vmem:[#allocation11 + $0x1e4] sm:$0xf]
        %v7565 = vld [vmem:[#allocation11 + $0x1e8] sm:$0xf]
        %v7566 = vld [vmem:[#allocation11 + $0x1ec] sm:$0xf]
        %v7567 = vld [vmem:[#allocation11 + $0x1f0] sm:$0xf]
        %v7568 = vld [vmem:[#allocation11 + $0x1f4] sm:$0xf]
        %v7569 = vld [vmem:[#allocation11 + $0x1f8] sm:$0xf]
        %v7570 = vld [vmem:[#allocation11 + $0x1fc] sm:$0xf]
        %v7571 = vld [vmem:[#allocation11 + $0x200] sm:$0xf]
        %v7572 = vld [vmem:[#allocation11 + $0x204] sm:$0xf]
        %v7573 = vld [vmem:[#allocation11 + $0x208] sm:$0xf]
        %v7574 = vld [vmem:[#allocation11 + $0x20c] sm:$0xf]
        %v7575 = vld [vmem:[#allocation11 + $0x210] sm:$0xf]
        %v7576 = vld [vmem:[#allocation11 + $0x214] sm:$0xf]
        %v7577 = vld [vmem:[#allocation11 + $0x218] sm:$0xf]
        %v7578 = vld [vmem:[#allocation11 + $0x21c] sm:$0xf]
        %v7579 = vld [vmem:[#allocation11 + $0x220] sm:$0xf]
        %v7580 = vld [vmem:[#allocation11 + $0x224] sm:$0xf]
        %v7581 = vld [vmem:[#allocation11 + $0x228] sm:$0xf]
        %v7582 = vld [vmem:[#allocation11 + $0x22c] sm:$0xf]
        %v7583 = vld [vmem:[#allocation11 + $0x230] sm:$0xf]
        %v7584 = vld [vmem:[#allocation11 + $0x234] sm:$0xf]
        %v7585 = vld [vmem:[#allocation11 + $0x238] sm:$0xf]
        %v7586 = vld [vmem:[#allocation11 + $0x23c] sm:$0xf]
        %v7587 = vld [vmem:[%s4] sm:$0x1]
        %v7589 = vlaneseq
        %v7590 = vshrl.u32 %v7589, 7
        %v7591 = vsub.s32 0, %v7590
        %v7592 = vrot.slane %v7587, %v7591
        %v7738 = vunpack.c.l.b16 %v7443
        %v7739 = vunpack.c.l.b16 %v7444
        %v7740 = vunpack.c.l.b16 %v7445
        %v7741 = vunpack.c.l.b16 %v7446
        %v7742 = vunpack.c.l.b16 %v7447
        %v7743 = vunpack.c.l.b16 %v7448
        %v7744 = vunpack.c.l.b16 %v7449
        %v7745 = vunpack.c.l.b16 %v7450
        %v7746 = vunpack.c.l.b16 %v7451
        %v7747 = vunpack.c.l.b16 %v7452
        %v7748 = vunpack.c.l.b16 %v7453
        %v7749 = vunpack.c.l.b16 %v7454
        %v7750 = vunpack.c.l.b16 %v7455
        %v7751 = vunpack.c.l.b16 %v7456
        %v7752 = vunpack.c.l.b16 %v7457
        %v7753 = vunpack.c.l.b16 %v7458
        %v7754 = vunpack.c.l.b16 %v7459
        %v7755 = vunpack.c.l.b16 %v7460
        %v7756 = vunpack.c.l.b16 %v7461
        %v7757 = vunpack.c.l.b16 %v7462
        %v7758 = vunpack.c.l.b16 %v7463
        %v7759 = vunpack.c.l.b16 %v7464
        %v7760 = vunpack.c.l.b16 %v7465
        %v7761 = vunpack.c.l.b16 %v7466
        %v7762 = vunpack.c.l.b16 %v7467
        %v7763 = vunpack.c.l.b16 %v7468
        %v7764 = vunpack.c.l.b16 %v7469
        %v7765 = vunpack.c.l.b16 %v7470
        %v7766 = vunpack.c.l.b16 %v7471
        %v7767 = vunpack.c.l.b16 %v7472
        %v7768 = vunpack.c.l.b16 %v7473
        %v7769 = vunpack.c.l.b16 %v7474
        %v7770 = vunpack.c.l.b16 %v7475
        %v7771 = vunpack.c.l.b16 %v7476
        %v7772 = vunpack.c.l.b16 %v7477
        %v7773 = vunpack.c.l.b16 %v7478
        %v7774 = vunpack.c.l.b16 %v7479
        %v7775 = vunpack.c.l.b16 %v7480
        %v7776 = vunpack.c.l.b16 %v7481
        %v7777 = vunpack.c.l.b16 %v7482
        %v7778 = vunpack.c.l.b16 %v7483
        %v7779 = vunpack.c.l.b16 %v7484
        %v7780 = vunpack.c.l.b16 %v7485
        %v7781 = vunpack.c.l.b16 %v7486
        %v7782 = vunpack.c.l.b16 %v7487
        %v7783 = vunpack.c.l.b16 %v7488
        %v7784 = vunpack.c.l.b16 %v7489
        %v7785 = vunpack.c.l.b16 %v7490
        %v7786 = vunpack.c.l.b16 %v7491
        %v7787 = vunpack.c.l.b16 %v7492
        %v7788 = vunpack.c.l.b16 %v7493
        %v7789 = vunpack.c.l.b16 %v7494
        %v7790 = vunpack.c.l.b16 %v7495
        %v7791 = vunpack.c.l.b16 %v7496
        %v7792 = vunpack.c.l.b16 %v7497
        %v7793 = vunpack.c.l.b16 %v7498
        %v7794 = vunpack.c.l.b16 %v7499
        %v7795 = vunpack.c.l.b16 %v7500
        %v7796 = vunpack.c.l.b16 %v7501
        %v7797 = vunpack.c.l.b16 %v7502
        %v7798 = vunpack.c.l.b16 %v7503
        %v7799 = vunpack.c.l.b16 %v7504
        %v7800 = vunpack.c.l.b16 %v7505
        %v7801 = vunpack.c.l.b16 %v7506
        %v7802 = vunpack.c.l.b16 %v7507
        %v7803 = vunpack.c.l.b16 %v7508
        %v7804 = vunpack.c.l.b16 %v7509
        %v7805 = vunpack.c.l.b16 %v7510
        %v7806 = vunpack.c.l.b16 %v7511
        %v7807 = vunpack.c.l.b16 %v7512
        %v7808 = vunpack.c.l.b16 %v7513
        %v7809 = vunpack.c.l.b16 %v7514
        %v7810 = vunpack.c.l.b16 %v7515
        %v7811 = vunpack.c.l.b16 %v7516
        %v7812 = vunpack.c.l.b16 %v7517
        %v7813 = vunpack.c.l.b16 %v7518
        %v7814 = vunpack.c.l.b16 %v7519
        %v7815 = vunpack.c.l.b16 %v7520
        %v7816 = vunpack.c.l.b16 %v7521
        %v7817 = vunpack.c.l.b16 %v7522
        %v7818 = vunpack.c.l.b16 %v7523
        %v7819 = vunpack.c.l.b16 %v7524
        %v7820 = vunpack.c.l.b16 %v7525
        %v7821 = vunpack.c.l.b16 %v7526
        %v7822 = vunpack.c.l.b16 %v7527
        %v7823 = vunpack.c.l.b16 %v7528
        %v7824 = vunpack.c.l.b16 %v7529
        %v7825 = vunpack.c.l.b16 %v7530
        %v7826 = vunpack.c.l.b16 %v7531
        %v7827 = vunpack.c.l.b16 %v7532
        %v7828 = vunpack.c.l.b16 %v7533
        %v7829 = vunpack.c.l.b16 %v7534
        %v7830 = vunpack.c.l.b16 %v7535
        %v7831 = vunpack.c.l.b16 %v7536
        %v7832 = vunpack.c.l.b16 %v7537
        %v7833 = vunpack.c.l.b16 %v7538
        %v7834 = vunpack.c.l.b16 %v7539
        %v7835 = vunpack.c.l.b16 %v7540
        %v7836 = vunpack.c.l.b16 %v7541
        %v7837 = vunpack.c.l.b16 %v7542
        %v7838 = vunpack.c.l.b16 %v7543
        %v7839 = vunpack.c.l.b16 %v7544
        %v7840 = vunpack.c.l.b16 %v7545
        %v7841 = vunpack.c.l.b16 %v7546
        %v7842 = vunpack.c.l.b16 %v7547
        %v7843 = vunpack.c.l.b16 %v7548
        %v7844 = vunpack.c.l.b16 %v7549
        %v7845 = vunpack.c.l.b16 %v7550
        %v7846 = vunpack.c.l.b16 %v7551
        %v7847 = vunpack.c.l.b16 %v7552
        %v7848 = vunpack.c.l.b16 %v7553
        %v7849 = vunpack.c.l.b16 %v7554
        %v7850 = vunpack.c.l.b16 %v7555
        %v7851 = vunpack.c.l.b16 %v7556
        %v7852 = vunpack.c.l.b16 %v7557
        %v7853 = vunpack.c.l.b16 %v7558
        %v7854 = vunpack.c.l.b16 %v7559
        %v7855 = vunpack.c.l.b16 %v7560
        %v7856 = vunpack.c.l.b16 %v7561
        %v7857 = vunpack.c.l.b16 %v7562
        %v7858 = vunpack.c.l.b16 %v7563
        %v7859 = vunpack.c.l.b16 %v7564
        %v7860 = vunpack.c.l.b16 %v7565
        %v7861 = vunpack.c.l.b16 %v7566
        %v7862 = vunpack.c.l.b16 %v7567
        %v7863 = vunpack.c.l.b16 %v7568
        %v7864 = vunpack.c.l.b16 %v7569
        %v7865 = vunpack.c.l.b16 %v7570
        %v7866 = vunpack.c.l.b16 %v7571
        %v7867 = vunpack.c.l.b16 %v7572
        %v7868 = vunpack.c.l.b16 %v7573
        %v7869 = vunpack.c.l.b16 %v7574
        %v7870 = vunpack.c.l.b16 %v7575
        %v7871 = vunpack.c.l.b16 %v7576
        %v7872 = vunpack.c.l.b16 %v7577
        %v7873 = vunpack.c.l.b16 %v7578
        %v7874 = vunpack.c.l.b16 %v7579
        %v7875 = vunpack.c.l.b16 %v7580
        %v7876 = vunpack.c.l.b16 %v7581
        %v7877 = vunpack.c.l.b16 %v7582
        %v7878 = vunpack.c.l.b16 %v7583
        %v7879 = vunpack.c.l.b16 %v7584
        %v7880 = vunpack.c.l.b16 %v7585
        %v7881 = vunpack.c.l.b16 %v7586
        %v7882 = vpack.c.b16 %v7739, %v7738
        %v7883 = vpack.c.b16 %v7741, %v7740
        %v7884 = vpack.c.b16 %v7743, %v7742
        %v7885 = vpack.c.b16 %v7745, %v7744
        %v7886 = vpack.c.b16 %v7747, %v7746
        %v7887 = vpack.c.b16 %v7749, %v7748
        %v7888 = vpack.c.b16 %v7751, %v7750
        %v7889 = vpack.c.b16 %v7753, %v7752
        %v7890 = vpack.c.b16 %v7755, %v7754
        %v7891 = vpack.c.b16 %v7757, %v7756
        %v7892 = vpack.c.b16 %v7759, %v7758
        %v7893 = vpack.c.b16 %v7761, %v7760
        %v7894 = vpack.c.b16 %v7763, %v7762
        %v7895 = vpack.c.b16 %v7765, %v7764
        %v7896 = vpack.c.b16 %v7767, %v7766
        %v7897 = vpack.c.b16 %v7769, %v7768
        %v7898 = vpack.c.b16 %v7771, %v7770
        %v7899 = vpack.c.b16 %v7773, %v7772
        %v7900 = vpack.c.b16 %v7775, %v7774
        %v7901 = vpack.c.b16 %v7777, %v7776
        %v7902 = vpack.c.b16 %v7779, %v7778
        %v7903 = vpack.c.b16 %v7781, %v7780
        %v7904 = vpack.c.b16 %v7783, %v7782
        %v7905 = vpack.c.b16 %v7785, %v7784
        %v7906 = vpack.c.b16 %v7787, %v7786
        %v7907 = vpack.c.b16 %v7789, %v7788
        %v7908 = vpack.c.b16 %v7791, %v7790
        %v7909 = vpack.c.b16 %v7793, %v7792
        %v7910 = vpack.c.b16 %v7795, %v7794
        %v7911 = vpack.c.b16 %v7797, %v7796
        %v7912 = vpack.c.b16 %v7799, %v7798
        %v7913 = vpack.c.b16 %v7801, %v7800
        %v7914 = vpack.c.b16 %v7803, %v7802
        %v7915 = vpack.c.b16 %v7805, %v7804
        %v7916 = vpack.c.b16 %v7807, %v7806
        %v7917 = vpack.c.b16 %v7809, %v7808
        %v7918 = vpack.c.b16 %v7811, %v7810
        %v7919 = vpack.c.b16 %v7813, %v7812
        %v7920 = vpack.c.b16 %v7815, %v7814
        %v7921 = vpack.c.b16 %v7817, %v7816
        %v7922 = vpack.c.b16 %v7819, %v7818
        %v7923 = vpack.c.b16 %v7821, %v7820
        %v7924 = vpack.c.b16 %v7823, %v7822
        %v7925 = vpack.c.b16 %v7825, %v7824
        %v7926 = vpack.c.b16 %v7827, %v7826
        %v7927 = vpack.c.b16 %v7829, %v7828
        %v7928 = vpack.c.b16 %v7831, %v7830
        %v7929 = vpack.c.b16 %v7833, %v7832
        %v7930 = vpack.c.b16 %v7835, %v7834
        %v7931 = vpack.c.b16 %v7837, %v7836
        %v7932 = vpack.c.b16 %v7839, %v7838
        %v7933 = vpack.c.b16 %v7841, %v7840
        %v7934 = vpack.c.b16 %v7843, %v7842
        %v7935 = vpack.c.b16 %v7845, %v7844
        %v7936 = vpack.c.b16 %v7847, %v7846
        %v7937 = vpack.c.b16 %v7849, %v7848
        %v7938 = vpack.c.b16 %v7851, %v7850
        %v7939 = vpack.c.b16 %v7853, %v7852
        %v7940 = vpack.c.b16 %v7855, %v7854
        %v7941 = vpack.c.b16 %v7857, %v7856
        %v7942 = vpack.c.b16 %v7859, %v7858
        %v7943 = vpack.c.b16 %v7861, %v7860
        %v7944 = vpack.c.b16 %v7863, %v7862
        %v7945 = vpack.c.b16 %v7865, %v7864
        %v7946 = vpack.c.b16 %v7867, %v7866
        %v7947 = vpack.c.b16 %v7869, %v7868
        %v7948 = vpack.c.b16 %v7871, %v7870
        %v7949 = vpack.c.b16 %v7873, %v7872
        %v7950 = vpack.c.b16 %v7875, %v7874
        %v7951 = vpack.c.b16 %v7877, %v7876
        %v7952 = vpack.c.b16 %v7879, %v7878
        %v7953 = vpack.c.b16 %v7881, %v7880
        %8026 = vmatprep.subr.bf16.mxu0 0
        %8027 = vmatpush1.bf16.msra.mxu0 %v7882
        %8028 = vmatprep.subr.bf16.mxu0 0
        %8029 = vmatpush1.bf16.msra.mxu0 %v7883
        %8030 = vmatprep.subr.bf16.mxu0 0
        %8031 = vmatpush1.bf16.msra.mxu0 %v7884
        %8032 = vmatprep.subr.bf16.mxu0 0
        %8033 = vmatpush1.bf16.msra.mxu0 %v7885
        %8034 = vmatprep.subr.bf16.mxu0 0
        %8035 = vmatpush1.bf16.msra.mxu0 %v7886
        %8036 = vmatprep.subr.bf16.mxu0 0
        %8037 = vmatpush1.bf16.msra.mxu0 %v7887
        %8038 = vmatprep.subr.bf16.mxu0 0
        %8039 = vmatpush1.bf16.msra.mxu0 %v7888
        %8040 = vmatprep.subr.bf16.mxu0 0
        %8041 = vmatpush1.bf16.msra.mxu0 %v7889
        %8042 = vmatprep.subr.bf16.mxu0 0
        %8043 = vmatpush1.bf16.msra.mxu0 %v7890
        %8044 = vmatprep.subr.bf16.mxu0 0
        %8045 = vmatpush1.bf16.msra.mxu0 %v7891
        %8046 = vmatprep.subr.bf16.mxu0 0
        %8047 = vmatpush1.bf16.msra.mxu0 %v7892
        %8048 = vmatprep.subr.bf16.mxu0 0
        %8049 = vmatpush1.bf16.msra.mxu0 %v7893
        %8050 = vmatprep.subr.bf16.mxu0 0
        %8051 = vmatpush1.bf16.msra.mxu0 %v7894
        %8052 = vmatprep.subr.bf16.mxu0 0
        %8053 = vmatpush1.bf16.msra.mxu0 %v7895
        %8054 = vmatprep.subr.bf16.mxu0 0
        %8055 = vmatpush1.bf16.msra.mxu0 %v7896
        %8056 = vmatprep.subr.bf16.mxu0 0
        %8057 = vmatpush1.bf16.msra.mxu0 %v7897
        %8058 = vmatprep.mubr.bf16.mxu0 %v7300
        %8059 = vmatmul.mubr.bf16.gmra.mrb[0].mxu0 %v7299
        %v8060 = vpop.f32.mrb[0].mxu0
        %v8061 = vadd.f32 %v7592, %v8060
        %v8062 = vpop.f32.mrb[0].mxu0
        %v8063 = vpop.f32.mrb[0].mxu0
        %v8064 = vadd.f32 %v7592, %v8063
        %v8065 = vpop.f32.mrb[0].mxu0
        %8066 = vmatprep.mubr.bf16.mxu0 %v7309
        %8067 = vmatmul.mubr.bf16.gmra.mrb[0].mxu0 %v7308
        %v8068 = vpop.f32.mrb[0].mxu0
        %v8069 = vadd.f32 %v7592, %v8068
        %v8070 = vpop.f32.mrb[0].mxu0
        %v8071 = vpop.f32.mrb[0].mxu0
        %v8072 = vadd.f32 %v7592, %v8071
        %v8073 = vpop.f32.mrb[0].mxu0
        %8074 = vmatprep.mubr.bf16.mxu0 %v7318
        %8075 = vmatmul.mubr.bf16.gmra.mrb[0].mxu0 %v7317
        %v8076 = vpop.f32.mrb[0].mxu0
        %v8077 = vadd.f32 %v7592, %v8076
        %v8078 = vpop.f32.mrb[0].mxu0
        %v8079 = vpop.f32.mrb[0].mxu0
        %v8080 = vadd.f32 %v7592, %v8079
        %v8081 = vpop.f32.mrb[0].mxu0
        %8082 = vmatprep.mubr.bf16.mxu0 %v7327
        %8083 = vmatmul.mubr.bf16.gmra.mrb[0].mxu0 %v7326
        %v8084 = vpop.f32.mrb[0].mxu0
        %v8085 = vadd.f32 %v7592, %v8084
        %v8086 = vpop.f32.mrb[0].mxu0
        %v8087 = vpop.f32.mrb[0].mxu0
        %v8088 = vadd.f32 %v7592, %v8087
        %v8089 = vpop.f32.mrb[0].mxu0
        %8090 = vmatprep.mubr.bf16.mxu0 %v7336
        %8091 = vmatmul.mubr.bf16.gmra.mrb[0].mxu0 %v7335
        %v8092 = vpop.f32.mrb[0].mxu0
        %v8093 = vadd.f32 %v7592, %v8092
        %v8094 = vpop.f32.mrb[0].mxu0
        %v8095 = vpop.f32.mrb[0].mxu0
        %v8096 = vadd.f32 %v7592, %v8095
        %v8097 = vpop.f32.mrb[0].mxu0
        %8098 = vmatprep.mubr.bf16.mxu0 %v7345
        %8099 = vmatmul.mubr.bf16.gmra.mrb[0].mxu0 %v7344
        %v8100 = vpop.f32.mrb[0].mxu0
        %v8101 = vadd.f32 %v7592, %v8100
        %v8102 = vpop.f32.mrb[0].mxu0
        %v8103 = vpop.f32.mrb[0].mxu0
        %v8104 = vadd.f32 %v7592, %v8103
        %v8105 = vpop.f32.mrb[0].mxu0
        %8106 = vmatprep.mubr.bf16.mxu0 %v7354
        %8107 = vmatmul.mubr.bf16.gmra.mrb[0].mxu0 %v7353
        %v8108 = vpop.f32.mrb[0].mxu0
        %v8109 = vadd.f32 %v7592, %v8108
        %v8110 = vpop.f32.mrb[0].mxu0
        %v8111 = vpop.f32.mrb[0].mxu0
        %v8112 = vadd.f32 %v7592, %v8111
        %v8113 = vpop.f32.mrb[0].mxu0
        %8114 = vmatprep.mubr.bf16.mxu0 %v7363
        %8115 = vmatmul.mubr.bf16.gmra.mrb[0].mxu0 %v7362
        %v8116 = vpop.f32.mrb[0].mxu0
        %v8117 = vadd.f32 %v7592, %v8116
        %v8118 = vpop.f32.mrb[0].mxu0
        %v8119 = vpop.f32.mrb[0].mxu0
        %v8120 = vadd.f32 %v7592, %v8119
        %v8121 = vpop.f32.mrb[0].mxu0
        %8122 = vmatprep.mubr.bf16.mxu0 %v7372
        %8123 = vmatmul.mubr.bf16.gmra.mrb[0].mxu0 %v7371
        %v8124 = vpop.f32.mrb[0].mxu0
        %v8125 = vadd.f32 %v7592, %v8124
        %v8126 = vpop.f32.mrb[0].mxu0
        %v8127 = vpop.f32.mrb[0].mxu0
        %v8128 = vadd.f32 %v7592, %v8127
        %v8129 = vpop.f32.mrb[0].mxu0
        %8130 = vmatprep.mubr.bf16.mxu0 %v7381
        %8131 = vmatmul.mubr.bf16.gmra.mrb[0].mxu0 %v7380
        %v8132 = vpop.f32.mrb[0].mxu0
        %v8133 = vadd.f32 %v7592, %v8132
        %v8134 = vpop.f32.mrb[0].mxu0
        %v8135 = vpop.f32.mrb[0].mxu0
        %v8136 = vadd.f32 %v7592, %v8135
        %v8137 = vpop.f32.mrb[0].mxu0
        %8138 = vmatprep.mubr.bf16.mxu0 %v7390
        %8139 = vmatmul.mubr.bf16.gmra.mrb[0].mxu0 %v7389
        %v8140 = vpop.f32.mrb[0].mxu0
        %v8141 = vadd.f32 %v7592, %v8140
        %v8142 = vpop.f32.mrb[0].mxu0
        %v8143 = vpop.f32.mrb[0].mxu0
        %v8144 = vadd.f32 %v7592, %v8143
        %v8145 = vpop.f32.mrb[0].mxu0
        %8146 = vmatprep.mubr.bf16.mxu0 %v7399
        %8147 = vmatmul.mubr.bf16.gmra.mrb[0].mxu0 %v7398
        %v8148 = vpop.f32.mrb[0].mxu0
        %v8149 = vadd.f32 %v7592, %v8148
        %v8150 = vpop.f32.mrb[0].mxu0
        %v8151 = vpop.f32.mrb[0].mxu0
        %v8152 = vadd.f32 %v7592, %v8151
        %v8153 = vpop.f32.mrb[0].mxu0
        %8154 = vmatprep.mubr.bf16.mxu0 %v7408
        %8155 = vmatmul.mubr.bf16.gmra.mrb[0].mxu0 %v7407
        %v8156 = vpop.f32.mrb[0].mxu0
        %v8157 = vadd.f32 %v7592, %v8156
        %v8158 = vpop.f32.mrb[0].mxu0
        %v8159 = vpop.f32.mrb[0].mxu0
        %v8160 = vadd.f32 %v7592, %v8159
        %v8161 = vpop.f32.mrb[0].mxu0
        %8162 = vmatprep.mubr.bf16.mxu0 %v7417
        %8163 = vmatmul.mubr.bf16.gmra.mrb[0].mxu0 %v7416
        %v8164 = vpop.f32.mrb[0].mxu0
        %v8165 = vadd.f32 %v7592, %v8164
        %v8166 = vpop.f32.mrb[0].mxu0
        %v8167 = vpop.f32.mrb[0].mxu0
        %v8168 = vadd.f32 %v7592, %v8167
        %v8169 = vpop.f32.mrb[0].mxu0
        %8170 = vmatprep.mubr.bf16.mxu0 %v7426
        %8171 = vmatmul.mubr.bf16.gmra.mrb[0].mxu0 %v7425
        %v8172 = vpop.f32.mrb[0].mxu0
        %v8173 = vadd.f32 %v7592, %v8172
        %v8174 = vpop.f32.mrb[0].mxu0
        %v8175 = vpop.f32.mrb[0].mxu0
        %v8176 = vadd.f32 %v7592, %v8175
        %v8177 = vpop.f32.mrb[0].mxu0
        %8178 = vmatprep.mubr.bf16.mxu0 %v7435
        %8179 = vmatmul.mubr.bf16.gmra.mrb[0].mxu0 %v7434
        %v8180 = vpop.f32.mrb[0].mxu0
        %v8181 = vadd.f32 %v7592, %v8180
        %v8182 = vpop.f32.mrb[0].mxu0
        %v8183 = vpop.f32.mrb[0].mxu0
        %v8184 = vadd.f32 %v7592, %v8183
        %v8185 = vpop.f32.mrb[0].mxu0
        %8186 = vdwg.mxu0
        %8187 = vmatprep.subr.bf16.mxu0 0
        %8188 = vmatpush1.bf16.msra.mxu0 %v7898
        %8189 = vmatprep.subr.bf16.mxu0 0
        %8190 = vmatpush1.bf16.msra.mxu0 %v7899
        %8191 = vmatprep.subr.bf16.mxu0 0
        %8192 = vmatpush1.bf16.msra.mxu0 %v7900
        %8193 = vmatprep.subr.bf16.mxu0 0
        %8194 = vmatpush1.bf16.msra.mxu0 %v7901
        %8195 = vmatprep.subr.bf16.mxu0 0
        %8196 = vmatpush1.bf16.msra.mxu0 %v7902
        %8197 = vmatprep.subr.bf16.mxu0 0
        %8198 = vmatpush1.bf16.msra.mxu0 %v7903
        %8199 = vmatprep.subr.bf16.mxu0 0
        %8200 = vmatpush1.bf16.msra.mxu0 %v7904
        %8201 = vmatprep.subr.bf16.mxu0 0
        %8202 = vmatpush1.bf16.msra.mxu0 %v7905
        %8203 = vmatprep.subr.bf16.mxu0 0
        %8204 = vmatpush1.bf16.msra.mxu0 %v7906
        %8205 = vmatprep.subr.bf16.mxu0 0
        %8206 = vmatpush1.bf16.msra.mxu0 %v7907
        %8207 = vmatprep.subr.bf16.mxu0 0
        %8208 = vmatpush1.bf16.msra.mxu0 %v7908
        %8209 = vmatprep.subr.bf16.mxu0 0
        %8210 = vmatpush1.bf16.msra.mxu0 %v7909
        %8211 = vmatprep.subr.bf16.mxu0 0
        %8212 = vmatpush1.bf16.msra.mxu0 %v7910
        %8213 = vmatprep.subr.bf16.mxu0 0
        %8214 = vmatpush1.bf16.msra.mxu0 %v7911
        %8215 = vmatprep.subr.bf16.mxu0 0
        %8216 = vmatpush1.bf16.msra.mxu0 %v7912
        %8217 = vmatprep.subr.bf16.mxu0 0
        %8218 = vmatpush1.bf16.msra.mxu0 %v7913
        %8219 = vmatprep.mubr.bf16.mxu0 %v7302
        %8220 = vmatmul.mubr.bf16.gmra.mrb[0].mxu0 %v7301
        %v8221 = vpop.f32.mrb[0].mxu0
        %v8222 = vadd.f32 %v8061, %v8221
        %v8223 = vpop.f32.mrb[0].mxu0
        %v8224 = vpop.f32.mrb[0].mxu0
        %v8225 = vadd.f32 %v8064, %v8224
        %v8226 = vpop.f32.mrb[0].mxu0
        %8227 = vmatprep.mubr.bf16.mxu0 %v7311
        %8228 = vmatmul.mubr.bf16.gmra.mrb[0].mxu0 %v7310
        %v8229 = vpop.f32.mrb[0].mxu0
        %v8230 = vadd.f32 %v8069, %v8229
        %v8231 = vpop.f32.mrb[0].mxu0
        %v8232 = vpop.f32.mrb[0].mxu0
        %v8233 = vadd.f32 %v8072, %v8232
        %v8234 = vpop.f32.mrb[0].mxu0
        %8235 = vmatprep.mubr.bf16.mxu0 %v7320
        %8236 = vmatmul.mubr.bf16.gmra.mrb[0].mxu0 %v7319
        %v8237 = vpop.f32.mrb[0].mxu0
        %v8238 = vadd.f32 %v8077, %v8237
        %v8239 = vpop.f32.mrb[0].mxu0
        %v8240 = vpop.f32.mrb[0].mxu0
        %v8241 = vadd.f32 %v8080, %v8240
        %v8242 = vpop.f32.mrb[0].mxu0
        %8243 = vmatprep.mubr.bf16.mxu0 %v7329
        %8244 = vmatmul.mubr.bf16.gmra.mrb[0].mxu0 %v7328
        %v8245 = vpop.f32.mrb[0].mxu0
        %v8246 = vadd.f32 %v8085, %v8245
        %v8247 = vpop.f32.mrb[0].mxu0
        %v8248 = vpop.f32.mrb[0].mxu0
        %v8249 = vadd.f32 %v8088, %v8248
        %v8250 = vpop.f32.mrb[0].mxu0
        %8251 = vmatprep.mubr.bf16.mxu0 %v7338
        %8252 = vmatmul.mubr.bf16.gmra.mrb[0].mxu0 %v7337
        %v8253 = vpop.f32.mrb[0].mxu0
        %v8254 = vadd.f32 %v8093, %v8253
        %v8255 = vpop.f32.mrb[0].mxu0
        %v8256 = vpop.f32.mrb[0].mxu0
        %v8257 = vadd.f32 %v8096, %v8256
        %v8258 = vpop.f32.mrb[0].mxu0
        %8259 = vmatprep.mubr.bf16.mxu0 %v7347
        %8260 = vmatmul.mubr.bf16.gmra.mrb[0].mxu0 %v7346
        %v8261 = vpop.f32.mrb[0].mxu0
        %v8262 = vadd.f32 %v8101, %v8261
        %v8263 = vpop.f32.mrb[0].mxu0
        %v8264 = vpop.f32.mrb[0].mxu0
        %v8265 = vadd.f32 %v8104, %v8264
        %v8266 = vpop.f32.mrb[0].mxu0
        %8267 = vmatprep.mubr.bf16.mxu0 %v7356
        %8268 = vmatmul.mubr.bf16.gmra.mrb[0].mxu0 %v7355
        %v8269 = vpop.f32.mrb[0].mxu0
        %v8270 = vadd.f32 %v8109, %v8269
        %v8271 = vpop.f32.mrb[0].mxu0
        %v8272 = vpop.f32.mrb[0].mxu0
        %v8273 = vadd.f32 %v8112, %v8272
        %v8274 = vpop.f32.mrb[0].mxu0
        %8275 = vmatprep.mubr.bf16.mxu0 %v7365
        %8276 = vmatmul.mubr.bf16.gmra.mrb[0].mxu0 %v7364
        %v8277 = vpop.f32.mrb[0].mxu0
        %v8278 = vadd.f32 %v8117, %v8277
        %v8279 = vpop.f32.mrb[0].mxu0
        %v8280 = vpop.f32.mrb[0].mxu0
        %v8281 = vadd.f32 %v8120, %v8280
        %v8282 = vpop.f32.mrb[0].mxu0
        %8283 = vmatprep.mubr.bf16.mxu0 %v7374
        %8284 = vmatmul.mubr.bf16.gmra.mrb[0].mxu0 %v7373
        %v8285 = vpop.f32.mrb[0].mxu0
        %v8286 = vadd.f32 %v8125, %v8285
        %v8287 = vpop.f32.mrb[0].mxu0
        %v8288 = vpop.f32.mrb[0].mxu0
        %v8289 = vadd.f32 %v8128, %v8288
        %v8290 = vpop.f32.mrb[0].mxu0
        %8291 = vmatprep.mubr.bf16.mxu0 %v7383
        %8292 = vmatmul.mubr.bf16.gmra.mrb[0].mxu0 %v7382
        %v8293 = vpop.f32.mrb[0].mxu0
        %v8294 = vadd.f32 %v8133, %v8293
        %v8295 = vpop.f32.mrb[0].mxu0
        %v8296 = vpop.f32.mrb[0].mxu0
        %v8297 = vadd.f32 %v8136, %v8296
        %v8298 = vpop.f32.mrb[0].mxu0
        %8299 = vmatprep.mubr.bf16.mxu0 %v7392
        %8300 = vmatmul.mubr.bf16.gmra.mrb[0].mxu0 %v7391
        %v8301 = vpop.f32.mrb[0].mxu0
        %v8302 = vadd.f32 %v8141, %v8301
        %v8303 = vpop.f32.mrb[0].mxu0
        %v8304 = vpop.f32.mrb[0].mxu0
        %v8305 = vadd.f32 %v8144, %v8304
        %v8306 = vpop.f32.mrb[0].mxu0
        %8307 = vmatprep.mubr.bf16.mxu0 %v7401
        %8308 = vmatmul.mubr.bf16.gmra.mrb[0].mxu0 %v7400
        %v8309 = vpop.f32.mrb[0].mxu0
        %v8310 = vadd.f32 %v8149, %v8309
        %v8311 = vpop.f32.mrb[0].mxu0
        %v8312 = vpop.f32.mrb[0].mxu0
        %v8313 = vadd.f32 %v8152, %v8312
        %v8314 = vpop.f32.mrb[0].mxu0
        %8315 = vmatprep.mubr.bf16.mxu0 %v7410
        %8316 = vmatmul.mubr.bf16.gmra.mrb[0].mxu0 %v7409
        %v8317 = vpop.f32.mrb[0].mxu0
        %v8318 = vadd.f32 %v8157, %v8317
        %v8319 = vpop.f32.mrb[0].mxu0
        %v8320 = vpop.f32.mrb[0].mxu0
        %v8321 = vadd.f32 %v8160, %v8320
        %v8322 = vpop.f32.mrb[0].mxu0
        %8323 = vmatprep.mubr.bf16.mxu0 %v7419
        %8324 = vmatmul.mubr.bf16.gmra.mrb[0].mxu0 %v7418
        %v8325 = vpop.f32.mrb[0].mxu0
        %v8326 = vadd.f32 %v8165, %v8325
        %v8327 = vpop.f32.mrb[0].mxu0
        %v8328 = vpop.f32.mrb[0].mxu0
        %v8329 = vadd.f32 %v8168, %v8328
        %v8330 = vpop.f32.mrb[0].mxu0
        %8331 = vmatprep.mubr.bf16.mxu0 %v7428
        %8332 = vmatmul.mubr.bf16.gmra.mrb[0].mxu0 %v7427
        %v8333 = vpop.f32.mrb[0].mxu0
        %v8334 = vadd.f32 %v8173, %v8333
        %v8335 = vpop.f32.mrb[0].mxu0
        %v8336 = vpop.f32.mrb[0].mxu0
        %v8337 = vadd.f32 %v8176, %v8336
        %v8338 = vpop.f32.mrb[0].mxu0
        %8339 = vmatprep.mubr.bf16.mxu0 %v7437
        %8340 = vmatmul.mubr.bf16.gmra.mrb[0].mxu0 %v7436
        %v8341 = vpop.f32.mrb[0].mxu0
        %v8342 = vadd.f32 %v8181, %v8341
        %v8343 = vpop.f32.mrb[0].mxu0
        %v8344 = vpop.f32.mrb[0].mxu0
        %v8345 = vadd.f32 %v8184, %v8344
        %v8346 = vpop.f32.mrb[0].mxu0
        %8347 = vdwg.mxu0
        %8348 = vmatprep.subr.bf16.mxu0 0
        %8349 = vmatpush1.bf16.msra.mxu0 %v7914
        %8350 = vmatprep.subr.bf16.mxu0 0
        %8351 = vmatpush1.bf16.msra.mxu0 %v7915
        %8352 = vmatprep.subr.bf16.mxu0 0
        %8353 = vmatpush1.bf16.msra.mxu0 %v7916
        %8354 = vmatprep.subr.bf16.mxu0 0
        %8355 = vmatpush1.bf16.msra.mxu0 %v7917
        %8356 = vmatprep.subr.bf16.mxu0 0
        %8357 = vmatpush1.bf16.msra.mxu0 %v7918
        %8358 = vmatprep.subr.bf16.mxu0 0
        %8359 = vmatpush1.bf16.msra.mxu0 %v7919
        %8360 = vmatprep.subr.bf16.mxu0 0
        %8361 = vmatpush1.bf16.msra.mxu0 %v7920
        %8362 = vmatprep.subr.bf16.mxu0 0
        %8363 = vmatpush1.bf16.msra.mxu0 %v7921
        %8364 = vmatprep.subr.bf16.mxu0 0
        %8365 = vmatpush1.bf16.msra.mxu0 %v7922
        %8366 = vmatprep.subr.bf16.mxu0 0
        %8367 = vmatpush1.bf16.msra.mxu0 %v7923
        %8368 = vmatprep.subr.bf16.mxu0 0
        %8369 = vmatpush1.bf16.msra.mxu0 %v7924
        %8370 = vmatprep.subr.bf16.mxu0 0
        %8371 = vmatpush1.bf16.msra.mxu0 %v7925
        %8372 = vmatprep.subr.bf16.mxu0 0
        %8373 = vmatpush1.bf16.msra.mxu0 %v7926
        %8374 = vmatprep.subr.bf16.mxu0 0
        %8375 = vmatpush1.bf16.msra.mxu0 %v7927
        %8376 = vmatprep.subr.bf16.mxu0 0
        %8377 = vmatpush1.bf16.msra.mxu0 %v7928
        %8378 = vmatprep.subr.bf16.mxu0 0
        %8379 = vmatpush1.bf16.msra.mxu0 %v7929
        %8380 = vmatprep.mubr.bf16.mxu0 %v7304
        %8381 = vmatmul.mubr.bf16.gmra.mrb[0].mxu0 %v7303
        %v8382 = vpop.f32.mrb[0].mxu0
        %v8383 = vadd.f32 %v8222, %v8382
        %v8384 = vpop.f32.mrb[0].mxu0
        %v8385 = vpop.f32.mrb[0].mxu0
        %v8386 = vadd.f32 %v8225, %v8385
        %v8387 = vpop.f32.mrb[0].mxu0
        %8388 = vmatprep.mubr.bf16.mxu0 %v7313
        %8389 = vmatmul.mubr.bf16.gmra.mrb[0].mxu0 %v7312
        %v8390 = vpop.f32.mrb[0].mxu0
        %v8391 = vadd.f32 %v8230, %v8390
        %v8392 = vpop.f32.mrb[0].mxu0
        %v8393 = vpop.f32.mrb[0].mxu0
        %v8394 = vadd.f32 %v8233, %v8393
        %v8395 = vpop.f32.mrb[0].mxu0
        %8396 = vmatprep.mubr.bf16.mxu0 %v7322
        %8397 = vmatmul.mubr.bf16.gmra.mrb[0].mxu0 %v7321
        %v8398 = vpop.f32.mrb[0].mxu0
        %v8399 = vadd.f32 %v8238, %v8398
        %v8400 = vpop.f32.mrb[0].mxu0
        %v8401 = vpop.f32.mrb[0].mxu0
        %v8402 = vadd.f32 %v8241, %v8401
        %v8403 = vpop.f32.mrb[0].mxu0
        %8404 = vmatprep.mubr.bf16.mxu0 %v7331
        %8405 = vmatmul.mubr.bf16.gmra.mrb[0].mxu0 %v7330
        %v8406 = vpop.f32.mrb[0].mxu0
        %v8407 = vadd.f32 %v8246, %v8406
        %v8408 = vpop.f32.mrb[0].mxu0
        %v8409 = vpop.f32.mrb[0].mxu0
        %v8410 = vadd.f32 %v8249, %v8409
        %v8411 = vpop.f32.mrb[0].mxu0
        %8412 = vmatprep.mubr.bf16.mxu0 %v7340
        %8413 = vmatmul.mubr.bf16.gmra.mrb[0].mxu0 %v7339
        %v8414 = vpop.f32.mrb[0].mxu0
        %v8415 = vadd.f32 %v8254, %v8414
        %v8416 = vpop.f32.mrb[0].mxu0
        %v8417 = vpop.f32.mrb[0].mxu0
        %v8418 = vadd.f32 %v8257, %v8417
        %v8419 = vpop.f32.mrb[0].mxu0
        %8420 = vmatprep.mubr.bf16.mxu0 %v7349
        %8421 = vmatmul.mubr.bf16.gmra.mrb[0].mxu0 %v7348
        %v8422 = vpop.f32.mrb[0].mxu0
        %v8423 = vadd.f32 %v8262, %v8422
        %v8424 = vpop.f32.mrb[0].mxu0
        %v8425 = vpop.f32.mrb[0].mxu0
        %v8426 = vadd.f32 %v8265, %v8425
        %v8427 = vpop.f32.mrb[0].mxu0
        %8428 = vmatprep.mubr.bf16.mxu0 %v7358
        %8429 = vmatmul.mubr.bf16.gmra.mrb[0].mxu0 %v7357
        %v8430 = vpop.f32.mrb[0].mxu0
        %v8431 = vadd.f32 %v8270, %v8430
        %v8432 = vpop.f32.mrb[0].mxu0
        %v8433 = vpop.f32.mrb[0].mxu0
        %v8434 = vadd.f32 %v8273, %v8433
        %v8435 = vpop.f32.mrb[0].mxu0
        %8436 = vmatprep.mubr.bf16.mxu0 %v7367
        %8437 = vmatmul.mubr.bf16.gmra.mrb[0].mxu0 %v7366
        %v8438 = vpop.f32.mrb[0].mxu0
        %v8439 = vadd.f32 %v8278, %v8438
        %v8440 = vpop.f32.mrb[0].mxu0
        %v8441 = vpop.f32.mrb[0].mxu0
        %v8442 = vadd.f32 %v8281, %v8441
        %v8443 = vpop.f32.mrb[0].mxu0
        %8444 = vmatprep.mubr.bf16.mxu0 %v7376
        %8445 = vmatmul.mubr.bf16.gmra.mrb[0].mxu0 %v7375
        %v8446 = vpop.f32.mrb[0].mxu0
        %v8447 = vadd.f32 %v8286, %v8446
        %v8448 = vpop.f32.mrb[0].mxu0
        %v8449 = vpop.f32.mrb[0].mxu0
        %v8450 = vadd.f32 %v8289, %v8449
        %v8451 = vpop.f32.mrb[0].mxu0
        %8452 = vmatprep.mubr.bf16.mxu0 %v7385
        %8453 = vmatmul.mubr.bf16.gmra.mrb[0].mxu0 %v7384
        %v8454 = vpop.f32.mrb[0].mxu0
        %v8455 = vadd.f32 %v8294, %v8454
        %v8456 = vpop.f32.mrb[0].mxu0
        %v8457 = vpop.f32.mrb[0].mxu0
        %v8458 = vadd.f32 %v8297, %v8457
        %v8459 = vpop.f32.mrb[0].mxu0
        %8460 = vmatprep.mubr.bf16.mxu0 %v7394
        %8461 = vmatmul.mubr.bf16.gmra.mrb[0].mxu0 %v7393
        %v8462 = vpop.f32.mrb[0].mxu0
        %v8463 = vadd.f32 %v8302, %v8462
        %v8464 = vpop.f32.mrb[0].mxu0
        %v8465 = vpop.f32.mrb[0].mxu0
        %v8466 = vadd.f32 %v8305, %v8465
        %v8467 = vpop.f32.mrb[0].mxu0
        %8468 = vmatprep.mubr.bf16.mxu0 %v7403
        %8469 = vmatmul.mubr.bf16.gmra.mrb[0].mxu0 %v7402
        %v8470 = vpop.f32.mrb[0].mxu0
        %v8471 = vadd.f32 %v8310, %v8470
        %v8472 = vpop.f32.mrb[0].mxu0
        %v8473 = vpop.f32.mrb[0].mxu0
        %v8474 = vadd.f32 %v8313, %v8473
        %v8475 = vpop.f32.mrb[0].mxu0
        %8476 = vmatprep.mubr.bf16.mxu0 %v7412
        %8477 = vmatmul.mubr.bf16.gmra.mrb[0].mxu0 %v7411
        %v8478 = vpop.f32.mrb[0].mxu0
        %v8479 = vadd.f32 %v8318, %v8478
        %v8480 = vpop.f32.mrb[0].mxu0
        %v8481 = vpop.f32.mrb[0].mxu0
        %v8482 = vadd.f32 %v8321, %v8481
        %v8483 = vpop.f32.mrb[0].mxu0
        %8484 = vmatprep.mubr.bf16.mxu0 %v7421
        %8485 = vmatmul.mubr.bf16.gmra.mrb[0].mxu0 %v7420
        %v8486 = vpop.f32.mrb[0].mxu0
        %v8487 = vadd.f32 %v8326, %v8486
        %v8488 = vpop.f32.mrb[0].mxu0
        %v8489 = vpop.f32.mrb[0].mxu0
        %v8490 = vadd.f32 %v8329, %v8489
        %v8491 = vpop.f32.mrb[0].mxu0
        %8492 = vmatprep.mubr.bf16.mxu0 %v7430
        %8493 = vmatmul.mubr.bf16.gmra.mrb[0].mxu0 %v7429
        %v8494 = vpop.f32.mrb[0].mxu0
        %v8495 = vadd.f32 %v8334, %v8494
        %v8496 = vpop.f32.mrb[0].mxu0
        %v8497 = vpop.f32.mrb[0].mxu0
        %v8498 = vadd.f32 %v8337, %v8497
        %v8499 = vpop.f32.mrb[0].mxu0
        %8500 = vmatprep.mubr.bf16.mxu0 %v7439
        %8501 = vmatmul.mubr.bf16.gmra.mrb[0].mxu0 %v7438
        %v8502 = vpop.f32.mrb[0].mxu0
        %v8503 = vadd.f32 %v8342, %v8502
        %v8504 = vpop.f32.mrb[0].mxu0
        %v8505 = vpop.f32.mrb[0].mxu0
        %v8506 = vadd.f32 %v8345, %v8505
        %v8507 = vpop.f32.mrb[0].mxu0
        %8508 = vdwg.mxu0
        %8509 = vmatprep.subr.bf16.mxu0 0
        %8510 = vmatpush1.bf16.msra.mxu0 %v7930
        %8511 = vmatprep.subr.bf16.mxu0 0
        %8512 = vmatpush1.bf16.msra.mxu0 %v7931
        %8513 = vmatprep.subr.bf16.mxu0 0
        %8514 = vmatpush1.bf16.msra.mxu0 %v7932
        %8515 = vmatprep.subr.bf16.mxu0 0
        %8516 = vmatpush1.bf16.msra.mxu0 %v7933
        %8517 = vmatprep.subr.bf16.mxu0 0
        %8518 = vmatpush1.bf16.msra.mxu0 %v7934
        %8519 = vmatprep.subr.bf16.mxu0 0
        %8520 = vmatpush1.bf16.msra.mxu0 %v7935
        %8521 = vmatprep.subr.bf16.mxu0 0
        %8522 = vmatpush1.bf16.msra.mxu0 %v7936
        %8523 = vmatprep.subr.bf16.mxu0 0
        %8524 = vmatpush1.bf16.msra.mxu0 %v7937
        %8525 = vmatprep.subr.bf16.mxu0 0
        %8526 = vmatpush1.bf16.msra.mxu0 %v7938
        %8527 = vmatprep.subr.bf16.mxu0 0
        %8528 = vmatpush1.bf16.msra.mxu0 %v7939
        %8529 = vmatprep.subr.bf16.mxu0 0
        %8530 = vmatpush1.bf16.msra.mxu0 %v7940
        %8531 = vmatprep.subr.bf16.mxu0 0
        %8532 = vmatpush1.bf16.msra.mxu0 %v7941
        %8533 = vmatprep.subr.bf16.mxu0 0
        %8534 = vmatpush1.bf16.msra.mxu0 %v7942
        %8535 = vmatprep.subr.bf16.mxu0 0
        %8536 = vmatpush1.bf16.msra.mxu0 %v7943
        %8537 = vmatprep.subr.bf16.mxu0 0
        %8538 = vmatpush1.bf16.msra.mxu0 %v7944
        %8539 = vmatprep.subr.bf16.mxu0 0
        %8540 = vmatpush1.bf16.msra.mxu0 %v7945
        %8541 = vmatprep.mubr.bf16.mxu0 %v7306
        %8542 = vmatmul.mubr.bf16.gmra.mrb[0].mxu0 %v7305
        %v8543 = vpop.f32.mrb[0].mxu0
        %v8544 = vadd.f32 %v8383, %v8543
        %v8545 = vpop.f32.mrb[0].mxu0
        %v8546 = vpop.f32.mrb[0].mxu0
        %v8547 = vadd.f32 %v8386, %v8546
        %v8548 = vpop.f32.mrb[0].mxu0
        %8549 = vmatprep.mubr.bf16.mxu0 %v7315
        %8550 = vmatmul.mubr.bf16.gmra.mrb[0].mxu0 %v7314
        %v8551 = vpop.f32.mrb[0].mxu0
        %v8552 = vadd.f32 %v8391, %v8551
        %v8553 = vpop.f32.mrb[0].mxu0
        %v8554 = vpop.f32.mrb[0].mxu0
        %v8555 = vadd.f32 %v8394, %v8554
        %v8556 = vpop.f32.mrb[0].mxu0
        %8557 = vmatprep.mubr.bf16.mxu0 %v7324
        %8558 = vmatmul.mubr.bf16.gmra.mrb[0].mxu0 %v7323
        %v8559 = vpop.f32.mrb[0].mxu0
        %v8560 = vadd.f32 %v8399, %v8559
        %v8561 = vpop.f32.mrb[0].mxu0
        %v8562 = vpop.f32.mrb[0].mxu0
        %v8563 = vadd.f32 %v8402, %v8562
        %v8564 = vpop.f32.mrb[0].mxu0
        %8565 = vmatprep.mubr.bf16.mxu0 %v7333
        %8566 = vmatmul.mubr.bf16.gmra.mrb[0].mxu0 %v7332
        %v8567 = vpop.f32.mrb[0].mxu0
        %v8568 = vadd.f32 %v8407, %v8567
        %v8569 = vpop.f32.mrb[0].mxu0
        %v8570 = vpop.f32.mrb[0].mxu0
        %v8571 = vadd.f32 %v8410, %v8570
        %v8572 = vpop.f32.mrb[0].mxu0
        %8573 = vmatprep.mubr.bf16.mxu0 %v7342
        %8574 = vmatmul.mubr.bf16.gmra.mrb[0].mxu0 %v7341
        %v8575 = vpop.f32.mrb[0].mxu0
        %v8576 = vadd.f32 %v8415, %v8575
        %v8577 = vpop.f32.mrb[0].mxu0
        %v8578 = vpop.f32.mrb[0].mxu0
        %v8579 = vadd.f32 %v8418, %v8578
        %v8580 = vpop.f32.mrb[0].mxu0
        %8581 = vmatprep.mubr.bf16.mxu0 %v7351
        %8582 = vmatmul.mubr.bf16.gmra.mrb[0].mxu0 %v7350
        %v8583 = vpop.f32.mrb[0].mxu0
        %v8584 = vadd.f32 %v8423, %v8583
        %v8585 = vpop.f32.mrb[0].mxu0
        %v8586 = vpop.f32.mrb[0].mxu0
        %v8587 = vadd.f32 %v8426, %v8586
        %v8588 = vpop.f32.mrb[0].mxu0
        %8589 = vmatprep.mubr.bf16.mxu0 %v7360
        %8590 = vmatmul.mubr.bf16.gmra.mrb[0].mxu0 %v7359
        %v8591 = vpop.f32.mrb[0].mxu0
        %v8592 = vadd.f32 %v8431, %v8591
        %v8593 = vpop.f32.mrb[0].mxu0
        %v8594 = vpop.f32.mrb[0].mxu0
        %v8595 = vadd.f32 %v8434, %v8594
        %v8596 = vpop.f32.mrb[0].mxu0
        %8597 = vmatprep.mubr.bf16.mxu0 %v7369
        %8598 = vmatmul.mubr.bf16.gmra.mrb[0].mxu0 %v7368
        %v8599 = vpop.f32.mrb[0].mxu0
        %v8600 = vadd.f32 %v8439, %v8599
        %v8601 = vpop.f32.mrb[0].mxu0
        %v8602 = vpop.f32.mrb[0].mxu0
        %v8603 = vadd.f32 %v8442, %v8602
        %v8604 = vpop.f32.mrb[0].mxu0
        %8605 = vmatprep.mubr.bf16.mxu0 %v7378
        %8606 = vmatmul.mubr.bf16.gmra.mrb[0].mxu0 %v7377
        %v8607 = vpop.f32.mrb[0].mxu0
        %v8608 = vadd.f32 %v8447, %v8607
        %v8609 = vpop.f32.mrb[0].mxu0
        %v8610 = vpop.f32.mrb[0].mxu0
        %v8611 = vadd.f32 %v8450, %v8610
        %v8612 = vpop.f32.mrb[0].mxu0
        %8613 = vmatprep.mubr.bf16.mxu0 %v7387
        %8614 = vmatmul.mubr.bf16.gmra.mrb[0].mxu0 %v7386
        %v8615 = vpop.f32.mrb[0].mxu0
        %v8616 = vadd.f32 %v8455, %v8615
        %v8617 = vpop.f32.mrb[0].mxu0
        %v8618 = vpop.f32.mrb[0].mxu0
        %v8619 = vadd.f32 %v8458, %v8618
        %v8620 = vpop.f32.mrb[0].mxu0
        %8621 = vmatprep.mubr.bf16.mxu0 %v7396
        %8622 = vmatmul.mubr.bf16.gmra.mrb[0].mxu0 %v7395
        %v8623 = vpop.f32.mrb[0].mxu0
        %v8624 = vadd.f32 %v8463, %v8623
        %v8625 = vpop.f32.mrb[0].mxu0
        %v8626 = vpop.f32.mrb[0].mxu0
        %v8627 = vadd.f32 %v8466, %v8626
        %v8628 = vpop.f32.mrb[0].mxu0
        %8629 = vmatprep.mubr.bf16.mxu0 %v7405
        %8630 = vmatmul.mubr.bf16.gmra.mrb[0].mxu0 %v7404
        %v8631 = vpop.f32.mrb[0].mxu0
        %v8632 = vadd.f32 %v8471, %v8631
        %v8633 = vpop.f32.mrb[0].mxu0
        %v8634 = vpop.f32.mrb[0].mxu0
        %v8635 = vadd.f32 %v8474, %v8634
        %v8636 = vpop.f32.mrb[0].mxu0
        %8637 = vmatprep.mubr.bf16.mxu0 %v7414
        %8638 = vmatmul.mubr.bf16.gmra.mrb[0].mxu0 %v7413
        %v8639 = vpop.f32.mrb[0].mxu0
        %v8640 = vadd.f32 %v8479, %v8639
        %v8641 = vpop.f32.mrb[0].mxu0
        %v8642 = vpop.f32.mrb[0].mxu0
        %v8643 = vadd.f32 %v8482, %v8642
        %v8644 = vpop.f32.mrb[0].mxu0
        %8645 = vmatprep.mubr.bf16.mxu0 %v7423
        %8646 = vmatmul.mubr.bf16.gmra.mrb[0].mxu0 %v7422
        %v8647 = vpop.f32.mrb[0].mxu0
        %v8648 = vadd.f32 %v8487, %v8647
        %v8649 = vpop.f32.mrb[0].mxu0
        %v8650 = vpop.f32.mrb[0].mxu0
        %v8651 = vadd.f32 %v8490, %v8650
        %v8652 = vpop.f32.mrb[0].mxu0
        %8653 = vmatprep.mubr.bf16.mxu0 %v7432
        %8654 = vmatmul.mubr.bf16.gmra.mrb[0].mxu0 %v7431
        %v8655 = vpop.f32.mrb[0].mxu0
        %v8656 = vadd.f32 %v8495, %v8655
        %v8657 = vpop.f32.mrb[0].mxu0
        %v8658 = vpop.f32.mrb[0].mxu0
        %v8659 = vadd.f32 %v8498, %v8658
        %v8660 = vpop.f32.mrb[0].mxu0
        %8661 = vmatprep.mubr.bf16.mxu0 %v7441
        %8662 = vmatmul.mubr.bf16.gmra.mrb[0].mxu0 %v7440
        %v8663 = vpop.f32.mrb[0].mxu0
        %v8664 = vadd.f32 %v8503, %v8663
        %v8665 = vpop.f32.mrb[0].mxu0
        %v8666 = vpop.f32.mrb[0].mxu0
        %v8667 = vadd.f32 %v8506, %v8666
        %v8668 = vpop.f32.mrb[0].mxu0
        %8669 = vdwg.mxu0
        %8670 = vmatprep.subr.bf16.mxu0 0
        %8671 = vmatpush1.bf16.msra.mxu0 %v7946
        %8672 = vmatprep.subr.bf16.mxu0 0
        %8673 = vmatpush1.bf16.msra.mxu0 %v7947
        %8674 = vmatprep.subr.bf16.mxu0 0
        %8675 = vmatpush1.bf16.msra.mxu0 %v7948
        %8676 = vmatprep.subr.bf16.mxu0 0
        %8677 = vmatpush1.bf16.msra.mxu0 %v7949
        %8678 = vmatprep.subr.bf16.mxu0 0
        %8679 = vmatpush1.bf16.msra.mxu0 %v7950
        %8680 = vmatprep.subr.bf16.mxu0 0
        %8681 = vmatpush1.bf16.msra.mxu0 %v7951
        %8682 = vmatprep.subr.bf16.mxu0 0
        %8683 = vmatpush1.bf16.msra.mxu0 %v7952
        %8684 = vmatprep.subr.bf16.mxu0 0
        %8685 = vmatpush1.bf16.msra.mxu0 %v7953
        %8686 = vmatprep.subr.bf16.mxu0 0
        %8687 = vmatpush1.bf16.msra.mxu0 0
        %8688 = vmatprep.subr.bf16.mxu0 0
        %8689 = vmatpush1.bf16.msra.mxu0 0
        %8690 = vmatprep.subr.bf16.mxu0 0
        %8691 = vmatpush1.bf16.msra.mxu0 0
        %8692 = vmatprep.subr.bf16.mxu0 0
        %8693 = vmatpush1.bf16.msra.mxu0 0
        %8694 = vmatprep.subr.bf16.mxu0 0
        %8695 = vmatpush1.bf16.msra.mxu0 0
        %8696 = vmatprep.subr.bf16.mxu0 0
        %8697 = vmatpush1.bf16.msra.mxu0 0
        %8698 = vmatprep.subr.bf16.mxu0 0
        %8699 = vmatpush1.bf16.msra.mxu0 0
        %8700 = vmatprep.subr.bf16.mxu0 0
        %8701 = vmatpush1.bf16.msra.mxu0 0
        %8702 = vmatprep.mubr.bf16.mxu0 0
        %8703 = vmatmul.mubr.bf16.gmra.mrb[0].mxu0 %v7307
        %v8704 = vpop.f32.mrb[0].mxu0
        %v8705 = vadd.f32 %v8544, %v8704
        %v8706 = vpop.f32.mrb[0].mxu0
        %v8707 = vpop.f32.mrb[0].mxu0
        %v8708 = vadd.f32 %v8547, %v8707
        %v8709 = vpop.f32.mrb[0].mxu0
        %8710 = vmatprep.mubr.bf16.mxu0 0
        %8711 = vmatmul.mubr.bf16.gmra.mrb[0].mxu0 %v7316
        %v8712 = vpop.f32.mrb[0].mxu0
        %v8713 = vadd.f32 %v8552, %v8712
        %v8714 = vpop.f32.mrb[0].mxu0
        %v8715 = vpop.f32.mrb[0].mxu0
        %v8716 = vadd.f32 %v8555, %v8715
        %v8717 = vpop.f32.mrb[0].mxu0
        %8718 = vmatprep.mubr.bf16.mxu0 0
        %8719 = vmatmul.mubr.bf16.gmra.mrb[0].mxu0 %v7325
        %v8720 = vpop.f32.mrb[0].mxu0
        %v8721 = vadd.f32 %v8560, %v8720
        %v8722 = vpop.f32.mrb[0].mxu0
        %v8723 = vpop.f32.mrb[0].mxu0
        %v8724 = vadd.f32 %v8563, %v8723
        %v8725 = vpop.f32.mrb[0].mxu0
        %8726 = vmatprep.mubr.bf16.mxu0 0
        %8727 = vmatmul.mubr.bf16.gmra.mrb[0].mxu0 %v7334
        %v8728 = vpop.f32.mrb[0].mxu0
        %v8729 = vadd.f32 %v8568, %v8728
        %v8730 = vpop.f32.mrb[0].mxu0
        %v8731 = vpop.f32.mrb[0].mxu0
        %v8732 = vadd.f32 %v8571, %v8731
        %v8733 = vpop.f32.mrb[0].mxu0
        %8734 = vmatprep.mubr.bf16.mxu0 0
        %8735 = vmatmul.mubr.bf16.gmra.mrb[0].mxu0 %v7343
        %v8736 = vpop.f32.mrb[0].mxu0
        %v8737 = vadd.f32 %v8576, %v8736
        %v8738 = vpop.f32.mrb[0].mxu0
        %v8739 = vpop.f32.mrb[0].mxu0
        %v8740 = vadd.f32 %v8579, %v8739
        %v8741 = vpop.f32.mrb[0].mxu0
        %8742 = vmatprep.mubr.bf16.mxu0 0
        %8743 = vmatmul.mubr.bf16.gmra.mrb[0].mxu0 %v7352
        %v8744 = vpop.f32.mrb[0].mxu0
        %v8745 = vadd.f32 %v8584, %v8744
        %v8746 = vpop.f32.mrb[0].mxu0
        %v8747 = vpop.f32.mrb[0].mxu0
        %v8748 = vadd.f32 %v8587, %v8747
        %v8749 = vpop.f32.mrb[0].mxu0
        %8750 = vmatprep.mubr.bf16.mxu0 0
        %8751 = vmatmul.mubr.bf16.gmra.mrb[0].mxu0 %v7361
        %v8752 = vpop.f32.mrb[0].mxu0
        %v8753 = vadd.f32 %v8592, %v8752
        %v8754 = vpop.f32.mrb[0].mxu0
        %v8755 = vpop.f32.mrb[0].mxu0
        %v8756 = vadd.f32 %v8595, %v8755
        %v8757 = vpop.f32.mrb[0].mxu0
        %8758 = vmatprep.mubr.bf16.mxu0 0
        %8759 = vmatmul.mubr.bf16.gmra.mrb[0].mxu0 %v7370
        %v8760 = vpop.f32.mrb[0].mxu0
        %v8761 = vadd.f32 %v8600, %v8760
        %v8762 = vpop.f32.mrb[0].mxu0
        %v8763 = vpop.f32.mrb[0].mxu0
        %v8764 = vadd.f32 %v8603, %v8763
        %v8765 = vpop.f32.mrb[0].mxu0
        %8766 = vmatprep.mubr.bf16.mxu0 0
        %8767 = vmatmul.mubr.bf16.gmra.mrb[0].mxu0 %v7379
        %v8768 = vpop.f32.mrb[0].mxu0
        %v8769 = vadd.f32 %v8608, %v8768
        %v8770 = vpop.f32.mrb[0].mxu0
        %v8771 = vpop.f32.mrb[0].mxu0
        %v8772 = vadd.f32 %v8611, %v8771
        %v8773 = vpop.f32.mrb[0].mxu0
        %8774 = vmatprep.mubr.bf16.mxu0 0
        %8775 = vmatmul.mubr.bf16.gmra.mrb[0].mxu0 %v7388
        %v8776 = vpop.f32.mrb[0].mxu0
        %v8777 = vadd.f32 %v8616, %v8776
        %v8778 = vpop.f32.mrb[0].mxu0
        %v8779 = vpop.f32.mrb[0].mxu0
        %v8780 = vadd.f32 %v8619, %v8779
        %v8781 = vpop.f32.mrb[0].mxu0
        %8782 = vmatprep.mubr.bf16.mxu0 0
        %8783 = vmatmul.mubr.bf16.gmra.mrb[0].mxu0 %v7397
        %v8784 = vpop.f32.mrb[0].mxu0
        %v8785 = vadd.f32 %v8624, %v8784
        %v8786 = vpop.f32.mrb[0].mxu0
        %v8787 = vpop.f32.mrb[0].mxu0
        %v8788 = vadd.f32 %v8627, %v8787
        %v8789 = vpop.f32.mrb[0].mxu0
        %8790 = vmatprep.mubr.bf16.mxu0 0
        %8791 = vmatmul.mubr.bf16.gmra.mrb[0].mxu0 %v7406
        %v8792 = vpop.f32.mrb[0].mxu0
        %v8793 = vadd.f32 %v8632, %v8792
        %v8794 = vpop.f32.mrb[0].mxu0
        %v8795 = vpop.f32.mrb[0].mxu0
        %v8796 = vadd.f32 %v8635, %v8795
        %v8797 = vpop.f32.mrb[0].mxu0
        %8798 = vmatprep.mubr.bf16.mxu0 0
        %8799 = vmatmul.mubr.bf16.gmra.mrb[0].mxu0 %v7415
        %v8800 = vpop.f32.mrb[0].mxu0
        %v8801 = vadd.f32 %v8640, %v8800
        %v8802 = vpop.f32.mrb[0].mxu0
        %v8803 = vpop.f32.mrb[0].mxu0
        %v8804 = vadd.f32 %v8643, %v8803
        %v8805 = vpop.f32.mrb[0].mxu0
        %8806 = vmatprep.mubr.bf16.mxu0 0
        %8807 = vmatmul.mubr.bf16.gmra.mrb[0].mxu0 %v7424
        %v8808 = vpop.f32.mrb[0].mxu0
        %v8809 = vadd.f32 %v8648, %v8808
        %v8810 = vpop.f32.mrb[0].mxu0
        %v8811 = vpop.f32.mrb[0].mxu0
        %v8812 = vadd.f32 %v8651, %v8811
        %v8813 = vpop.f32.mrb[0].mxu0
        %8814 = vmatprep.mubr.bf16.mxu0 0
        %8815 = vmatmul.mubr.bf16.gmra.mrb[0].mxu0 %v7433
        %v8816 = vpop.f32.mrb[0].mxu0
        %v8817 = vadd.f32 %v8656, %v8816
        %v8818 = vpop.f32.mrb[0].mxu0
        %v8819 = vpop.f32.mrb[0].mxu0
        %v8820 = vadd.f32 %v8659, %v8819
        %v8821 = vpop.f32.mrb[0].mxu0
        %8822 = vmatprep.mubr.bf16.mxu0 0
        %8823 = vmatmul.mubr.bf16.gmra.mrb[0].mxu0 %v7442
        %v8824 = vpop.f32.mrb[0].mxu0
        %v8825 = vadd.f32 %v8664, %v8824
        %v8826 = vpop.f32.mrb[0].mxu0
        %v8827 = vpop.f32.mrb[0].mxu0
        %v8828 = vadd.f32 %v8667, %v8827
        %v8829 = vpop.f32.mrb[0].mxu0
        %8830 = vdwg.mxu0
        %vm8831 = vcmp.ge.f32.partialorder %v8705, 0.0
        %vm8832 = vcmp.ge.f32.partialorder %v8708, 0.0
        %vm8833 = vcmp.ge.f32.partialorder %v8713, 0.0
        %vm8834 = vcmp.ge.f32.partialorder %v8716, 0.0
        %vm8835 = vcmp.ge.f32.partialorder %v8721, 0.0
        %vm8836 = vcmp.ge.f32.partialorder %v8724, 0.0
        %vm8837 = vcmp.ge.f32.partialorder %v8729, 0.0
        %vm8838 = vcmp.ge.f32.partialorder %v8732, 0.0
        %vm8839 = vcmp.ge.f32.partialorder %v8737, 0.0
        %vm8840 = vcmp.ge.f32.partialorder %v8740, 0.0
        %vm8841 = vcmp.ge.f32.partialorder %v8745, 0.0
        %vm8842 = vcmp.ge.f32.partialorder %v8748, 0.0
        %vm8843 = vcmp.ge.f32.partialorder %v8753, 0.0
        %vm8844 = vcmp.ge.f32.partialorder %v8756, 0.0
        %vm8845 = vcmp.ge.f32.partialorder %v8761, 0.0
        %vm8846 = vcmp.ge.f32.partialorder %v8764, 0.0
        %vm8847 = vcmp.ge.f32.partialorder %v8769, 0.0
        %vm8848 = vcmp.ge.f32.partialorder %v8772, 0.0
        %vm8849 = vcmp.ge.f32.partialorder %v8777, 0.0
        %vm8850 = vcmp.ge.f32.partialorder %v8780, 0.0
        %vm8851 = vcmp.ge.f32.partialorder %v8785, 0.0
        %vm8852 = vcmp.ge.f32.partialorder %v8788, 0.0
        %vm8853 = vcmp.ge.f32.partialorder %v8793, 0.0
        %vm8854 = vcmp.ge.f32.partialorder %v8796, 0.0
        %vm8855 = vcmp.ge.f32.partialorder %v8801, 0.0
        %vm8856 = vcmp.ge.f32.partialorder %v8804, 0.0
        %vm8857 = vcmp.ge.f32.partialorder %v8809, 0.0
        %vm8858 = vcmp.ge.f32.partialorder %v8812, 0.0
        %vm8859 = vcmp.ge.f32.partialorder %v8817, 0.0
        %vm8860 = vcmp.ge.f32.partialorder %v8820, 0.0
        %vm8861 = vcmp.ge.f32.partialorder %v8825, 0.0
        %vm8862 = vcmp.ge.f32.partialorder %v8828, 0.0
        %v8863 = vmul.f32 %v8705, 0.01
        %v8864 = vmul.f32 %v8708, 0.01
        %v8865 = vmul.f32 %v8713, 0.01
        %v8866 = vmul.f32 %v8716, 0.01
        %v8867 = vmul.f32 %v8721, 0.01
        %v8868 = vmul.f32 %v8724, 0.01
        %v8869 = vmul.f32 %v8729, 0.01
        %v8870 = vmul.f32 %v8732, 0.01
        %v8871 = vmul.f32 %v8737, 0.01
        %v8872 = vmul.f32 %v8740, 0.01
        %v8873 = vmul.f32 %v8745, 0.01
        %v8874 = vmul.f32 %v8748, 0.01
        %v8875 = vmul.f32 %v8753, 0.01
        %v8876 = vmul.f32 %v8756, 0.01
        %v8877 = vmul.f32 %v8761, 0.01
        %v8878 = vmul.f32 %v8764, 0.01
        %v8879 = vmul.f32 %v8769, 0.01
        %v8880 = vmul.f32 %v8772, 0.01
        %v8881 = vmul.f32 %v8777, 0.01
        %v8882 = vmul.f32 %v8780, 0.01
        %v8883 = vmul.f32 %v8785, 0.01
        %v8884 = vmul.f32 %v8788, 0.01
        %v8885 = vmul.f32 %v8793, 0.01
        %v8886 = vmul.f32 %v8796, 0.01
        %v8887 = vmul.f32 %v8801, 0.01
        %v8888 = vmul.f32 %v8804, 0.01
        %v8889 = vmul.f32 %v8809, 0.01
        %v8890 = vmul.f32 %v8812, 0.01
        %v8891 = vmul.f32 %v8817, 0.01
        %v8892 = vmul.f32 %v8820, 0.01
        %v8893 = vmul.f32 %v8825, 0.01
        %v8894 = vmul.f32 %v8828, 0.01
        %v8895 = vsel %vm8831, %v8705, %v8863
        %v8896 = vsel %vm8832, %v8708, %v8864
        %v8897 = vsel %vm8833, %v8713, %v8865
        %v8898 = vsel %vm8834, %v8716, %v8866
        %v8899 = vsel %vm8835, %v8721, %v8867
        %v8900 = vsel %vm8836, %v8724, %v8868
        %v8901 = vsel %vm8837, %v8729, %v8869
        %v8902 = vsel %vm8838, %v8732, %v8870
        %v8903 = vsel %vm8839, %v8737, %v8871
        %v8904 = vsel %vm8840, %v8740, %v8872
        %v8905 = vsel %vm8841, %v8745, %v8873
        %v8906 = vsel %vm8842, %v8748, %v8874
        %v8907 = vsel %vm8843, %v8753, %v8875
        %v8908 = vsel %vm8844, %v8756, %v8876
        %v8909 = vsel %vm8845, %v8761, %v8877
        %v8910 = vsel %vm8846, %v8764, %v8878
        %v8911 = vsel %vm8847, %v8769, %v8879
        %v8912 = vsel %vm8848, %v8772, %v8880
        %v8913 = vsel %vm8849, %v8777, %v8881
        %v8914 = vsel %vm8850, %v8780, %v8882
        %v8915 = vsel %vm8851, %v8785, %v8883
        %v8916 = vsel %vm8852, %v8788, %v8884
        %v8917 = vsel %vm8853, %v8793, %v8885
        %v8918 = vsel %vm8854, %v8796, %v8886
        %v8919 = vsel %vm8855, %v8801, %v8887
        %v8920 = vsel %vm8856, %v8804, %v8888
        %v8921 = vsel %vm8857, %v8809, %v8889
        %v8922 = vsel %vm8858, %v8812, %v8890
        %v8923 = vsel %vm8859, %v8817, %v8891
        %v8924 = vsel %vm8860, %v8820, %v8892
        %v8925 = vsel %vm8861, %v8825, %v8893
        %v8926 = vsel %vm8862, %v8828, %v8894
        %8927 = vst [vmem:[%s271] sm:$0xff] %v8895
        %8928 = vst [vmem:[%s271 + $0x8] sm:$0xff] %v8896
        %8929 = vst [vmem:[%s271 + $0x10] sm:$0xff] %v8897
        %8930 = vst [vmem:[%s271 + $0x18] sm:$0xff] %v8898
        %8931 = vst [vmem:[%s271 + $0x20] sm:$0xff] %v8899
        %8932 = vst [vmem:[%s271 + $0x28] sm:$0xff] %v8900
        %8933 = vst [vmem:[%s271 + $0x30] sm:$0xff] %v8901
        %8934 = vst [vmem:[%s271 + $0x38] sm:$0xff] %v8902
        %8935 = vst [vmem:[%s271 + $0x40] sm:$0xff] %v8903
        %8936 = vst [vmem:[%s271 + $0x48] sm:$0xff] %v8904
        %8937 = vst [vmem:[%s271 + $0x50] sm:$0xff] %v8905
        %8938 = vst [vmem:[%s271 + $0x58] sm:$0xff] %v8906
        %8939 = vst [vmem:[%s271 + $0x60] sm:$0xff] %v8907
        %8940 = vst [vmem:[%s271 + $0x68] sm:$0xff] %v8908
        %8941 = vst [vmem:[%s271 + $0x70] sm:$0xff] %v8909
        %8942 = vst [vmem:[%s271 + $0x78] sm:$0xff] %v8910
        %8943 = vst [vmem:[%s271 + $0x80] sm:$0xff] %v8911
        %8944 = vst [vmem:[%s271 + $0x88] sm:$0xff] %v8912
        %8945 = vst [vmem:[%s271 + $0x90] sm:$0xff] %v8913
        %8946 = vst [vmem:[%s271 + $0x98] sm:$0xff] %v8914
        %8947 = vst [vmem:[%s271 + $0xa0] sm:$0xff] %v8915
        %8948 = vst [vmem:[%s271 + $0xa8] sm:$0xff] %v8916
        %8949 = vst [vmem:[%s271 + $0xb0] sm:$0xff] %v8917
        %8950 = vst [vmem:[%s271 + $0xb8] sm:$0xff] %v8918
        %8951 = vst [vmem:[%s271 + $0xc0] sm:$0xff] %v8919
        %8952 = vst [vmem:[%s271 + $0xc8] sm:$0xff] %v8920
        %8953 = vst [vmem:[%s271 + $0xd0] sm:$0xff] %v8921
        %8954 = vst [vmem:[%s271 + $0xd8] sm:$0xff] %v8922
        %8955 = vst [vmem:[%s271 + $0xe0] sm:$0xff] %v8923
        %8956 = vst [vmem:[%s271 + $0xe8] sm:$0xff] %v8924
        %8957 = vst [vmem:[%s271 + $0xf0] sm:$0xff] %v8925
        %8958 = vst [vmem:[%s271 + $0xf8] sm:$0xff] %v8926
        %s8959 = sand.u32 %s141, 1
        %s8960 = scalar_lea.sflag [#allocation8], %s8959
        %s8961 = sand.u32 %s141, 1
        %s8962 = smul.addr %s8961, 256
        %s8963 = scalar_lea.vmem [#allocation12], %s8962
        // Predicated region
        $region53: #{tpu_custom_call.1} parent=39 // pred_check
          %p8964 = pneg %p151
        $region54: #{tpu_custom_call.1} parent=39 // pred_check_branch
          %8966 = sbr.rel (%p8964) target = $region56
        $region55: #{tpu_custom_call.1} parent=39 // pred_region
          %s8968 = ssub.s32 4096, 4096
          %8969 = vsyncadd %s8960, %s8968
          %s8970 = smul.addr %s23, 32
          %s8971 = smul.addr %s8970, 128
          %s8972 = scalar_lea.hbm %s5, %s8971
          %s8973 = sshll.u32 %s8963, 4
          %s8974 = int_to_ptr.vmem [resolvable:$true] %s8973
          %8979 = dma.vmem_to_hbm [thread:$0]  %s8974, 4096, %s8972, %s8960, 128, 128, 8
        $region56: #{tpu_custom_call.1} parent=39 // pred_fallthru
          _
      $region40: #{tpu_custom_call.1} parent=5 // pred_fallthru
        _
      %p8980 = scmp.le.s32.totalorder 2, %s18
      // Predicated region
      $region57: #{tpu_custom_call.1} parent=5 // pred_check
        %p8981 = pneg %p8980
      $region58: #{tpu_custom_call.1} parent=5 // pred_check_branch
        %8983 = sbr.rel (%p8981) target = $region60
      $region59: #{tpu_custom_call.1} parent=5 // pred_region
        %s8984 = ssub.s32 %s18, 2
        // Predicated region
        $region61: #{tpu_custom_call.1} parent=59 // pred_check
          %p8985 = pneg %p157
        $region62: #{tpu_custom_call.1} parent=59 // pred_check_branch
          %8987 = sbr.rel (%p8985) target = $region64
        $region63: #{tpu_custom_call.1} parent=59 // pred_region
          %s8988 = sand.u32 %s142, 1
          %s8989 = scalar_lea.sflag [#allocation8], %s8988
          %s8990 = sand.u32 %s142, 1
          %s8991 = smul.addr %s8990, 256
          %s8992 = scalar_lea.vmem [#allocation12], %s8991
          %8993 = dma.done %s8989, 4096
        $region64: #{tpu_custom_call.1} parent=59 // pred_fallthru
          _
      $region60: #{tpu_custom_call.1} parent=5 // pred_fallthru
        _
    $region6: #{tpu_custom_call.1} parent=1 // loop_footer
      %s22 = sadd.s32 1, %s18
    $region7: #{tpu_custom_call.1} parent=1 // loop_footer_branch
      %17 = sbr.rel target = $region3
    $region8: #{tpu_custom_call.1} parent=1 // loop_exit
      _
    %8994 = vsyncpa [#allocation7], 1
    %s8995 = scalar_lea.sflag [#allocation7], 1
    %8996 = vsyncpa %s8995, 1
    %8997 = vsyncpa [#allocation10], 1
    %8998 = vsyncpa [#allocation8], 1
    %s8999 = scalar_lea.sflag [#allocation8], 1
    %9000 = vsyncpa %s8999, 1

</llo_original>
